<compile_context>
chip_gen: v6e
topology: v6e:2x2x1
jax: 0.10.0
libtpu: 0.0.40
codegen_flags: <defaults>
</compile_context>

<pallas_src>
import math

import jax
import jax.numpy as jnp
import numpy as np
from jax.experimental import pallas as pl
from jax.experimental.pallas import tpu as pltpu

NUM_HEADS = 4          # attention_config.num_attention_heads
LN_EPS = 1e-12         # BertConfig default layer_norm_eps
B_TILE = 8             # batch elements processed per grid step


def _feature_extractor_kernel(
    w_ref,        # SMEM (L,)           softmax(layer weights)
    x_ref,        # VMEM (BT, L, S, H)  stacked hidden states, bf16
    mbias_ref,    # VMEM (BT, 1, S)     attention mask (float) for the score bias
    mpool_ref,    # VMEM (BT, S, 1)     attention mask (float) for mean pooling
    wq_ref, bq_ref,   # (NH, H, HD), (NH, 1, HD)  (scale folded in)
    wk_ref, bk_ref,   # (NH, H, HD), (NH, 1, HD)
    wv_ref, bv_ref,   # (NH, H, HD), (NH, 1, HD)
    wo_ref,           # (NH, HD, H)
    bo_ref, gamma_ref, beta_ref,   # (1, H) each
    out_ref,      # VMEM (BT, H)
):
    BT, L, S, H = x_ref.shape
    HD = H // NUM_HEADS
    BTS = BT * S

    # ---- 1) softmax-weighted sum over transformer layers ----------------
    # 4 independent accumulators instead of a 12-deep dependent add chain.
    n_acc = min(4, L)
    accs = [None] * n_acc
    for l in range(L):                       # L is static -> unrolled
        term = w_ref[l] * x_ref[:, l].astype(jnp.float32)   # (BT, S, H)
        a = l % n_acc
        accs[a] = term if accs[a] is None else accs[a] + term
    enc = accs[0]
    for a in accs[1:]:
        enc = enc + a                        # (BT, S, H)
    enc2d = enc.reshape(BTS, H)              # free: only leading dims merge

    # extended attention mask -> additive bias, broadcast over query rows
    attn_bias = (1.0 - mbias_ref[...]) * -10000.0            # (BT, 1, S)

    # ---- 2) BertAttention (per-head, no lane slicing / concat / .T) -----
    hdd = enc2d + bo_ref[...]                # residual + output-proj bias
    for h in range(NUM_HEADS):               # static unroll over heads
        qh = (jnp.dot(enc2d, wq_ref[h], preferred_element_type=jnp.float32)
              + bq_ref[h]).reshape(BT, S, HD)
        kh = (jnp.dot(enc2d, wk_ref[h], preferred_element_type=jnp.float32)
              + bk_ref[h]).reshape(BT, S, HD)
        vh = (jnp.dot(enc2d, wv_ref[h], preferred_element_type=jnp.float32)
              + bv_ref[h]).reshape(BT, S, HD)

        s = jnp.einsum("bqd,bkd->bqk", qh, kh,
                       preferred_element_type=jnp.float32)   # (BT, S, S)
        s = s + attn_bias
        s = s - jnp.max(s, axis=-1, keepdims=True)
        p = jnp.exp(s)
        p = p * pl.reciprocal(jnp.sum(p, axis=-1, keepdims=True), approx=True)

        ctx = jnp.einsum("bqk,bkd->bqd", p, vh,
                         preferred_element_type=jnp.float32)  # (BT, S, HD)
        # per-head accumulation into the output projection (no concat)
        hdd = hdd + jnp.dot(ctx.reshape(BTS, HD), wo_ref[h],
                            preferred_element_type=jnp.float32)

    # BertSelfOutput LayerNorm (eps=1e-12)
    mu = jnp.mean(hdd, axis=-1, keepdims=True)
    var = jnp.mean(jnp.square(hdd - mu), axis=-1, keepdims=True)
    ln = (hdd - mu) * jax.lax.rsqrt(var + LN_EPS)
    ln = ln * gamma_ref[...] + beta_ref[...]                  # (BTS, H)

    # ---- 3) masked mean pooling over the sequence axis -------------------
    ln3 = ln.reshape(BT, S, H)
    m = mpool_ref[...]                                        # (BT, S, 1)
    sum_emb = jnp.sum(ln3 * m, axis=1)                        # (BT, H)
    cnt = jnp.maximum(jnp.sum(m, axis=1), 1e-9)               # (BT, 1)
    out_ref[...] = sum_emb * pl.reciprocal(cnt, approx=True)


def feature_extractor_forward(hidden_states, attention_mask, params, *, b_tile=B_TILE):
    """hidden_states: (L, B, S, H) f32, attention_mask: (B, S) -> (B, H) f32."""
    L, B, S, H = hidden_states.shape
    HD = H // NUM_HEADS
    scale = 1.0 / math.sqrt(HD)

    # ---- parameter / input preprocessing (tiny, done once per call) ----
    w_soft = jax.nn.softmax(params["layer_weights"]).astype(jnp.float32)   # (L,)

    # (L,B,S,H) f32 -> (B,L,S,H) bf16: contiguous per-batch HBM slab, half bytes.
    # TODO(synk): in a real pipeline the backbone should hand us this layout/dtype
    # directly so this transpose+cast does not cost an extra HBM pass.
    x = jnp.transpose(hidden_states, (1, 0, 2, 3)).astype(jnp.bfloat16)

    maskf = attention_mask.astype(jnp.float32)
    mask_bias = maskf.reshape(B, 1, S)     # layout for the additive score bias
    mask_pool = maskf.reshape(B, S, 1)     # layout for masked mean pooling

    # Per-head weight splits; fold 1/sqrt(HD) into the Q projection.
    wq = (params["wq"] * scale).reshape(H, NUM_HEADS, HD).transpose(1, 0, 2)
    wk = params["wk"].reshape(H, NUM_HEADS, HD).transpose(1, 0, 2)
    wv = params["wv"].reshape(H, NUM_HEADS, HD).transpose(1, 0, 2)
    bq = (params["bq"] * scale).reshape(NUM_HEADS, 1, HD)
    bk = params["bk"].reshape(NUM_HEADS, 1, HD)
    bv = params["bv"].reshape(NUM_HEADS, 1, HD)
    wo = params["wo"].reshape(NUM_HEADS, HD, H)
    bo = params["bo"].reshape(1, H)
    gamma = params["ln_gamma"].reshape(1, H)
    beta = params["ln_beta"].reshape(1, H)

    # Pad batch up to a multiple of the batch tile (padded rows are harmless:
    # zero hidden states + zero mask -> finite garbage that we slice off).
    BP = -(-B // b_tile) * b_tile
    if BP != B:
        pad = BP - B
        x = jnp.pad(x, ((0, pad), (0, 0), (0, 0), (0, 0)))
        mask_bias = jnp.pad(mask_bias, ((0, pad), (0, 0), (0, 0)))
        mask_pool = jnp.pad(mask_pool, ((0, pad), (0, 0), (0, 0)))

    def rep(arr):  # full-array block, replicated across the grid
        nd = arr.ndim
        return pl.BlockSpec(arr.shape, lambda b, _nd=nd: (0,) * _nd)

    # TODO(synk): for production BERT sizes (S~512, H~768) stream L as a grid
    # reduction axis (or tile S) and raise vmem_limit_bytes instead of keeping
    # the whole (L,S,H) stack resident per batch tile (v7x has 64 MiB VMEM).
    out = pl.pallas_call(
        _feature_extractor_kernel,
        out_shape=jax.ShapeDtypeStruct((BP, H), jnp.float32),
        grid=(BP // b_tile,),
        in_specs=[
            pl.BlockSpec(memory_space=pltpu.MemorySpace.SMEM),          # w_soft
            pl.BlockSpec((b_tile, L, S, H), lambda b: (b, 0, 0, 0)),    # hidden states
            pl.BlockSpec((b_tile, 1, S), lambda b: (b, 0, 0)),          # mask (bias)
            pl.BlockSpec((b_tile, S, 1), lambda b: (b, 0, 0)),          # mask (pool)
            rep(wq), rep(bq), rep(wk), rep(bk), rep(wv), rep(bv),
            rep(wo), rep(bo), rep(gamma), rep(beta),
        ],
        out_specs=pl.BlockSpec((b_tile, H), lambda b: (b, 0)),
        compiler_params=pltpu.CompilerParams(
            dimension_semantics=("parallel",),
        ),
    )(
        w_soft, x, mask_bias, mask_pool,
        wq, bq, wk, bk, wv, bv, wo, bo, gamma, beta,
    )
    return out[:B]


def reference_forward(hidden_states, attention_mask, params):
    """Pure-JAX reference for checking kernel correctness."""
    L, B, S, H = hidden_states.shape
    HD = H // NUM_HEADS
    w = jax.nn.softmax(params["layer_weights"])
    enc = jnp.einsum("l,lbsh->bsh", w, hidden_states)
    mask = attention_mask.astype(jnp.float32)
    bias = (1.0 - mask)[:, None, None, :] * -10000.0

    def proj(x, W, b):
        return x @ W + b

    q = proj(enc, params["wq"], params["bq"]).reshape(B, S, NUM_HEADS, HD).transpose(0, 2, 1, 3)
    k = proj(enc, params["wk"], params["bk"]).reshape(B, S, NUM_HEADS, HD).transpose(0, 2, 1, 3)
    v = proj(enc, params["wv"], params["bv"]).reshape(B, S, NUM_HEADS, HD).transpose(0, 2, 1, 3)
    s = jnp.einsum("bhqd,bhkd->bhqk", q, k) / math.sqrt(HD) + bias
    p = jax.nn.softmax(s, axis=-1)
    ctx = jnp.einsum("bhqk,bhkd->bhqd", p, v).transpose(0, 2, 1, 3).reshape(B, S, H)
    attn_out = ctx @ params["wo"] + params["bo"]
    hdd = attn_out + enc
    mu = jnp.mean(hdd, axis=-1, keepdims=True)
    var = jnp.mean((hdd - mu) ** 2, axis=-1, keepdims=True)
    ln = (hdd - mu) * jax.lax.rsqrt(var + LN_EPS) * params["ln_gamma"] + params["ln_beta"]
    m = mask[..., None]
    sum_emb = jnp.sum(ln * m, axis=1)
    sum_mask = jnp.clip(jnp.sum(m, axis=1), 1e-9, None)
    return sum_emb / sum_mask


def init_params(key, hidden_size, num_layers_in_head):
    H, L = hidden_size, num_layers_in_head
    ks = jax.random.split(key, 8)
    std = 0.02
    return {
        # torch.linspace(-5, 5, L) as in FeatureExtractor.__init__
        "layer_weights": jnp.linspace(-5.0, 5.0, L).astype(jnp.float32),
        "wq": std * jax.random.normal(ks[0], (H, H), jnp.float32),
        "bq": std * jax.random.normal(ks[1], (H,), jnp.float32),
        "wk": std * jax.random.normal(ks[2], (H, H), jnp.float32),
        "bk": std * jax.random.normal(ks[3], (H,), jnp.float32),
        "wv": std * jax.random.normal(ks[4], (H, H), jnp.float32),
        "bv": std * jax.random.normal(ks[5], (H,), jnp.float32),
        "wo": std * jax.random.normal(ks[6], (H, H), jnp.float32),
        "bo": std * jax.random.normal(ks[7], (H,), jnp.float32),
        "ln_gamma": jnp.ones((H,), jnp.float32),
        "ln_beta": jnp.zeros((H,), jnp.float32),
        # TODO(synk): self.classifier (Linear(H, num_targets)) is initialized in
        # the PyTorch module but never used in forward(), so it is omitted here.
    }


if __name__ == "__main__":
    L, B, S, H = 12, 2, 8, 32      # num_layers_in_head=12, hidden_size=32 (4 heads x 8)

    key = jax.random.PRNGKey(0)
    k_params, k_x = jax.random.split(key)
    params = init_params(k_params, H, L)

    hidden_states = jax.random.normal(k_x, (L, B, S, H), jnp.float32)
    attention_mask = jnp.array(
        [[1, 1, 1, 1, 1, 1, 1, 1],
         [1, 1, 1, 1, 1, 0, 0, 0]], dtype=jnp.float32)

    out = feature_extractor_forward(hidden_states, attention_mask, params)
    out = jax.block_until_ready(out)

    # Reference sees the same bf16-quantized activations the kernel consumes;
    # slightly relaxed tolerance covers the approx-EUP reciprocals.
    hs_q = hidden_states.astype(jnp.bfloat16).astype(jnp.float32)
    ref = reference_forward(hs_q, attention_mask, params)
    np.testing.assert_allclose(np.asarray(out), np.asarray(ref), atol=2e-3, rtol=2e-3)

    print("KERNEL_OK")
</pallas_src>

<mosaic_0001>
module attributes {stable_mosaic.version = 11 : i64} {
  func.func @_feature_extractor_kernel(%arg0: i32, %arg1: memref<12xf32, #tpu.memory_space<smem>>, %arg2: memref<8x12x8x32xbf16, #tpu.memory_space<vmem>>, %arg3: memref<8x1x8xf32, #tpu.memory_space<vmem>>, %arg4: memref<8x8x1xf32, #tpu.memory_space<vmem>>, %arg5: memref<4x32x8xf32, #tpu.memory_space<vmem>>, %arg6: memref<4x1x8xf32, #tpu.memory_space<vmem>>, %arg7: memref<4x32x8xf32, #tpu.memory_space<vmem>>, %arg8: memref<4x1x8xf32, #tpu.memory_space<vmem>>, %arg9: memref<4x32x8xf32, #tpu.memory_space<vmem>>, %arg10: memref<4x1x8xf32, #tpu.memory_space<vmem>>, %arg11: memref<4x8x32xf32, #tpu.memory_space<vmem>>, %arg12: memref<1x32xf32, #tpu.memory_space<vmem>>, %arg13: memref<1x32xf32, #tpu.memory_space<vmem>>, %arg14: memref<1x32xf32, #tpu.memory_space<vmem>>, %arg15: memref<8x32xf32, #tpu.memory_space<vmem>>) attributes {dimension_semantics = [#tpu.dimension_semantics<parallel>], iteration_bounds = array<i64: 1>, scalar_prefetch = 0 : i64, scratch_operands = 0 : i64, tpu.core_type = #tpu.core_type<tc>, window_params = [{transform_indices = @transform_0, window_bounds = array<i64: 12>}, {transform_indices = @transform_1, window_bounds = array<i64: 8, 12, 8, 32>}, {transform_indices = @transform_2, window_bounds = array<i64: 8, 1, 8>}, {transform_indices = @transform_3, window_bounds = array<i64: 8, 8, 1>}, {pipeline_mode = #tpu.pipeline_mode<synchronous>, transform_indices = @transform_4, window_bounds = array<i64: 4, 32, 8>}, {pipeline_mode = #tpu.pipeline_mode<synchronous>, transform_indices = @transform_5, window_bounds = array<i64: 4, 1, 8>}, {pipeline_mode = #tpu.pipeline_mode<synchronous>, transform_indices = @transform_6, window_bounds = array<i64: 4, 32, 8>}, {pipeline_mode = #tpu.pipeline_mode<synchronous>, transform_indices = @transform_7, window_bounds = array<i64: 4, 1, 8>}, {pipeline_mode = #tpu.pipeline_mode<synchronous>, transform_indices = @transform_8, window_bounds = array<i64: 4, 32, 8>}, {pipeline_mode = #tpu.pipeline_mode<synchronous>, transform_indices = @transform_9, window_bounds = array<i64: 4, 1, 8>}, {pipeline_mode = #tpu.pipeline_mode<synchronous>, transform_indices = @transform_10, window_bounds = array<i64: 4, 8, 32>}, {pipeline_mode = #tpu.pipeline_mode<synchronous>, transform_indices = @transform_11, window_bounds = array<i64: 1, 32>}, {pipeline_mode = #tpu.pipeline_mode<synchronous>, transform_indices = @transform_12, window_bounds = array<i64: 1, 32>}, {pipeline_mode = #tpu.pipeline_mode<synchronous>, transform_indices = @transform_13, window_bounds = array<i64: 1, 32>}, {transform_indices = @transform_14, window_bounds = array<i64: 8, 32>}]} {
    %c0 = arith.constant 0 : index
    %0 = memref.load %arg1[%c0] : memref<12xf32, #tpu.memory_space<smem>>
    %c0_0 = arith.constant 0 : index
    %c0_1 = arith.constant 0 : index
    %c0_2 = arith.constant 0 : index
    %c0_3 = arith.constant 0 : index
    %1 = vector.load %arg2[%c0_0, %c0_1, %c0_2, %c0_3] : memref<8x12x8x32xbf16, #tpu.memory_space<vmem>>, vector<8x1x8x32xbf16>
    %2 = vector.shape_cast %1 : vector<8x1x8x32xbf16> to vector<8x8x32xbf16>
    %3 = arith.extf %2 : vector<8x8x32xbf16> to vector<8x8x32xf32>
    %4 = vector.broadcast %0 : f32 to vector<8x8x32xf32>
    %5 = arith.mulf %4, %3 : vector<8x8x32xf32>
    %c1 = arith.constant 1 : index
    %6 = memref.load %arg1[%c1] : memref<12xf32, #tpu.memory_space<smem>>
    %c0_4 = arith.constant 0 : index
    %c1_5 = arith.constant 1 : index
    %c0_6 = arith.constant 0 : index
    %c0_7 = arith.constant 0 : index
    %7 = vector.load %arg2[%c0_4, %c1_5, %c0_6, %c0_7] : memref<8x12x8x32xbf16, #tpu.memory_space<vmem>>, vector<8x1x8x32xbf16>
    %8 = vector.shape_cast %7 : vector<8x1x8x32xbf16> to vector<8x8x32xbf16>
    %9 = arith.extf %8 : vector<8x8x32xbf16> to vector<8x8x32xf32>
    %10 = vector.broadcast %6 : f32 to vector<8x8x32xf32>
    %11 = arith.mulf %10, %9 : vector<8x8x32xf32>
    %c2 = arith.constant 2 : index
    %12 = memref.load %arg1[%c2] : memref<12xf32, #tpu.memory_space<smem>>
    %c0_8 = arith.constant 0 : index
    %c2_9 = arith.constant 2 : index
    %c0_10 = arith.constant 0 : index
    %c0_11 = arith.constant 0 : index
    %13 = vector.load %arg2[%c0_8, %c2_9, %c0_10, %c0_11] : memref<8x12x8x32xbf16, #tpu.memory_space<vmem>>, vector<8x1x8x32xbf16>
    %14 = vector.shape_cast %13 : vector<8x1x8x32xbf16> to vector<8x8x32xbf16>
    %15 = arith.extf %14 : vector<8x8x32xbf16> to vector<8x8x32xf32>
    %16 = vector.broadcast %12 : f32 to vector<8x8x32xf32>
    %17 = arith.mulf %16, %15 : vector<8x8x32xf32>
    %c3 = arith.constant 3 : index
    %18 = memref.load %arg1[%c3] : memref<12xf32, #tpu.memory_space<smem>>
    %c0_12 = arith.constant 0 : index
    %c3_13 = arith.constant 3 : index
    %c0_14 = arith.constant 0 : index
    %c0_15 = arith.constant 0 : index
    %19 = vector.load %arg2[%c0_12, %c3_13, %c0_14, %c0_15] : memref<8x12x8x32xbf16, #tpu.memory_space<vmem>>, vector<8x1x8x32xbf16>
    %20 = vector.shape_cast %19 : vector<8x1x8x32xbf16> to vector<8x8x32xbf16>
    %21 = arith.extf %20 : vector<8x8x32xbf16> to vector<8x8x32xf32>
    %22 = vector.broadcast %18 : f32 to vector<8x8x32xf32>
    %23 = arith.mulf %22, %21 : vector<8x8x32xf32>
    %c4 = arith.constant 4 : index
    %24 = memref.load %arg1[%c4] : memref<12xf32, #tpu.memory_space<smem>>
    %c0_16 = arith.constant 0 : index
    %c4_17 = arith.constant 4 : index
    %c0_18 = arith.constant 0 : index
    %c0_19 = arith.constant 0 : index
    %25 = vector.load %arg2[%c0_16, %c4_17, %c0_18, %c0_19] : memref<8x12x8x32xbf16, #tpu.memory_space<vmem>>, vector<8x1x8x32xbf16>
    %26 = vector.shape_cast %25 : vector<8x1x8x32xbf16> to vector<8x8x32xbf16>
    %27 = arith.extf %26 : vector<8x8x32xbf16> to vector<8x8x32xf32>
    %28 = vector.broadcast %24 : f32 to vector<8x8x32xf32>
    %29 = arith.mulf %28, %27 : vector<8x8x32xf32>
    %30 = arith.addf %5, %29 : vector<8x8x32xf32>
    %c5 = arith.constant 5 : index
    %31 = memref.load %arg1[%c5] : memref<12xf32, #tpu.memory_space<smem>>
    %c0_20 = arith.constant 0 : index
    %c5_21 = arith.constant 5 : index
    %c0_22 = arith.constant 0 : index
    %c0_23 = arith.constant 0 : index
    %32 = vector.load %arg2[%c0_20, %c5_21, %c0_22, %c0_23] : memref<8x12x8x32xbf16, #tpu.memory_space<vmem>>, vector<8x1x8x32xbf16>
    %33 = vector.shape_cast %32 : vector<8x1x8x32xbf16> to vector<8x8x32xbf16>
    %34 = arith.extf %33 : vector<8x8x32xbf16> to vector<8x8x32xf32>
    %35 = vector.broadcast %31 : f32 to vector<8x8x32xf32>
    %36 = arith.mulf %35, %34 : vector<8x8x32xf32>
    %37 = arith.addf %11, %36 : vector<8x8x32xf32>
    %c6 = arith.constant 6 : index
    %38 = memref.load %arg1[%c6] : memref<12xf32, #tpu.memory_space<smem>>
    %c0_24 = arith.constant 0 : index
    %c6_25 = arith.constant 6 : index
    %c0_26 = arith.constant 0 : index
    %c0_27 = arith.constant 0 : index
    %39 = vector.load %arg2[%c0_24, %c6_25, %c0_26, %c0_27] : memref<8x12x8x32xbf16, #tpu.memory_space<vmem>>, vector<8x1x8x32xbf16>
    %40 = vector.shape_cast %39 : vector<8x1x8x32xbf16> to vector<8x8x32xbf16>
    %41 = arith.extf %40 : vector<8x8x32xbf16> to vector<8x8x32xf32>
    %42 = vector.broadcast %38 : f32 to vector<8x8x32xf32>
    %43 = arith.mulf %42, %41 : vector<8x8x32xf32>
    %44 = arith.addf %17, %43 : vector<8x8x32xf32>
    %c7 = arith.constant 7 : index
    %45 = memref.load %arg1[%c7] : memref<12xf32, #tpu.memory_space<smem>>
    %c0_28 = arith.constant 0 : index
    %c7_29 = arith.constant 7 : index
    %c0_30 = arith.constant 0 : index
    %c0_31 = arith.constant 0 : index
    %46 = vector.load %arg2[%c0_28, %c7_29, %c0_30, %c0_31] : memref<8x12x8x32xbf16, #tpu.memory_space<vmem>>, vector<8x1x8x32xbf16>
    %47 = vector.shape_cast %46 : vector<8x1x8x32xbf16> to vector<8x8x32xbf16>
    %48 = arith.extf %47 : vector<8x8x32xbf16> to vector<8x8x32xf32>
    %49 = vector.broadcast %45 : f32 to vector<8x8x32xf32>
    %50 = arith.mulf %49, %48 : vector<8x8x32xf32>
    %51 = arith.addf %23, %50 : vector<8x8x32xf32>
    %c8 = arith.constant 8 : index
    %52 = memref.load %arg1[%c8] : memref<12xf32, #tpu.memory_space<smem>>
    %c0_32 = arith.constant 0 : index
    %c8_33 = arith.constant 8 : index
    %c0_34 = arith.constant 0 : index
    %c0_35 = arith.constant 0 : index
    %53 = vector.load %arg2[%c0_32, %c8_33, %c0_34, %c0_35] : memref<8x12x8x32xbf16, #tpu.memory_space<vmem>>, vector<8x1x8x32xbf16>
    %54 = vector.shape_cast %53 : vector<8x1x8x32xbf16> to vector<8x8x32xbf16>
    %55 = arith.extf %54 : vector<8x8x32xbf16> to vector<8x8x32xf32>
    %56 = vector.broadcast %52 : f32 to vector<8x8x32xf32>
    %57 = arith.mulf %56, %55 : vector<8x8x32xf32>
    %58 = arith.addf %30, %57 : vector<8x8x32xf32>
    %c9 = arith.constant 9 : index
    %59 = memref.load %arg1[%c9] : memref<12xf32, #tpu.memory_space<smem>>
    %c0_36 = arith.constant 0 : index
    %c9_37 = arith.constant 9 : index
    %c0_38 = arith.constant 0 : index
    %c0_39 = arith.constant 0 : index
    %60 = vector.load %arg2[%c0_36, %c9_37, %c0_38, %c0_39] : memref<8x12x8x32xbf16, #tpu.memory_space<vmem>>, vector<8x1x8x32xbf16>
    %61 = vector.shape_cast %60 : vector<8x1x8x32xbf16> to vector<8x8x32xbf16>
    %62 = arith.extf %61 : vector<8x8x32xbf16> to vector<8x8x32xf32>
    %63 = vector.broadcast %59 : f32 to vector<8x8x32xf32>
    %64 = arith.mulf %63, %62 : vector<8x8x32xf32>
    %65 = arith.addf %37, %64 : vector<8x8x32xf32>
    %c10 = arith.constant 10 : index
    %66 = memref.load %arg1[%c10] : memref<12xf32, #tpu.memory_space<smem>>
    %c0_40 = arith.constant 0 : index
    %c10_41 = arith.constant 10 : index
    %c0_42 = arith.constant 0 : index
    %c0_43 = arith.constant 0 : index
    %67 = vector.load %arg2[%c0_40, %c10_41, %c0_42, %c0_43] : memref<8x12x8x32xbf16, #tpu.memory_space<vmem>>, vector<8x1x8x32xbf16>
    %68 = vector.shape_cast %67 : vector<8x1x8x32xbf16> to vector<8x8x32xbf16>
    %69 = arith.extf %68 : vector<8x8x32xbf16> to vector<8x8x32xf32>
    %70 = vector.broadcast %66 : f32 to vector<8x8x32xf32>
    %71 = arith.mulf %70, %69 : vector<8x8x32xf32>
    %72 = arith.addf %44, %71 : vector<8x8x32xf32>
    %c11 = arith.constant 11 : index
    %73 = memref.load %arg1[%c11] : memref<12xf32, #tpu.memory_space<smem>>
    %c0_44 = arith.constant 0 : index
    %c11_45 = arith.constant 11 : index
    %c0_46 = arith.constant 0 : index
    %c0_47 = arith.constant 0 : index
    %74 = vector.load %arg2[%c0_44, %c11_45, %c0_46, %c0_47] : memref<8x12x8x32xbf16, #tpu.memory_space<vmem>>, vector<8x1x8x32xbf16>
    %75 = vector.shape_cast %74 : vector<8x1x8x32xbf16> to vector<8x8x32xbf16>
    %76 = arith.extf %75 : vector<8x8x32xbf16> to vector<8x8x32xf32>
    %77 = vector.broadcast %73 : f32 to vector<8x8x32xf32>
    %78 = arith.mulf %77, %76 : vector<8x8x32xf32>
    %79 = arith.addf %51, %78 : vector<8x8x32xf32>
    %80 = arith.addf %58, %65 : vector<8x8x32xf32>
    %81 = arith.addf %80, %72 : vector<8x8x32xf32>
    %82 = arith.addf %81, %79 : vector<8x8x32xf32>
    %83 = vector.shape_cast %82 : vector<8x8x32xf32> to vector<64x32xf32>
    %c0_48 = arith.constant 0 : index
    %c0_49 = arith.constant 0 : index
    %c0_50 = arith.constant 0 : index
    %84 = vector.load %arg3[%c0_48, %c0_49, %c0_50] : memref<8x1x8xf32, #tpu.memory_space<vmem>>, vector<8x1x8xf32>
    %cst = arith.constant 1.000000e+00 : f32
    %85 = vector.broadcast %cst : f32 to vector<8x1x8xf32>
    %86 = arith.subf %85, %84 : vector<8x1x8xf32>
    %cst_51 = arith.constant -1.000000e+04 : f32
    %87 = vector.broadcast %cst_51 : f32 to vector<8x1x8xf32>
    %88 = arith.mulf %86, %87 : vector<8x1x8xf32>
    %c0_52 = arith.constant 0 : index
    %c0_53 = arith.constant 0 : index
    %89 = vector.load %arg12[%c0_52, %c0_53] : memref<1x32xf32, #tpu.memory_space<vmem>>, vector<1x32xf32>
    %90 = vector.broadcast %89 : vector<1x32xf32> to vector<64x32xf32>
    %91 = arith.addf %83, %90 : vector<64x32xf32>
    %c0_54 = arith.constant 0 : index
    %c0_55 = arith.constant 0 : index
    %c0_56 = arith.constant 0 : index
    %92 = vector.load %arg5[%c0_54, %c0_55, %c0_56] : memref<4x32x8xf32, #tpu.memory_space<vmem>>, vector<1x32x8xf32>
    %93 = vector.shape_cast %92 : vector<1x32x8xf32> to vector<32x8xf32>
    %cst_57 = arith.constant dense<0.000000e+00> : vector<64x8xf32>
    %94 = tpu.matmul %83, %93, %cst_57 {dimension_numbers = #tpu.dot_dimension_numbers<[1], [0], [0], [1], [0, 0, 1, 1], [], []>} : vector<64x32xf32>, vector<32x8xf32>, vector<64x8xf32> -> vector<64x8xf32>
    %c0_58 = arith.constant 0 : index
    %c0_59 = arith.constant 0 : index
    %c0_60 = arith.constant 0 : index
    %95 = vector.load %arg6[%c0_58, %c0_59, %c0_60] : memref<4x1x8xf32, #tpu.memory_space<vmem>>, vector<1x1x8xf32>
    %96 = vector.shape_cast %95 : vector<1x1x8xf32> to vector<1x8xf32>
    %97 = vector.broadcast %96 : vector<1x8xf32> to vector<64x8xf32>
    %98 = arith.addf %94, %97 : vector<64x8xf32>
    %99 = vector.shape_cast %98 : vector<64x8xf32> to vector<8x8x8xf32>
    %c0_61 = arith.constant 0 : index
    %c0_62 = arith.constant 0 : index
    %c0_63 = arith.constant 0 : index
    %100 = vector.load %arg7[%c0_61, %c0_62, %c0_63] : memref<4x32x8xf32, #tpu.memory_space<vmem>>, vector<1x32x8xf32>
    %101 = vector.shape_cast %100 : vector<1x32x8xf32> to vector<32x8xf32>
    %cst_64 = arith.constant dense<0.000000e+00> : vector<64x8xf32>
    %102 = tpu.matmul %83, %101, %cst_64 {dimension_numbers = #tpu.dot_dimension_numbers<[1], [0], [0], [1], [0, 0, 1, 1], [], []>} : vector<64x32xf32>, vector<32x8xf32>, vector<64x8xf32> -> vector<64x8xf32>
    %c0_65 = arith.constant 0 : index
    %c0_66 = arith.constant 0 : index
    %c0_67 = arith.constant 0 : index
    %103 = vector.load %arg8[%c0_65, %c0_66, %c0_67] : memref<4x1x8xf32, #tpu.memory_space<vmem>>, vector<1x1x8xf32>
    %104 = vector.shape_cast %103 : vector<1x1x8xf32> to vector<1x8xf32>
    %105 = vector.broadcast %104 : vector<1x8xf32> to vector<64x8xf32>
    %106 = arith.addf %102, %105 : vector<64x8xf32>
    %107 = vector.shape_cast %106 : vector<64x8xf32> to vector<8x8x8xf32>
    %c0_68 = arith.constant 0 : index
    %c0_69 = arith.constant 0 : index
    %c0_70 = arith.constant 0 : index
    %108 = vector.load %arg9[%c0_68, %c0_69, %c0_70] : memref<4x32x8xf32, #tpu.memory_space<vmem>>, vector<1x32x8xf32>
    %109 = vector.shape_cast %108 : vector<1x32x8xf32> to vector<32x8xf32>
    %cst_71 = arith.constant dense<0.000000e+00> : vector<64x8xf32>
    %110 = tpu.matmul %83, %109, %cst_71 {dimension_numbers = #tpu.dot_dimension_numbers<[1], [0], [0], [1], [0, 0, 1, 1], [], []>} : vector<64x32xf32>, vector<32x8xf32>, vector<64x8xf32> -> vector<64x8xf32>
    %c0_72 = arith.constant 0 : index
    %c0_73 = arith.constant 0 : index
    %c0_74 = arith.constant 0 : index
    %111 = vector.load %arg10[%c0_72, %c0_73, %c0_74] : memref<4x1x8xf32, #tpu.memory_space<vmem>>, vector<1x1x8xf32>
    %112 = vector.shape_cast %111 : vector<1x1x8xf32> to vector<1x8xf32>
    %113 = vector.broadcast %112 : vector<1x8xf32> to vector<64x8xf32>
    %114 = arith.addf %110, %113 : vector<64x8xf32>
    %115 = vector.shape_cast %114 : vector<64x8xf32> to vector<8x8x8xf32>
    "tpu.trace_start"() <{level = 10 : i32, message = "bqd,bkd->bqk"}> : () -> ()
    %cst_75 = arith.constant dense<0.000000e+00> : vector<8x8x8xf32>
    %116 = tpu.matmul %99, %107, %cst_75 {dimension_numbers = #tpu.dot_dimension_numbers<[2], [2], [1], [1], [0, 0, 0, 1, 1, 1], [0], [0]>} : vector<8x8x8xf32>, vector<8x8x8xf32>, vector<8x8x8xf32> -> vector<8x8x8xf32>
    "tpu.trace_stop"() : () -> ()
    %117 = vector.broadcast %88 : vector<8x1x8xf32> to vector<8x8x8xf32>
    %118 = arith.addf %116, %117 : vector<8x8x8xf32>
    %cst_76 = arith.constant dense<0xFF800000> : vector<8x8xf32>
    %119 = vector.multi_reduction <maximumf>, %118, %cst_76 [2] : vector<8x8x8xf32> to vector<8x8xf32>
    %120 = vector.shape_cast %119 : vector<8x8xf32> to vector<8x8x1xf32>
    %121 = vector.broadcast %120 : vector<8x8x1xf32> to vector<8x8x8xf32>
    %122 = arith.subf %118, %121 : vector<8x8x8xf32>
    %123 = math.exp %122 : vector<8x8x8xf32>
    %cst_77 = arith.constant dense<0.000000e+00> : vector<8x8xf32>
    %124 = vector.multi_reduction <add>, %123, %cst_77 [2] : vector<8x8x8xf32> to vector<8x8xf32>
    %125 = vector.shape_cast %124 : vector<8x8xf32> to vector<8x8x1xf32>
    %126 = tpu.reciprocal %125 {approx = true} : vector<8x8x1xf32> -> vector<8x8x1xf32>
    %127 = vector.broadcast %126 : vector<8x8x1xf32> to vector<8x8x8xf32>
    %128 = arith.mulf %123, %127 : vector<8x8x8xf32>
    "tpu.trace_start"() <{level = 10 : i32, message = "bqk,bkd->bqd"}> : () -> ()
    %cst_78 = arith.constant dense<0.000000e+00> : vector<8x8x8xf32>
    %129 = tpu.matmul %128, %115, %cst_78 {dimension_numbers = #tpu.dot_dimension_numbers<[2], [1], [1], [2], [0, 0, 0, 1, 1, 2], [0], [0]>} : vector<8x8x8xf32>, vector<8x8x8xf32>, vector<8x8x8xf32> -> vector<8x8x8xf32>
    "tpu.trace_stop"() : () -> ()
    %130 = vector.shape_cast %129 : vector<8x8x8xf32> to vector<64x8xf32>
    %c0_79 = arith.constant 0 : index
    %c0_80 = arith.constant 0 : index
    %c0_81 = arith.constant 0 : index
    %131 = vector.load %arg11[%c0_79, %c0_80, %c0_81] : memref<4x8x32xf32, #tpu.memory_space<vmem>>, vector<1x8x32xf32>
    %132 = vector.shape_cast %131 : vector<1x8x32xf32> to vector<8x32xf32>
    %cst_82 = arith.constant dense<0.000000e+00> : vector<64x32xf32>
    %133 = tpu.matmul %130, %132, %cst_82 {dimension_numbers = #tpu.dot_dimension_numbers<[1], [0], [0], [1], [0, 0, 1, 1], [], []>} : vector<64x8xf32>, vector<8x32xf32>, vector<64x32xf32> -> vector<64x32xf32>
    %134 = arith.addf %91, %133 : vector<64x32xf32>
    %c1_83 = arith.constant 1 : index
    %c0_84 = arith.constant 0 : index
    %c0_85 = arith.constant 0 : index
    %135 = vector.load %arg5[%c1_83, %c0_84, %c0_85] : memref<4x32x8xf32, #tpu.memory_space<vmem>>, vector<1x32x8xf32>
    %136 = vector.shape_cast %135 : vector<1x32x8xf32> to vector<32x8xf32>
    %cst_86 = arith.constant dense<0.000000e+00> : vector<64x8xf32>
    %137 = tpu.matmul %83, %136, %cst_86 {dimension_numbers = #tpu.dot_dimension_numbers<[1], [0], [0], [1], [0, 0, 1, 1], [], []>} : vector<64x32xf32>, vector<32x8xf32>, vector<64x8xf32> -> vector<64x8xf32>
    %c1_87 = arith.constant 1 : index
    %c0_88 = arith.constant 0 : index
    %c0_89 = arith.constant 0 : index
    %138 = vector.load %arg6[%c1_87, %c0_88, %c0_89] : memref<4x1x8xf32, #tpu.memory_space<vmem>>, vector<1x1x8xf32>
    %139 = vector.shape_cast %138 : vector<1x1x8xf32> to vector<1x8xf32>
    %140 = vector.broadcast %139 : vector<1x8xf32> to vector<64x8xf32>
    %141 = arith.addf %137, %140 : vector<64x8xf32>
    %142 = vector.shape_cast %141 : vector<64x8xf32> to vector<8x8x8xf32>
    %c1_90 = arith.constant 1 : index
    %c0_91 = arith.constant 0 : index
    %c0_92 = arith.constant 0 : index
    %143 = vector.load %arg7[%c1_90, %c0_91, %c0_92] : memref<4x32x8xf32, #tpu.memory_space<vmem>>, vector<1x32x8xf32>
    %144 = vector.shape_cast %143 : vector<1x32x8xf32> to vector<32x8xf32>
    %cst_93 = arith.constant dense<0.000000e+00> : vector<64x8xf32>
    %145 = tpu.matmul %83, %144, %cst_93 {dimension_numbers = #tpu.dot_dimension_numbers<[1], [0], [0], [1], [0, 0, 1, 1], [], []>} : vector<64x32xf32>, vector<32x8xf32>, vector<64x8xf32> -> vector<64x8xf32>
    %c1_94 = arith.constant 1 : index
    %c0_95 = arith.constant 0 : index
    %c0_96 = arith.constant 0 : index
    %146 = vector.load %arg8[%c1_94, %c0_95, %c0_96] : memref<4x1x8xf32, #tpu.memory_space<vmem>>, vector<1x1x8xf32>
    %147 = vector.shape_cast %146 : vector<1x1x8xf32> to vector<1x8xf32>
    %148 = vector.broadcast %147 : vector<1x8xf32> to vector<64x8xf32>
    %149 = arith.addf %145, %148 : vector<64x8xf32>
    %150 = vector.shape_cast %149 : vector<64x8xf32> to vector<8x8x8xf32>
    %c1_97 = arith.constant 1 : index
    %c0_98 = arith.constant 0 : index
    %c0_99 = arith.constant 0 : index
    %151 = vector.load %arg9[%c1_97, %c0_98, %c0_99] : memref<4x32x8xf32, #tpu.memory_space<vmem>>, vector<1x32x8xf32>
    %152 = vector.shape_cast %151 : vector<1x32x8xf32> to vector<32x8xf32>
    %cst_100 = arith.constant dense<0.000000e+00> : vector<64x8xf32>
    %153 = tpu.matmul %83, %152, %cst_100 {dimension_numbers = #tpu.dot_dimension_numbers<[1], [0], [0], [1], [0, 0, 1, 1], [], []>} : vector<64x32xf32>, vector<32x8xf32>, vector<64x8xf32> -> vector<64x8xf32>
    %c1_101 = arith.constant 1 : index
    %c0_102 = arith.constant 0 : index
    %c0_103 = arith.constant 0 : index
    %154 = vector.load %arg10[%c1_101, %c0_102, %c0_103] : memref<4x1x8xf32, #tpu.memory_space<vmem>>, vector<1x1x8xf32>
    %155 = vector.shape_cast %154 : vector<1x1x8xf32> to vector<1x8xf32>
    %156 = vector.broadcast %155 : vector<1x8xf32> to vector<64x8xf32>
    %157 = arith.addf %153, %156 : vector<64x8xf32>
    %158 = vector.shape_cast %157 : vector<64x8xf32> to vector<8x8x8xf32>
    "tpu.trace_start"() <{level = 10 : i32, message = "bqd,bkd->bqk"}> : () -> ()
    %cst_104 = arith.constant dense<0.000000e+00> : vector<8x8x8xf32>
    %159 = tpu.matmul %142, %150, %cst_104 {dimension_numbers = #tpu.dot_dimension_numbers<[2], [2], [1], [1], [0, 0, 0, 1, 1, 1], [0], [0]>} : vector<8x8x8xf32>, vector<8x8x8xf32>, vector<8x8x8xf32> -> vector<8x8x8xf32>
    "tpu.trace_stop"() : () -> ()
    %160 = vector.broadcast %88 : vector<8x1x8xf32> to vector<8x8x8xf32>
    %161 = arith.addf %159, %160 : vector<8x8x8xf32>
    %cst_105 = arith.constant dense<0xFF800000> : vector<8x8xf32>
    %162 = vector.multi_reduction <maximumf>, %161, %cst_105 [2] : vector<8x8x8xf32> to vector<8x8xf32>
    %163 = vector.shape_cast %162 : vector<8x8xf32> to vector<8x8x1xf32>
    %164 = vector.broadcast %163 : vector<8x8x1xf32> to vector<8x8x8xf32>
    %165 = arith.subf %161, %164 : vector<8x8x8xf32>
    %166 = math.exp %165 : vector<8x8x8xf32>
    %cst_106 = arith.constant dense<0.000000e+00> : vector<8x8xf32>
    %167 = vector.multi_reduction <add>, %166, %cst_106 [2] : vector<8x8x8xf32> to vector<8x8xf32>
    %168 = vector.shape_cast %167 : vector<8x8xf32> to vector<8x8x1xf32>
    %169 = tpu.reciprocal %168 {approx = true} : vector<8x8x1xf32> -> vector<8x8x1xf32>
    %170 = vector.broadcast %169 : vector<8x8x1xf32> to vector<8x8x8xf32>
    %171 = arith.mulf %166, %170 : vector<8x8x8xf32>
    "tpu.trace_start"() <{level = 10 : i32, message = "bqk,bkd->bqd"}> : () -> ()
    %cst_107 = arith.constant dense<0.000000e+00> : vector<8x8x8xf32>
    %172 = tpu.matmul %171, %158, %cst_107 {dimension_numbers = #tpu.dot_dimension_numbers<[2], [1], [1], [2], [0, 0, 0, 1, 1, 2], [0], [0]>} : vector<8x8x8xf32>, vector<8x8x8xf32>, vector<8x8x8xf32> -> vector<8x8x8xf32>
    "tpu.trace_stop"() : () -> ()
    %173 = vector.shape_cast %172 : vector<8x8x8xf32> to vector<64x8xf32>
    %c1_108 = arith.constant 1 : index
    %c0_109 = arith.constant 0 : index
    %c0_110 = arith.constant 0 : index
    %174 = vector.load %arg11[%c1_108, %c0_109, %c0_110] : memref<4x8x32xf32, #tpu.memory_space<vmem>>, vector<1x8x32xf32>
    %175 = vector.shape_cast %174 : vector<1x8x32xf32> to vector<8x32xf32>
    %cst_111 = arith.constant dense<0.000000e+00> : vector<64x32xf32>
    %176 = tpu.matmul %173, %175, %cst_111 {dimension_numbers = #tpu.dot_dimension_numbers<[1], [0], [0], [1], [0, 0, 1, 1], [], []>} : vector<64x8xf32>, vector<8x32xf32>, vector<64x32xf32> -> vector<64x32xf32>
    %177 = arith.addf %134, %176 : vector<64x32xf32>
    %c2_112 = arith.constant 2 : index
    %c0_113 = arith.constant 0 : index
    %c0_114 = arith.constant 0 : index
    %178 = vector.load %arg5[%c2_112, %c0_113, %c0_114] : memref<4x32x8xf32, #tpu.memory_space<vmem>>, vector<1x32x8xf32>
    %179 = vector.shape_cast %178 : vector<1x32x8xf32> to vector<32x8xf32>
    %cst_115 = arith.constant dense<0.000000e+00> : vector<64x8xf32>
    %180 = tpu.matmul %83, %179, %cst_115 {dimension_numbers = #tpu.dot_dimension_numbers<[1], [0], [0], [1], [0, 0, 1, 1], [], []>} : vector<64x32xf32>, vector<32x8xf32>, vector<64x8xf32> -> vector<64x8xf32>
    %c2_116 = arith.constant 2 : index
    %c0_117 = arith.constant 0 : index
    %c0_118 = arith.constant 0 : index
    %181 = vector.load %arg6[%c2_116, %c0_117, %c0_118] : memref<4x1x8xf32, #tpu.memory_space<vmem>>, vector<1x1x8xf32>
    %182 = vector.shape_cast %181 : vector<1x1x8xf32> to vector<1x8xf32>
    %183 = vector.broadcast %182 : vector<1x8xf32> to vector<64x8xf32>
    %184 = arith.addf %180, %183 : vector<64x8xf32>
    %185 = vector.shape_cast %184 : vector<64x8xf32> to vector<8x8x8xf32>
    %c2_119 = arith.constant 2 : index
    %c0_120 = arith.constant 0 : index
    %c0_121 = arith.constant 0 : index
    %186 = vector.load %arg7[%c2_119, %c0_120, %c0_121] : memref<4x32x8xf32, #tpu.memory_space<vmem>>, vector<1x32x8xf32>
    %187 = vector.shape_cast %186 : vector<1x32x8xf32> to vector<32x8xf32>
    %cst_122 = arith.constant dense<0.000000e+00> : vector<64x8xf32>
    %188 = tpu.matmul %83, %187, %cst_122 {dimension_numbers = #tpu.dot_dimension_numbers<[1], [0], [0], [1], [0, 0, 1, 1], [], []>} : vector<64x32xf32>, vector<32x8xf32>, vector<64x8xf32> -> vector<64x8xf32>
    %c2_123 = arith.constant 2 : index
    %c0_124 = arith.constant 0 : index
    %c0_125 = arith.constant 0 : index
    %189 = vector.load %arg8[%c2_123, %c0_124, %c0_125] : memref<4x1x8xf32, #tpu.memory_space<vmem>>, vector<1x1x8xf32>
    %190 = vector.shape_cast %189 : vector<1x1x8xf32> to vector<1x8xf32>
    %191 = vector.broadcast %190 : vector<1x8xf32> to vector<64x8xf32>
    %192 = arith.addf %188, %191 : vector<64x8xf32>
    %193 = vector.shape_cast %192 : vector<64x8xf32> to vector<8x8x8xf32>
    %c2_126 = arith.constant 2 : index
    %c0_127 = arith.constant 0 : index
    %c0_128 = arith.constant 0 : index
    %194 = vector.load %arg9[%c2_126, %c0_127, %c0_128] : memref<4x32x8xf32, #tpu.memory_space<vmem>>, vector<1x32x8xf32>
    %195 = vector.shape_cast %194 : vector<1x32x8xf32> to vector<32x8xf32>
    %cst_129 = arith.constant dense<0.000000e+00> : vector<64x8xf32>
    %196 = tpu.matmul %83, %195, %cst_129 {dimension_numbers = #tpu.dot_dimension_numbers<[1], [0], [0], [1], [0, 0, 1, 1], [], []>} : vector<64x32xf32>, vector<32x8xf32>, vector<64x8xf32> -> vector<64x8xf32>
    %c2_130 = arith.constant 2 : index
    %c0_131 = arith.constant 0 : index
    %c0_132 = arith.constant 0 : index
    %197 = vector.load %arg10[%c2_130, %c0_131, %c0_132] : memref<4x1x8xf32, #tpu.memory_space<vmem>>, vector<1x1x8xf32>
    %198 = vector.shape_cast %197 : vector<1x1x8xf32> to vector<1x8xf32>
    %199 = vector.broadcast %198 : vector<1x8xf32> to vector<64x8xf32>
    %200 = arith.addf %196, %199 : vector<64x8xf32>
    %201 = vector.shape_cast %200 : vector<64x8xf32> to vector<8x8x8xf32>
    "tpu.trace_start"() <{level = 10 : i32, message = "bqd,bkd->bqk"}> : () -> ()
    %cst_133 = arith.constant dense<0.000000e+00> : vector<8x8x8xf32>
    %202 = tpu.matmul %185, %193, %cst_133 {dimension_numbers = #tpu.dot_dimension_numbers<[2], [2], [1], [1], [0, 0, 0, 1, 1, 1], [0], [0]>} : vector<8x8x8xf32>, vector<8x8x8xf32>, vector<8x8x8xf32> -> vector<8x8x8xf32>
    "tpu.trace_stop"() : () -> ()
    %203 = vector.broadcast %88 : vector<8x1x8xf32> to vector<8x8x8xf32>
    %204 = arith.addf %202, %203 : vector<8x8x8xf32>
    %cst_134 = arith.constant dense<0xFF800000> : vector<8x8xf32>
    %205 = vector.multi_reduction <maximumf>, %204, %cst_134 [2] : vector<8x8x8xf32> to vector<8x8xf32>
    %206 = vector.shape_cast %205 : vector<8x8xf32> to vector<8x8x1xf32>
    %207 = vector.broadcast %206 : vector<8x8x1xf32> to vector<8x8x8xf32>
    %208 = arith.subf %204, %207 : vector<8x8x8xf32>
    %209 = math.exp %208 : vector<8x8x8xf32>
    %cst_135 = arith.constant dense<0.000000e+00> : vector<8x8xf32>
    %210 = vector.multi_reduction <add>, %209, %cst_135 [2] : vector<8x8x8xf32> to vector<8x8xf32>
    %211 = vector.shape_cast %210 : vector<8x8xf32> to vector<8x8x1xf32>
    %212 = tpu.reciprocal %211 {approx = true} : vector<8x8x1xf32> -> vector<8x8x1xf32>
    %213 = vector.broadcast %212 : vector<8x8x1xf32> to vector<8x8x8xf32>
    %214 = arith.mulf %209, %213 : vector<8x8x8xf32>
    "tpu.trace_start"() <{level = 10 : i32, message = "bqk,bkd->bqd"}> : () -> ()
    %cst_136 = arith.constant dense<0.000000e+00> : vector<8x8x8xf32>
    %215 = tpu.matmul %214, %201, %cst_136 {dimension_numbers = #tpu.dot_dimension_numbers<[2], [1], [1], [2], [0, 0, 0, 1, 1, 2], [0], [0]>} : vector<8x8x8xf32>, vector<8x8x8xf32>, vector<8x8x8xf32> -> vector<8x8x8xf32>
    "tpu.trace_stop"() : () -> ()
    %216 = vector.shape_cast %215 : vector<8x8x8xf32> to vector<64x8xf32>
    %c2_137 = arith.constant 2 : index
    %c0_138 = arith.constant 0 : index
    %c0_139 = arith.constant 0 : index
    %217 = vector.load %arg11[%c2_137, %c0_138, %c0_139] : memref<4x8x32xf32, #tpu.memory_space<vmem>>, vector<1x8x32xf32>
    %218 = vector.shape_cast %217 : vector<1x8x32xf32> to vector<8x32xf32>
    %cst_140 = arith.constant dense<0.000000e+00> : vector<64x32xf32>
    %219 = tpu.matmul %216, %218, %cst_140 {dimension_numbers = #tpu.dot_dimension_numbers<[1], [0], [0], [1], [0, 0, 1, 1], [], []>} : vector<64x8xf32>, vector<8x32xf32>, vector<64x32xf32> -> vector<64x32xf32>
    %220 = arith.addf %177, %219 : vector<64x32xf32>
    %c3_141 = arith.constant 3 : index
    %c0_142 = arith.constant 0 : index
    %c0_143 = arith.constant 0 : index
    %221 = vector.load %arg5[%c3_141, %c0_142, %c0_143] : memref<4x32x8xf32, #tpu.memory_space<vmem>>, vector<1x32x8xf32>
    %222 = vector.shape_cast %221 : vector<1x32x8xf32> to vector<32x8xf32>
    %cst_144 = arith.constant dense<0.000000e+00> : vector<64x8xf32>
    %223 = tpu.matmul %83, %222, %cst_144 {dimension_numbers = #tpu.dot_dimension_numbers<[1], [0], [0], [1], [0, 0, 1, 1], [], []>} : vector<64x32xf32>, vector<32x8xf32>, vector<64x8xf32> -> vector<64x8xf32>
    %c3_145 = arith.constant 3 : index
    %c0_146 = arith.constant 0 : index
    %c0_147 = arith.constant 0 : index
    %224 = vector.load %arg6[%c3_145, %c0_146, %c0_147] : memref<4x1x8xf32, #tpu.memory_space<vmem>>, vector<1x1x8xf32>
    %225 = vector.shape_cast %224 : vector<1x1x8xf32> to vector<1x8xf32>
    %226 = vector.broadcast %225 : vector<1x8xf32> to vector<64x8xf32>
    %227 = arith.addf %223, %226 : vector<64x8xf32>
    %228 = vector.shape_cast %227 : vector<64x8xf32> to vector<8x8x8xf32>
    %c3_148 = arith.constant 3 : index
    %c0_149 = arith.constant 0 : index
    %c0_150 = arith.constant 0 : index
    %229 = vector.load %arg7[%c3_148, %c0_149, %c0_150] : memref<4x32x8xf32, #tpu.memory_space<vmem>>, vector<1x32x8xf32>
    %230 = vector.shape_cast %229 : vector<1x32x8xf32> to vector<32x8xf32>
    %cst_151 = arith.constant dense<0.000000e+00> : vector<64x8xf32>
    %231 = tpu.matmul %83, %230, %cst_151 {dimension_numbers = #tpu.dot_dimension_numbers<[1], [0], [0], [1], [0, 0, 1, 1], [], []>} : vector<64x32xf32>, vector<32x8xf32>, vector<64x8xf32> -> vector<64x8xf32>
    %c3_152 = arith.constant 3 : index
    %c0_153 = arith.constant 0 : index
    %c0_154 = arith.constant 0 : index
    %232 = vector.load %arg8[%c3_152, %c0_153, %c0_154] : memref<4x1x8xf32, #tpu.memory_space<vmem>>, vector<1x1x8xf32>
    %233 = vector.shape_cast %232 : vector<1x1x8xf32> to vector<1x8xf32>
    %234 = vector.broadcast %233 : vector<1x8xf32> to vector<64x8xf32>
    %235 = arith.addf %231, %234 : vector<64x8xf32>
    %236 = vector.shape_cast %235 : vector<64x8xf32> to vector<8x8x8xf32>
    %c3_155 = arith.constant 3 : index
    %c0_156 = arith.constant 0 : index
    %c0_157 = arith.constant 0 : index
    %237 = vector.load %arg9[%c3_155, %c0_156, %c0_157] : memref<4x32x8xf32, #tpu.memory_space<vmem>>, vector<1x32x8xf32>
    %238 = vector.shape_cast %237 : vector<1x32x8xf32> to vector<32x8xf32>
    %cst_158 = arith.constant dense<0.000000e+00> : vector<64x8xf32>
    %239 = tpu.matmul %83, %238, %cst_158 {dimension_numbers = #tpu.dot_dimension_numbers<[1], [0], [0], [1], [0, 0, 1, 1], [], []>} : vector<64x32xf32>, vector<32x8xf32>, vector<64x8xf32> -> vector<64x8xf32>
    %c3_159 = arith.constant 3 : index
    %c0_160 = arith.constant 0 : index
    %c0_161 = arith.constant 0 : index
    %240 = vector.load %arg10[%c3_159, %c0_160, %c0_161] : memref<4x1x8xf32, #tpu.memory_space<vmem>>, vector<1x1x8xf32>
    %241 = vector.shape_cast %240 : vector<1x1x8xf32> to vector<1x8xf32>
    %242 = vector.broadcast %241 : vector<1x8xf32> to vector<64x8xf32>
    %243 = arith.addf %239, %242 : vector<64x8xf32>
    %244 = vector.shape_cast %243 : vector<64x8xf32> to vector<8x8x8xf32>
    "tpu.trace_start"() <{level = 10 : i32, message = "bqd,bkd->bqk"}> : () -> ()
    %cst_162 = arith.constant dense<0.000000e+00> : vector<8x8x8xf32>
    %245 = tpu.matmul %228, %236, %cst_162 {dimension_numbers = #tpu.dot_dimension_numbers<[2], [2], [1], [1], [0, 0, 0, 1, 1, 1], [0], [0]>} : vector<8x8x8xf32>, vector<8x8x8xf32>, vector<8x8x8xf32> -> vector<8x8x8xf32>
    "tpu.trace_stop"() : () -> ()
    %246 = vector.broadcast %88 : vector<8x1x8xf32> to vector<8x8x8xf32>
    %247 = arith.addf %245, %246 : vector<8x8x8xf32>
    %cst_163 = arith.constant dense<0xFF800000> : vector<8x8xf32>
    %248 = vector.multi_reduction <maximumf>, %247, %cst_163 [2] : vector<8x8x8xf32> to vector<8x8xf32>
    %249 = vector.shape_cast %248 : vector<8x8xf32> to vector<8x8x1xf32>
    %250 = vector.broadcast %249 : vector<8x8x1xf32> to vector<8x8x8xf32>
    %251 = arith.subf %247, %250 : vector<8x8x8xf32>
    %252 = math.exp %251 : vector<8x8x8xf32>
    %cst_164 = arith.constant dense<0.000000e+00> : vector<8x8xf32>
    %253 = vector.multi_reduction <add>, %252, %cst_164 [2] : vector<8x8x8xf32> to vector<8x8xf32>
    %254 = vector.shape_cast %253 : vector<8x8xf32> to vector<8x8x1xf32>
    %255 = tpu.reciprocal %254 {approx = true} : vector<8x8x1xf32> -> vector<8x8x1xf32>
    %256 = vector.broadcast %255 : vector<8x8x1xf32> to vector<8x8x8xf32>
    %257 = arith.mulf %252, %256 : vector<8x8x8xf32>
    "tpu.trace_start"() <{level = 10 : i32, message = "bqk,bkd->bqd"}> : () -> ()
    %cst_165 = arith.constant dense<0.000000e+00> : vector<8x8x8xf32>
    %258 = tpu.matmul %257, %244, %cst_165 {dimension_numbers = #tpu.dot_dimension_numbers<[2], [1], [1], [2], [0, 0, 0, 1, 1, 2], [0], [0]>} : vector<8x8x8xf32>, vector<8x8x8xf32>, vector<8x8x8xf32> -> vector<8x8x8xf32>
    "tpu.trace_stop"() : () -> ()
    %259 = vector.shape_cast %258 : vector<8x8x8xf32> to vector<64x8xf32>
    %c3_166 = arith.constant 3 : index
    %c0_167 = arith.constant 0 : index
    %c0_168 = arith.constant 0 : index
    %260 = vector.load %arg11[%c3_166, %c0_167, %c0_168] : memref<4x8x32xf32, #tpu.memory_space<vmem>>, vector<1x8x32xf32>
    %261 = vector.shape_cast %260 : vector<1x8x32xf32> to vector<8x32xf32>
    %cst_169 = arith.constant dense<0.000000e+00> : vector<64x32xf32>
    %262 = tpu.matmul %259, %261, %cst_169 {dimension_numbers = #tpu.dot_dimension_numbers<[1], [0], [0], [1], [0, 0, 1, 1], [], []>} : vector<64x8xf32>, vector<8x32xf32>, vector<64x32xf32> -> vector<64x32xf32>
    %263 = arith.addf %220, %262 : vector<64x32xf32>
    %cst_170 = arith.constant dense<0.000000e+00> : vector<64xf32>
    %264 = vector.multi_reduction <add>, %263, %cst_170 [1] : vector<64x32xf32> to vector<64xf32>
    %265 = vector.shape_cast %264 : vector<64xf32> to vector<64x1xf32>
    %cst_171 = arith.constant 3.200000e+01 : f32
    %266 = vector.broadcast %cst_171 : f32 to vector<64x1xf32>
    %267 = arith.divf %265, %266 : vector<64x1xf32>
    %268 = vector.broadcast %267 : vector<64x1xf32> to vector<64x32xf32>
    %269 = arith.subf %263, %268 : vector<64x32xf32>
    %270 = arith.mulf %269, %269 : vector<64x32xf32>
    %cst_172 = arith.constant dense<0.000000e+00> : vector<64xf32>
    %271 = vector.multi_reduction <add>, %270, %cst_172 [1] : vector<64x32xf32> to vector<64xf32>
    %272 = vector.shape_cast %271 : vector<64xf32> to vector<64x1xf32>
    %cst_173 = arith.constant 3.200000e+01 : f32
    %273 = vector.broadcast %cst_173 : f32 to vector<64x1xf32>
    %274 = arith.divf %272, %273 : vector<64x1xf32>
    %275 = vector.broadcast %267 : vector<64x1xf32> to vector<64x32xf32>
    %276 = arith.subf %263, %275 : vector<64x32xf32>
    %cst_174 = arith.constant 9.99999996E-13 : f32
    %277 = vector.broadcast %cst_174 : f32 to vector<64x1xf32>
    %278 = arith.addf %274, %277 : vector<64x1xf32>
    %279 = math.rsqrt %278 : vector<64x1xf32>
    %280 = vector.broadcast %279 : vector<64x1xf32> to vector<64x32xf32>
    %281 = arith.mulf %276, %280 : vector<64x32xf32>
    %c0_175 = arith.constant 0 : index
    %c0_176 = arith.constant 0 : index
    %282 = vector.load %arg13[%c0_175, %c0_176] : memref<1x32xf32, #tpu.memory_space<vmem>>, vector<1x32xf32>
    %283 = vector.broadcast %282 : vector<1x32xf32> to vector<64x32xf32>
    %284 = arith.mulf %281, %283 : vector<64x32xf32>
    %c0_177 = arith.constant 0 : index
    %c0_178 = arith.constant 0 : index
    %285 = vector.load %arg14[%c0_177, %c0_178] : memref<1x32xf32, #tpu.memory_space<vmem>>, vector<1x32xf32>
    %286 = vector.broadcast %285 : vector<1x32xf32> to vector<64x32xf32>
    %287 = arith.addf %284, %286 : vector<64x32xf32>
    %288 = vector.shape_cast %287 : vector<64x32xf32> to vector<8x8x32xf32>
    %c0_179 = arith.constant 0 : index
    %c0_180 = arith.constant 0 : index
    %c0_181 = arith.constant 0 : index
    %289 = vector.load %arg4[%c0_179, %c0_180, %c0_181] : memref<8x8x1xf32, #tpu.memory_space<vmem>>, vector<8x8x1xf32>
    %290 = vector.broadcast %289 : vector<8x8x1xf32> to vector<8x8x32xf32>
    %291 = arith.mulf %288, %290 : vector<8x8x32xf32>
    %cst_182 = arith.constant dense<0.000000e+00> : vector<8x32xf32>
    %292 = vector.multi_reduction <add>, %291, %cst_182 [1] : vector<8x8x32xf32> to vector<8x32xf32>
    %cst_183 = arith.constant dense<0.000000e+00> : vector<8x1xf32>
    %293 = vector.multi_reduction <add>, %289, %cst_183 [1] : vector<8x8x1xf32> to vector<8x1xf32>
    %cst_184 = arith.constant 9.99999971E-10 : f32
    %294 = vector.broadcast %cst_184 : f32 to vector<8x1xf32>
    %295 = arith.maximumf %293, %294 : vector<8x1xf32>
    %296 = tpu.reciprocal %295 {approx = true} : vector<8x1xf32> -> vector<8x1xf32>
    %297 = vector.broadcast %296 : vector<8x1xf32> to vector<8x32xf32>
    %298 = arith.mulf %292, %297 : vector<8x32xf32>
    %c0_185 = arith.constant 0 : index
    %c0_186 = arith.constant 0 : index
    %299 = vector.load %arg15[%c0_185, %c0_186] : memref<8x32xf32, #tpu.memory_space<vmem>>, vector<8x32xf32>
    tpu.vector_store %arg15[%c0_185, %c0_186], %298 {strides = array<i32>} : memref<8x32xf32, #tpu.memory_space<vmem>>, vector<8x32xf32>,
    return
  }
  func.func @transform_0(%arg0: i32) -> i32 {
    %c0_i32 = arith.constant 0 : i32
    %c0_i32_0 = arith.constant 0 : i32
    return %c0_i32 : i32
  }
  func.func @transform_1(%arg0: i32) -> (i32, i32, i32, i32) {
    %c0_i32 = arith.constant 0 : i32
    %c0_i32_0 = arith.constant 0 : i32
    %c0_i32_1 = arith.constant 0 : i32
    %c0_i32_2 = arith.constant 0 : i32
    return %arg0, %c0_i32, %c0_i32_0, %c0_i32_1 : i32, i32, i32, i32
  }
  func.func @transform_2(%arg0: i32) -> (i32, i32, i32) {
    %c0_i32 = arith.constant 0 : i32
    %c0_i32_0 = arith.constant 0 : i32
    %c0_i32_1 = arith.constant 0 : i32
    return %arg0, %c0_i32, %c0_i32_0 : i32, i32, i32
  }
  func.func @transform_3(%arg0: i32) -> (i32, i32, i32) {
    %c0_i32 = arith.constant 0 : i32
    %c0_i32_0 = arith.constant 0 : i32
    %c0_i32_1 = arith.constant 0 : i32
    return %arg0, %c0_i32, %c0_i32_0 : i32, i32, i32
  }
  func.func @transform_4(%arg0: i32) -> (i32, i32, i32) {
    %c0_i32 = arith.constant 0 : i32
    %c0_i32_0 = arith.constant 0 : i32
    %c0_i32_1 = arith.constant 0 : i32
    %c0_i32_2 = arith.constant 0 : i32
    return %c0_i32, %c0_i32_0, %c0_i32_1 : i32, i32, i32
  }
  func.func @transform_5(%arg0: i32) -> (i32, i32, i32) {
    %c0_i32 = arith.constant 0 : i32
    %c0_i32_0 = arith.constant 0 : i32
    %c0_i32_1 = arith.constant 0 : i32
    %c0_i32_2 = arith.constant 0 : i32
    return %c0_i32, %c0_i32_0, %c0_i32_1 : i32, i32, i32
  }
  func.func @transform_6(%arg0: i32) -> (i32, i32, i32) {
    %c0_i32 = arith.constant 0 : i32
    %c0_i32_0 = arith.constant 0 : i32
    %c0_i32_1 = arith.constant 0 : i32
    %c0_i32_2 = arith.constant 0 : i32
    return %c0_i32, %c0_i32_0, %c0_i32_1 : i32, i32, i32
  }
  func.func @transform_7(%arg0: i32) -> (i32, i32, i32) {
    %c0_i32 = arith.constant 0 : i32
    %c0_i32_0 = arith.constant 0 : i32
    %c0_i32_1 = arith.constant 0 : i32
    %c0_i32_2 = arith.constant 0 : i32
    return %c0_i32, %c0_i32_0, %c0_i32_1 : i32, i32, i32
  }
  func.func @transform_8(%arg0: i32) -> (i32, i32, i32) {
    %c0_i32 = arith.constant 0 : i32
    %c0_i32_0 = arith.constant 0 : i32
    %c0_i32_1 = arith.constant 0 : i32
    %c0_i32_2 = arith.constant 0 : i32
    return %c0_i32, %c0_i32_0, %c0_i32_1 : i32, i32, i32
  }
  func.func @transform_9(%arg0: i32) -> (i32, i32, i32) {
    %c0_i32 = arith.constant 0 : i32
    %c0_i32_0 = arith.constant 0 : i32
    %c0_i32_1 = arith.constant 0 : i32
    %c0_i32_2 = arith.constant 0 : i32
    return %c0_i32, %c0_i32_0, %c0_i32_1 : i32, i32, i32
  }
  func.func @transform_10(%arg0: i32) -> (i32, i32, i32) {
    %c0_i32 = arith.constant 0 : i32
    %c0_i32_0 = arith.constant 0 : i32
    %c0_i32_1 = arith.constant 0 : i32
    %c0_i32_2 = arith.constant 0 : i32
    return %c0_i32, %c0_i32_0, %c0_i32_1 : i32, i32, i32
  }
  func.func @transform_11(%arg0: i32) -> (i32, i32) {
    %c0_i32 = arith.constant 0 : i32
    %c0_i32_0 = arith.constant 0 : i32
    %c0_i32_1 = arith.constant 0 : i32
    return %c0_i32, %c0_i32_0 : i32, i32
  }
  func.func @transform_12(%arg0: i32) -> (i32, i32) {
    %c0_i32 = arith.constant 0 : i32
    %c0_i32_0 = arith.constant 0 : i32
    %c0_i32_1 = arith.constant 0 : i32
    return %c0_i32, %c0_i32_0 : i32, i32
  }
  func.func @transform_13(%arg0: i32) -> (i32, i32) {
    %c0_i32 = arith.constant 0 : i32
    %c0_i32_0 = arith.constant 0 : i32
    %c0_i32_1 = arith.constant 0 : i32
    return %c0_i32, %c0_i32_0 : i32, i32
  }
  func.func @transform_14(%arg0: i32) -> (i32, i32) {
    %c0_i32 = arith.constant 0 : i32
    %c0_i32_0 = arith.constant 0 : i32
    return %arg0, %c0_i32 : i32, i32
  }
}

</mosaic_0001>

<llo_original>
// kernel: tpu_custom_call.1
$region0: #{tpu_custom_call.1}
  #allocation0 [shape = 'u32[]', space=smem, size = 0x4, offset = 0x4, fixed_abs, tag = 'smem constant byte address 0x4 - core index']
  #allocation1 [shape = 'u32[144,128]{1,0:T(1,128)}', space=vmem, size = 0x12000, scoped, tag = 'internal scratch']
  %s0 = inlined_call_operand.vmem [shape: f32[12], index: 0, kind: input, shape index: {}]
  %s1 = inlined_call_operand.vmem [shape: bf16[8,12,8,32], index: 1, kind: input, shape index: {}]
  %s2 = inlined_call_operand.vmem [shape: f32[8,1,8], index: 2, kind: input, shape index: {}]
  %s3 = inlined_call_operand.vmem [shape: f32[8,8,1], index: 3, kind: input, shape index: {}]
  %s4 = inlined_call_operand.vmem [shape: f32[4,32,8], index: 4, kind: input, shape index: {}]
  %s5 = inlined_call_operand.vmem [shape: f32[4,1,8], index: 5, kind: input, shape index: {}]
  %s6 = inlined_call_operand.vmem [shape: f32[4,32,8], index: 6, kind: input, shape index: {}]
  %s7 = inlined_call_operand.vmem [shape: f32[4,1,8], index: 7, kind: input, shape index: {}]
  %s8 = inlined_call_operand.vmem [shape: f32[4,32,8], index: 8, kind: input, shape index: {}]
  %s9 = inlined_call_operand.vmem [shape: f32[4,1,8], index: 9, kind: input, shape index: {}]
  %s10 = inlined_call_operand.vmem [shape: f32[4,8,32], index: 10, kind: input, shape index: {}]
  %s11 = inlined_call_operand.vmem [shape: f32[1,32], index: 11, kind: input, shape index: {}]
  %s12 = inlined_call_operand.vmem [shape: f32[1,32], index: 12, kind: input, shape index: {}]
  %s13 = inlined_call_operand.vmem [shape: f32[1,32], index: 13, kind: input, shape index: {}]
  %s14 = inlined_call_operand.hbm [shape: f32[8,32], index: 14, kind: output, shape index: {}]
  %s15 = sld [smem:[#allocation0]]
  $region70: #{tpu_custom_call.1} parent=0
    _
  %s17 = ssub.s32 1, %s15
  %s18 = scalar_select 0, %s17, %s15
  $region1: #{tpu_custom_call.1} parent=0
    #allocation2 [shape = 'u8[512]{0}', space=smem, size = 0x200, scoped, tag = 'input window, operand 0, single buffered']
    #allocation3 [shape = 's32[1]{0}', space=sflag, size = 0x4, scoped, tag = 'scoped memory for tpu_custom_call.1']
    #allocation4 [shape = 's32[1]{0}', space=sflag, size = 0x4, scoped, tag = 'scoped memory for tpu_custom_call.1']
    #allocation5 [shape = 'u8[4096]{0}', space=vmem, size = 0x1000, scoped, tag = 'output window, operand 0, single buffered']
    %19 = vsyncpa [#allocation4], 0
    %20 = vsyncpa [#allocation3], 0
    // Predicated region
    $region2: #{tpu_custom_call.1} parent=1 // pred_check
      _
    $region3: #{tpu_custom_call.1} parent=1 // pred_check_branch
      %22 = sbr.rel (0) target = $region5
    $region4: #{tpu_custom_call.1} parent=1 // pred_region
      %s24 = ssub.s32 16, 16
      %25 = vsyncadd [#allocation4], %s24
      %s27 = sshll.u32 %s0, 4
      %s28 = int_to_ptr.vmem [resolvable:$true] %s27
      %30 = dma.vmem_to_smem %s28, 16, [#allocation2], [#allocation4]
    $region5: #{tpu_custom_call.1} parent=1 // pred_fallthru
      _
    // Predicated region
    $region6: #{tpu_custom_call.1} parent=1 // pred_check
      _
    $region7: #{tpu_custom_call.1} parent=1 // pred_check_branch
      %32 = sbr.rel (0) target = $region9
    $region8: #{tpu_custom_call.1} parent=1 // pred_region
      _
    $region9: #{tpu_custom_call.1} parent=1 // pred_fallthru
      _
    // Predicated region
    $region10: #{tpu_custom_call.1} parent=1 // pred_check
      _
    $region11: #{tpu_custom_call.1} parent=1 // pred_check_branch
      %34 = sbr.rel (0) target = $region13
    $region12: #{tpu_custom_call.1} parent=1 // pred_region
      _
    $region13: #{tpu_custom_call.1} parent=1 // pred_fallthru
      _
    // Predicated region
    $region14: #{tpu_custom_call.1} parent=1 // pred_check
      _
    $region15: #{tpu_custom_call.1} parent=1 // pred_check_branch
      %36 = sbr.rel (0) target = $region17
    $region16: #{tpu_custom_call.1} parent=1 // pred_region
      _
    $region17: #{tpu_custom_call.1} parent=1 // pred_fallthru
      _
    // Predicated region
    $region18: #{tpu_custom_call.1} parent=1 // pred_check
      _
    $region19: #{tpu_custom_call.1} parent=1 // pred_check_branch
      %38 = sbr.rel (0) target = $region21
    $region20: #{tpu_custom_call.1} parent=1 // pred_region
      _
    $region21: #{tpu_custom_call.1} parent=1 // pred_fallthru
      _
    // Predicated region
    $region22: #{tpu_custom_call.1} parent=1 // pred_check
      _
    $region23: #{tpu_custom_call.1} parent=1 // pred_check_branch
      %40 = sbr.rel (0) target = $region25
    $region24: #{tpu_custom_call.1} parent=1 // pred_region
      _
    $region25: #{tpu_custom_call.1} parent=1 // pred_fallthru
      _
    // Predicated region
    $region26: #{tpu_custom_call.1} parent=1 // pred_check
      _
    $region27: #{tpu_custom_call.1} parent=1 // pred_check_branch
      %42 = sbr.rel (0) target = $region29
    $region28: #{tpu_custom_call.1} parent=1 // pred_region
      _
    $region29: #{tpu_custom_call.1} parent=1 // pred_fallthru
      _
    // Predicated region
    $region30: #{tpu_custom_call.1} parent=1 // pred_check
      _
    $region31: #{tpu_custom_call.1} parent=1 // pred_check_branch
      %44 = sbr.rel (0) target = $region33
    $region32: #{tpu_custom_call.1} parent=1 // pred_region
      _
    $region33: #{tpu_custom_call.1} parent=1 // pred_fallthru
      _
    // Predicated region
    $region34: #{tpu_custom_call.1} parent=1 // pred_check
      _
    $region35: #{tpu_custom_call.1} parent=1 // pred_check_branch
      %46 = sbr.rel (0) target = $region37
    $region36: #{tpu_custom_call.1} parent=1 // pred_region
      _
    $region37: #{tpu_custom_call.1} parent=1 // pred_fallthru
      _
    // Predicated region
    $region38: #{tpu_custom_call.1} parent=1 // pred_check
      _
    $region39: #{tpu_custom_call.1} parent=1 // pred_check_branch
      %48 = sbr.rel (0) target = $region41
    $region40: #{tpu_custom_call.1} parent=1 // pred_region
      _
    $region41: #{tpu_custom_call.1} parent=1 // pred_fallthru
      _
    // Predicated region
    $region42: #{tpu_custom_call.1} parent=1 // pred_check
      _
    $region43: #{tpu_custom_call.1} parent=1 // pred_check_branch
      %50 = sbr.rel (0) target = $region45
    $region44: #{tpu_custom_call.1} parent=1 // pred_region
      _
    $region45: #{tpu_custom_call.1} parent=1 // pred_fallthru
      _
    // Predicated region
    $region46: #{tpu_custom_call.1} parent=1 // pred_check
      _
    $region47: #{tpu_custom_call.1} parent=1 // pred_check_branch
      %52 = sbr.rel (0) target = $region49
    $region48: #{tpu_custom_call.1} parent=1 // pred_region
      _
    $region49: #{tpu_custom_call.1} parent=1 // pred_fallthru
      _
    // Predicated region
    $region50: #{tpu_custom_call.1} parent=1 // pred_check
      _
    $region51: #{tpu_custom_call.1} parent=1 // pred_check_branch
      %54 = sbr.rel (0) target = $region53
    $region52: #{tpu_custom_call.1} parent=1 // pred_region
      _
    $region53: #{tpu_custom_call.1} parent=1 // pred_fallthru
      _
    // Predicated region
    $region54: #{tpu_custom_call.1} parent=1 // pred_check
      _
    $region55: #{tpu_custom_call.1} parent=1 // pred_check_branch
      %56 = sbr.rel (0) target = $region57
    $region56: #{tpu_custom_call.1} parent=1 // pred_region
      _
    $region57: #{tpu_custom_call.1} parent=1 // pred_fallthru
      _
    // Predicated region
    $region58: #{tpu_custom_call.1} parent=1 // pred_check
      _
    $region59: #{tpu_custom_call.1} parent=1 // pred_check_branch
      %58 = sbr.rel (0) target = $region61
    $region60: #{tpu_custom_call.1} parent=1 // pred_region
      %59 = dma.done [#allocation4], 16
    $region61: #{tpu_custom_call.1} parent=1 // pred_fallthru
      _
    %60 = sfence
    %s61 = sld [smem:[#allocation2]]
    %v62 = vld [vmem:[%s1] sm:$0xf]
    %v63 = vld [vmem:[%s1 + $0x30] sm:$0xf]
    %v64 = vld [vmem:[%s1 + $0x60] sm:$0xf]
    %v65 = vld [vmem:[%s1 + $0x90] sm:$0xf]
    %v66 = vld [vmem:[%s1 + $0xc0] sm:$0xf]
    %v67 = vld [vmem:[%s1 + $0xf0] sm:$0xf]
    %v68 = vld [vmem:[%s1 + $0x120] sm:$0xf]
    %v69 = vld [vmem:[%s1 + $0x150] sm:$0xf]
    %v70 = vunpack.c.l.bf16 %v62
    %v71 = vunpack.c.l.bf16 %v63
    %v72 = vunpack.c.l.bf16 %v64
    %v73 = vunpack.c.l.bf16 %v65
    %v74 = vunpack.c.l.bf16 %v66
    %v75 = vunpack.c.l.bf16 %v67
    %v76 = vunpack.c.l.bf16 %v68
    %v77 = vunpack.c.l.bf16 %v69
    %v78 = vstv %s61
    %v79 = vmul.f32 %v78, %v70
    %v80 = vmul.f32 %v78, %v71
    %v81 = vmul.f32 %v78, %v72
    %v82 = vmul.f32 %v78, %v73
    %v83 = vmul.f32 %v78, %v74
    %v84 = vmul.f32 %v78, %v75
    %v85 = vmul.f32 %v78, %v76
    %v86 = vmul.f32 %v78, %v77
    %s87 = sld [smem:[#allocation2 + $0x1]]
    %s88 = scalar_lea.vmem %s1, 4
    %v89 = vld [vmem:[%s88] sm:$0xf]
    %v90 = vld [vmem:[%s88 + $0x30] sm:$0xf]
    %v91 = vld [vmem:[%s88 + $0x60] sm:$0xf]
    %v92 = vld [vmem:[%s88 + $0x90] sm:$0xf]
    %v93 = vld [vmem:[%s88 + $0xc0] sm:$0xf]
    %v94 = vld [vmem:[%s88 + $0xf0] sm:$0xf]
    %v95 = vld [vmem:[%s88 + $0x120] sm:$0xf]
    %v96 = vld [vmem:[%s88 + $0x150] sm:$0xf]
    %v97 = vunpack.c.l.bf16 %v89
    %v98 = vunpack.c.l.bf16 %v90
    %v99 = vunpack.c.l.bf16 %v91
    %v100 = vunpack.c.l.bf16 %v92
    %v101 = vunpack.c.l.bf16 %v93
    %v102 = vunpack.c.l.bf16 %v94
    %v103 = vunpack.c.l.bf16 %v95
    %v104 = vunpack.c.l.bf16 %v96
    %v105 = vstv %s87
    %v106 = vmul.f32 %v105, %v97
    %v107 = vmul.f32 %v105, %v98
    %v108 = vmul.f32 %v105, %v99
    %v109 = vmul.f32 %v105, %v100
    %v110 = vmul.f32 %v105, %v101
    %v111 = vmul.f32 %v105, %v102
    %v112 = vmul.f32 %v105, %v103
    %v113 = vmul.f32 %v105, %v104
    %s114 = sld [smem:[#allocation2 + $0x2]]
    %s115 = scalar_lea.vmem %s1, 8
    %v116 = vld [vmem:[%s115] sm:$0xf]
    %v117 = vld [vmem:[%s115 + $0x30] sm:$0xf]
    %v118 = vld [vmem:[%s115 + $0x60] sm:$0xf]
    %v119 = vld [vmem:[%s115 + $0x90] sm:$0xf]
    %v120 = vld [vmem:[%s115 + $0xc0] sm:$0xf]
    %v121 = vld [vmem:[%s115 + $0xf0] sm:$0xf]
    %v122 = vld [vmem:[%s115 + $0x120] sm:$0xf]
    %v123 = vld [vmem:[%s115 + $0x150] sm:$0xf]
    %v124 = vunpack.c.l.bf16 %v116
    %v125 = vunpack.c.l.bf16 %v117
    %v126 = vunpack.c.l.bf16 %v118
    %v127 = vunpack.c.l.bf16 %v119
    %v128 = vunpack.c.l.bf16 %v120
    %v129 = vunpack.c.l.bf16 %v121
    %v130 = vunpack.c.l.bf16 %v122
    %v131 = vunpack.c.l.bf16 %v123
    %v132 = vstv %s114
    %v133 = vmul.f32 %v132, %v124
    %v134 = vmul.f32 %v132, %v125
    %v135 = vmul.f32 %v132, %v126
    %v136 = vmul.f32 %v132, %v127
    %v137 = vmul.f32 %v132, %v128
    %v138 = vmul.f32 %v132, %v129
    %v139 = vmul.f32 %v132, %v130
    %v140 = vmul.f32 %v132, %v131
    %s141 = sld [smem:[#allocation2 + $0x3]]
    %s142 = scalar_lea.vmem %s1, 12
    %v143 = vld [vmem:[%s142] sm:$0xf]
    %v144 = vld [vmem:[%s142 + $0x30] sm:$0xf]
    %v145 = vld [vmem:[%s142 + $0x60] sm:$0xf]
    %v146 = vld [vmem:[%s142 + $0x90] sm:$0xf]
    %v147 = vld [vmem:[%s142 + $0xc0] sm:$0xf]
    %v148 = vld [vmem:[%s142 + $0xf0] sm:$0xf]
    %v149 = vld [vmem:[%s142 + $0x120] sm:$0xf]
    %v150 = vld [vmem:[%s142 + $0x150] sm:$0xf]
    %v151 = vunpack.c.l.bf16 %v143
    %v152 = vunpack.c.l.bf16 %v144
    %v153 = vunpack.c.l.bf16 %v145
    %v154 = vunpack.c.l.bf16 %v146
    %v155 = vunpack.c.l.bf16 %v147
    %v156 = vunpack.c.l.bf16 %v148
    %v157 = vunpack.c.l.bf16 %v149
    %v158 = vunpack.c.l.bf16 %v150
    %v159 = vstv %s141
    %v160 = vmul.f32 %v159, %v151
    %v161 = vmul.f32 %v159, %v152
    %v162 = vmul.f32 %v159, %v153
    %v163 = vmul.f32 %v159, %v154
    %v164 = vmul.f32 %v159, %v155
    %v165 = vmul.f32 %v159, %v156
    %v166 = vmul.f32 %v159, %v157
    %v167 = vmul.f32 %v159, %v158
    %s168 = sld [smem:[#allocation2 + $0x4]]
    %s169 = scalar_lea.vmem %s1, 16
    %v170 = vld [vmem:[%s169] sm:$0xf]
    %v171 = vld [vmem:[%s169 + $0x30] sm:$0xf]
    %v172 = vld [vmem:[%s169 + $0x60] sm:$0xf]
    %v173 = vld [vmem:[%s169 + $0x90] sm:$0xf]
    %v174 = vld [vmem:[%s169 + $0xc0] sm:$0xf]
    %v175 = vld [vmem:[%s169 + $0xf0] sm:$0xf]
    %v176 = vld [vmem:[%s169 + $0x120] sm:$0xf]
    %v177 = vld [vmem:[%s169 + $0x150] sm:$0xf]
    %v178 = vunpack.c.l.bf16 %v170
    %v179 = vunpack.c.l.bf16 %v171
    %v180 = vunpack.c.l.bf16 %v172
    %v181 = vunpack.c.l.bf16 %v173
    %v182 = vunpack.c.l.bf16 %v174
    %v183 = vunpack.c.l.bf16 %v175
    %v184 = vunpack.c.l.bf16 %v176
    %v185 = vunpack.c.l.bf16 %v177
    %v186 = vstv %s168
    %v187 = vmul.f32 %v186, %v178
    %v188 = vmul.f32 %v186, %v179
    %v189 = vmul.f32 %v186, %v180
    %v190 = vmul.f32 %v186, %v181
    %v191 = vmul.f32 %v186, %v182
    %v192 = vmul.f32 %v186, %v183
    %v193 = vmul.f32 %v186, %v184
    %v194 = vmul.f32 %v186, %v185
    %v195 = vadd.f32 %v79, %v187
    %v196 = vadd.f32 %v80, %v188
    %v197 = vadd.f32 %v81, %v189
    %v198 = vadd.f32 %v82, %v190
    %v199 = vadd.f32 %v83, %v191
    %v200 = vadd.f32 %v84, %v192
    %v201 = vadd.f32 %v85, %v193
    %v202 = vadd.f32 %v86, %v194
    %s203 = sld [smem:[#allocation2 + $0x5]]
    %s204 = scalar_lea.vmem %s1, 20
    %v205 = vld [vmem:[%s204] sm:$0xf]
    %v206 = vld [vmem:[%s204 + $0x30] sm:$0xf]
    %v207 = vld [vmem:[%s204 + $0x60] sm:$0xf]
    %v208 = vld [vmem:[%s204 + $0x90] sm:$0xf]
    %v209 = vld [vmem:[%s204 + $0xc0] sm:$0xf]
    %v210 = vld [vmem:[%s204 + $0xf0] sm:$0xf]
    %v211 = vld [vmem:[%s204 + $0x120] sm:$0xf]
    %v212 = vld [vmem:[%s204 + $0x150] sm:$0xf]
    %v213 = vunpack.c.l.bf16 %v205
    %v214 = vunpack.c.l.bf16 %v206
    %v215 = vunpack.c.l.bf16 %v207
    %v216 = vunpack.c.l.bf16 %v208
    %v217 = vunpack.c.l.bf16 %v209
    %v218 = vunpack.c.l.bf16 %v210
    %v219 = vunpack.c.l.bf16 %v211
    %v220 = vunpack.c.l.bf16 %v212
    %v221 = vstv %s203
    %v222 = vmul.f32 %v221, %v213
    %v223 = vmul.f32 %v221, %v214
    %v224 = vmul.f32 %v221, %v215
    %v225 = vmul.f32 %v221, %v216
    %v226 = vmul.f32 %v221, %v217
    %v227 = vmul.f32 %v221, %v218
    %v228 = vmul.f32 %v221, %v219
    %v229 = vmul.f32 %v221, %v220
    %v230 = vadd.f32 %v106, %v222
    %v231 = vadd.f32 %v107, %v223
    %v232 = vadd.f32 %v108, %v224
    %v233 = vadd.f32 %v109, %v225
    %v234 = vadd.f32 %v110, %v226
    %v235 = vadd.f32 %v111, %v227
    %v236 = vadd.f32 %v112, %v228
    %v237 = vadd.f32 %v113, %v229
    %s238 = sld [smem:[#allocation2 + $0x6]]
    %s239 = scalar_lea.vmem %s1, 24
    %v240 = vld [vmem:[%s239] sm:$0xf]
    %v241 = vld [vmem:[%s239 + $0x30] sm:$0xf]
    %v242 = vld [vmem:[%s239 + $0x60] sm:$0xf]
    %v243 = vld [vmem:[%s239 + $0x90] sm:$0xf]
    %v244 = vld [vmem:[%s239 + $0xc0] sm:$0xf]
    %v245 = vld [vmem:[%s239 + $0xf0] sm:$0xf]
    %v246 = vld [vmem:[%s239 + $0x120] sm:$0xf]
    %v247 = vld [vmem:[%s239 + $0x150] sm:$0xf]
    %v248 = vunpack.c.l.bf16 %v240
    %v249 = vunpack.c.l.bf16 %v241
    %v250 = vunpack.c.l.bf16 %v242
    %v251 = vunpack.c.l.bf16 %v243
    %v252 = vunpack.c.l.bf16 %v244
    %v253 = vunpack.c.l.bf16 %v245
    %v254 = vunpack.c.l.bf16 %v246
    %v255 = vunpack.c.l.bf16 %v247
    %v256 = vstv %s238
    %v257 = vmul.f32 %v256, %v248
    %v258 = vmul.f32 %v256, %v249
    %v259 = vmul.f32 %v256, %v250
    %v260 = vmul.f32 %v256, %v251
    %v261 = vmul.f32 %v256, %v252
    %v262 = vmul.f32 %v256, %v253
    %v263 = vmul.f32 %v256, %v254
    %v264 = vmul.f32 %v256, %v255
    %v265 = vadd.f32 %v133, %v257
    %v266 = vadd.f32 %v134, %v258
    %v267 = vadd.f32 %v135, %v259
    %v268 = vadd.f32 %v136, %v260
    %v269 = vadd.f32 %v137, %v261
    %v270 = vadd.f32 %v138, %v262
    %v271 = vadd.f32 %v139, %v263
    %v272 = vadd.f32 %v140, %v264
    %s273 = sld [smem:[#allocation2 + $0x7]]
    %s274 = scalar_lea.vmem %s1, 28
    %v275 = vld [vmem:[%s274] sm:$0xf]
    %v276 = vld [vmem:[%s274 + $0x30] sm:$0xf]
    %v277 = vld [vmem:[%s274 + $0x60] sm:$0xf]
    %v278 = vld [vmem:[%s274 + $0x90] sm:$0xf]
    %v279 = vld [vmem:[%s274 + $0xc0] sm:$0xf]
    %v280 = vld [vmem:[%s274 + $0xf0] sm:$0xf]
    %v281 = vld [vmem:[%s274 + $0x120] sm:$0xf]
    %v282 = vld [vmem:[%s274 + $0x150] sm:$0xf]
    %v283 = vunpack.c.l.bf16 %v275
    %v284 = vunpack.c.l.bf16 %v276
    %v285 = vunpack.c.l.bf16 %v277
    %v286 = vunpack.c.l.bf16 %v278
    %v287 = vunpack.c.l.bf16 %v279
    %v288 = vunpack.c.l.bf16 %v280
    %v289 = vunpack.c.l.bf16 %v281
    %v290 = vunpack.c.l.bf16 %v282
    %v291 = vstv %s273
    %v292 = vmul.f32 %v291, %v283
    %v293 = vmul.f32 %v291, %v284
    %v294 = vmul.f32 %v291, %v285
    %v295 = vmul.f32 %v291, %v286
    %v296 = vmul.f32 %v291, %v287
    %v297 = vmul.f32 %v291, %v288
    %v298 = vmul.f32 %v291, %v289
    %v299 = vmul.f32 %v291, %v290
    %v300 = vadd.f32 %v160, %v292
    %v301 = vadd.f32 %v161, %v293
    %v302 = vadd.f32 %v162, %v294
    %v303 = vadd.f32 %v163, %v295
    %v304 = vadd.f32 %v164, %v296
    %v305 = vadd.f32 %v165, %v297
    %v306 = vadd.f32 %v166, %v298
    %v307 = vadd.f32 %v167, %v299
    %s308 = sld [smem:[#allocation2 + $0x8]]
    %s309 = scalar_lea.vmem %s1, 32
    %v310 = vld [vmem:[%s309] sm:$0xf]
    %v311 = vld [vmem:[%s309 + $0x30] sm:$0xf]
    %v312 = vld [vmem:[%s309 + $0x60] sm:$0xf]
    %v313 = vld [vmem:[%s309 + $0x90] sm:$0xf]
    %v314 = vld [vmem:[%s309 + $0xc0] sm:$0xf]
    %v315 = vld [vmem:[%s309 + $0xf0] sm:$0xf]
    %v316 = vld [vmem:[%s309 + $0x120] sm:$0xf]
    %v317 = vld [vmem:[%s309 + $0x150] sm:$0xf]
    %v318 = vunpack.c.l.bf16 %v310
    %v319 = vunpack.c.l.bf16 %v311
    %v320 = vunpack.c.l.bf16 %v312
    %v321 = vunpack.c.l.bf16 %v313
    %v322 = vunpack.c.l.bf16 %v314
    %v323 = vunpack.c.l.bf16 %v315
    %v324 = vunpack.c.l.bf16 %v316
    %v325 = vunpack.c.l.bf16 %v317
    %v326 = vstv %s308
    %v327 = vmul.f32 %v326, %v318
    %v328 = vmul.f32 %v326, %v319
    %v329 = vmul.f32 %v326, %v320
    %v330 = vmul.f32 %v326, %v321
    %v331 = vmul.f32 %v326, %v322
    %v332 = vmul.f32 %v326, %v323
    %v333 = vmul.f32 %v326, %v324
    %v334 = vmul.f32 %v326, %v325
    %v335 = vadd.f32 %v195, %v327
    %v336 = vadd.f32 %v196, %v328
    %v337 = vadd.f32 %v197, %v329
    %v338 = vadd.f32 %v198, %v330
    %v339 = vadd.f32 %v199, %v331
    %v340 = vadd.f32 %v200, %v332
    %v341 = vadd.f32 %v201, %v333
    %v342 = vadd.f32 %v202, %v334
    %s343 = sld [smem:[#allocation2 + $0x9]]
    %s344 = scalar_lea.vmem %s1, 36
    %v345 = vld [vmem:[%s344] sm:$0xf]
    %v346 = vld [vmem:[%s344 + $0x30] sm:$0xf]
    %v347 = vld [vmem:[%s344 + $0x60] sm:$0xf]
    %v348 = vld [vmem:[%s344 + $0x90] sm:$0xf]
    %v349 = vld [vmem:[%s344 + $0xc0] sm:$0xf]
    %v350 = vld [vmem:[%s344 + $0xf0] sm:$0xf]
    %v351 = vld [vmem:[%s344 + $0x120] sm:$0xf]
    %v352 = vld [vmem:[%s344 + $0x150] sm:$0xf]
    %v353 = vunpack.c.l.bf16 %v345
    %v354 = vunpack.c.l.bf16 %v346
    %v355 = vunpack.c.l.bf16 %v347
    %v356 = vunpack.c.l.bf16 %v348
    %v357 = vunpack.c.l.bf16 %v349
    %v358 = vunpack.c.l.bf16 %v350
    %v359 = vunpack.c.l.bf16 %v351
    %v360 = vunpack.c.l.bf16 %v352
    %v361 = vstv %s343
    %v362 = vmul.f32 %v361, %v353
    %v363 = vmul.f32 %v361, %v354
    %v364 = vmul.f32 %v361, %v355
    %v365 = vmul.f32 %v361, %v356
    %v366 = vmul.f32 %v361, %v357
    %v367 = vmul.f32 %v361, %v358
    %v368 = vmul.f32 %v361, %v359
    %v369 = vmul.f32 %v361, %v360
    %v370 = vadd.f32 %v230, %v362
    %v371 = vadd.f32 %v231, %v363
    %v372 = vadd.f32 %v232, %v364
    %v373 = vadd.f32 %v233, %v365
    %v374 = vadd.f32 %v234, %v366
    %v375 = vadd.f32 %v235, %v367
    %v376 = vadd.f32 %v236, %v368
    %v377 = vadd.f32 %v237, %v369
    %s378 = sld [smem:[#allocation2 + $0xa]]
    %s379 = scalar_lea.vmem %s1, 40
    %v380 = vld [vmem:[%s379] sm:$0xf]
    %v381 = vld [vmem:[%s379 + $0x30] sm:$0xf]
    %v382 = vld [vmem:[%s379 + $0x60] sm:$0xf]
    %v383 = vld [vmem:[%s379 + $0x90] sm:$0xf]
    %v384 = vld [vmem:[%s379 + $0xc0] sm:$0xf]
    %v385 = vld [vmem:[%s379 + $0xf0] sm:$0xf]
    %v386 = vld [vmem:[%s379 + $0x120] sm:$0xf]
    %v387 = vld [vmem:[%s379 + $0x150] sm:$0xf]
    %v388 = vunpack.c.l.bf16 %v380
    %v389 = vunpack.c.l.bf16 %v381
    %v390 = vunpack.c.l.bf16 %v382
    %v391 = vunpack.c.l.bf16 %v383
    %v392 = vunpack.c.l.bf16 %v384
    %v393 = vunpack.c.l.bf16 %v385
    %v394 = vunpack.c.l.bf16 %v386
    %v395 = vunpack.c.l.bf16 %v387
    %v396 = vstv %s378
    %v397 = vmul.f32 %v396, %v388
    %v398 = vmul.f32 %v396, %v389
    %v399 = vmul.f32 %v396, %v390
    %v400 = vmul.f32 %v396, %v391
    %v401 = vmul.f32 %v396, %v392
    %v402 = vmul.f32 %v396, %v393
    %v403 = vmul.f32 %v396, %v394
    %v404 = vmul.f32 %v396, %v395
    %v405 = vadd.f32 %v265, %v397
    %v406 = vadd.f32 %v266, %v398
    %v407 = vadd.f32 %v267, %v399
    %v408 = vadd.f32 %v268, %v400
    %v409 = vadd.f32 %v269, %v401
    %v410 = vadd.f32 %v270, %v402
    %v411 = vadd.f32 %v271, %v403
    %v412 = vadd.f32 %v272, %v404
    %s413 = sld [smem:[#allocation2 + $0xb]]
    %s414 = scalar_lea.vmem %s1, 44
    %v415 = vld [vmem:[%s414] sm:$0xf]
    %v416 = vld [vmem:[%s414 + $0x30] sm:$0xf]
    %v417 = vld [vmem:[%s414 + $0x60] sm:$0xf]
    %v418 = vld [vmem:[%s414 + $0x90] sm:$0xf]
    %v419 = vld [vmem:[%s414 + $0xc0] sm:$0xf]
    %v420 = vld [vmem:[%s414 + $0xf0] sm:$0xf]
    %v421 = vld [vmem:[%s414 + $0x120] sm:$0xf]
    %v422 = vld [vmem:[%s414 + $0x150] sm:$0xf]
    %v423 = vunpack.c.l.bf16 %v415
    %v424 = vunpack.c.l.bf16 %v416
    %v425 = vunpack.c.l.bf16 %v417
    %v426 = vunpack.c.l.bf16 %v418
    %v427 = vunpack.c.l.bf16 %v419
    %v428 = vunpack.c.l.bf16 %v420
    %v429 = vunpack.c.l.bf16 %v421
    %v430 = vunpack.c.l.bf16 %v422
    %v431 = vstv %s413
    %v432 = vmul.f32 %v431, %v423
    %v433 = vmul.f32 %v431, %v424
    %v434 = vmul.f32 %v431, %v425
    %v435 = vmul.f32 %v431, %v426
    %v436 = vmul.f32 %v431, %v427
    %v437 = vmul.f32 %v431, %v428
    %v438 = vmul.f32 %v431, %v429
    %v439 = vmul.f32 %v431, %v430
    %v440 = vadd.f32 %v300, %v432
    %v441 = vadd.f32 %v301, %v433
    %v442 = vadd.f32 %v302, %v434
    %v443 = vadd.f32 %v303, %v435
    %v444 = vadd.f32 %v304, %v436
    %v445 = vadd.f32 %v305, %v437
    %v446 = vadd.f32 %v306, %v438
    %v447 = vadd.f32 %v307, %v439
    %v448 = vadd.f32 %v335, %v370
    %v449 = vadd.f32 %v336, %v371
    %v450 = vadd.f32 %v337, %v372
    %v451 = vadd.f32 %v338, %v373
    %v452 = vadd.f32 %v339, %v374
    %v453 = vadd.f32 %v340, %v375
    %v454 = vadd.f32 %v341, %v376
    %v455 = vadd.f32 %v342, %v377
    %v456 = vadd.f32 %v448, %v405
    %v457 = vadd.f32 %v449, %v406
    %v458 = vadd.f32 %v450, %v407
    %v459 = vadd.f32 %v451, %v408
    %v460 = vadd.f32 %v452, %v409
    %v461 = vadd.f32 %v453, %v410
    %v462 = vadd.f32 %v454, %v411
    %v463 = vadd.f32 %v455, %v412
    %v464 = vadd.f32 %v456, %v440
    %v465 = vadd.f32 %v457, %v441
    %v466 = vadd.f32 %v458, %v442
    %v467 = vadd.f32 %v459, %v443
    %v468 = vadd.f32 %v460, %v444
    %v469 = vadd.f32 %v461, %v445
    %v470 = vadd.f32 %v462, %v446
    %v471 = vadd.f32 %v463, %v447
    %v472 = vld [vmem:[%s2] sm:$0x1]
    %v473 = vld [vmem:[%s2 + $0x1] sm:$0x1]
    %v474 = vld [vmem:[%s2 + $0x2] sm:$0x1]
    %v475 = vld [vmem:[%s2 + $0x3] sm:$0x1]
    %v476 = vld [vmem:[%s2 + $0x4] sm:$0x1]
    %v477 = vld [vmem:[%s2 + $0x5] sm:$0x1]
    %v478 = vld [vmem:[%s2 + $0x6] sm:$0x1]
    %v479 = vld [vmem:[%s2 + $0x7] sm:$0x1]
    %v480 = vsub.f32 1.0, %v472
    %v481 = vsub.f32 1.0, %v473
    %v482 = vsub.f32 1.0, %v474
    %v483 = vsub.f32 1.0, %v475
    %v484 = vsub.f32 1.0, %v476
    %v485 = vsub.f32 1.0, %v477
    %v486 = vsub.f32 1.0, %v478
    %v487 = vsub.f32 1.0, %v479
    %v488 = vmul.f32 %v480, -10000.0
    %v489 = vmul.f32 %v481, -10000.0
    %v490 = vmul.f32 %v482, -10000.0
    %v491 = vmul.f32 %v483, -10000.0
    %v492 = vmul.f32 %v484, -10000.0
    %v493 = vmul.f32 %v485, -10000.0
    %v494 = vmul.f32 %v486, -10000.0
    %v495 = vmul.f32 %v487, -10000.0
    %v496 = vld [vmem:[%s11] sm:$0x1]
    %v498 = vlaneseq
    %v499 = vshrl.u32 %v498, 7
    %v500 = vsub.s32 0, %v499
    %v501 = vrot.slane %v496, %v500
    %v503 = vadd.f32 %v464, %v501
    %v504 = vadd.f32 %v465, %v501
    %v505 = vadd.f32 %v466, %v501
    %v506 = vadd.f32 %v467, %v501
    %v507 = vadd.f32 %v468, %v501
    %v508 = vadd.f32 %v469, %v501
    %v509 = vadd.f32 %v470, %v501
    %v510 = vadd.f32 %v471, %v501
    %v511 = vld [vmem:[%s4] sm:$0xff]
    %v512 = vld [vmem:[%s4 + $0x8] sm:$0xff]
    %v513 = vld [vmem:[%s4 + $0x10] sm:$0xff]
    %v514 = vld [vmem:[%s4 + $0x18] sm:$0xff]
    %v515 = vld [vmem:[%s5] sm:$0x1]
    %v517 = vlaneseq
    %v518 = vshrl.u32 %v517, 7
    %v519 = vsub.s32 0, %v518
    %v520 = vrot.slane %v515, %v519
    %vm522 = vcmask 261120
    %v524 = vsel %vm522, %v464, 0
    %v527 = vsel %vm522, %v465, 0
    %v530 = vsel %vm522, %v466, 0
    %v533 = vsel %vm522, %v467, 0
    %v536 = vsel %vm522, %v468, 0
    %v539 = vsel %vm522, %v469, 0
    %v542 = vsel %vm522, %v470, 0
    %v545 = vsel %vm522, %v471, 0
    %547 = vmatprep.subr.mxu0 0.0
    %548 = vmatpush1.msra.mxu0 0.0
    %549 = vmatprep.subr.mxu0 0.0
    %550 = vmatpush1.msra.mxu0 0.0
    %551 = vmatprep.subr.mxu0 0.0
    %552 = vmatpush1.msra.mxu0 0.0
    %553 = vmatprep.subr.mxu0 0.0
    %554 = vmatpush1.msra.mxu0 0.0
    %555 = vmatprep.subr.mxu0 0.0
    %556 = vmatpush1.msra.mxu0 0.0
    %557 = vmatprep.subr.mxu0 0.0
    %558 = vmatpush1.msra.mxu0 0.0
    %559 = vmatprep.subr.mxu0 0.0
    %560 = vmatpush1.msra.mxu0 0.0
    %561 = vmatprep.subr.mxu0 0.0
    %562 = vmatpush1.msra.mxu0 0.0
    %563 = vmatprep.subr.mxu0 0.0
    %564 = vmatpush1.msra.mxu0 0.0
    %565 = vmatprep.subr.mxu0 0.0
    %566 = vmatpush1.msra.mxu0 0.0
    %567 = vmatprep.subr.mxu0 0.0
    %568 = vmatpush1.msra.mxu0 0.0
    %569 = vmatprep.subr.mxu0 0.0
    %570 = vmatpush1.msra.mxu0 0.0
    %571 = vmatprep.subr.mxu0 0.0
    %572 = vmatpush1.msra.mxu0 %v514
    %573 = vmatprep.subr.mxu0 0.0
    %574 = vmatpush1.msra.mxu0 %v513
    %575 = vmatprep.subr.mxu0 0.0
    %576 = vmatpush1.msra.mxu0 %v512
    %577 = vmatprep.subr.mxu0 0.0
    %578 = vmatpush1.msra.mxu0 %v511
    %579 = vmatprep.subr.mxu0 0.0
    %580 = vmatpush2.msra.mxu0 0.0
    %581 = vmatprep.subr.mxu0 0.0
    %582 = vmatpush2.msra.mxu0 0.0
    %583 = vmatprep.subr.mxu0 0.0
    %584 = vmatpush2.msra.mxu0 0.0
    %585 = vmatprep.subr.mxu0 0.0
    %586 = vmatpush2.msra.mxu0 0.0
    %587 = vmatprep.subr.mxu0 0.0
    %588 = vmatpush2.msra.mxu0 0.0
    %589 = vmatprep.subr.mxu0 0.0
    %590 = vmatpush2.msra.mxu0 0.0
    %591 = vmatprep.subr.mxu0 0.0
    %592 = vmatpush2.msra.mxu0 0.0
    %593 = vmatprep.subr.mxu0 0.0
    %594 = vmatpush2.msra.mxu0 0.0
    %595 = vmatprep.subr.mxu0 0.0
    %596 = vmatpush2.msra.mxu0 0.0
    %597 = vmatprep.subr.mxu0 0.0
    %598 = vmatpush2.msra.mxu0 0.0
    %599 = vmatprep.subr.mxu0 0.0
    %600 = vmatpush2.msra.mxu0 0.0
    %601 = vmatprep.subr.mxu0 0.0
    %602 = vmatpush2.msra.mxu0 0.0
    %603 = vmatprep.subr.mxu0 0.0
    %604 = vmatpush2.msra.mxu0 0.0
    %605 = vmatprep.subr.mxu0 0.0
    %606 = vmatpush2.msra.mxu0 0.0
    %607 = vmatprep.subr.mxu0 0.0
    %608 = vmatpush2.msra.mxu0 0.0
    %609 = vmatprep.subr.mxu0 0.0
    %610 = vmatpush2.msra.mxu0 0.0
    %611 = vmatprep.mubr.f32.mxu0 0.0
    %612 = vmatmul.mubr.f32.gmra.mxu0 %v524
    %v613 = vpop.f32.mrf.mxu0
    %v614 = vadd.f32 %v520, %v613
    %v615 = vpop.f32.mrf.mxu0
    %616 = vmatprep.mubr.f32.mxu0 0.0
    %617 = vmatmul.mubr.f32.gmra.mxu0 %v527
    %v618 = vpop.f32.mrf.mxu0
    %v619 = vadd.f32 %v520, %v618
    %v620 = vpop.f32.mrf.mxu0
    %621 = vmatprep.mubr.f32.mxu0 0.0
    %622 = vmatmul.mubr.f32.gmra.mxu0 %v530
    %v623 = vpop.f32.mrf.mxu0
    %v624 = vadd.f32 %v520, %v623
    %v625 = vpop.f32.mrf.mxu0
    %626 = vmatprep.mubr.f32.mxu0 0.0
    %627 = vmatmul.mubr.f32.gmra.mxu0 %v533
    %v628 = vpop.f32.mrf.mxu0
    %v629 = vadd.f32 %v520, %v628
    %v630 = vpop.f32.mrf.mxu0
    %631 = vmatprep.mubr.f32.mxu0 0.0
    %632 = vmatmul.mubr.f32.gmra.mxu0 %v536
    %v633 = vpop.f32.mrf.mxu0
    %v634 = vadd.f32 %v520, %v633
    %v635 = vpop.f32.mrf.mxu0
    %636 = vmatprep.mubr.f32.mxu0 0.0
    %637 = vmatmul.mubr.f32.gmra.mxu0 %v539
    %v638 = vpop.f32.mrf.mxu0
    %v639 = vadd.f32 %v520, %v638
    %v640 = vpop.f32.mrf.mxu0
    %641 = vmatprep.mubr.f32.mxu0 0.0
    %642 = vmatmul.mubr.f32.gmra.mxu0 %v542
    %v643 = vpop.f32.mrf.mxu0
    %v644 = vadd.f32 %v520, %v643
    %v645 = vpop.f32.mrf.mxu0
    %646 = vmatprep.mubr.f32.mxu0 0.0
    %647 = vmatmul.mubr.f32.gmra.mxu0 %v545
    %v648 = vpop.f32.mrf.mxu0
    %v649 = vadd.f32 %v520, %v648
    %v650 = vpop.f32.mrf.mxu0
    %651 = vdwg.mxu0
    %v652 = vld [vmem:[%s6] sm:$0xff]
    %v653 = vld [vmem:[%s6 + $0x8] sm:$0xff]
    %v654 = vld [vmem:[%s6 + $0x10] sm:$0xff]
    %v655 = vld [vmem:[%s6 + $0x18] sm:$0xff]
    %v656 = vld [vmem:[%s7] sm:$0x1]
    %v658 = vlaneseq
    %v659 = vshrl.u32 %v658, 7
    %v660 = vsub.s32 0, %v659
    %v661 = vrot.slane %v656, %v660
    %663 = vmatprep.subr.mxu0 0.0
    %664 = vmatpush1.msra.mxu0 0.0
    %665 = vmatprep.subr.mxu0 0.0
    %666 = vmatpush1.msra.mxu0 0.0
    %667 = vmatprep.subr.mxu0 0.0
    %668 = vmatpush1.msra.mxu0 0.0
    %669 = vmatprep.subr.mxu0 0.0
    %670 = vmatpush1.msra.mxu0 0.0
    %671 = vmatprep.subr.mxu0 0.0
    %672 = vmatpush1.msra.mxu0 0.0
    %673 = vmatprep.subr.mxu0 0.0
    %674 = vmatpush1.msra.mxu0 0.0
    %675 = vmatprep.subr.mxu0 0.0
    %676 = vmatpush1.msra.mxu0 0.0
    %677 = vmatprep.subr.mxu0 0.0
    %678 = vmatpush1.msra.mxu0 0.0
    %679 = vmatprep.subr.mxu0 0.0
    %680 = vmatpush1.msra.mxu0 0.0
    %681 = vmatprep.subr.mxu0 0.0
    %682 = vmatpush1.msra.mxu0 0.0
    %683 = vmatprep.subr.mxu0 0.0
    %684 = vmatpush1.msra.mxu0 0.0
    %685 = vmatprep.subr.mxu0 0.0
    %686 = vmatpush1.msra.mxu0 0.0
    %687 = vmatprep.subr.mxu0 0.0
    %688 = vmatpush1.msra.mxu0 %v655
    %689 = vmatprep.subr.mxu0 0.0
    %690 = vmatpush1.msra.mxu0 %v654
    %691 = vmatprep.subr.mxu0 0.0
    %692 = vmatpush1.msra.mxu0 %v653
    %693 = vmatprep.subr.mxu0 0.0
    %694 = vmatpush1.msra.mxu0 %v652
    %695 = vmatprep.subr.mxu0 0.0
    %696 = vmatpush2.msra.mxu0 0.0
    %697 = vmatprep.subr.mxu0 0.0
    %698 = vmatpush2.msra.mxu0 0.0
    %699 = vmatprep.subr.mxu0 0.0
    %700 = vmatpush2.msra.mxu0 0.0
    %701 = vmatprep.subr.mxu0 0.0
    %702 = vmatpush2.msra.mxu0 0.0
    %703 = vmatprep.subr.mxu0 0.0
    %704 = vmatpush2.msra.mxu0 0.0
    %705 = vmatprep.subr.mxu0 0.0
    %706 = vmatpush2.msra.mxu0 0.0
    %707 = vmatprep.subr.mxu0 0.0
    %708 = vmatpush2.msra.mxu0 0.0
    %709 = vmatprep.subr.mxu0 0.0
    %710 = vmatpush2.msra.mxu0 0.0
    %711 = vmatprep.subr.mxu0 0.0
    %712 = vmatpush2.msra.mxu0 0.0
    %713 = vmatprep.subr.mxu0 0.0
    %714 = vmatpush2.msra.mxu0 0.0
    %715 = vmatprep.subr.mxu0 0.0
    %716 = vmatpush2.msra.mxu0 0.0
    %717 = vmatprep.subr.mxu0 0.0
    %718 = vmatpush2.msra.mxu0 0.0
    %719 = vmatprep.subr.mxu0 0.0
    %720 = vmatpush2.msra.mxu0 0.0
    %721 = vmatprep.subr.mxu0 0.0
    %722 = vmatpush2.msra.mxu0 0.0
    %723 = vmatprep.subr.mxu0 0.0
    %724 = vmatpush2.msra.mxu0 0.0
    %725 = vmatprep.subr.mxu0 0.0
    %726 = vmatpush2.msra.mxu0 0.0
    %727 = vmatprep.mubr.f32.mxu0 0.0
    %728 = vmatmul.mubr.f32.gmra.mxu0 %v524
    %v729 = vpop.f32.mrf.mxu0
    %v730 = vadd.f32 %v661, %v729
    %v731 = vpop.f32.mrf.mxu0
    %732 = vmatprep.mubr.f32.mxu0 0.0
    %733 = vmatmul.mubr.f32.gmra.mxu0 %v527
    %v734 = vpop.f32.mrf.mxu0
    %v735 = vadd.f32 %v661, %v734
    %v736 = vpop.f32.mrf.mxu0
    %737 = vmatprep.mubr.f32.mxu0 0.0
    %738 = vmatmul.mubr.f32.gmra.mxu0 %v530
    %v739 = vpop.f32.mrf.mxu0
    %v740 = vadd.f32 %v661, %v739
    %v741 = vpop.f32.mrf.mxu0
    %742 = vmatprep.mubr.f32.mxu0 0.0
    %743 = vmatmul.mubr.f32.gmra.mxu0 %v533
    %v744 = vpop.f32.mrf.mxu0
    %v745 = vadd.f32 %v661, %v744
    %v746 = vpop.f32.mrf.mxu0
    %747 = vmatprep.mubr.f32.mxu0 0.0
    %748 = vmatmul.mubr.f32.gmra.mxu0 %v536
    %v749 = vpop.f32.mrf.mxu0
    %v750 = vadd.f32 %v661, %v749
    %v751 = vpop.f32.mrf.mxu0
    %752 = vmatprep.mubr.f32.mxu0 0.0
    %753 = vmatmul.mubr.f32.gmra.mxu0 %v539
    %v754 = vpop.f32.mrf.mxu0
    %v755 = vadd.f32 %v661, %v754
    %v756 = vpop.f32.mrf.mxu0
    %757 = vmatprep.mubr.f32.mxu0 0.0
    %758 = vmatmul.mubr.f32.gmra.mxu0 %v542
    %v759 = vpop.f32.mrf.mxu0
    %v760 = vadd.f32 %v661, %v759
    %v761 = vpop.f32.mrf.mxu0
    %762 = vmatprep.mubr.f32.mxu0 0.0
    %763 = vmatmul.mubr.f32.gmra.mxu0 %v545
    %v764 = vpop.f32.mrf.mxu0
    %v765 = vadd.f32 %v661, %v764
    %v766 = vpop.f32.mrf.mxu0
    %767 = vdwg.mxu0
    %v768 = vld [vmem:[%s8] sm:$0xff]
    %v769 = vld [vmem:[%s8 + $0x8] sm:$0xff]
    %v770 = vld [vmem:[%s8 + $0x10] sm:$0xff]
    %v771 = vld [vmem:[%s8 + $0x18] sm:$0xff]
    %v772 = vld [vmem:[%s9] sm:$0x1]
    %v774 = vlaneseq
    %v775 = vshrl.u32 %v774, 7
    %v776 = vsub.s32 0, %v775
    %v777 = vrot.slane %v772, %v776
    %779 = vmatprep.subr.mxu0 0.0
    %780 = vmatpush1.msra.mxu0 0.0
    %781 = vmatprep.subr.mxu0 0.0
    %782 = vmatpush1.msra.mxu0 0.0
    %783 = vmatprep.subr.mxu0 0.0
    %784 = vmatpush1.msra.mxu0 0.0
    %785 = vmatprep.subr.mxu0 0.0
    %786 = vmatpush1.msra.mxu0 0.0
    %787 = vmatprep.subr.mxu0 0.0
    %788 = vmatpush1.msra.mxu0 0.0
    %789 = vmatprep.subr.mxu0 0.0
    %790 = vmatpush1.msra.mxu0 0.0
    %791 = vmatprep.subr.mxu0 0.0
    %792 = vmatpush1.msra.mxu0 0.0
    %793 = vmatprep.subr.mxu0 0.0
    %794 = vmatpush1.msra.mxu0 0.0
    %795 = vmatprep.subr.mxu0 0.0
    %796 = vmatpush1.msra.mxu0 0.0
    %797 = vmatprep.subr.mxu0 0.0
    %798 = vmatpush1.msra.mxu0 0.0
    %799 = vmatprep.subr.mxu0 0.0
    %800 = vmatpush1.msra.mxu0 0.0
    %801 = vmatprep.subr.mxu0 0.0
    %802 = vmatpush1.msra.mxu0 0.0
    %803 = vmatprep.subr.mxu0 0.0
    %804 = vmatpush1.msra.mxu0 %v771
    %805 = vmatprep.subr.mxu0 0.0
    %806 = vmatpush1.msra.mxu0 %v770
    %807 = vmatprep.subr.mxu0 0.0
    %808 = vmatpush1.msra.mxu0 %v769
    %809 = vmatprep.subr.mxu0 0.0
    %810 = vmatpush1.msra.mxu0 %v768
    %811 = vmatprep.subr.mxu0 0.0
    %812 = vmatpush2.msra.mxu0 0.0
    %813 = vmatprep.subr.mxu0 0.0
    %814 = vmatpush2.msra.mxu0 0.0
    %815 = vmatprep.subr.mxu0 0.0
    %816 = vmatpush2.msra.mxu0 0.0
    %817 = vmatprep.subr.mxu0 0.0
    %818 = vmatpush2.msra.mxu0 0.0
    %819 = vmatprep.subr.mxu0 0.0
    %820 = vmatpush2.msra.mxu0 0.0
    %821 = vmatprep.subr.mxu0 0.0
    %822 = vmatpush2.msra.mxu0 0.0
    %823 = vmatprep.subr.mxu0 0.0
    %824 = vmatpush2.msra.mxu0 0.0
    %825 = vmatprep.subr.mxu0 0.0
    %826 = vmatpush2.msra.mxu0 0.0
    %827 = vmatprep.subr.mxu0 0.0
    %828 = vmatpush2.msra.mxu0 0.0
    %829 = vmatprep.subr.mxu0 0.0
    %830 = vmatpush2.msra.mxu0 0.0
    %831 = vmatprep.subr.mxu0 0.0
    %832 = vmatpush2.msra.mxu0 0.0
    %833 = vmatprep.subr.mxu0 0.0
    %834 = vmatpush2.msra.mxu0 0.0
    %835 = vmatprep.subr.mxu0 0.0
    %836 = vmatpush2.msra.mxu0 0.0
    %837 = vmatprep.subr.mxu0 0.0
    %838 = vmatpush2.msra.mxu0 0.0
    %839 = vmatprep.subr.mxu0 0.0
    %840 = vmatpush2.msra.mxu0 0.0
    %841 = vmatprep.subr.mxu0 0.0
    %842 = vmatpush2.msra.mxu0 0.0
    %843 = vmatprep.mubr.f32.mxu0 0.0
    %844 = vmatmul.mubr.f32.gmra.mxu0 %v524
    %v845 = vpop.f32.mrf.mxu0
    %v846 = vadd.f32 %v777, %v845
    %v847 = vpop.f32.mrf.mxu0
    %848 = vmatprep.mubr.f32.mxu0 0.0
    %849 = vmatmul.mubr.f32.gmra.mxu0 %v527
    %v850 = vpop.f32.mrf.mxu0
    %v851 = vadd.f32 %v777, %v850
    %v852 = vpop.f32.mrf.mxu0
    %853 = vmatprep.mubr.f32.mxu0 0.0
    %854 = vmatmul.mubr.f32.gmra.mxu0 %v530
    %v855 = vpop.f32.mrf.mxu0
    %v856 = vadd.f32 %v777, %v855
    %v857 = vpop.f32.mrf.mxu0
    %858 = vmatprep.mubr.f32.mxu0 0.0
    %859 = vmatmul.mubr.f32.gmra.mxu0 %v533
    %v860 = vpop.f32.mrf.mxu0
    %v861 = vadd.f32 %v777, %v860
    %v862 = vpop.f32.mrf.mxu0
    %863 = vmatprep.mubr.f32.mxu0 0.0
    %864 = vmatmul.mubr.f32.gmra.mxu0 %v536
    %v865 = vpop.f32.mrf.mxu0
    %v866 = vadd.f32 %v777, %v865
    %v867 = vpop.f32.mrf.mxu0
    %868 = vmatprep.mubr.f32.mxu0 0.0
    %869 = vmatmul.mubr.f32.gmra.mxu0 %v539
    %v870 = vpop.f32.mrf.mxu0
    %v871 = vadd.f32 %v777, %v870
    %v872 = vpop.f32.mrf.mxu0
    %873 = vmatprep.mubr.f32.mxu0 0.0
    %874 = vmatmul.mubr.f32.gmra.mxu0 %v542
    %v875 = vpop.f32.mrf.mxu0
    %v876 = vadd.f32 %v777, %v875
    %v877 = vpop.f32.mrf.mxu0
    %878 = vmatprep.mubr.f32.mxu0 0.0
    %879 = vmatmul.mubr.f32.gmra.mxu0 %v545
    %v880 = vpop.f32.mrf.mxu0
    %v881 = vadd.f32 %v777, %v880
    %v882 = vpop.f32.mrf.mxu0
    %883 = vdwg.mxu0
    %v892 = vlaneseq
    %v893 = vshrl.u32 %v892, 7
    %v894 = vsub.s32 0, %v893
    %v895 = vrot.slane %v488, %v894
    %v896 = vlaneseq
    %v897 = vshrl.u32 %v896, 7
    %v898 = vsub.s32 0, %v897
    %v899 = vrot.slane %v489, %v898
    %v900 = vlaneseq
    %v901 = vshrl.u32 %v900, 7
    %v902 = vsub.s32 0, %v901
    %v903 = vrot.slane %v490, %v902
    %v904 = vlaneseq
    %v905 = vshrl.u32 %v904, 7
    %v906 = vsub.s32 0, %v905
    %v907 = vrot.slane %v491, %v906
    %v908 = vlaneseq
    %v909 = vshrl.u32 %v908, 7
    %v910 = vsub.s32 0, %v909
    %v911 = vrot.slane %v492, %v910
    %v912 = vlaneseq
    %v913 = vshrl.u32 %v912, 7
    %v914 = vsub.s32 0, %v913
    %v915 = vrot.slane %v493, %v914
    %v916 = vlaneseq
    %v917 = vshrl.u32 %v916, 7
    %v918 = vsub.s32 0, %v917
    %v919 = vrot.slane %v494, %v918
    %v920 = vlaneseq
    %v921 = vshrl.u32 %v920, 7
    %v922 = vsub.s32 0, %v921
    %v923 = vrot.slane %v495, %v922
    %vm932 = vcmask 64512
    %v934 = vsel %vm932, %v614, 0
    %v937 = vsel %vm932, %v730, 0
    %939 = vmatprep.subr.mxu0 0.0
    %940 = vmatpush1.xpose.msra.mxu0 0.0
    %941 = vmatprep.subr.mxu0 0.0
    %942 = vmatpush1.xpose.msra.mxu0 0.0
    %943 = vmatprep.subr.mxu0 0.0
    %944 = vmatpush1.xpose.msra.mxu0 0.0
    %945 = vmatprep.subr.mxu0 0.0
    %946 = vmatpush1.xpose.msra.mxu0 0.0
    %947 = vmatprep.subr.mxu0 0.0
    %948 = vmatpush1.xpose.msra.mxu0 0.0
    %949 = vmatprep.subr.mxu0 0.0
    %950 = vmatpush1.xpose.msra.mxu0 0.0
    %951 = vmatprep.subr.mxu0 0.0
    %952 = vmatpush1.xpose.msra.mxu0 0.0
    %953 = vmatprep.subr.mxu0 0.0
    %954 = vmatpush1.xpose.msra.mxu0 0.0
    %955 = vmatprep.subr.mxu0 0.0
    %956 = vmatpush1.xpose.msra.mxu0 0.0
    %957 = vmatprep.subr.mxu0 0.0
    %958 = vmatpush1.xpose.msra.mxu0 0.0
    %959 = vmatprep.subr.mxu0 0.0
    %960 = vmatpush1.xpose.msra.mxu0 0.0
    %961 = vmatprep.subr.mxu0 0.0
    %962 = vmatpush1.xpose.msra.mxu0 0.0
    %963 = vmatprep.subr.mxu0 0.0
    %964 = vmatpush1.xpose.msra.mxu0 0.0
    %965 = vmatprep.subr.mxu0 0.0
    %966 = vmatpush1.xpose.msra.mxu0 0.0
    %967 = vmatprep.subr.mxu0 0.0
    %968 = vmatpush1.xpose.msra.mxu0 0.0
    %969 = vmatprep.subr.mxu0 0.0
    %970 = vmatpush1.xpose.msra.mxu0 %v937
    %971 = vmatprep.subr.mxu0 0.0
    %972 = vmatpush2.xpose.msra.mxu0 0.0
    %973 = vmatprep.subr.mxu0 0.0
    %974 = vmatpush2.xpose.msra.mxu0 0.0
    %975 = vmatprep.subr.mxu0 0.0
    %976 = vmatpush2.xpose.msra.mxu0 0.0
    %977 = vmatprep.subr.mxu0 0.0
    %978 = vmatpush2.xpose.msra.mxu0 0.0
    %979 = vmatprep.subr.mxu0 0.0
    %980 = vmatpush2.xpose.msra.mxu0 0.0
    %981 = vmatprep.subr.mxu0 0.0
    %982 = vmatpush2.xpose.msra.mxu0 0.0
    %983 = vmatprep.subr.mxu0 0.0
    %984 = vmatpush2.xpose.msra.mxu0 0.0
    %985 = vmatprep.subr.mxu0 0.0
    %986 = vmatpush2.xpose.msra.mxu0 0.0
    %987 = vmatprep.subr.mxu0 0.0
    %988 = vmatpush2.xpose.msra.mxu0 0.0
    %989 = vmatprep.subr.mxu0 0.0
    %990 = vmatpush2.xpose.msra.mxu0 0.0
    %991 = vmatprep.subr.mxu0 0.0
    %992 = vmatpush2.xpose.msra.mxu0 0.0
    %993 = vmatprep.subr.mxu0 0.0
    %994 = vmatpush2.xpose.msra.mxu0 0.0
    %995 = vmatprep.subr.mxu0 0.0
    %996 = vmatpush2.xpose.msra.mxu0 0.0
    %997 = vmatprep.subr.mxu0 0.0
    %998 = vmatpush2.xpose.msra.mxu0 0.0
    %999 = vmatprep.subr.mxu0 0.0
    %1000 = vmatpush2.xpose.msra.mxu0 0.0
    %1001 = vmatprep.subr.mxu0 0.0
    %1002 = vmatpush2.xpose.msra.mxu0 0.0
    %1003 = vmatprep.mubr.f32.mxu0 0.0
    %1004 = vmatmul.mubr.f32.gmra.mxu0 %v934
    %v1005 = vpop.f32.mrf.mxu0
    %v1006 = vadd.f32 %v895, %v1005
    %v1007 = vpop.f32.mrf.mxu0
    %1008 = vdwg.mxu0
    %v1010 = vsel %vm932, %v619, 0
    %v1013 = vsel %vm932, %v735, 0
    %1015 = vmatprep.subr.mxu0 0.0
    %1016 = vmatpush1.xpose.msra.mxu0 0.0
    %1017 = vmatprep.subr.mxu0 0.0
    %1018 = vmatpush1.xpose.msra.mxu0 0.0
    %1019 = vmatprep.subr.mxu0 0.0
    %1020 = vmatpush1.xpose.msra.mxu0 0.0
    %1021 = vmatprep.subr.mxu0 0.0
    %1022 = vmatpush1.xpose.msra.mxu0 0.0
    %1023 = vmatprep.subr.mxu0 0.0
    %1024 = vmatpush1.xpose.msra.mxu0 0.0
    %1025 = vmatprep.subr.mxu0 0.0
    %1026 = vmatpush1.xpose.msra.mxu0 0.0
    %1027 = vmatprep.subr.mxu0 0.0
    %1028 = vmatpush1.xpose.msra.mxu0 0.0
    %1029 = vmatprep.subr.mxu0 0.0
    %1030 = vmatpush1.xpose.msra.mxu0 0.0
    %1031 = vmatprep.subr.mxu0 0.0
    %1032 = vmatpush1.xpose.msra.mxu0 0.0
    %1033 = vmatprep.subr.mxu0 0.0
    %1034 = vmatpush1.xpose.msra.mxu0 0.0
    %1035 = vmatprep.subr.mxu0 0.0
    %1036 = vmatpush1.xpose.msra.mxu0 0.0
    %1037 = vmatprep.subr.mxu0 0.0
    %1038 = vmatpush1.xpose.msra.mxu0 0.0
    %1039 = vmatprep.subr.mxu0 0.0
    %1040 = vmatpush1.xpose.msra.mxu0 0.0
    %1041 = vmatprep.subr.mxu0 0.0
    %1042 = vmatpush1.xpose.msra.mxu0 0.0
    %1043 = vmatprep.subr.mxu0 0.0
    %1044 = vmatpush1.xpose.msra.mxu0 0.0
    %1045 = vmatprep.subr.mxu0 0.0
    %1046 = vmatpush1.xpose.msra.mxu0 %v1013
    %1047 = vmatprep.subr.mxu0 0.0
    %1048 = vmatpush2.xpose.msra.mxu0 0.0
    %1049 = vmatprep.subr.mxu0 0.0
    %1050 = vmatpush2.xpose.msra.mxu0 0.0
    %1051 = vmatprep.subr.mxu0 0.0
    %1052 = vmatpush2.xpose.msra.mxu0 0.0
    %1053 = vmatprep.subr.mxu0 0.0
    %1054 = vmatpush2.xpose.msra.mxu0 0.0
    %1055 = vmatprep.subr.mxu0 0.0
    %1056 = vmatpush2.xpose.msra.mxu0 0.0
    %1057 = vmatprep.subr.mxu0 0.0
    %1058 = vmatpush2.xpose.msra.mxu0 0.0
    %1059 = vmatprep.subr.mxu0 0.0
    %1060 = vmatpush2.xpose.msra.mxu0 0.0
    %1061 = vmatprep.subr.mxu0 0.0
    %1062 = vmatpush2.xpose.msra.mxu0 0.0
    %1063 = vmatprep.subr.mxu0 0.0
    %1064 = vmatpush2.xpose.msra.mxu0 0.0
    %1065 = vmatprep.subr.mxu0 0.0
    %1066 = vmatpush2.xpose.msra.mxu0 0.0
    %1067 = vmatprep.subr.mxu0 0.0
    %1068 = vmatpush2.xpose.msra.mxu0 0.0
    %1069 = vmatprep.subr.mxu0 0.0
    %1070 = vmatpush2.xpose.msra.mxu0 0.0
    %1071 = vmatprep.subr.mxu0 0.0
    %1072 = vmatpush2.xpose.msra.mxu0 0.0
    %1073 = vmatprep.subr.mxu0 0.0
    %1074 = vmatpush2.xpose.msra.mxu0 0.0
    %1075 = vmatprep.subr.mxu0 0.0
    %1076 = vmatpush2.xpose.msra.mxu0 0.0
    %1077 = vmatprep.subr.mxu0 0.0
    %1078 = vmatpush2.xpose.msra.mxu0 0.0
    %1079 = vmatprep.mubr.f32.mxu0 0.0
    %1080 = vmatmul.mubr.f32.gmra.mxu0 %v1010
    %v1081 = vpop.f32.mrf.mxu0
    %v1082 = vadd.f32 %v899, %v1081
    %v1083 = vpop.f32.mrf.mxu0
    %1084 = vdwg.mxu0
    %v1086 = vsel %vm932, %v624, 0
    %v1089 = vsel %vm932, %v740, 0
    %1091 = vmatprep.subr.mxu0 0.0
    %1092 = vmatpush1.xpose.msra.mxu0 0.0
    %1093 = vmatprep.subr.mxu0 0.0
    %1094 = vmatpush1.xpose.msra.mxu0 0.0
    %1095 = vmatprep.subr.mxu0 0.0
    %1096 = vmatpush1.xpose.msra.mxu0 0.0
    %1097 = vmatprep.subr.mxu0 0.0
    %1098 = vmatpush1.xpose.msra.mxu0 0.0
    %1099 = vmatprep.subr.mxu0 0.0
    %1100 = vmatpush1.xpose.msra.mxu0 0.0
    %1101 = vmatprep.subr.mxu0 0.0
    %1102 = vmatpush1.xpose.msra.mxu0 0.0
    %1103 = vmatprep.subr.mxu0 0.0
    %1104 = vmatpush1.xpose.msra.mxu0 0.0
    %1105 = vmatprep.subr.mxu0 0.0
    %1106 = vmatpush1.xpose.msra.mxu0 0.0
    %1107 = vmatprep.subr.mxu0 0.0
    %1108 = vmatpush1.xpose.msra.mxu0 0.0
    %1109 = vmatprep.subr.mxu0 0.0
    %1110 = vmatpush1.xpose.msra.mxu0 0.0
    %1111 = vmatprep.subr.mxu0 0.0
    %1112 = vmatpush1.xpose.msra.mxu0 0.0
    %1113 = vmatprep.subr.mxu0 0.0
    %1114 = vmatpush1.xpose.msra.mxu0 0.0
    %1115 = vmatprep.subr.mxu0 0.0
    %1116 = vmatpush1.xpose.msra.mxu0 0.0
    %1117 = vmatprep.subr.mxu0 0.0
    %1118 = vmatpush1.xpose.msra.mxu0 0.0
    %1119 = vmatprep.subr.mxu0 0.0
    %1120 = vmatpush1.xpose.msra.mxu0 0.0
    %1121 = vmatprep.subr.mxu0 0.0
    %1122 = vmatpush1.xpose.msra.mxu0 %v1089
    %1123 = vmatprep.subr.mxu0 0.0
    %1124 = vmatpush2.xpose.msra.mxu0 0.0
    %1125 = vmatprep.subr.mxu0 0.0
    %1126 = vmatpush2.xpose.msra.mxu0 0.0
    %1127 = vmatprep.subr.mxu0 0.0
    %1128 = vmatpush2.xpose.msra.mxu0 0.0
    %1129 = vmatprep.subr.mxu0 0.0
    %1130 = vmatpush2.xpose.msra.mxu0 0.0
    %1131 = vmatprep.subr.mxu0 0.0
    %1132 = vmatpush2.xpose.msra.mxu0 0.0
    %1133 = vmatprep.subr.mxu0 0.0
    %1134 = vmatpush2.xpose.msra.mxu0 0.0
    %1135 = vmatprep.subr.mxu0 0.0
    %1136 = vmatpush2.xpose.msra.mxu0 0.0
    %1137 = vmatprep.subr.mxu0 0.0
    %1138 = vmatpush2.xpose.msra.mxu0 0.0
    %1139 = vmatprep.subr.mxu0 0.0
    %1140 = vmatpush2.xpose.msra.mxu0 0.0
    %1141 = vmatprep.subr.mxu0 0.0
    %1142 = vmatpush2.xpose.msra.mxu0 0.0
    %1143 = vmatprep.subr.mxu0 0.0
    %1144 = vmatpush2.xpose.msra.mxu0 0.0
    %1145 = vmatprep.subr.mxu0 0.0
    %1146 = vmatpush2.xpose.msra.mxu0 0.0
    %1147 = vmatprep.subr.mxu0 0.0
    %1148 = vmatpush2.xpose.msra.mxu0 0.0
    %1149 = vmatprep.subr.mxu0 0.0
    %1150 = vmatpush2.xpose.msra.mxu0 0.0
    %1151 = vmatprep.subr.mxu0 0.0
    %1152 = vmatpush2.xpose.msra.mxu0 0.0
    %1153 = vmatprep.subr.mxu0 0.0
    %1154 = vmatpush2.xpose.msra.mxu0 0.0
    %1155 = vmatprep.mubr.f32.mxu0 0.0
    %1156 = vmatmul.mubr.f32.gmra.mxu0 %v1086
    %v1157 = vpop.f32.mrf.mxu0
    %v1158 = vadd.f32 %v903, %v1157
    %v1159 = vpop.f32.mrf.mxu0
    %1160 = vdwg.mxu0
    %v1162 = vsel %vm932, %v629, 0
    %v1165 = vsel %vm932, %v745, 0
    %1167 = vmatprep.subr.mxu0 0.0
    %1168 = vmatpush1.xpose.msra.mxu0 0.0
    %1169 = vmatprep.subr.mxu0 0.0
    %1170 = vmatpush1.xpose.msra.mxu0 0.0
    %1171 = vmatprep.subr.mxu0 0.0
    %1172 = vmatpush1.xpose.msra.mxu0 0.0
    %1173 = vmatprep.subr.mxu0 0.0
    %1174 = vmatpush1.xpose.msra.mxu0 0.0
    %1175 = vmatprep.subr.mxu0 0.0
    %1176 = vmatpush1.xpose.msra.mxu0 0.0
    %1177 = vmatprep.subr.mxu0 0.0
    %1178 = vmatpush1.xpose.msra.mxu0 0.0
    %1179 = vmatprep.subr.mxu0 0.0
    %1180 = vmatpush1.xpose.msra.mxu0 0.0
    %1181 = vmatprep.subr.mxu0 0.0
    %1182 = vmatpush1.xpose.msra.mxu0 0.0
    %1183 = vmatprep.subr.mxu0 0.0
    %1184 = vmatpush1.xpose.msra.mxu0 0.0
    %1185 = vmatprep.subr.mxu0 0.0
    %1186 = vmatpush1.xpose.msra.mxu0 0.0
    %1187 = vmatprep.subr.mxu0 0.0
    %1188 = vmatpush1.xpose.msra.mxu0 0.0
    %1189 = vmatprep.subr.mxu0 0.0
    %1190 = vmatpush1.xpose.msra.mxu0 0.0
    %1191 = vmatprep.subr.mxu0 0.0
    %1192 = vmatpush1.xpose.msra.mxu0 0.0
    %1193 = vmatprep.subr.mxu0 0.0
    %1194 = vmatpush1.xpose.msra.mxu0 0.0
    %1195 = vmatprep.subr.mxu0 0.0
    %1196 = vmatpush1.xpose.msra.mxu0 0.0
    %1197 = vmatprep.subr.mxu0 0.0
    %1198 = vmatpush1.xpose.msra.mxu0 %v1165
    %1199 = vmatprep.subr.mxu0 0.0
    %1200 = vmatpush2.xpose.msra.mxu0 0.0
    %1201 = vmatprep.subr.mxu0 0.0
    %1202 = vmatpush2.xpose.msra.mxu0 0.0
    %1203 = vmatprep.subr.mxu0 0.0
    %1204 = vmatpush2.xpose.msra.mxu0 0.0
    %1205 = vmatprep.subr.mxu0 0.0
    %1206 = vmatpush2.xpose.msra.mxu0 0.0
    %1207 = vmatprep.subr.mxu0 0.0
    %1208 = vmatpush2.xpose.msra.mxu0 0.0
    %1209 = vmatprep.subr.mxu0 0.0
    %1210 = vmatpush2.xpose.msra.mxu0 0.0
    %1211 = vmatprep.subr.mxu0 0.0
    %1212 = vmatpush2.xpose.msra.mxu0 0.0
    %1213 = vmatprep.subr.mxu0 0.0
    %1214 = vmatpush2.xpose.msra.mxu0 0.0
    %1215 = vmatprep.subr.mxu0 0.0
    %1216 = vmatpush2.xpose.msra.mxu0 0.0
    %1217 = vmatprep.subr.mxu0 0.0
    %1218 = vmatpush2.xpose.msra.mxu0 0.0
    %1219 = vmatprep.subr.mxu0 0.0
    %1220 = vmatpush2.xpose.msra.mxu0 0.0
    %1221 = vmatprep.subr.mxu0 0.0
    %1222 = vmatpush2.xpose.msra.mxu0 0.0
    %1223 = vmatprep.subr.mxu0 0.0
    %1224 = vmatpush2.xpose.msra.mxu0 0.0
    %1225 = vmatprep.subr.mxu0 0.0
    %1226 = vmatpush2.xpose.msra.mxu0 0.0
    %1227 = vmatprep.subr.mxu0 0.0
    %1228 = vmatpush2.xpose.msra.mxu0 0.0
    %1229 = vmatprep.subr.mxu0 0.0
    %1230 = vmatpush2.xpose.msra.mxu0 0.0
    %1231 = vmatprep.mubr.f32.mxu0 0.0
    %1232 = vmatmul.mubr.f32.gmra.mxu0 %v1162
    %v1233 = vpop.f32.mrf.mxu0
    %v1234 = vadd.f32 %v907, %v1233
    %v1235 = vpop.f32.mrf.mxu0
    %1236 = vdwg.mxu0
    %v1238 = vsel %vm932, %v634, 0
    %v1241 = vsel %vm932, %v750, 0
    %1243 = vmatprep.subr.mxu0 0.0
    %1244 = vmatpush1.xpose.msra.mxu0 0.0
    %1245 = vmatprep.subr.mxu0 0.0
    %1246 = vmatpush1.xpose.msra.mxu0 0.0
    %1247 = vmatprep.subr.mxu0 0.0
    %1248 = vmatpush1.xpose.msra.mxu0 0.0
    %1249 = vmatprep.subr.mxu0 0.0
    %1250 = vmatpush1.xpose.msra.mxu0 0.0
    %1251 = vmatprep.subr.mxu0 0.0
    %1252 = vmatpush1.xpose.msra.mxu0 0.0
    %1253 = vmatprep.subr.mxu0 0.0
    %1254 = vmatpush1.xpose.msra.mxu0 0.0
    %1255 = vmatprep.subr.mxu0 0.0
    %1256 = vmatpush1.xpose.msra.mxu0 0.0
    %1257 = vmatprep.subr.mxu0 0.0
    %1258 = vmatpush1.xpose.msra.mxu0 0.0
    %1259 = vmatprep.subr.mxu0 0.0
    %1260 = vmatpush1.xpose.msra.mxu0 0.0
    %1261 = vmatprep.subr.mxu0 0.0
    %1262 = vmatpush1.xpose.msra.mxu0 0.0
    %1263 = vmatprep.subr.mxu0 0.0
    %1264 = vmatpush1.xpose.msra.mxu0 0.0
    %1265 = vmatprep.subr.mxu0 0.0
    %1266 = vmatpush1.xpose.msra.mxu0 0.0
    %1267 = vmatprep.subr.mxu0 0.0
    %1268 = vmatpush1.xpose.msra.mxu0 0.0
    %1269 = vmatprep.subr.mxu0 0.0
    %1270 = vmatpush1.xpose.msra.mxu0 0.0
    %1271 = vmatprep.subr.mxu0 0.0
    %1272 = vmatpush1.xpose.msra.mxu0 0.0
    %1273 = vmatprep.subr.mxu0 0.0
    %1274 = vmatpush1.xpose.msra.mxu0 %v1241
    %1275 = vmatprep.subr.mxu0 0.0
    %1276 = vmatpush2.xpose.msra.mxu0 0.0
    %1277 = vmatprep.subr.mxu0 0.0
    %1278 = vmatpush2.xpose.msra.mxu0 0.0
    %1279 = vmatprep.subr.mxu0 0.0
    %1280 = vmatpush2.xpose.msra.mxu0 0.0
    %1281 = vmatprep.subr.mxu0 0.0
    %1282 = vmatpush2.xpose.msra.mxu0 0.0
    %1283 = vmatprep.subr.mxu0 0.0
    %1284 = vmatpush2.xpose.msra.mxu0 0.0
    %1285 = vmatprep.subr.mxu0 0.0
    %1286 = vmatpush2.xpose.msra.mxu0 0.0
    %1287 = vmatprep.subr.mxu0 0.0
    %1288 = vmatpush2.xpose.msra.mxu0 0.0
    %1289 = vmatprep.subr.mxu0 0.0
    %1290 = vmatpush2.xpose.msra.mxu0 0.0
    %1291 = vmatprep.subr.mxu0 0.0
    %1292 = vmatpush2.xpose.msra.mxu0 0.0
    %1293 = vmatprep.subr.mxu0 0.0
    %1294 = vmatpush2.xpose.msra.mxu0 0.0
    %1295 = vmatprep.subr.mxu0 0.0
    %1296 = vmatpush2.xpose.msra.mxu0 0.0
    %1297 = vmatprep.subr.mxu0 0.0
    %1298 = vmatpush2.xpose.msra.mxu0 0.0
    %1299 = vmatprep.subr.mxu0 0.0
    %1300 = vmatpush2.xpose.msra.mxu0 0.0
    %1301 = vmatprep.subr.mxu0 0.0
    %1302 = vmatpush2.xpose.msra.mxu0 0.0
    %1303 = vmatprep.subr.mxu0 0.0
    %1304 = vmatpush2.xpose.msra.mxu0 0.0
    %1305 = vmatprep.subr.mxu0 0.0
    %1306 = vmatpush2.xpose.msra.mxu0 0.0
    %1307 = vmatprep.mubr.f32.mxu0 0.0
    %1308 = vmatmul.mubr.f32.gmra.mxu0 %v1238
    %v1309 = vpop.f32.mrf.mxu0
    %v1310 = vadd.f32 %v911, %v1309
    %v1311 = vpop.f32.mrf.mxu0
    %1312 = vdwg.mxu0
    %v1314 = vsel %vm932, %v639, 0
    %v1317 = vsel %vm932, %v755, 0
    %1319 = vmatprep.subr.mxu0 0.0
    %1320 = vmatpush1.xpose.msra.mxu0 0.0
    %1321 = vmatprep.subr.mxu0 0.0
    %1322 = vmatpush1.xpose.msra.mxu0 0.0
    %1323 = vmatprep.subr.mxu0 0.0
    %1324 = vmatpush1.xpose.msra.mxu0 0.0
    %1325 = vmatprep.subr.mxu0 0.0
    %1326 = vmatpush1.xpose.msra.mxu0 0.0
    %1327 = vmatprep.subr.mxu0 0.0
    %1328 = vmatpush1.xpose.msra.mxu0 0.0
    %1329 = vmatprep.subr.mxu0 0.0
    %1330 = vmatpush1.xpose.msra.mxu0 0.0
    %1331 = vmatprep.subr.mxu0 0.0
    %1332 = vmatpush1.xpose.msra.mxu0 0.0
    %1333 = vmatprep.subr.mxu0 0.0
    %1334 = vmatpush1.xpose.msra.mxu0 0.0
    %1335 = vmatprep.subr.mxu0 0.0
    %1336 = vmatpush1.xpose.msra.mxu0 0.0
    %1337 = vmatprep.subr.mxu0 0.0
    %1338 = vmatpush1.xpose.msra.mxu0 0.0
    %1339 = vmatprep.subr.mxu0 0.0
    %1340 = vmatpush1.xpose.msra.mxu0 0.0
    %1341 = vmatprep.subr.mxu0 0.0
    %1342 = vmatpush1.xpose.msra.mxu0 0.0
    %1343 = vmatprep.subr.mxu0 0.0
    %1344 = vmatpush1.xpose.msra.mxu0 0.0
    %1345 = vmatprep.subr.mxu0 0.0
    %1346 = vmatpush1.xpose.msra.mxu0 0.0
    %1347 = vmatprep.subr.mxu0 0.0
    %1348 = vmatpush1.xpose.msra.mxu0 0.0
    %1349 = vmatprep.subr.mxu0 0.0
    %1350 = vmatpush1.xpose.msra.mxu0 %v1317
    %1351 = vmatprep.subr.mxu0 0.0
    %1352 = vmatpush2.xpose.msra.mxu0 0.0
    %1353 = vmatprep.subr.mxu0 0.0
    %1354 = vmatpush2.xpose.msra.mxu0 0.0
    %1355 = vmatprep.subr.mxu0 0.0
    %1356 = vmatpush2.xpose.msra.mxu0 0.0
    %1357 = vmatprep.subr.mxu0 0.0
    %1358 = vmatpush2.xpose.msra.mxu0 0.0
    %1359 = vmatprep.subr.mxu0 0.0
    %1360 = vmatpush2.xpose.msra.mxu0 0.0
    %1361 = vmatprep.subr.mxu0 0.0
    %1362 = vmatpush2.xpose.msra.mxu0 0.0
    %1363 = vmatprep.subr.mxu0 0.0
    %1364 = vmatpush2.xpose.msra.mxu0 0.0
    %1365 = vmatprep.subr.mxu0 0.0
    %1366 = vmatpush2.xpose.msra.mxu0 0.0
    %1367 = vmatprep.subr.mxu0 0.0
    %1368 = vmatpush2.xpose.msra.mxu0 0.0
    %1369 = vmatprep.subr.mxu0 0.0
    %1370 = vmatpush2.xpose.msra.mxu0 0.0
    %1371 = vmatprep.subr.mxu0 0.0
    %1372 = vmatpush2.xpose.msra.mxu0 0.0
    %1373 = vmatprep.subr.mxu0 0.0
    %1374 = vmatpush2.xpose.msra.mxu0 0.0
    %1375 = vmatprep.subr.mxu0 0.0
    %1376 = vmatpush2.xpose.msra.mxu0 0.0
    %1377 = vmatprep.subr.mxu0 0.0
    %1378 = vmatpush2.xpose.msra.mxu0 0.0
    %1379 = vmatprep.subr.mxu0 0.0
    %1380 = vmatpush2.xpose.msra.mxu0 0.0
    %1381 = vmatprep.subr.mxu0 0.0
    %1382 = vmatpush2.xpose.msra.mxu0 0.0
    %1383 = vmatprep.mubr.f32.mxu0 0.0
    %1384 = vmatmul.mubr.f32.gmra.mxu0 %v1314
    %v1385 = vpop.f32.mrf.mxu0
    %v1386 = vadd.f32 %v915, %v1385
    %v1387 = vpop.f32.mrf.mxu0
    %1388 = vdwg.mxu0
    %v1390 = vsel %vm932, %v644, 0
    %v1393 = vsel %vm932, %v760, 0
    %1395 = vmatprep.subr.mxu0 0.0
    %1396 = vmatpush1.xpose.msra.mxu0 0.0
    %1397 = vmatprep.subr.mxu0 0.0
    %1398 = vmatpush1.xpose.msra.mxu0 0.0
    %1399 = vmatprep.subr.mxu0 0.0
    %1400 = vmatpush1.xpose.msra.mxu0 0.0
    %1401 = vmatprep.subr.mxu0 0.0
    %1402 = vmatpush1.xpose.msra.mxu0 0.0
    %1403 = vmatprep.subr.mxu0 0.0
    %1404 = vmatpush1.xpose.msra.mxu0 0.0
    %1405 = vmatprep.subr.mxu0 0.0
    %1406 = vmatpush1.xpose.msra.mxu0 0.0
    %1407 = vmatprep.subr.mxu0 0.0
    %1408 = vmatpush1.xpose.msra.mxu0 0.0
    %1409 = vmatprep.subr.mxu0 0.0
    %1410 = vmatpush1.xpose.msra.mxu0 0.0
    %1411 = vmatprep.subr.mxu0 0.0
    %1412 = vmatpush1.xpose.msra.mxu0 0.0
    %1413 = vmatprep.subr.mxu0 0.0
    %1414 = vmatpush1.xpose.msra.mxu0 0.0
    %1415 = vmatprep.subr.mxu0 0.0
    %1416 = vmatpush1.xpose.msra.mxu0 0.0
    %1417 = vmatprep.subr.mxu0 0.0
    %1418 = vmatpush1.xpose.msra.mxu0 0.0
    %1419 = vmatprep.subr.mxu0 0.0
    %1420 = vmatpush1.xpose.msra.mxu0 0.0
    %1421 = vmatprep.subr.mxu0 0.0
    %1422 = vmatpush1.xpose.msra.mxu0 0.0
    %1423 = vmatprep.subr.mxu0 0.0
    %1424 = vmatpush1.xpose.msra.mxu0 0.0
    %1425 = vmatprep.subr.mxu0 0.0
    %1426 = vmatpush1.xpose.msra.mxu0 %v1393
    %1427 = vmatprep.subr.mxu0 0.0
    %1428 = vmatpush2.xpose.msra.mxu0 0.0
    %1429 = vmatprep.subr.mxu0 0.0
    %1430 = vmatpush2.xpose.msra.mxu0 0.0
    %1431 = vmatprep.subr.mxu0 0.0
    %1432 = vmatpush2.xpose.msra.mxu0 0.0
    %1433 = vmatprep.subr.mxu0 0.0
    %1434 = vmatpush2.xpose.msra.mxu0 0.0
    %1435 = vmatprep.subr.mxu0 0.0
    %1436 = vmatpush2.xpose.msra.mxu0 0.0
    %1437 = vmatprep.subr.mxu0 0.0
    %1438 = vmatpush2.xpose.msra.mxu0 0.0
    %1439 = vmatprep.subr.mxu0 0.0
    %1440 = vmatpush2.xpose.msra.mxu0 0.0
    %1441 = vmatprep.subr.mxu0 0.0
    %1442 = vmatpush2.xpose.msra.mxu0 0.0
    %1443 = vmatprep.subr.mxu0 0.0
    %1444 = vmatpush2.xpose.msra.mxu0 0.0
    %1445 = vmatprep.subr.mxu0 0.0
    %1446 = vmatpush2.xpose.msra.mxu0 0.0
    %1447 = vmatprep.subr.mxu0 0.0
    %1448 = vmatpush2.xpose.msra.mxu0 0.0
    %1449 = vmatprep.subr.mxu0 0.0
    %1450 = vmatpush2.xpose.msra.mxu0 0.0
    %1451 = vmatprep.subr.mxu0 0.0
    %1452 = vmatpush2.xpose.msra.mxu0 0.0
    %1453 = vmatprep.subr.mxu0 0.0
    %1454 = vmatpush2.xpose.msra.mxu0 0.0
    %1455 = vmatprep.subr.mxu0 0.0
    %1456 = vmatpush2.xpose.msra.mxu0 0.0
    %1457 = vmatprep.subr.mxu0 0.0
    %1458 = vmatpush2.xpose.msra.mxu0 0.0
    %1459 = vmatprep.mubr.f32.mxu0 0.0
    %1460 = vmatmul.mubr.f32.gmra.mxu0 %v1390
    %v1461 = vpop.f32.mrf.mxu0
    %v1462 = vadd.f32 %v919, %v1461
    %v1463 = vpop.f32.mrf.mxu0
    %1464 = vdwg.mxu0
    %v1466 = vsel %vm932, %v649, 0
    %v1469 = vsel %vm932, %v765, 0
    %1471 = vmatprep.subr.mxu0 0.0
    %1472 = vmatpush1.xpose.msra.mxu0 0.0
    %1473 = vmatprep.subr.mxu0 0.0
    %1474 = vmatpush1.xpose.msra.mxu0 0.0
    %1475 = vmatprep.subr.mxu0 0.0
    %1476 = vmatpush1.xpose.msra.mxu0 0.0
    %1477 = vmatprep.subr.mxu0 0.0
    %1478 = vmatpush1.xpose.msra.mxu0 0.0
    %1479 = vmatprep.subr.mxu0 0.0
    %1480 = vmatpush1.xpose.msra.mxu0 0.0
    %1481 = vmatprep.subr.mxu0 0.0
    %1482 = vmatpush1.xpose.msra.mxu0 0.0
    %1483 = vmatprep.subr.mxu0 0.0
    %1484 = vmatpush1.xpose.msra.mxu0 0.0
    %1485 = vmatprep.subr.mxu0 0.0
    %1486 = vmatpush1.xpose.msra.mxu0 0.0
    %1487 = vmatprep.subr.mxu0 0.0
    %1488 = vmatpush1.xpose.msra.mxu0 0.0
    %1489 = vmatprep.subr.mxu0 0.0
    %1490 = vmatpush1.xpose.msra.mxu0 0.0
    %1491 = vmatprep.subr.mxu0 0.0
    %1492 = vmatpush1.xpose.msra.mxu0 0.0
    %1493 = vmatprep.subr.mxu0 0.0
    %1494 = vmatpush1.xpose.msra.mxu0 0.0
    %1495 = vmatprep.subr.mxu0 0.0
    %1496 = vmatpush1.xpose.msra.mxu0 0.0
    %1497 = vmatprep.subr.mxu0 0.0
    %1498 = vmatpush1.xpose.msra.mxu0 0.0
    %1499 = vmatprep.subr.mxu0 0.0
    %1500 = vmatpush1.xpose.msra.mxu0 0.0
    %1501 = vmatprep.subr.mxu0 0.0
    %1502 = vmatpush1.xpose.msra.mxu0 %v1469
    %1503 = vmatprep.subr.mxu0 0.0
    %1504 = vmatpush2.xpose.msra.mxu0 0.0
    %1505 = vmatprep.subr.mxu0 0.0
    %1506 = vmatpush2.xpose.msra.mxu0 0.0
    %1507 = vmatprep.subr.mxu0 0.0
    %1508 = vmatpush2.xpose.msra.mxu0 0.0
    %1509 = vmatprep.subr.mxu0 0.0
    %1510 = vmatpush2.xpose.msra.mxu0 0.0
    %1511 = vmatprep.subr.mxu0 0.0
    %1512 = vmatpush2.xpose.msra.mxu0 0.0
    %1513 = vmatprep.subr.mxu0 0.0
    %1514 = vmatpush2.xpose.msra.mxu0 0.0
    %1515 = vmatprep.subr.mxu0 0.0
    %1516 = vmatpush2.xpose.msra.mxu0 0.0
    %1517 = vmatprep.subr.mxu0 0.0
    %1518 = vmatpush2.xpose.msra.mxu0 0.0
    %1519 = vmatprep.subr.mxu0 0.0
    %1520 = vmatpush2.xpose.msra.mxu0 0.0
    %1521 = vmatprep.subr.mxu0 0.0
    %1522 = vmatpush2.xpose.msra.mxu0 0.0
    %1523 = vmatprep.subr.mxu0 0.0
    %1524 = vmatpush2.xpose.msra.mxu0 0.0
    %1525 = vmatprep.subr.mxu0 0.0
    %1526 = vmatpush2.xpose.msra.mxu0 0.0
    %1527 = vmatprep.subr.mxu0 0.0
    %1528 = vmatpush2.xpose.msra.mxu0 0.0
    %1529 = vmatprep.subr.mxu0 0.0
    %1530 = vmatpush2.xpose.msra.mxu0 0.0
    %1531 = vmatprep.subr.mxu0 0.0
    %1532 = vmatpush2.xpose.msra.mxu0 0.0
    %1533 = vmatprep.subr.mxu0 0.0
    %1534 = vmatpush2.xpose.msra.mxu0 0.0
    %1535 = vmatprep.mubr.f32.mxu0 0.0
    %1536 = vmatmul.mubr.f32.gmra.mxu0 %v1466
    %v1537 = vpop.f32.mrf.mxu0
    %v1538 = vadd.f32 %v923, %v1537
    %v1539 = vpop.f32.mrf.mxu0
    %1540 = vdwg.mxu0
    %v1541 = vsel %vm932, %v1006, -inf
    %1542 = vmax.xlane.f32.xlu0 %v1541
    %v1543 = vpop.xlane.xlu0 %1542
    %v1544 = vsel %vm932, %v1082, -inf
    %1545 = vmax.xlane.f32.xlu0 %v1544
    %v1546 = vpop.xlane.xlu0 %1545
    %v1547 = vsel %vm932, %v1158, -inf
    %1548 = vmax.xlane.f32.xlu0 %v1547
    %v1549 = vpop.xlane.xlu0 %1548
    %v1550 = vsel %vm932, %v1234, -inf
    %1551 = vmax.xlane.f32.xlu0 %v1550
    %v1552 = vpop.xlane.xlu0 %1551
    %v1553 = vsel %vm932, %v1310, -inf
    %1554 = vmax.xlane.f32.xlu0 %v1553
    %v1555 = vpop.xlane.xlu0 %1554
    %v1556 = vsel %vm932, %v1386, -inf
    %1557 = vmax.xlane.f32.xlu0 %v1556
    %v1558 = vpop.xlane.xlu0 %1557
    %v1559 = vsel %vm932, %v1462, -inf
    %1560 = vmax.xlane.f32.xlu0 %v1559
    %v1561 = vpop.xlane.xlu0 %1560
    %v1562 = vsel %vm932, %v1538, -inf
    %1563 = vmax.xlane.f32.xlu0 %v1562
    %v1564 = vpop.xlane.xlu0 %1563
    %v1565 = vsub.f32 %v1006, %v1543
    %v1566 = vsub.f32 %v1082, %v1546
    %v1567 = vsub.f32 %v1158, %v1549
    %v1568 = vsub.f32 %v1234, %v1552
    %v1569 = vsub.f32 %v1310, %v1555
    %v1570 = vsub.f32 %v1386, %v1558
    %v1571 = vsub.f32 %v1462, %v1561
    %v1572 = vsub.f32 %v1538, %v1564
    %v1573 = vmul.f32 %v1565, 1.442695
    %v1574 = vpow.pop %v1573
    %v1575 = vmul.f32 %v1566, 1.442695
    %v1576 = vpow.pop %v1575
    %v1577 = vmul.f32 %v1567, 1.442695
    %v1578 = vpow.pop %v1577
    %v1579 = vmul.f32 %v1568, 1.442695
    %v1580 = vpow.pop %v1579
    %v1581 = vmul.f32 %v1569, 1.442695
    %v1582 = vpow.pop %v1581
    %v1583 = vmul.f32 %v1570, 1.442695
    %v1584 = vpow.pop %v1583
    %v1585 = vmul.f32 %v1571, 1.442695
    %v1586 = vpow.pop %v1585
    %v1587 = vmul.f32 %v1572, 1.442695
    %v1588 = vpow.pop %v1587
    %v1589 = vsel %vm932, %v1574, 0.0
    %1590 = vadd.xlane.f32.xlu0 %v1589
    %v1591 = vpop.xlane.xlu0 %1590
    %v1592 = vsel %vm932, %v1576, 0.0
    %1593 = vadd.xlane.f32.xlu0 %v1592
    %v1594 = vpop.xlane.xlu0 %1593
    %v1595 = vsel %vm932, %v1578, 0.0
    %1596 = vadd.xlane.f32.xlu0 %v1595
    %v1597 = vpop.xlane.xlu0 %1596
    %v1598 = vsel %vm932, %v1580, 0.0
    %1599 = vadd.xlane.f32.xlu0 %v1598
    %v1600 = vpop.xlane.xlu0 %1599
    %v1601 = vsel %vm932, %v1582, 0.0
    %1602 = vadd.xlane.f32.xlu0 %v1601
    %v1603 = vpop.xlane.xlu0 %1602
    %v1604 = vsel %vm932, %v1584, 0.0
    %1605 = vadd.xlane.f32.xlu0 %v1604
    %v1606 = vpop.xlane.xlu0 %1605
    %v1607 = vsel %vm932, %v1586, 0.0
    %1608 = vadd.xlane.f32.xlu0 %v1607
    %v1609 = vpop.xlane.xlu0 %1608
    %v1610 = vsel %vm932, %v1588, 0.0
    %1611 = vadd.xlane.f32.xlu0 %v1610
    %v1612 = vpop.xlane.xlu0 %1611
    %v1613 = vrcp.pop %v1591
    %v1614 = vrcp.pop %v1594
    %v1615 = vrcp.pop %v1597
    %v1616 = vrcp.pop %v1600
    %v1617 = vrcp.pop %v1603
    %v1618 = vrcp.pop %v1606
    %v1619 = vrcp.pop %v1609
    %v1620 = vrcp.pop %v1612
    %v1621 = vmul.f32 %v1574, %v1613
    %v1622 = vmul.f32 %v1576, %v1614
    %v1623 = vmul.f32 %v1578, %v1615
    %v1624 = vmul.f32 %v1580, %v1616
    %v1625 = vmul.f32 %v1582, %v1617
    %v1626 = vmul.f32 %v1584, %v1618
    %v1627 = vmul.f32 %v1586, %v1619
    %v1628 = vmul.f32 %v1588, %v1620
    %v1630 = vsel %vm932, %v1621, 0
    %1632 = vmatprep.subr.mxu0 0.0
    %1633 = vmatpush1.msra.mxu0 0.0
    %1634 = vmatprep.subr.mxu0 0.0
    %1635 = vmatpush1.msra.mxu0 0.0
    %1636 = vmatprep.subr.mxu0 0.0
    %1637 = vmatpush1.msra.mxu0 0.0
    %1638 = vmatprep.subr.mxu0 0.0
    %1639 = vmatpush1.msra.mxu0 0.0
    %1640 = vmatprep.subr.mxu0 0.0
    %1641 = vmatpush1.msra.mxu0 0.0
    %1642 = vmatprep.subr.mxu0 0.0
    %1643 = vmatpush1.msra.mxu0 0.0
    %1644 = vmatprep.subr.mxu0 0.0
    %1645 = vmatpush1.msra.mxu0 0.0
    %1646 = vmatprep.subr.mxu0 0.0
    %1647 = vmatpush1.msra.mxu0 0.0
    %1648 = vmatprep.subr.mxu0 0.0
    %1649 = vmatpush1.msra.mxu0 0.0
    %1650 = vmatprep.subr.mxu0 0.0
    %1651 = vmatpush1.msra.mxu0 0.0
    %1652 = vmatprep.subr.mxu0 0.0
    %1653 = vmatpush1.msra.mxu0 0.0
    %1654 = vmatprep.subr.mxu0 0.0
    %1655 = vmatpush1.msra.mxu0 0.0
    %1656 = vmatprep.subr.mxu0 0.0
    %1657 = vmatpush1.msra.mxu0 0.0
    %1658 = vmatprep.subr.mxu0 0.0
    %1659 = vmatpush1.msra.mxu0 0.0
    %1660 = vmatprep.subr.mxu0 0.0
    %1661 = vmatpush1.msra.mxu0 0.0
    %1662 = vmatprep.subr.mxu0 0.0
    %1663 = vmatpush1.msra.mxu0 %v846
    %1664 = vmatprep.subr.mxu0 0.0
    %1665 = vmatpush2.msra.mxu0 0.0
    %1666 = vmatprep.subr.mxu0 0.0
    %1667 = vmatpush2.msra.mxu0 0.0
    %1668 = vmatprep.subr.mxu0 0.0
    %1669 = vmatpush2.msra.mxu0 0.0
    %1670 = vmatprep.subr.mxu0 0.0
    %1671 = vmatpush2.msra.mxu0 0.0
    %1672 = vmatprep.subr.mxu0 0.0
    %1673 = vmatpush2.msra.mxu0 0.0
    %1674 = vmatprep.subr.mxu0 0.0
    %1675 = vmatpush2.msra.mxu0 0.0
    %1676 = vmatprep.subr.mxu0 0.0
    %1677 = vmatpush2.msra.mxu0 0.0
    %1678 = vmatprep.subr.mxu0 0.0
    %1679 = vmatpush2.msra.mxu0 0.0
    %1680 = vmatprep.subr.mxu0 0.0
    %1681 = vmatpush2.msra.mxu0 0.0
    %1682 = vmatprep.subr.mxu0 0.0
    %1683 = vmatpush2.msra.mxu0 0.0
    %1684 = vmatprep.subr.mxu0 0.0
    %1685 = vmatpush2.msra.mxu0 0.0
    %1686 = vmatprep.subr.mxu0 0.0
    %1687 = vmatpush2.msra.mxu0 0.0
    %1688 = vmatprep.subr.mxu0 0.0
    %1689 = vmatpush2.msra.mxu0 0.0
    %1690 = vmatprep.subr.mxu0 0.0
    %1691 = vmatpush2.msra.mxu0 0.0
    %1692 = vmatprep.subr.mxu0 0.0
    %1693 = vmatpush2.msra.mxu0 0.0
    %1694 = vmatprep.subr.mxu0 0.0
    %1695 = vmatpush2.msra.mxu0 0.0
    %1696 = vmatprep.mubr.f32.mxu0 0.0
    %1697 = vmatmul.mubr.f32.gmra.mxu0 %v1630
    %v1698 = vpop.f32.mrf.mxu0
    %v1699 = vadd.f32 0.0, %v1698
    %v1700 = vpop.f32.mrf.mxu0
    %1701 = vdwg.mxu0
    %v1703 = vsel %vm932, %v1622, 0
    %1705 = vmatprep.subr.mxu0 0.0
    %1706 = vmatpush1.msra.mxu0 0.0
    %1707 = vmatprep.subr.mxu0 0.0
    %1708 = vmatpush1.msra.mxu0 0.0
    %1709 = vmatprep.subr.mxu0 0.0
    %1710 = vmatpush1.msra.mxu0 0.0
    %1711 = vmatprep.subr.mxu0 0.0
    %1712 = vmatpush1.msra.mxu0 0.0
    %1713 = vmatprep.subr.mxu0 0.0
    %1714 = vmatpush1.msra.mxu0 0.0
    %1715 = vmatprep.subr.mxu0 0.0
    %1716 = vmatpush1.msra.mxu0 0.0
    %1717 = vmatprep.subr.mxu0 0.0
    %1718 = vmatpush1.msra.mxu0 0.0
    %1719 = vmatprep.subr.mxu0 0.0
    %1720 = vmatpush1.msra.mxu0 0.0
    %1721 = vmatprep.subr.mxu0 0.0
    %1722 = vmatpush1.msra.mxu0 0.0
    %1723 = vmatprep.subr.mxu0 0.0
    %1724 = vmatpush1.msra.mxu0 0.0
    %1725 = vmatprep.subr.mxu0 0.0
    %1726 = vmatpush1.msra.mxu0 0.0
    %1727 = vmatprep.subr.mxu0 0.0
    %1728 = vmatpush1.msra.mxu0 0.0
    %1729 = vmatprep.subr.mxu0 0.0
    %1730 = vmatpush1.msra.mxu0 0.0
    %1731 = vmatprep.subr.mxu0 0.0
    %1732 = vmatpush1.msra.mxu0 0.0
    %1733 = vmatprep.subr.mxu0 0.0
    %1734 = vmatpush1.msra.mxu0 0.0
    %1735 = vmatprep.subr.mxu0 0.0
    %1736 = vmatpush1.msra.mxu0 %v851
    %1737 = vmatprep.subr.mxu0 0.0
    %1738 = vmatpush2.msra.mxu0 0.0
    %1739 = vmatprep.subr.mxu0 0.0
    %1740 = vmatpush2.msra.mxu0 0.0
    %1741 = vmatprep.subr.mxu0 0.0
    %1742 = vmatpush2.msra.mxu0 0.0
    %1743 = vmatprep.subr.mxu0 0.0
    %1744 = vmatpush2.msra.mxu0 0.0
    %1745 = vmatprep.subr.mxu0 0.0
    %1746 = vmatpush2.msra.mxu0 0.0
    %1747 = vmatprep.subr.mxu0 0.0
    %1748 = vmatpush2.msra.mxu0 0.0
    %1749 = vmatprep.subr.mxu0 0.0
    %1750 = vmatpush2.msra.mxu0 0.0
    %1751 = vmatprep.subr.mxu0 0.0
    %1752 = vmatpush2.msra.mxu0 0.0
    %1753 = vmatprep.subr.mxu0 0.0
    %1754 = vmatpush2.msra.mxu0 0.0
    %1755 = vmatprep.subr.mxu0 0.0
    %1756 = vmatpush2.msra.mxu0 0.0
    %1757 = vmatprep.subr.mxu0 0.0
    %1758 = vmatpush2.msra.mxu0 0.0
    %1759 = vmatprep.subr.mxu0 0.0
    %1760 = vmatpush2.msra.mxu0 0.0
    %1761 = vmatprep.subr.mxu0 0.0
    %1762 = vmatpush2.msra.mxu0 0.0
    %1763 = vmatprep.subr.mxu0 0.0
    %1764 = vmatpush2.msra.mxu0 0.0
    %1765 = vmatprep.subr.mxu0 0.0
    %1766 = vmatpush2.msra.mxu0 0.0
    %1767 = vmatprep.subr.mxu0 0.0
    %1768 = vmatpush2.msra.mxu0 0.0
    %1769 = vmatprep.mubr.f32.mxu0 0.0
    %1770 = vmatmul.mubr.f32.gmra.mxu0 %v1703
    %v1771 = vpop.f32.mrf.mxu0
    %v1772 = vadd.f32 0.0, %v1771
    %v1773 = vpop.f32.mrf.mxu0
    %1774 = vdwg.mxu0
    %v1776 = vsel %vm932, %v1623, 0
    %1778 = vmatprep.subr.mxu0 0.0
    %1779 = vmatpush1.msra.mxu0 0.0
    %1780 = vmatprep.subr.mxu0 0.0
    %1781 = vmatpush1.msra.mxu0 0.0
    %1782 = vmatprep.subr.mxu0 0.0
    %1783 = vmatpush1.msra.mxu0 0.0
    %1784 = vmatprep.subr.mxu0 0.0
    %1785 = vmatpush1.msra.mxu0 0.0
    %1786 = vmatprep.subr.mxu0 0.0
    %1787 = vmatpush1.msra.mxu0 0.0
    %1788 = vmatprep.subr.mxu0 0.0
    %1789 = vmatpush1.msra.mxu0 0.0
    %1790 = vmatprep.subr.mxu0 0.0
    %1791 = vmatpush1.msra.mxu0 0.0
    %1792 = vmatprep.subr.mxu0 0.0
    %1793 = vmatpush1.msra.mxu0 0.0
    %1794 = vmatprep.subr.mxu0 0.0
    %1795 = vmatpush1.msra.mxu0 0.0
    %1796 = vmatprep.subr.mxu0 0.0
    %1797 = vmatpush1.msra.mxu0 0.0
    %1798 = vmatprep.subr.mxu0 0.0
    %1799 = vmatpush1.msra.mxu0 0.0
    %1800 = vmatprep.subr.mxu0 0.0
    %1801 = vmatpush1.msra.mxu0 0.0
    %1802 = vmatprep.subr.mxu0 0.0
    %1803 = vmatpush1.msra.mxu0 0.0
    %1804 = vmatprep.subr.mxu0 0.0
    %1805 = vmatpush1.msra.mxu0 0.0
    %1806 = vmatprep.subr.mxu0 0.0
    %1807 = vmatpush1.msra.mxu0 0.0
    %1808 = vmatprep.subr.mxu0 0.0
    %1809 = vmatpush1.msra.mxu0 %v856
    %1810 = vmatprep.subr.mxu0 0.0
    %1811 = vmatpush2.msra.mxu0 0.0
    %1812 = vmatprep.subr.mxu0 0.0
    %1813 = vmatpush2.msra.mxu0 0.0
    %1814 = vmatprep.subr.mxu0 0.0
    %1815 = vmatpush2.msra.mxu0 0.0
    %1816 = vmatprep.subr.mxu0 0.0
    %1817 = vmatpush2.msra.mxu0 0.0
    %1818 = vmatprep.subr.mxu0 0.0
    %1819 = vmatpush2.msra.mxu0 0.0
    %1820 = vmatprep.subr.mxu0 0.0
    %1821 = vmatpush2.msra.mxu0 0.0
    %1822 = vmatprep.subr.mxu0 0.0
    %1823 = vmatpush2.msra.mxu0 0.0
    %1824 = vmatprep.subr.mxu0 0.0
    %1825 = vmatpush2.msra.mxu0 0.0
    %1826 = vmatprep.subr.mxu0 0.0
    %1827 = vmatpush2.msra.mxu0 0.0
    %1828 = vmatprep.subr.mxu0 0.0
    %1829 = vmatpush2.msra.mxu0 0.0
    %1830 = vmatprep.subr.mxu0 0.0
    %1831 = vmatpush2.msra.mxu0 0.0
    %1832 = vmatprep.subr.mxu0 0.0
    %1833 = vmatpush2.msra.mxu0 0.0
    %1834 = vmatprep.subr.mxu0 0.0
    %1835 = vmatpush2.msra.mxu0 0.0
    %1836 = vmatprep.subr.mxu0 0.0
    %1837 = vmatpush2.msra.mxu0 0.0
    %1838 = vmatprep.subr.mxu0 0.0
    %1839 = vmatpush2.msra.mxu0 0.0
    %1840 = vmatprep.subr.mxu0 0.0
    %1841 = vmatpush2.msra.mxu0 0.0
    %1842 = vmatprep.mubr.f32.mxu0 0.0
    %1843 = vmatmul.mubr.f32.gmra.mxu0 %v1776
    %v1844 = vpop.f32.mrf.mxu0
    %v1845 = vadd.f32 0.0, %v1844
    %v1846 = vpop.f32.mrf.mxu0
    %1847 = vdwg.mxu0
    %v1849 = vsel %vm932, %v1624, 0
    %1851 = vmatprep.subr.mxu0 0.0
    %1852 = vmatpush1.msra.mxu0 0.0
    %1853 = vmatprep.subr.mxu0 0.0
    %1854 = vmatpush1.msra.mxu0 0.0
    %1855 = vmatprep.subr.mxu0 0.0
    %1856 = vmatpush1.msra.mxu0 0.0
    %1857 = vmatprep.subr.mxu0 0.0
    %1858 = vmatpush1.msra.mxu0 0.0
    %1859 = vmatprep.subr.mxu0 0.0
    %1860 = vmatpush1.msra.mxu0 0.0
    %1861 = vmatprep.subr.mxu0 0.0
    %1862 = vmatpush1.msra.mxu0 0.0
    %1863 = vmatprep.subr.mxu0 0.0
    %1864 = vmatpush1.msra.mxu0 0.0
    %1865 = vmatprep.subr.mxu0 0.0
    %1866 = vmatpush1.msra.mxu0 0.0
    %1867 = vmatprep.subr.mxu0 0.0
    %1868 = vmatpush1.msra.mxu0 0.0
    %1869 = vmatprep.subr.mxu0 0.0
    %1870 = vmatpush1.msra.mxu0 0.0
    %1871 = vmatprep.subr.mxu0 0.0
    %1872 = vmatpush1.msra.mxu0 0.0
    %1873 = vmatprep.subr.mxu0 0.0
    %1874 = vmatpush1.msra.mxu0 0.0
    %1875 = vmatprep.subr.mxu0 0.0
    %1876 = vmatpush1.msra.mxu0 0.0
    %1877 = vmatprep.subr.mxu0 0.0
    %1878 = vmatpush1.msra.mxu0 0.0
    %1879 = vmatprep.subr.mxu0 0.0
    %1880 = vmatpush1.msra.mxu0 0.0
    %1881 = vmatprep.subr.mxu0 0.0
    %1882 = vmatpush1.msra.mxu0 %v861
    %1883 = vmatprep.subr.mxu0 0.0
    %1884 = vmatpush2.msra.mxu0 0.0
    %1885 = vmatprep.subr.mxu0 0.0
    %1886 = vmatpush2.msra.mxu0 0.0
    %1887 = vmatprep.subr.mxu0 0.0
    %1888 = vmatpush2.msra.mxu0 0.0
    %1889 = vmatprep.subr.mxu0 0.0
    %1890 = vmatpush2.msra.mxu0 0.0
    %1891 = vmatprep.subr.mxu0 0.0
    %1892 = vmatpush2.msra.mxu0 0.0
    %1893 = vmatprep.subr.mxu0 0.0
    %1894 = vmatpush2.msra.mxu0 0.0
    %1895 = vmatprep.subr.mxu0 0.0
    %1896 = vmatpush2.msra.mxu0 0.0
    %1897 = vmatprep.subr.mxu0 0.0
    %1898 = vmatpush2.msra.mxu0 0.0
    %1899 = vmatprep.subr.mxu0 0.0
    %1900 = vmatpush2.msra.mxu0 0.0
    %1901 = vmatprep.subr.mxu0 0.0
    %1902 = vmatpush2.msra.mxu0 0.0
    %1903 = vmatprep.subr.mxu0 0.0
    %1904 = vmatpush2.msra.mxu0 0.0
    %1905 = vmatprep.subr.mxu0 0.0
    %1906 = vmatpush2.msra.mxu0 0.0
    %1907 = vmatprep.subr.mxu0 0.0
    %1908 = vmatpush2.msra.mxu0 0.0
    %1909 = vmatprep.subr.mxu0 0.0
    %1910 = vmatpush2.msra.mxu0 0.0
    %1911 = vmatprep.subr.mxu0 0.0
    %1912 = vmatpush2.msra.mxu0 0.0
    %1913 = vmatprep.subr.mxu0 0.0
    %1914 = vmatpush2.msra.mxu0 0.0
    %1915 = vmatprep.mubr.f32.mxu0 0.0
    %1916 = vmatmul.mubr.f32.gmra.mxu0 %v1849
    %v1917 = vpop.f32.mrf.mxu0
    %v1918 = vadd.f32 0.0, %v1917
    %v1919 = vpop.f32.mrf.mxu0
    %1920 = vdwg.mxu0
    %v1922 = vsel %vm932, %v1625, 0
    %1924 = vmatprep.subr.mxu0 0.0
    %1925 = vmatpush1.msra.mxu0 0.0
    %1926 = vmatprep.subr.mxu0 0.0
    %1927 = vmatpush1.msra.mxu0 0.0
    %1928 = vmatprep.subr.mxu0 0.0
    %1929 = vmatpush1.msra.mxu0 0.0
    %1930 = vmatprep.subr.mxu0 0.0
    %1931 = vmatpush1.msra.mxu0 0.0
    %1932 = vmatprep.subr.mxu0 0.0
    %1933 = vmatpush1.msra.mxu0 0.0
    %1934 = vmatprep.subr.mxu0 0.0
    %1935 = vmatpush1.msra.mxu0 0.0
    %1936 = vmatprep.subr.mxu0 0.0
    %1937 = vmatpush1.msra.mxu0 0.0
    %1938 = vmatprep.subr.mxu0 0.0
    %1939 = vmatpush1.msra.mxu0 0.0
    %1940 = vmatprep.subr.mxu0 0.0
    %1941 = vmatpush1.msra.mxu0 0.0
    %1942 = vmatprep.subr.mxu0 0.0
    %1943 = vmatpush1.msra.mxu0 0.0
    %1944 = vmatprep.subr.mxu0 0.0
    %1945 = vmatpush1.msra.mxu0 0.0
    %1946 = vmatprep.subr.mxu0 0.0
    %1947 = vmatpush1.msra.mxu0 0.0
    %1948 = vmatprep.subr.mxu0 0.0
    %1949 = vmatpush1.msra.mxu0 0.0
    %1950 = vmatprep.subr.mxu0 0.0
    %1951 = vmatpush1.msra.mxu0 0.0
    %1952 = vmatprep.subr.mxu0 0.0
    %1953 = vmatpush1.msra.mxu0 0.0
    %1954 = vmatprep.subr.mxu0 0.0
    %1955 = vmatpush1.msra.mxu0 %v866
    %1956 = vmatprep.subr.mxu0 0.0
    %1957 = vmatpush2.msra.mxu0 0.0
    %1958 = vmatprep.subr.mxu0 0.0
    %1959 = vmatpush2.msra.mxu0 0.0
    %1960 = vmatprep.subr.mxu0 0.0
    %1961 = vmatpush2.msra.mxu0 0.0
    %1962 = vmatprep.subr.mxu0 0.0
    %1963 = vmatpush2.msra.mxu0 0.0
    %1964 = vmatprep.subr.mxu0 0.0
    %1965 = vmatpush2.msra.mxu0 0.0
    %1966 = vmatprep.subr.mxu0 0.0
    %1967 = vmatpush2.msra.mxu0 0.0
    %1968 = vmatprep.subr.mxu0 0.0
    %1969 = vmatpush2.msra.mxu0 0.0
    %1970 = vmatprep.subr.mxu0 0.0
    %1971 = vmatpush2.msra.mxu0 0.0
    %1972 = vmatprep.subr.mxu0 0.0
    %1973 = vmatpush2.msra.mxu0 0.0
    %1974 = vmatprep.subr.mxu0 0.0
    %1975 = vmatpush2.msra.mxu0 0.0
    %1976 = vmatprep.subr.mxu0 0.0
    %1977 = vmatpush2.msra.mxu0 0.0
    %1978 = vmatprep.subr.mxu0 0.0
    %1979 = vmatpush2.msra.mxu0 0.0
    %1980 = vmatprep.subr.mxu0 0.0
    %1981 = vmatpush2.msra.mxu0 0.0
    %1982 = vmatprep.subr.mxu0 0.0
    %1983 = vmatpush2.msra.mxu0 0.0
    %1984 = vmatprep.subr.mxu0 0.0
    %1985 = vmatpush2.msra.mxu0 0.0
    %1986 = vmatprep.subr.mxu0 0.0
    %1987 = vmatpush2.msra.mxu0 0.0
    %1988 = vmatprep.mubr.f32.mxu0 0.0
    %1989 = vmatmul.mubr.f32.gmra.mxu0 %v1922
    %v1990 = vpop.f32.mrf.mxu0
    %v1991 = vadd.f32 0.0, %v1990
    %v1992 = vpop.f32.mrf.mxu0
    %1993 = vdwg.mxu0
    %v1995 = vsel %vm932, %v1626, 0
    %1997 = vmatprep.subr.mxu0 0.0
    %1998 = vmatpush1.msra.mxu0 0.0
    %1999 = vmatprep.subr.mxu0 0.0
    %2000 = vmatpush1.msra.mxu0 0.0
    %2001 = vmatprep.subr.mxu0 0.0
    %2002 = vmatpush1.msra.mxu0 0.0
    %2003 = vmatprep.subr.mxu0 0.0
    %2004 = vmatpush1.msra.mxu0 0.0
    %2005 = vmatprep.subr.mxu0 0.0
    %2006 = vmatpush1.msra.mxu0 0.0
    %2007 = vmatprep.subr.mxu0 0.0
    %2008 = vmatpush1.msra.mxu0 0.0
    %2009 = vmatprep.subr.mxu0 0.0
    %2010 = vmatpush1.msra.mxu0 0.0
    %2011 = vmatprep.subr.mxu0 0.0
    %2012 = vmatpush1.msra.mxu0 0.0
    %2013 = vmatprep.subr.mxu0 0.0
    %2014 = vmatpush1.msra.mxu0 0.0
    %2015 = vmatprep.subr.mxu0 0.0
    %2016 = vmatpush1.msra.mxu0 0.0
    %2017 = vmatprep.subr.mxu0 0.0
    %2018 = vmatpush1.msra.mxu0 0.0
    %2019 = vmatprep.subr.mxu0 0.0
    %2020 = vmatpush1.msra.mxu0 0.0
    %2021 = vmatprep.subr.mxu0 0.0
    %2022 = vmatpush1.msra.mxu0 0.0
    %2023 = vmatprep.subr.mxu0 0.0
    %2024 = vmatpush1.msra.mxu0 0.0
    %2025 = vmatprep.subr.mxu0 0.0
    %2026 = vmatpush1.msra.mxu0 0.0
    %2027 = vmatprep.subr.mxu0 0.0
    %2028 = vmatpush1.msra.mxu0 %v871
    %2029 = vmatprep.subr.mxu0 0.0
    %2030 = vmatpush2.msra.mxu0 0.0
    %2031 = vmatprep.subr.mxu0 0.0
    %2032 = vmatpush2.msra.mxu0 0.0
    %2033 = vmatprep.subr.mxu0 0.0
    %2034 = vmatpush2.msra.mxu0 0.0
    %2035 = vmatprep.subr.mxu0 0.0
    %2036 = vmatpush2.msra.mxu0 0.0
    %2037 = vmatprep.subr.mxu0 0.0
    %2038 = vmatpush2.msra.mxu0 0.0
    %2039 = vmatprep.subr.mxu0 0.0
    %2040 = vmatpush2.msra.mxu0 0.0
    %2041 = vmatprep.subr.mxu0 0.0
    %2042 = vmatpush2.msra.mxu0 0.0
    %2043 = vmatprep.subr.mxu0 0.0
    %2044 = vmatpush2.msra.mxu0 0.0
    %2045 = vmatprep.subr.mxu0 0.0
    %2046 = vmatpush2.msra.mxu0 0.0
    %2047 = vmatprep.subr.mxu0 0.0
    %2048 = vmatpush2.msra.mxu0 0.0
    %2049 = vmatprep.subr.mxu0 0.0
    %2050 = vmatpush2.msra.mxu0 0.0
    %2051 = vmatprep.subr.mxu0 0.0
    %2052 = vmatpush2.msra.mxu0 0.0
    %2053 = vmatprep.subr.mxu0 0.0
    %2054 = vmatpush2.msra.mxu0 0.0
    %2055 = vmatprep.subr.mxu0 0.0
    %2056 = vmatpush2.msra.mxu0 0.0
    %2057 = vmatprep.subr.mxu0 0.0
    %2058 = vmatpush2.msra.mxu0 0.0
    %2059 = vmatprep.subr.mxu0 0.0
    %2060 = vmatpush2.msra.mxu0 0.0
    %2061 = vmatprep.mubr.f32.mxu0 0.0
    %2062 = vmatmul.mubr.f32.gmra.mxu0 %v1995
    %v2063 = vpop.f32.mrf.mxu0
    %v2064 = vadd.f32 0.0, %v2063
    %v2065 = vpop.f32.mrf.mxu0
    %2066 = vdwg.mxu0
    %v2068 = vsel %vm932, %v1627, 0
    %2070 = vmatprep.subr.mxu0 0.0
    %2071 = vmatpush1.msra.mxu0 0.0
    %2072 = vmatprep.subr.mxu0 0.0
    %2073 = vmatpush1.msra.mxu0 0.0
    %2074 = vmatprep.subr.mxu0 0.0
    %2075 = vmatpush1.msra.mxu0 0.0
    %2076 = vmatprep.subr.mxu0 0.0
    %2077 = vmatpush1.msra.mxu0 0.0
    %2078 = vmatprep.subr.mxu0 0.0
    %2079 = vmatpush1.msra.mxu0 0.0
    %2080 = vmatprep.subr.mxu0 0.0
    %2081 = vmatpush1.msra.mxu0 0.0
    %2082 = vmatprep.subr.mxu0 0.0
    %2083 = vmatpush1.msra.mxu0 0.0
    %2084 = vmatprep.subr.mxu0 0.0
    %2085 = vmatpush1.msra.mxu0 0.0
    %2086 = vmatprep.subr.mxu0 0.0
    %2087 = vmatpush1.msra.mxu0 0.0
    %2088 = vmatprep.subr.mxu0 0.0
    %2089 = vmatpush1.msra.mxu0 0.0
    %2090 = vmatprep.subr.mxu0 0.0
    %2091 = vmatpush1.msra.mxu0 0.0
    %2092 = vmatprep.subr.mxu0 0.0
    %2093 = vmatpush1.msra.mxu0 0.0
    %2094 = vmatprep.subr.mxu0 0.0
    %2095 = vmatpush1.msra.mxu0 0.0
    %2096 = vmatprep.subr.mxu0 0.0
    %2097 = vmatpush1.msra.mxu0 0.0
    %2098 = vmatprep.subr.mxu0 0.0
    %2099 = vmatpush1.msra.mxu0 0.0
    %2100 = vmatprep.subr.mxu0 0.0
    %2101 = vmatpush1.msra.mxu0 %v876
    %2102 = vmatprep.subr.mxu0 0.0
    %2103 = vmatpush2.msra.mxu0 0.0
    %2104 = vmatprep.subr.mxu0 0.0
    %2105 = vmatpush2.msra.mxu0 0.0
    %2106 = vmatprep.subr.mxu0 0.0
    %2107 = vmatpush2.msra.mxu0 0.0
    %2108 = vmatprep.subr.mxu0 0.0
    %2109 = vmatpush2.msra.mxu0 0.0
    %2110 = vmatprep.subr.mxu0 0.0
    %2111 = vmatpush2.msra.mxu0 0.0
    %2112 = vmatprep.subr.mxu0 0.0
    %2113 = vmatpush2.msra.mxu0 0.0
    %2114 = vmatprep.subr.mxu0 0.0
    %2115 = vmatpush2.msra.mxu0 0.0
    %2116 = vmatprep.subr.mxu0 0.0
    %2117 = vmatpush2.msra.mxu0 0.0
    %2118 = vmatprep.subr.mxu0 0.0
    %2119 = vmatpush2.msra.mxu0 0.0
    %2120 = vmatprep.subr.mxu0 0.0
    %2121 = vmatpush2.msra.mxu0 0.0
    %2122 = vmatprep.subr.mxu0 0.0
    %2123 = vmatpush2.msra.mxu0 0.0
    %2124 = vmatprep.subr.mxu0 0.0
    %2125 = vmatpush2.msra.mxu0 0.0
    %2126 = vmatprep.subr.mxu0 0.0
    %2127 = vmatpush2.msra.mxu0 0.0
    %2128 = vmatprep.subr.mxu0 0.0
    %2129 = vmatpush2.msra.mxu0 0.0
    %2130 = vmatprep.subr.mxu0 0.0
    %2131 = vmatpush2.msra.mxu0 0.0
    %2132 = vmatprep.subr.mxu0 0.0
    %2133 = vmatpush2.msra.mxu0 0.0
    %2134 = vmatprep.mubr.f32.mxu0 0.0
    %2135 = vmatmul.mubr.f32.gmra.mxu0 %v2068
    %v2136 = vpop.f32.mrf.mxu0
    %v2137 = vadd.f32 0.0, %v2136
    %v2138 = vpop.f32.mrf.mxu0
    %2139 = vdwg.mxu0
    %v2141 = vsel %vm932, %v1628, 0
    %2143 = vmatprep.subr.mxu0 0.0
    %2144 = vmatpush1.msra.mxu0 0.0
    %2145 = vmatprep.subr.mxu0 0.0
    %2146 = vmatpush1.msra.mxu0 0.0
    %2147 = vmatprep.subr.mxu0 0.0
    %2148 = vmatpush1.msra.mxu0 0.0
    %2149 = vmatprep.subr.mxu0 0.0
    %2150 = vmatpush1.msra.mxu0 0.0
    %2151 = vmatprep.subr.mxu0 0.0
    %2152 = vmatpush1.msra.mxu0 0.0
    %2153 = vmatprep.subr.mxu0 0.0
    %2154 = vmatpush1.msra.mxu0 0.0
    %2155 = vmatprep.subr.mxu0 0.0
    %2156 = vmatpush1.msra.mxu0 0.0
    %2157 = vmatprep.subr.mxu0 0.0
    %2158 = vmatpush1.msra.mxu0 0.0
    %2159 = vmatprep.subr.mxu0 0.0
    %2160 = vmatpush1.msra.mxu0 0.0
    %2161 = vmatprep.subr.mxu0 0.0
    %2162 = vmatpush1.msra.mxu0 0.0
    %2163 = vmatprep.subr.mxu0 0.0
    %2164 = vmatpush1.msra.mxu0 0.0
    %2165 = vmatprep.subr.mxu0 0.0
    %2166 = vmatpush1.msra.mxu0 0.0
    %2167 = vmatprep.subr.mxu0 0.0
    %2168 = vmatpush1.msra.mxu0 0.0
    %2169 = vmatprep.subr.mxu0 0.0
    %2170 = vmatpush1.msra.mxu0 0.0
    %2171 = vmatprep.subr.mxu0 0.0
    %2172 = vmatpush1.msra.mxu0 0.0
    %2173 = vmatprep.subr.mxu0 0.0
    %2174 = vmatpush1.msra.mxu0 %v881
    %2175 = vmatprep.subr.mxu0 0.0
    %2176 = vmatpush2.msra.mxu0 0.0
    %2177 = vmatprep.subr.mxu0 0.0
    %2178 = vmatpush2.msra.mxu0 0.0
    %2179 = vmatprep.subr.mxu0 0.0
    %2180 = vmatpush2.msra.mxu0 0.0
    %2181 = vmatprep.subr.mxu0 0.0
    %2182 = vmatpush2.msra.mxu0 0.0
    %2183 = vmatprep.subr.mxu0 0.0
    %2184 = vmatpush2.msra.mxu0 0.0
    %2185 = vmatprep.subr.mxu0 0.0
    %2186 = vmatpush2.msra.mxu0 0.0
    %2187 = vmatprep.subr.mxu0 0.0
    %2188 = vmatpush2.msra.mxu0 0.0
    %2189 = vmatprep.subr.mxu0 0.0
    %2190 = vmatpush2.msra.mxu0 0.0
    %2191 = vmatprep.subr.mxu0 0.0
    %2192 = vmatpush2.msra.mxu0 0.0
    %2193 = vmatprep.subr.mxu0 0.0
    %2194 = vmatpush2.msra.mxu0 0.0
    %2195 = vmatprep.subr.mxu0 0.0
    %2196 = vmatpush2.msra.mxu0 0.0
    %2197 = vmatprep.subr.mxu0 0.0
    %2198 = vmatpush2.msra.mxu0 0.0
    %2199 = vmatprep.subr.mxu0 0.0
    %2200 = vmatpush2.msra.mxu0 0.0
    %2201 = vmatprep.subr.mxu0 0.0
    %2202 = vmatpush2.msra.mxu0 0.0
    %2203 = vmatprep.subr.mxu0 0.0
    %2204 = vmatpush2.msra.mxu0 0.0
    %2205 = vmatprep.subr.mxu0 0.0
    %2206 = vmatpush2.msra.mxu0 0.0
    %2207 = vmatprep.mubr.f32.mxu0 0.0
    %2208 = vmatmul.mubr.f32.gmra.mxu0 %v2141
    %v2209 = vpop.f32.mrf.mxu0
    %v2210 = vadd.f32 0.0, %v2209
    %v2211 = vpop.f32.mrf.mxu0
    %2212 = vdwg.mxu0
    %v2213 = vld [vmem:[%s10] sm:$0xff]
    %v2215 = vsel %vm932, %v1699, 0
    %v2218 = vsel %vm932, %v1772, 0
    %v2221 = vsel %vm932, %v1845, 0
    %v2224 = vsel %vm932, %v1918, 0
    %v2227 = vsel %vm932, %v1991, 0
    %v2230 = vsel %vm932, %v2064, 0
    %v2233 = vsel %vm932, %v2137, 0
    %v2236 = vsel %vm932, %v2210, 0
    %2238 = vmatprep.subr.mxu0 0.0
    %2239 = vmatpush1.msra.mxu0 0.0
    %2240 = vmatprep.subr.mxu0 0.0
    %2241 = vmatpush1.msra.mxu0 0.0
    %2242 = vmatprep.subr.mxu0 0.0
    %2243 = vmatpush1.msra.mxu0 0.0
    %2244 = vmatprep.subr.mxu0 0.0
    %2245 = vmatpush1.msra.mxu0 0.0
    %2246 = vmatprep.subr.mxu0 0.0
    %2247 = vmatpush1.msra.mxu0 0.0
    %2248 = vmatprep.subr.mxu0 0.0
    %2249 = vmatpush1.msra.mxu0 0.0
    %2250 = vmatprep.subr.mxu0 0.0
    %2251 = vmatpush1.msra.mxu0 0.0
    %2252 = vmatprep.subr.mxu0 0.0
    %2253 = vmatpush1.msra.mxu0 0.0
    %2254 = vmatprep.subr.mxu0 0.0
    %2255 = vmatpush1.msra.mxu0 0.0
    %2256 = vmatprep.subr.mxu0 0.0
    %2257 = vmatpush1.msra.mxu0 0.0
    %2258 = vmatprep.subr.mxu0 0.0
    %2259 = vmatpush1.msra.mxu0 0.0
    %2260 = vmatprep.subr.mxu0 0.0
    %2261 = vmatpush1.msra.mxu0 0.0
    %2262 = vmatprep.subr.mxu0 0.0
    %2263 = vmatpush1.msra.mxu0 0.0
    %2264 = vmatprep.subr.mxu0 0.0
    %2265 = vmatpush1.msra.mxu0 0.0
    %2266 = vmatprep.subr.mxu0 0.0
    %2267 = vmatpush1.msra.mxu0 0.0
    %2268 = vmatprep.subr.mxu0 0.0
    %2269 = vmatpush1.msra.mxu0 %v2213
    %2270 = vmatprep.subr.mxu0 0.0
    %2271 = vmatpush2.msra.mxu0 0.0
    %2272 = vmatprep.subr.mxu0 0.0
    %2273 = vmatpush2.msra.mxu0 0.0
    %2274 = vmatprep.subr.mxu0 0.0
    %2275 = vmatpush2.msra.mxu0 0.0
    %2276 = vmatprep.subr.mxu0 0.0
    %2277 = vmatpush2.msra.mxu0 0.0
    %2278 = vmatprep.subr.mxu0 0.0
    %2279 = vmatpush2.msra.mxu0 0.0
    %2280 = vmatprep.subr.mxu0 0.0
    %2281 = vmatpush2.msra.mxu0 0.0
    %2282 = vmatprep.subr.mxu0 0.0
    %2283 = vmatpush2.msra.mxu0 0.0
    %2284 = vmatprep.subr.mxu0 0.0
    %2285 = vmatpush2.msra.mxu0 0.0
    %2286 = vmatprep.subr.mxu0 0.0
    %2287 = vmatpush2.msra.mxu0 0.0
    %2288 = vmatprep.subr.mxu0 0.0
    %2289 = vmatpush2.msra.mxu0 0.0
    %2290 = vmatprep.subr.mxu0 0.0
    %2291 = vmatpush2.msra.mxu0 0.0
    %2292 = vmatprep.subr.mxu0 0.0
    %2293 = vmatpush2.msra.mxu0 0.0
    %2294 = vmatprep.subr.mxu0 0.0
    %2295 = vmatpush2.msra.mxu0 0.0
    %2296 = vmatprep.subr.mxu0 0.0
    %2297 = vmatpush2.msra.mxu0 0.0
    %2298 = vmatprep.subr.mxu0 0.0
    %2299 = vmatpush2.msra.mxu0 0.0
    %2300 = vmatprep.subr.mxu0 0.0
    %2301 = vmatpush2.msra.mxu0 0.0
    %2302 = vmatprep.mubr.f32.mxu0 0.0
    %2303 = vmatmul.mubr.f32.gmra.mxu0 %v2215
    %v2304 = vpop.f32.mrf.mxu0
    %v2305 = vadd.f32 0.0, %v2304
    %v2306 = vpop.f32.mrf.mxu0
    %2307 = vmatprep.mubr.f32.mxu0 0.0
    %2308 = vmatmul.mubr.f32.gmra.mxu0 %v2218
    %v2309 = vpop.f32.mrf.mxu0
    %v2310 = vadd.f32 0.0, %v2309
    %v2311 = vpop.f32.mrf.mxu0
    %2312 = vmatprep.mubr.f32.mxu0 0.0
    %2313 = vmatmul.mubr.f32.gmra.mxu0 %v2221
    %v2314 = vpop.f32.mrf.mxu0
    %v2315 = vadd.f32 0.0, %v2314
    %v2316 = vpop.f32.mrf.mxu0
    %2317 = vmatprep.mubr.f32.mxu0 0.0
    %2318 = vmatmul.mubr.f32.gmra.mxu0 %v2224
    %v2319 = vpop.f32.mrf.mxu0
    %v2320 = vadd.f32 0.0, %v2319
    %v2321 = vpop.f32.mrf.mxu0
    %2322 = vmatprep.mubr.f32.mxu0 0.0
    %2323 = vmatmul.mubr.f32.gmra.mxu0 %v2227
    %v2324 = vpop.f32.mrf.mxu0
    %v2325 = vadd.f32 0.0, %v2324
    %v2326 = vpop.f32.mrf.mxu0
    %2327 = vmatprep.mubr.f32.mxu0 0.0
    %2328 = vmatmul.mubr.f32.gmra.mxu0 %v2230
    %v2329 = vpop.f32.mrf.mxu0
    %v2330 = vadd.f32 0.0, %v2329
    %v2331 = vpop.f32.mrf.mxu0
    %2332 = vmatprep.mubr.f32.mxu0 0.0
    %2333 = vmatmul.mubr.f32.gmra.mxu0 %v2233
    %v2334 = vpop.f32.mrf.mxu0
    %v2335 = vadd.f32 0.0, %v2334
    %v2336 = vpop.f32.mrf.mxu0
    %2337 = vmatprep.mubr.f32.mxu0 0.0
    %2338 = vmatmul.mubr.f32.gmra.mxu0 %v2236
    %v2339 = vpop.f32.mrf.mxu0
    %v2340 = vadd.f32 0.0, %v2339
    %v2341 = vpop.f32.mrf.mxu0
    %2342 = vdwg.mxu0
    %v2343 = vadd.f32 %v503, %v2305
    %v2344 = vadd.f32 %v504, %v2310
    %v2345 = vadd.f32 %v505, %v2315
    %v2346 = vadd.f32 %v506, %v2320
    %v2347 = vadd.f32 %v507, %v2325
    %v2348 = vadd.f32 %v508, %v2330
    %v2349 = vadd.f32 %v509, %v2335
    %v2350 = vadd.f32 %v510, %v2340
    %s2351 = scalar_lea.vmem %s4, 32
    %v2352 = vld [vmem:[%s2351] sm:$0xff]
    %v2353 = vld [vmem:[%s2351 + $0x8] sm:$0xff]
    %v2354 = vld [vmem:[%s2351 + $0x10] sm:$0xff]
    %v2355 = vld [vmem:[%s2351 + $0x18] sm:$0xff]
    %s2356 = scalar_lea.vmem %s5, 1
    %v2357 = vld [vmem:[%s2356] sm:$0x1]
    %v2359 = vlaneseq
    %v2360 = vshrl.u32 %v2359, 7
    %v2361 = vsub.s32 0, %v2360
    %v2362 = vrot.slane %v2357, %v2361
    %2364 = vmatprep.subr.mxu0 0.0
    %2365 = vmatpush1.msra.mxu0 0.0
    %2366 = vmatprep.subr.mxu0 0.0
    %2367 = vmatpush1.msra.mxu0 0.0
    %2368 = vmatprep.subr.mxu0 0.0
    %2369 = vmatpush1.msra.mxu0 0.0
    %2370 = vmatprep.subr.mxu0 0.0
    %2371 = vmatpush1.msra.mxu0 0.0
    %2372 = vmatprep.subr.mxu0 0.0
    %2373 = vmatpush1.msra.mxu0 0.0
    %2374 = vmatprep.subr.mxu0 0.0
    %2375 = vmatpush1.msra.mxu0 0.0
    %2376 = vmatprep.subr.mxu0 0.0
    %2377 = vmatpush1.msra.mxu0 0.0
    %2378 = vmatprep.subr.mxu0 0.0
    %2379 = vmatpush1.msra.mxu0 0.0
    %2380 = vmatprep.subr.mxu0 0.0
    %2381 = vmatpush1.msra.mxu0 0.0
    %2382 = vmatprep.subr.mxu0 0.0
    %2383 = vmatpush1.msra.mxu0 0.0
    %2384 = vmatprep.subr.mxu0 0.0
    %2385 = vmatpush1.msra.mxu0 0.0
    %2386 = vmatprep.subr.mxu0 0.0
    %2387 = vmatpush1.msra.mxu0 0.0
    %2388 = vmatprep.subr.mxu0 0.0
    %2389 = vmatpush1.msra.mxu0 %v2355
    %2390 = vmatprep.subr.mxu0 0.0
    %2391 = vmatpush1.msra.mxu0 %v2354
    %2392 = vmatprep.subr.mxu0 0.0
    %2393 = vmatpush1.msra.mxu0 %v2353
    %2394 = vmatprep.subr.mxu0 0.0
    %2395 = vmatpush1.msra.mxu0 %v2352
    %2396 = vmatprep.subr.mxu0 0.0
    %2397 = vmatpush2.msra.mxu0 0.0
    %2398 = vmatprep.subr.mxu0 0.0
    %2399 = vmatpush2.msra.mxu0 0.0
    %2400 = vmatprep.subr.mxu0 0.0
    %2401 = vmatpush2.msra.mxu0 0.0
    %2402 = vmatprep.subr.mxu0 0.0
    %2403 = vmatpush2.msra.mxu0 0.0
    %2404 = vmatprep.subr.mxu0 0.0
    %2405 = vmatpush2.msra.mxu0 0.0
    %2406 = vmatprep.subr.mxu0 0.0
    %2407 = vmatpush2.msra.mxu0 0.0
    %2408 = vmatprep.subr.mxu0 0.0
    %2409 = vmatpush2.msra.mxu0 0.0
    %2410 = vmatprep.subr.mxu0 0.0
    %2411 = vmatpush2.msra.mxu0 0.0
    %2412 = vmatprep.subr.mxu0 0.0
    %2413 = vmatpush2.msra.mxu0 0.0
    %2414 = vmatprep.subr.mxu0 0.0
    %2415 = vmatpush2.msra.mxu0 0.0
    %2416 = vmatprep.subr.mxu0 0.0
    %2417 = vmatpush2.msra.mxu0 0.0
    %2418 = vmatprep.subr.mxu0 0.0
    %2419 = vmatpush2.msra.mxu0 0.0
    %2420 = vmatprep.subr.mxu0 0.0
    %2421 = vmatpush2.msra.mxu0 0.0
    %2422 = vmatprep.subr.mxu0 0.0
    %2423 = vmatpush2.msra.mxu0 0.0
    %2424 = vmatprep.subr.mxu0 0.0
    %2425 = vmatpush2.msra.mxu0 0.0
    %2426 = vmatprep.subr.mxu0 0.0
    %2427 = vmatpush2.msra.mxu0 0.0
    %2428 = vmatprep.mubr.f32.mxu0 0.0
    %2429 = vmatmul.mubr.f32.gmra.mxu0 %v524
    %v2430 = vpop.f32.mrf.mxu0
    %v2431 = vadd.f32 %v2362, %v2430
    %v2432 = vpop.f32.mrf.mxu0
    %2433 = vmatprep.mubr.f32.mxu0 0.0
    %2434 = vmatmul.mubr.f32.gmra.mxu0 %v527
    %v2435 = vpop.f32.mrf.mxu0
    %v2436 = vadd.f32 %v2362, %v2435
    %v2437 = vpop.f32.mrf.mxu0
    %2438 = vmatprep.mubr.f32.mxu0 0.0
    %2439 = vmatmul.mubr.f32.gmra.mxu0 %v530
    %v2440 = vpop.f32.mrf.mxu0
    %v2441 = vadd.f32 %v2362, %v2440
    %v2442 = vpop.f32.mrf.mxu0
    %2443 = vmatprep.mubr.f32.mxu0 0.0
    %2444 = vmatmul.mubr.f32.gmra.mxu0 %v533
    %v2445 = vpop.f32.mrf.mxu0
    %v2446 = vadd.f32 %v2362, %v2445
    %v2447 = vpop.f32.mrf.mxu0
    %2448 = vmatprep.mubr.f32.mxu0 0.0
    %2449 = vmatmul.mubr.f32.gmra.mxu0 %v536
    %v2450 = vpop.f32.mrf.mxu0
    %v2451 = vadd.f32 %v2362, %v2450
    %v2452 = vpop.f32.mrf.mxu0
    %2453 = vmatprep.mubr.f32.mxu0 0.0
    %2454 = vmatmul.mubr.f32.gmra.mxu0 %v539
    %v2455 = vpop.f32.mrf.mxu0
    %v2456 = vadd.f32 %v2362, %v2455
    %v2457 = vpop.f32.mrf.mxu0
    %2458 = vmatprep.mubr.f32.mxu0 0.0
    %2459 = vmatmul.mubr.f32.gmra.mxu0 %v542
    %v2460 = vpop.f32.mrf.mxu0
    %v2461 = vadd.f32 %v2362, %v2460
    %v2462 = vpop.f32.mrf.mxu0
    %2463 = vmatprep.mubr.f32.mxu0 0.0
    %2464 = vmatmul.mubr.f32.gmra.mxu0 %v545
    %v2465 = vpop.f32.mrf.mxu0
    %v2466 = vadd.f32 %v2362, %v2465
    %v2467 = vpop.f32.mrf.mxu0
    %2468 = vdwg.mxu0
    %s2469 = scalar_lea.vmem %s6, 32
    %v2470 = vld [vmem:[%s2469] sm:$0xff]
    %v2471 = vld [vmem:[%s2469 + $0x8] sm:$0xff]
    %v2472 = vld [vmem:[%s2469 + $0x10] sm:$0xff]
    %v2473 = vld [vmem:[%s2469 + $0x18] sm:$0xff]
    %s2474 = scalar_lea.vmem %s7, 1
    %v2475 = vld [vmem:[%s2474] sm:$0x1]
    %v2477 = vlaneseq
    %v2478 = vshrl.u32 %v2477, 7
    %v2479 = vsub.s32 0, %v2478
    %v2480 = vrot.slane %v2475, %v2479
    %2482 = vmatprep.subr.mxu0 0.0
    %2483 = vmatpush1.msra.mxu0 0.0
    %2484 = vmatprep.subr.mxu0 0.0
    %2485 = vmatpush1.msra.mxu0 0.0
    %2486 = vmatprep.subr.mxu0 0.0
    %2487 = vmatpush1.msra.mxu0 0.0
    %2488 = vmatprep.subr.mxu0 0.0
    %2489 = vmatpush1.msra.mxu0 0.0
    %2490 = vmatprep.subr.mxu0 0.0
    %2491 = vmatpush1.msra.mxu0 0.0
    %2492 = vmatprep.subr.mxu0 0.0
    %2493 = vmatpush1.msra.mxu0 0.0
    %2494 = vmatprep.subr.mxu0 0.0
    %2495 = vmatpush1.msra.mxu0 0.0
    %2496 = vmatprep.subr.mxu0 0.0
    %2497 = vmatpush1.msra.mxu0 0.0
    %2498 = vmatprep.subr.mxu0 0.0
    %2499 = vmatpush1.msra.mxu0 0.0
    %2500 = vmatprep.subr.mxu0 0.0
    %2501 = vmatpush1.msra.mxu0 0.0
    %2502 = vmatprep.subr.mxu0 0.0
    %2503 = vmatpush1.msra.mxu0 0.0
    %2504 = vmatprep.subr.mxu0 0.0
    %2505 = vmatpush1.msra.mxu0 0.0
    %2506 = vmatprep.subr.mxu0 0.0
    %2507 = vmatpush1.msra.mxu0 %v2473
    %2508 = vmatprep.subr.mxu0 0.0
    %2509 = vmatpush1.msra.mxu0 %v2472
    %2510 = vmatprep.subr.mxu0 0.0
    %2511 = vmatpush1.msra.mxu0 %v2471
    %2512 = vmatprep.subr.mxu0 0.0
    %2513 = vmatpush1.msra.mxu0 %v2470
    %2514 = vmatprep.subr.mxu0 0.0
    %2515 = vmatpush2.msra.mxu0 0.0
    %2516 = vmatprep.subr.mxu0 0.0
    %2517 = vmatpush2.msra.mxu0 0.0
    %2518 = vmatprep.subr.mxu0 0.0
    %2519 = vmatpush2.msra.mxu0 0.0
    %2520 = vmatprep.subr.mxu0 0.0
    %2521 = vmatpush2.msra.mxu0 0.0
    %2522 = vmatprep.subr.mxu0 0.0
    %2523 = vmatpush2.msra.mxu0 0.0
    %2524 = vmatprep.subr.mxu0 0.0
    %2525 = vmatpush2.msra.mxu0 0.0
    %2526 = vmatprep.subr.mxu0 0.0
    %2527 = vmatpush2.msra.mxu0 0.0
    %2528 = vmatprep.subr.mxu0 0.0
    %2529 = vmatpush2.msra.mxu0 0.0
    %2530 = vmatprep.subr.mxu0 0.0
    %2531 = vmatpush2.msra.mxu0 0.0
    %2532 = vmatprep.subr.mxu0 0.0
    %2533 = vmatpush2.msra.mxu0 0.0
    %2534 = vmatprep.subr.mxu0 0.0
    %2535 = vmatpush2.msra.mxu0 0.0
    %2536 = vmatprep.subr.mxu0 0.0
    %2537 = vmatpush2.msra.mxu0 0.0
    %2538 = vmatprep.subr.mxu0 0.0
    %2539 = vmatpush2.msra.mxu0 0.0
    %2540 = vmatprep.subr.mxu0 0.0
    %2541 = vmatpush2.msra.mxu0 0.0
    %2542 = vmatprep.subr.mxu0 0.0
    %2543 = vmatpush2.msra.mxu0 0.0
    %2544 = vmatprep.subr.mxu0 0.0
    %2545 = vmatpush2.msra.mxu0 0.0
    %2546 = vmatprep.mubr.f32.mxu0 0.0
    %2547 = vmatmul.mubr.f32.gmra.mxu0 %v524
    %v2548 = vpop.f32.mrf.mxu0
    %v2549 = vadd.f32 %v2480, %v2548
    %v2550 = vpop.f32.mrf.mxu0
    %2551 = vmatprep.mubr.f32.mxu0 0.0
    %2552 = vmatmul.mubr.f32.gmra.mxu0 %v527
    %v2553 = vpop.f32.mrf.mxu0
    %v2554 = vadd.f32 %v2480, %v2553
    %v2555 = vpop.f32.mrf.mxu0
    %2556 = vmatprep.mubr.f32.mxu0 0.0
    %2557 = vmatmul.mubr.f32.gmra.mxu0 %v530
    %v2558 = vpop.f32.mrf.mxu0
    %v2559 = vadd.f32 %v2480, %v2558
    %v2560 = vpop.f32.mrf.mxu0
    %2561 = vmatprep.mubr.f32.mxu0 0.0
    %2562 = vmatmul.mubr.f32.gmra.mxu0 %v533
    %v2563 = vpop.f32.mrf.mxu0
    %v2564 = vadd.f32 %v2480, %v2563
    %v2565 = vpop.f32.mrf.mxu0
    %2566 = vmatprep.mubr.f32.mxu0 0.0
    %2567 = vmatmul.mubr.f32.gmra.mxu0 %v536
    %v2568 = vpop.f32.mrf.mxu0
    %v2569 = vadd.f32 %v2480, %v2568
    %v2570 = vpop.f32.mrf.mxu0
    %2571 = vmatprep.mubr.f32.mxu0 0.0
    %2572 = vmatmul.mubr.f32.gmra.mxu0 %v539
    %v2573 = vpop.f32.mrf.mxu0
    %v2574 = vadd.f32 %v2480, %v2573
    %v2575 = vpop.f32.mrf.mxu0
    %2576 = vmatprep.mubr.f32.mxu0 0.0
    %2577 = vmatmul.mubr.f32.gmra.mxu0 %v542
    %v2578 = vpop.f32.mrf.mxu0
    %v2579 = vadd.f32 %v2480, %v2578
    %v2580 = vpop.f32.mrf.mxu0
    %2581 = vmatprep.mubr.f32.mxu0 0.0
    %2582 = vmatmul.mubr.f32.gmra.mxu0 %v545
    %v2583 = vpop.f32.mrf.mxu0
    %v2584 = vadd.f32 %v2480, %v2583
    %v2585 = vpop.f32.mrf.mxu0
    %2586 = vdwg.mxu0
    %s2587 = scalar_lea.vmem %s8, 32
    %v2588 = vld [vmem:[%s2587] sm:$0xff]
    %v2589 = vld [vmem:[%s2587 + $0x8] sm:$0xff]
    %v2590 = vld [vmem:[%s2587 + $0x10] sm:$0xff]
    %v2591 = vld [vmem:[%s2587 + $0x18] sm:$0xff]
    %s2592 = scalar_lea.vmem %s9, 1
    %v2593 = vld [vmem:[%s2592] sm:$0x1]
    %v2595 = vlaneseq
    %v2596 = vshrl.u32 %v2595, 7
    %v2597 = vsub.s32 0, %v2596
    %v2598 = vrot.slane %v2593, %v2597
    %2600 = vmatprep.subr.mxu0 0.0
    %2601 = vmatpush1.msra.mxu0 0.0
    %2602 = vmatprep.subr.mxu0 0.0
    %2603 = vmatpush1.msra.mxu0 0.0
    %2604 = vmatprep.subr.mxu0 0.0
    %2605 = vmatpush1.msra.mxu0 0.0
    %2606 = vmatprep.subr.mxu0 0.0
    %2607 = vmatpush1.msra.mxu0 0.0
    %2608 = vmatprep.subr.mxu0 0.0
    %2609 = vmatpush1.msra.mxu0 0.0
    %2610 = vmatprep.subr.mxu0 0.0
    %2611 = vmatpush1.msra.mxu0 0.0
    %2612 = vmatprep.subr.mxu0 0.0
    %2613 = vmatpush1.msra.mxu0 0.0
    %2614 = vmatprep.subr.mxu0 0.0
    %2615 = vmatpush1.msra.mxu0 0.0
    %2616 = vmatprep.subr.mxu0 0.0
    %2617 = vmatpush1.msra.mxu0 0.0
    %2618 = vmatprep.subr.mxu0 0.0
    %2619 = vmatpush1.msra.mxu0 0.0
    %2620 = vmatprep.subr.mxu0 0.0
    %2621 = vmatpush1.msra.mxu0 0.0
    %2622 = vmatprep.subr.mxu0 0.0
    %2623 = vmatpush1.msra.mxu0 0.0
    %2624 = vmatprep.subr.mxu0 0.0
    %2625 = vmatpush1.msra.mxu0 %v2591
    %2626 = vmatprep.subr.mxu0 0.0
    %2627 = vmatpush1.msra.mxu0 %v2590
    %2628 = vmatprep.subr.mxu0 0.0
    %2629 = vmatpush1.msra.mxu0 %v2589
    %2630 = vmatprep.subr.mxu0 0.0
    %2631 = vmatpush1.msra.mxu0 %v2588
    %2632 = vmatprep.subr.mxu0 0.0
    %2633 = vmatpush2.msra.mxu0 0.0
    %2634 = vmatprep.subr.mxu0 0.0
    %2635 = vmatpush2.msra.mxu0 0.0
    %2636 = vmatprep.subr.mxu0 0.0
    %2637 = vmatpush2.msra.mxu0 0.0
    %2638 = vmatprep.subr.mxu0 0.0
    %2639 = vmatpush2.msra.mxu0 0.0
    %2640 = vmatprep.subr.mxu0 0.0
    %2641 = vmatpush2.msra.mxu0 0.0
    %2642 = vmatprep.subr.mxu0 0.0
    %2643 = vmatpush2.msra.mxu0 0.0
    %2644 = vmatprep.subr.mxu0 0.0
    %2645 = vmatpush2.msra.mxu0 0.0
    %2646 = vmatprep.subr.mxu0 0.0
    %2647 = vmatpush2.msra.mxu0 0.0
    %2648 = vmatprep.subr.mxu0 0.0
    %2649 = vmatpush2.msra.mxu0 0.0
    %2650 = vmatprep.subr.mxu0 0.0
    %2651 = vmatpush2.msra.mxu0 0.0
    %2652 = vmatprep.subr.mxu0 0.0
    %2653 = vmatpush2.msra.mxu0 0.0
    %2654 = vmatprep.subr.mxu0 0.0
    %2655 = vmatpush2.msra.mxu0 0.0
    %2656 = vmatprep.subr.mxu0 0.0
    %2657 = vmatpush2.msra.mxu0 0.0
    %2658 = vmatprep.subr.mxu0 0.0
    %2659 = vmatpush2.msra.mxu0 0.0
    %2660 = vmatprep.subr.mxu0 0.0
    %2661 = vmatpush2.msra.mxu0 0.0
    %2662 = vmatprep.subr.mxu0 0.0
    %2663 = vmatpush2.msra.mxu0 0.0
    %2664 = vmatprep.mubr.f32.mxu0 0.0
    %2665 = vmatmul.mubr.f32.gmra.mxu0 %v524
    %v2666 = vpop.f32.mrf.mxu0
    %v2667 = vadd.f32 %v2598, %v2666
    %v2668 = vpop.f32.mrf.mxu0
    %2669 = vmatprep.mubr.f32.mxu0 0.0
    %2670 = vmatmul.mubr.f32.gmra.mxu0 %v527
    %v2671 = vpop.f32.mrf.mxu0
    %v2672 = vadd.f32 %v2598, %v2671
    %v2673 = vpop.f32.mrf.mxu0
    %2674 = vmatprep.mubr.f32.mxu0 0.0
    %2675 = vmatmul.mubr.f32.gmra.mxu0 %v530
    %v2676 = vpop.f32.mrf.mxu0
    %v2677 = vadd.f32 %v2598, %v2676
    %v2678 = vpop.f32.mrf.mxu0
    %2679 = vmatprep.mubr.f32.mxu0 0.0
    %2680 = vmatmul.mubr.f32.gmra.mxu0 %v533
    %v2681 = vpop.f32.mrf.mxu0
    %v2682 = vadd.f32 %v2598, %v2681
    %v2683 = vpop.f32.mrf.mxu0
    %2684 = vmatprep.mubr.f32.mxu0 0.0
    %2685 = vmatmul.mubr.f32.gmra.mxu0 %v536
    %v2686 = vpop.f32.mrf.mxu0
    %v2687 = vadd.f32 %v2598, %v2686
    %v2688 = vpop.f32.mrf.mxu0
    %2689 = vmatprep.mubr.f32.mxu0 0.0
    %2690 = vmatmul.mubr.f32.gmra.mxu0 %v539
    %v2691 = vpop.f32.mrf.mxu0
    %v2692 = vadd.f32 %v2598, %v2691
    %v2693 = vpop.f32.mrf.mxu0
    %2694 = vmatprep.mubr.f32.mxu0 0.0
    %2695 = vmatmul.mubr.f32.gmra.mxu0 %v542
    %v2696 = vpop.f32.mrf.mxu0
    %v2697 = vadd.f32 %v2598, %v2696
    %v2698 = vpop.f32.mrf.mxu0
    %2699 = vmatprep.mubr.f32.mxu0 0.0
    %2700 = vmatmul.mubr.f32.gmra.mxu0 %v545
    %v2701 = vpop.f32.mrf.mxu0
    %v2702 = vadd.f32 %v2598, %v2701
    %v2703 = vpop.f32.mrf.mxu0
    %2704 = vdwg.mxu0
    %v2706 = vsel %vm932, %v2431, 0
    %v2709 = vsel %vm932, %v2549, 0
    %2711 = vmatprep.subr.mxu0 0.0
    %2712 = vmatpush1.xpose.msra.mxu0 0.0
    %2713 = vmatprep.subr.mxu0 0.0
    %2714 = vmatpush1.xpose.msra.mxu0 0.0
    %2715 = vmatprep.subr.mxu0 0.0
    %2716 = vmatpush1.xpose.msra.mxu0 0.0
    %2717 = vmatprep.subr.mxu0 0.0
    %2718 = vmatpush1.xpose.msra.mxu0 0.0
    %2719 = vmatprep.subr.mxu0 0.0
    %2720 = vmatpush1.xpose.msra.mxu0 0.0
    %2721 = vmatprep.subr.mxu0 0.0
    %2722 = vmatpush1.xpose.msra.mxu0 0.0
    %2723 = vmatprep.subr.mxu0 0.0
    %2724 = vmatpush1.xpose.msra.mxu0 0.0
    %2725 = vmatprep.subr.mxu0 0.0
    %2726 = vmatpush1.xpose.msra.mxu0 0.0
    %2727 = vmatprep.subr.mxu0 0.0
    %2728 = vmatpush1.xpose.msra.mxu0 0.0
    %2729 = vmatprep.subr.mxu0 0.0
    %2730 = vmatpush1.xpose.msra.mxu0 0.0
    %2731 = vmatprep.subr.mxu0 0.0
    %2732 = vmatpush1.xpose.msra.mxu0 0.0
    %2733 = vmatprep.subr.mxu0 0.0
    %2734 = vmatpush1.xpose.msra.mxu0 0.0
    %2735 = vmatprep.subr.mxu0 0.0
    %2736 = vmatpush1.xpose.msra.mxu0 0.0
    %2737 = vmatprep.subr.mxu0 0.0
    %2738 = vmatpush1.xpose.msra.mxu0 0.0
    %2739 = vmatprep.subr.mxu0 0.0
    %2740 = vmatpush1.xpose.msra.mxu0 0.0
    %2741 = vmatprep.subr.mxu0 0.0
    %2742 = vmatpush1.xpose.msra.mxu0 %v2709
    %2743 = vmatprep.subr.mxu0 0.0
    %2744 = vmatpush2.xpose.msra.mxu0 0.0
    %2745 = vmatprep.subr.mxu0 0.0
    %2746 = vmatpush2.xpose.msra.mxu0 0.0
    %2747 = vmatprep.subr.mxu0 0.0
    %2748 = vmatpush2.xpose.msra.mxu0 0.0
    %2749 = vmatprep.subr.mxu0 0.0
    %2750 = vmatpush2.xpose.msra.mxu0 0.0
    %2751 = vmatprep.subr.mxu0 0.0
    %2752 = vmatpush2.xpose.msra.mxu0 0.0
    %2753 = vmatprep.subr.mxu0 0.0
    %2754 = vmatpush2.xpose.msra.mxu0 0.0
    %2755 = vmatprep.subr.mxu0 0.0
    %2756 = vmatpush2.xpose.msra.mxu0 0.0
    %2757 = vmatprep.subr.mxu0 0.0
    %2758 = vmatpush2.xpose.msra.mxu0 0.0
    %2759 = vmatprep.subr.mxu0 0.0
    %2760 = vmatpush2.xpose.msra.mxu0 0.0
    %2761 = vmatprep.subr.mxu0 0.0
    %2762 = vmatpush2.xpose.msra.mxu0 0.0
    %2763 = vmatprep.subr.mxu0 0.0
    %2764 = vmatpush2.xpose.msra.mxu0 0.0
    %2765 = vmatprep.subr.mxu0 0.0
    %2766 = vmatpush2.xpose.msra.mxu0 0.0
    %2767 = vmatprep.subr.mxu0 0.0
    %2768 = vmatpush2.xpose.msra.mxu0 0.0
    %2769 = vmatprep.subr.mxu0 0.0
    %2770 = vmatpush2.xpose.msra.mxu0 0.0
    %2771 = vmatprep.subr.mxu0 0.0
    %2772 = vmatpush2.xpose.msra.mxu0 0.0
    %2773 = vmatprep.subr.mxu0 0.0
    %2774 = vmatpush2.xpose.msra.mxu0 0.0
    %2775 = vmatprep.mubr.f32.mxu0 0.0
    %2776 = vmatmul.mubr.f32.gmra.mxu0 %v2706
    %v2777 = vpop.f32.mrf.mxu0
    %v2778 = vadd.f32 %v895, %v2777
    %v2779 = vpop.f32.mrf.mxu0
    %2780 = vdwg.mxu0
    %v2782 = vsel %vm932, %v2436, 0
    %v2785 = vsel %vm932, %v2554, 0
    %2787 = vmatprep.subr.mxu0 0.0
    %2788 = vmatpush1.xpose.msra.mxu0 0.0
    %2789 = vmatprep.subr.mxu0 0.0
    %2790 = vmatpush1.xpose.msra.mxu0 0.0
    %2791 = vmatprep.subr.mxu0 0.0
    %2792 = vmatpush1.xpose.msra.mxu0 0.0
    %2793 = vmatprep.subr.mxu0 0.0
    %2794 = vmatpush1.xpose.msra.mxu0 0.0
    %2795 = vmatprep.subr.mxu0 0.0
    %2796 = vmatpush1.xpose.msra.mxu0 0.0
    %2797 = vmatprep.subr.mxu0 0.0
    %2798 = vmatpush1.xpose.msra.mxu0 0.0
    %2799 = vmatprep.subr.mxu0 0.0
    %2800 = vmatpush1.xpose.msra.mxu0 0.0
    %2801 = vmatprep.subr.mxu0 0.0
    %2802 = vmatpush1.xpose.msra.mxu0 0.0
    %2803 = vmatprep.subr.mxu0 0.0
    %2804 = vmatpush1.xpose.msra.mxu0 0.0
    %2805 = vmatprep.subr.mxu0 0.0
    %2806 = vmatpush1.xpose.msra.mxu0 0.0
    %2807 = vmatprep.subr.mxu0 0.0
    %2808 = vmatpush1.xpose.msra.mxu0 0.0
    %2809 = vmatprep.subr.mxu0 0.0
    %2810 = vmatpush1.xpose.msra.mxu0 0.0
    %2811 = vmatprep.subr.mxu0 0.0
    %2812 = vmatpush1.xpose.msra.mxu0 0.0
    %2813 = vmatprep.subr.mxu0 0.0
    %2814 = vmatpush1.xpose.msra.mxu0 0.0
    %2815 = vmatprep.subr.mxu0 0.0
    %2816 = vmatpush1.xpose.msra.mxu0 0.0
    %2817 = vmatprep.subr.mxu0 0.0
    %2818 = vmatpush1.xpose.msra.mxu0 %v2785
    %2819 = vmatprep.subr.mxu0 0.0
    %2820 = vmatpush2.xpose.msra.mxu0 0.0
    %2821 = vmatprep.subr.mxu0 0.0
    %2822 = vmatpush2.xpose.msra.mxu0 0.0
    %2823 = vmatprep.subr.mxu0 0.0
    %2824 = vmatpush2.xpose.msra.mxu0 0.0
    %2825 = vmatprep.subr.mxu0 0.0
    %2826 = vmatpush2.xpose.msra.mxu0 0.0
    %2827 = vmatprep.subr.mxu0 0.0
    %2828 = vmatpush2.xpose.msra.mxu0 0.0
    %2829 = vmatprep.subr.mxu0 0.0
    %2830 = vmatpush2.xpose.msra.mxu0 0.0
    %2831 = vmatprep.subr.mxu0 0.0
    %2832 = vmatpush2.xpose.msra.mxu0 0.0
    %2833 = vmatprep.subr.mxu0 0.0
    %2834 = vmatpush2.xpose.msra.mxu0 0.0
    %2835 = vmatprep.subr.mxu0 0.0
    %2836 = vmatpush2.xpose.msra.mxu0 0.0
    %2837 = vmatprep.subr.mxu0 0.0
    %2838 = vmatpush2.xpose.msra.mxu0 0.0
    %2839 = vmatprep.subr.mxu0 0.0
    %2840 = vmatpush2.xpose.msra.mxu0 0.0
    %2841 = vmatprep.subr.mxu0 0.0
    %2842 = vmatpush2.xpose.msra.mxu0 0.0
    %2843 = vmatprep.subr.mxu0 0.0
    %2844 = vmatpush2.xpose.msra.mxu0 0.0
    %2845 = vmatprep.subr.mxu0 0.0
    %2846 = vmatpush2.xpose.msra.mxu0 0.0
    %2847 = vmatprep.subr.mxu0 0.0
    %2848 = vmatpush2.xpose.msra.mxu0 0.0
    %2849 = vmatprep.subr.mxu0 0.0
    %2850 = vmatpush2.xpose.msra.mxu0 0.0
    %2851 = vmatprep.mubr.f32.mxu0 0.0
    %2852 = vmatmul.mubr.f32.gmra.mxu0 %v2782
    %v2853 = vpop.f32.mrf.mxu0
    %v2854 = vadd.f32 %v899, %v2853
    %v2855 = vpop.f32.mrf.mxu0
    %2856 = vdwg.mxu0
    %v2858 = vsel %vm932, %v2441, 0
    %v2861 = vsel %vm932, %v2559, 0
    %2863 = vmatprep.subr.mxu0 0.0
    %2864 = vmatpush1.xpose.msra.mxu0 0.0
    %2865 = vmatprep.subr.mxu0 0.0
    %2866 = vmatpush1.xpose.msra.mxu0 0.0
    %2867 = vmatprep.subr.mxu0 0.0
    %2868 = vmatpush1.xpose.msra.mxu0 0.0
    %2869 = vmatprep.subr.mxu0 0.0
    %2870 = vmatpush1.xpose.msra.mxu0 0.0
    %2871 = vmatprep.subr.mxu0 0.0
    %2872 = vmatpush1.xpose.msra.mxu0 0.0
    %2873 = vmatprep.subr.mxu0 0.0
    %2874 = vmatpush1.xpose.msra.mxu0 0.0
    %2875 = vmatprep.subr.mxu0 0.0
    %2876 = vmatpush1.xpose.msra.mxu0 0.0
    %2877 = vmatprep.subr.mxu0 0.0
    %2878 = vmatpush1.xpose.msra.mxu0 0.0
    %2879 = vmatprep.subr.mxu0 0.0
    %2880 = vmatpush1.xpose.msra.mxu0 0.0
    %2881 = vmatprep.subr.mxu0 0.0
    %2882 = vmatpush1.xpose.msra.mxu0 0.0
    %2883 = vmatprep.subr.mxu0 0.0
    %2884 = vmatpush1.xpose.msra.mxu0 0.0
    %2885 = vmatprep.subr.mxu0 0.0
    %2886 = vmatpush1.xpose.msra.mxu0 0.0
    %2887 = vmatprep.subr.mxu0 0.0
    %2888 = vmatpush1.xpose.msra.mxu0 0.0
    %2889 = vmatprep.subr.mxu0 0.0
    %2890 = vmatpush1.xpose.msra.mxu0 0.0
    %2891 = vmatprep.subr.mxu0 0.0
    %2892 = vmatpush1.xpose.msra.mxu0 0.0
    %2893 = vmatprep.subr.mxu0 0.0
    %2894 = vmatpush1.xpose.msra.mxu0 %v2861
    %2895 = vmatprep.subr.mxu0 0.0
    %2896 = vmatpush2.xpose.msra.mxu0 0.0
    %2897 = vmatprep.subr.mxu0 0.0
    %2898 = vmatpush2.xpose.msra.mxu0 0.0
    %2899 = vmatprep.subr.mxu0 0.0
    %2900 = vmatpush2.xpose.msra.mxu0 0.0
    %2901 = vmatprep.subr.mxu0 0.0
    %2902 = vmatpush2.xpose.msra.mxu0 0.0
    %2903 = vmatprep.subr.mxu0 0.0
    %2904 = vmatpush2.xpose.msra.mxu0 0.0
    %2905 = vmatprep.subr.mxu0 0.0
    %2906 = vmatpush2.xpose.msra.mxu0 0.0
    %2907 = vmatprep.subr.mxu0 0.0
    %2908 = vmatpush2.xpose.msra.mxu0 0.0
    %2909 = vmatprep.subr.mxu0 0.0
    %2910 = vmatpush2.xpose.msra.mxu0 0.0
    %2911 = vmatprep.subr.mxu0 0.0
    %2912 = vmatpush2.xpose.msra.mxu0 0.0
    %2913 = vmatprep.subr.mxu0 0.0
    %2914 = vmatpush2.xpose.msra.mxu0 0.0
    %2915 = vmatprep.subr.mxu0 0.0
    %2916 = vmatpush2.xpose.msra.mxu0 0.0
    %2917 = vmatprep.subr.mxu0 0.0
    %2918 = vmatpush2.xpose.msra.mxu0 0.0
    %2919 = vmatprep.subr.mxu0 0.0
    %2920 = vmatpush2.xpose.msra.mxu0 0.0
    %2921 = vmatprep.subr.mxu0 0.0
    %2922 = vmatpush2.xpose.msra.mxu0 0.0
    %2923 = vmatprep.subr.mxu0 0.0
    %2924 = vmatpush2.xpose.msra.mxu0 0.0
    %2925 = vmatprep.subr.mxu0 0.0
    %2926 = vmatpush2.xpose.msra.mxu0 0.0
    %2927 = vmatprep.mubr.f32.mxu0 0.0
    %2928 = vmatmul.mubr.f32.gmra.mxu0 %v2858
    %v2929 = vpop.f32.mrf.mxu0
    %v2930 = vadd.f32 %v903, %v2929
    %v2931 = vpop.f32.mrf.mxu0
    %2932 = vdwg.mxu0
    %v2934 = vsel %vm932, %v2446, 0
    %v2937 = vsel %vm932, %v2564, 0
    %2939 = vmatprep.subr.mxu0 0.0
    %2940 = vmatpush1.xpose.msra.mxu0 0.0
    %2941 = vmatprep.subr.mxu0 0.0
    %2942 = vmatpush1.xpose.msra.mxu0 0.0
    %2943 = vmatprep.subr.mxu0 0.0
    %2944 = vmatpush1.xpose.msra.mxu0 0.0
    %2945 = vmatprep.subr.mxu0 0.0
    %2946 = vmatpush1.xpose.msra.mxu0 0.0
    %2947 = vmatprep.subr.mxu0 0.0
    %2948 = vmatpush1.xpose.msra.mxu0 0.0
    %2949 = vmatprep.subr.mxu0 0.0
    %2950 = vmatpush1.xpose.msra.mxu0 0.0
    %2951 = vmatprep.subr.mxu0 0.0
    %2952 = vmatpush1.xpose.msra.mxu0 0.0
    %2953 = vmatprep.subr.mxu0 0.0
    %2954 = vmatpush1.xpose.msra.mxu0 0.0
    %2955 = vmatprep.subr.mxu0 0.0
    %2956 = vmatpush1.xpose.msra.mxu0 0.0
    %2957 = vmatprep.subr.mxu0 0.0
    %2958 = vmatpush1.xpose.msra.mxu0 0.0
    %2959 = vmatprep.subr.mxu0 0.0
    %2960 = vmatpush1.xpose.msra.mxu0 0.0
    %2961 = vmatprep.subr.mxu0 0.0
    %2962 = vmatpush1.xpose.msra.mxu0 0.0
    %2963 = vmatprep.subr.mxu0 0.0
    %2964 = vmatpush1.xpose.msra.mxu0 0.0
    %2965 = vmatprep.subr.mxu0 0.0
    %2966 = vmatpush1.xpose.msra.mxu0 0.0
    %2967 = vmatprep.subr.mxu0 0.0
    %2968 = vmatpush1.xpose.msra.mxu0 0.0
    %2969 = vmatprep.subr.mxu0 0.0
    %2970 = vmatpush1.xpose.msra.mxu0 %v2937
    %2971 = vmatprep.subr.mxu0 0.0
    %2972 = vmatpush2.xpose.msra.mxu0 0.0
    %2973 = vmatprep.subr.mxu0 0.0
    %2974 = vmatpush2.xpose.msra.mxu0 0.0
    %2975 = vmatprep.subr.mxu0 0.0
    %2976 = vmatpush2.xpose.msra.mxu0 0.0
    %2977 = vmatprep.subr.mxu0 0.0
    %2978 = vmatpush2.xpose.msra.mxu0 0.0
    %2979 = vmatprep.subr.mxu0 0.0
    %2980 = vmatpush2.xpose.msra.mxu0 0.0
    %2981 = vmatprep.subr.mxu0 0.0
    %2982 = vmatpush2.xpose.msra.mxu0 0.0
    %2983 = vmatprep.subr.mxu0 0.0
    %2984 = vmatpush2.xpose.msra.mxu0 0.0
    %2985 = vmatprep.subr.mxu0 0.0
    %2986 = vmatpush2.xpose.msra.mxu0 0.0
    %2987 = vmatprep.subr.mxu0 0.0
    %2988 = vmatpush2.xpose.msra.mxu0 0.0
    %2989 = vmatprep.subr.mxu0 0.0
    %2990 = vmatpush2.xpose.msra.mxu0 0.0
    %2991 = vmatprep.subr.mxu0 0.0
    %2992 = vmatpush2.xpose.msra.mxu0 0.0
    %2993 = vmatprep.subr.mxu0 0.0
    %2994 = vmatpush2.xpose.msra.mxu0 0.0
    %2995 = vmatprep.subr.mxu0 0.0
    %2996 = vmatpush2.xpose.msra.mxu0 0.0
    %2997 = vmatprep.subr.mxu0 0.0
    %2998 = vmatpush2.xpose.msra.mxu0 0.0
    %2999 = vmatprep.subr.mxu0 0.0
    %3000 = vmatpush2.xpose.msra.mxu0 0.0
    %3001 = vmatprep.subr.mxu0 0.0
    %3002 = vmatpush2.xpose.msra.mxu0 0.0
    %3003 = vmatprep.mubr.f32.mxu0 0.0
    %3004 = vmatmul.mubr.f32.gmra.mxu0 %v2934
    %v3005 = vpop.f32.mrf.mxu0
    %v3006 = vadd.f32 %v907, %v3005
    %v3007 = vpop.f32.mrf.mxu0
    %3008 = vdwg.mxu0
    %v3010 = vsel %vm932, %v2451, 0
    %v3013 = vsel %vm932, %v2569, 0
    %3015 = vmatprep.subr.mxu0 0.0
    %3016 = vmatpush1.xpose.msra.mxu0 0.0
    %3017 = vmatprep.subr.mxu0 0.0
    %3018 = vmatpush1.xpose.msra.mxu0 0.0
    %3019 = vmatprep.subr.mxu0 0.0
    %3020 = vmatpush1.xpose.msra.mxu0 0.0
    %3021 = vmatprep.subr.mxu0 0.0
    %3022 = vmatpush1.xpose.msra.mxu0 0.0
    %3023 = vmatprep.subr.mxu0 0.0
    %3024 = vmatpush1.xpose.msra.mxu0 0.0
    %3025 = vmatprep.subr.mxu0 0.0
    %3026 = vmatpush1.xpose.msra.mxu0 0.0
    %3027 = vmatprep.subr.mxu0 0.0
    %3028 = vmatpush1.xpose.msra.mxu0 0.0
    %3029 = vmatprep.subr.mxu0 0.0
    %3030 = vmatpush1.xpose.msra.mxu0 0.0
    %3031 = vmatprep.subr.mxu0 0.0
    %3032 = vmatpush1.xpose.msra.mxu0 0.0
    %3033 = vmatprep.subr.mxu0 0.0
    %3034 = vmatpush1.xpose.msra.mxu0 0.0
    %3035 = vmatprep.subr.mxu0 0.0
    %3036 = vmatpush1.xpose.msra.mxu0 0.0
    %3037 = vmatprep.subr.mxu0 0.0
    %3038 = vmatpush1.xpose.msra.mxu0 0.0
    %3039 = vmatprep.subr.mxu0 0.0
    %3040 = vmatpush1.xpose.msra.mxu0 0.0
    %3041 = vmatprep.subr.mxu0 0.0
    %3042 = vmatpush1.xpose.msra.mxu0 0.0
    %3043 = vmatprep.subr.mxu0 0.0
    %3044 = vmatpush1.xpose.msra.mxu0 0.0
    %3045 = vmatprep.subr.mxu0 0.0
    %3046 = vmatpush1.xpose.msra.mxu0 %v3013
    %3047 = vmatprep.subr.mxu0 0.0
    %3048 = vmatpush2.xpose.msra.mxu0 0.0
    %3049 = vmatprep.subr.mxu0 0.0
    %3050 = vmatpush2.xpose.msra.mxu0 0.0
    %3051 = vmatprep.subr.mxu0 0.0
    %3052 = vmatpush2.xpose.msra.mxu0 0.0
    %3053 = vmatprep.subr.mxu0 0.0
    %3054 = vmatpush2.xpose.msra.mxu0 0.0
    %3055 = vmatprep.subr.mxu0 0.0
    %3056 = vmatpush2.xpose.msra.mxu0 0.0
    %3057 = vmatprep.subr.mxu0 0.0
    %3058 = vmatpush2.xpose.msra.mxu0 0.0
    %3059 = vmatprep.subr.mxu0 0.0
    %3060 = vmatpush2.xpose.msra.mxu0 0.0
    %3061 = vmatprep.subr.mxu0 0.0
    %3062 = vmatpush2.xpose.msra.mxu0 0.0
    %3063 = vmatprep.subr.mxu0 0.0
    %3064 = vmatpush2.xpose.msra.mxu0 0.0
    %3065 = vmatprep.subr.mxu0 0.0
    %3066 = vmatpush2.xpose.msra.mxu0 0.0
    %3067 = vmatprep.subr.mxu0 0.0
    %3068 = vmatpush2.xpose.msra.mxu0 0.0
    %3069 = vmatprep.subr.mxu0 0.0
    %3070 = vmatpush2.xpose.msra.mxu0 0.0
    %3071 = vmatprep.subr.mxu0 0.0
    %3072 = vmatpush2.xpose.msra.mxu0 0.0
    %3073 = vmatprep.subr.mxu0 0.0
    %3074 = vmatpush2.xpose.msra.mxu0 0.0
    %3075 = vmatprep.subr.mxu0 0.0
    %3076 = vmatpush2.xpose.msra.mxu0 0.0
    %3077 = vmatprep.subr.mxu0 0.0
    %3078 = vmatpush2.xpose.msra.mxu0 0.0
    %3079 = vmatprep.mubr.f32.mxu0 0.0
    %3080 = vmatmul.mubr.f32.gmra.mxu0 %v3010
    %v3081 = vpop.f32.mrf.mxu0
    %v3082 = vadd.f32 %v911, %v3081
    %v3083 = vpop.f32.mrf.mxu0
    %3084 = vdwg.mxu0
    %v3086 = vsel %vm932, %v2456, 0
    %v3089 = vsel %vm932, %v2574, 0
    %3091 = vmatprep.subr.mxu0 0.0
    %3092 = vmatpush1.xpose.msra.mxu0 0.0
    %3093 = vmatprep.subr.mxu0 0.0
    %3094 = vmatpush1.xpose.msra.mxu0 0.0
    %3095 = vmatprep.subr.mxu0 0.0
    %3096 = vmatpush1.xpose.msra.mxu0 0.0
    %3097 = vmatprep.subr.mxu0 0.0
    %3098 = vmatpush1.xpose.msra.mxu0 0.0
    %3099 = vmatprep.subr.mxu0 0.0
    %3100 = vmatpush1.xpose.msra.mxu0 0.0
    %3101 = vmatprep.subr.mxu0 0.0
    %3102 = vmatpush1.xpose.msra.mxu0 0.0
    %3103 = vmatprep.subr.mxu0 0.0
    %3104 = vmatpush1.xpose.msra.mxu0 0.0
    %3105 = vmatprep.subr.mxu0 0.0
    %3106 = vmatpush1.xpose.msra.mxu0 0.0
    %3107 = vmatprep.subr.mxu0 0.0
    %3108 = vmatpush1.xpose.msra.mxu0 0.0
    %3109 = vmatprep.subr.mxu0 0.0
    %3110 = vmatpush1.xpose.msra.mxu0 0.0
    %3111 = vmatprep.subr.mxu0 0.0
    %3112 = vmatpush1.xpose.msra.mxu0 0.0
    %3113 = vmatprep.subr.mxu0 0.0
    %3114 = vmatpush1.xpose.msra.mxu0 0.0
    %3115 = vmatprep.subr.mxu0 0.0
    %3116 = vmatpush1.xpose.msra.mxu0 0.0
    %3117 = vmatprep.subr.mxu0 0.0
    %3118 = vmatpush1.xpose.msra.mxu0 0.0
    %3119 = vmatprep.subr.mxu0 0.0
    %3120 = vmatpush1.xpose.msra.mxu0 0.0
    %3121 = vmatprep.subr.mxu0 0.0
    %3122 = vmatpush1.xpose.msra.mxu0 %v3089
    %3123 = vmatprep.subr.mxu0 0.0
    %3124 = vmatpush2.xpose.msra.mxu0 0.0
    %3125 = vmatprep.subr.mxu0 0.0
    %3126 = vmatpush2.xpose.msra.mxu0 0.0
    %3127 = vmatprep.subr.mxu0 0.0
    %3128 = vmatpush2.xpose.msra.mxu0 0.0
    %3129 = vmatprep.subr.mxu0 0.0
    %3130 = vmatpush2.xpose.msra.mxu0 0.0
    %3131 = vmatprep.subr.mxu0 0.0
    %3132 = vmatpush2.xpose.msra.mxu0 0.0
    %3133 = vmatprep.subr.mxu0 0.0
    %3134 = vmatpush2.xpose.msra.mxu0 0.0
    %3135 = vmatprep.subr.mxu0 0.0
    %3136 = vmatpush2.xpose.msra.mxu0 0.0
    %3137 = vmatprep.subr.mxu0 0.0
    %3138 = vmatpush2.xpose.msra.mxu0 0.0
    %3139 = vmatprep.subr.mxu0 0.0
    %3140 = vmatpush2.xpose.msra.mxu0 0.0
    %3141 = vmatprep.subr.mxu0 0.0
    %3142 = vmatpush2.xpose.msra.mxu0 0.0
    %3143 = vmatprep.subr.mxu0 0.0
    %3144 = vmatpush2.xpose.msra.mxu0 0.0
    %3145 = vmatprep.subr.mxu0 0.0
    %3146 = vmatpush2.xpose.msra.mxu0 0.0
    %3147 = vmatprep.subr.mxu0 0.0
    %3148 = vmatpush2.xpose.msra.mxu0 0.0
    %3149 = vmatprep.subr.mxu0 0.0
    %3150 = vmatpush2.xpose.msra.mxu0 0.0
    %3151 = vmatprep.subr.mxu0 0.0
    %3152 = vmatpush2.xpose.msra.mxu0 0.0
    %3153 = vmatprep.subr.mxu0 0.0
    %3154 = vmatpush2.xpose.msra.mxu0 0.0
    %3155 = vmatprep.mubr.f32.mxu0 0.0
    %3156 = vmatmul.mubr.f32.gmra.mxu0 %v3086
    %v3157 = vpop.f32.mrf.mxu0
    %v3158 = vadd.f32 %v915, %v3157
    %v3159 = vpop.f32.mrf.mxu0
    %3160 = vdwg.mxu0
    %v3162 = vsel %vm932, %v2461, 0
    %v3165 = vsel %vm932, %v2579, 0
    %3167 = vmatprep.subr.mxu0 0.0
    %3168 = vmatpush1.xpose.msra.mxu0 0.0
    %3169 = vmatprep.subr.mxu0 0.0
    %3170 = vmatpush1.xpose.msra.mxu0 0.0
    %3171 = vmatprep.subr.mxu0 0.0
    %3172 = vmatpush1.xpose.msra.mxu0 0.0
    %3173 = vmatprep.subr.mxu0 0.0
    %3174 = vmatpush1.xpose.msra.mxu0 0.0
    %3175 = vmatprep.subr.mxu0 0.0
    %3176 = vmatpush1.xpose.msra.mxu0 0.0
    %3177 = vmatprep.subr.mxu0 0.0
    %3178 = vmatpush1.xpose.msra.mxu0 0.0
    %3179 = vmatprep.subr.mxu0 0.0
    %3180 = vmatpush1.xpose.msra.mxu0 0.0
    %3181 = vmatprep.subr.mxu0 0.0
    %3182 = vmatpush1.xpose.msra.mxu0 0.0
    %3183 = vmatprep.subr.mxu0 0.0
    %3184 = vmatpush1.xpose.msra.mxu0 0.0
    %3185 = vmatprep.subr.mxu0 0.0
    %3186 = vmatpush1.xpose.msra.mxu0 0.0
    %3187 = vmatprep.subr.mxu0 0.0
    %3188 = vmatpush1.xpose.msra.mxu0 0.0
    %3189 = vmatprep.subr.mxu0 0.0
    %3190 = vmatpush1.xpose.msra.mxu0 0.0
    %3191 = vmatprep.subr.mxu0 0.0
    %3192 = vmatpush1.xpose.msra.mxu0 0.0
    %3193 = vmatprep.subr.mxu0 0.0
    %3194 = vmatpush1.xpose.msra.mxu0 0.0
    %3195 = vmatprep.subr.mxu0 0.0
    %3196 = vmatpush1.xpose.msra.mxu0 0.0
    %3197 = vmatprep.subr.mxu0 0.0
    %3198 = vmatpush1.xpose.msra.mxu0 %v3165
    %3199 = vmatprep.subr.mxu0 0.0
    %3200 = vmatpush2.xpose.msra.mxu0 0.0
    %3201 = vmatprep.subr.mxu0 0.0
    %3202 = vmatpush2.xpose.msra.mxu0 0.0
    %3203 = vmatprep.subr.mxu0 0.0
    %3204 = vmatpush2.xpose.msra.mxu0 0.0
    %3205 = vmatprep.subr.mxu0 0.0
    %3206 = vmatpush2.xpose.msra.mxu0 0.0
    %3207 = vmatprep.subr.mxu0 0.0
    %3208 = vmatpush2.xpose.msra.mxu0 0.0
    %3209 = vmatprep.subr.mxu0 0.0
    %3210 = vmatpush2.xpose.msra.mxu0 0.0
    %3211 = vmatprep.subr.mxu0 0.0
    %3212 = vmatpush2.xpose.msra.mxu0 0.0
    %3213 = vmatprep.subr.mxu0 0.0
    %3214 = vmatpush2.xpose.msra.mxu0 0.0
    %3215 = vmatprep.subr.mxu0 0.0
    %3216 = vmatpush2.xpose.msra.mxu0 0.0
    %3217 = vmatprep.subr.mxu0 0.0
    %3218 = vmatpush2.xpose.msra.mxu0 0.0
    %3219 = vmatprep.subr.mxu0 0.0
    %3220 = vmatpush2.xpose.msra.mxu0 0.0
    %3221 = vmatprep.subr.mxu0 0.0
    %3222 = vmatpush2.xpose.msra.mxu0 0.0
    %3223 = vmatprep.subr.mxu0 0.0
    %3224 = vmatpush2.xpose.msra.mxu0 0.0
    %3225 = vmatprep.subr.mxu0 0.0
    %3226 = vmatpush2.xpose.msra.mxu0 0.0
    %3227 = vmatprep.subr.mxu0 0.0
    %3228 = vmatpush2.xpose.msra.mxu0 0.0
    %3229 = vmatprep.subr.mxu0 0.0
    %3230 = vmatpush2.xpose.msra.mxu0 0.0
    %3231 = vmatprep.mubr.f32.mxu0 0.0
    %3232 = vmatmul.mubr.f32.gmra.mxu0 %v3162
    %v3233 = vpop.f32.mrf.mxu0
    %v3234 = vadd.f32 %v919, %v3233
    %v3235 = vpop.f32.mrf.mxu0
    %3236 = vdwg.mxu0
    %v3238 = vsel %vm932, %v2466, 0
    %v3241 = vsel %vm932, %v2584, 0
    %3243 = vmatprep.subr.mxu0 0.0
    %3244 = vmatpush1.xpose.msra.mxu0 0.0
    %3245 = vmatprep.subr.mxu0 0.0
    %3246 = vmatpush1.xpose.msra.mxu0 0.0
    %3247 = vmatprep.subr.mxu0 0.0
    %3248 = vmatpush1.xpose.msra.mxu0 0.0
    %3249 = vmatprep.subr.mxu0 0.0
    %3250 = vmatpush1.xpose.msra.mxu0 0.0
    %3251 = vmatprep.subr.mxu0 0.0
    %3252 = vmatpush1.xpose.msra.mxu0 0.0
    %3253 = vmatprep.subr.mxu0 0.0
    %3254 = vmatpush1.xpose.msra.mxu0 0.0
    %3255 = vmatprep.subr.mxu0 0.0
    %3256 = vmatpush1.xpose.msra.mxu0 0.0
    %3257 = vmatprep.subr.mxu0 0.0
    %3258 = vmatpush1.xpose.msra.mxu0 0.0
    %3259 = vmatprep.subr.mxu0 0.0
    %3260 = vmatpush1.xpose.msra.mxu0 0.0
    %3261 = vmatprep.subr.mxu0 0.0
    %3262 = vmatpush1.xpose.msra.mxu0 0.0
    %3263 = vmatprep.subr.mxu0 0.0
    %3264 = vmatpush1.xpose.msra.mxu0 0.0
    %3265 = vmatprep.subr.mxu0 0.0
    %3266 = vmatpush1.xpose.msra.mxu0 0.0
    %3267 = vmatprep.subr.mxu0 0.0
    %3268 = vmatpush1.xpose.msra.mxu0 0.0
    %3269 = vmatprep.subr.mxu0 0.0
    %3270 = vmatpush1.xpose.msra.mxu0 0.0
    %3271 = vmatprep.subr.mxu0 0.0
    %3272 = vmatpush1.xpose.msra.mxu0 0.0
    %3273 = vmatprep.subr.mxu0 0.0
    %3274 = vmatpush1.xpose.msra.mxu0 %v3241
    %3275 = vmatprep.subr.mxu0 0.0
    %3276 = vmatpush2.xpose.msra.mxu0 0.0
    %3277 = vmatprep.subr.mxu0 0.0
    %3278 = vmatpush2.xpose.msra.mxu0 0.0
    %3279 = vmatprep.subr.mxu0 0.0
    %3280 = vmatpush2.xpose.msra.mxu0 0.0
    %3281 = vmatprep.subr.mxu0 0.0
    %3282 = vmatpush2.xpose.msra.mxu0 0.0
    %3283 = vmatprep.subr.mxu0 0.0
    %3284 = vmatpush2.xpose.msra.mxu0 0.0
    %3285 = vmatprep.subr.mxu0 0.0
    %3286 = vmatpush2.xpose.msra.mxu0 0.0
    %3287 = vmatprep.subr.mxu0 0.0
    %3288 = vmatpush2.xpose.msra.mxu0 0.0
    %3289 = vmatprep.subr.mxu0 0.0
    %3290 = vmatpush2.xpose.msra.mxu0 0.0
    %3291 = vmatprep.subr.mxu0 0.0
    %3292 = vmatpush2.xpose.msra.mxu0 0.0
    %3293 = vmatprep.subr.mxu0 0.0
    %3294 = vmatpush2.xpose.msra.mxu0 0.0
    %3295 = vmatprep.subr.mxu0 0.0
    %3296 = vmatpush2.xpose.msra.mxu0 0.0
    %3297 = vmatprep.subr.mxu0 0.0
    %3298 = vmatpush2.xpose.msra.mxu0 0.0
    %3299 = vmatprep.subr.mxu0 0.0
    %3300 = vmatpush2.xpose.msra.mxu0 0.0
    %3301 = vmatprep.subr.mxu0 0.0
    %3302 = vmatpush2.xpose.msra.mxu0 0.0
    %3303 = vmatprep.subr.mxu0 0.0
    %3304 = vmatpush2.xpose.msra.mxu0 0.0
    %3305 = vmatprep.subr.mxu0 0.0
    %3306 = vmatpush2.xpose.msra.mxu0 0.0
    %3307 = vmatprep.mubr.f32.mxu0 0.0
    %3308 = vmatmul.mubr.f32.gmra.mxu0 %v3238
    %v3309 = vpop.f32.mrf.mxu0
    %v3310 = vadd.f32 %v923, %v3309
    %v3311 = vpop.f32.mrf.mxu0
    %3312 = vdwg.mxu0
    %v3313 = vsel %vm932, %v2778, -inf
    %3314 = vmax.xlane.f32.xlu0 %v3313
    %v3315 = vpop.xlane.xlu0 %3314
    %v3316 = vsel %vm932, %v2854, -inf
    %3317 = vmax.xlane.f32.xlu0 %v3316
    %v3318 = vpop.xlane.xlu0 %3317
    %v3319 = vsel %vm932, %v2930, -inf
    %3320 = vmax.xlane.f32.xlu0 %v3319
    %v3321 = vpop.xlane.xlu0 %3320
    %v3322 = vsel %vm932, %v3006, -inf
    %3323 = vmax.xlane.f32.xlu0 %v3322
    %v3324 = vpop.xlane.xlu0 %3323
    %v3325 = vsel %vm932, %v3082, -inf
    %3326 = vmax.xlane.f32.xlu0 %v3325
    %v3327 = vpop.xlane.xlu0 %3326
    %v3328 = vsel %vm932, %v3158, -inf
    %3329 = vmax.xlane.f32.xlu0 %v3328
    %v3330 = vpop.xlane.xlu0 %3329
    %v3331 = vsel %vm932, %v3234, -inf
    %3332 = vmax.xlane.f32.xlu0 %v3331
    %v3333 = vpop.xlane.xlu0 %3332
    %v3334 = vsel %vm932, %v3310, -inf
    %3335 = vmax.xlane.f32.xlu0 %v3334
    %v3336 = vpop.xlane.xlu0 %3335
    %v3337 = vsub.f32 %v2778, %v3315
    %v3338 = vsub.f32 %v2854, %v3318
    %v3339 = vsub.f32 %v2930, %v3321
    %v3340 = vsub.f32 %v3006, %v3324
    %v3341 = vsub.f32 %v3082, %v3327
    %v3342 = vsub.f32 %v3158, %v3330
    %v3343 = vsub.f32 %v3234, %v3333
    %v3344 = vsub.f32 %v3310, %v3336
    %v3345 = vmul.f32 %v3337, 1.442695
    %v3346 = vpow.pop %v3345
    %v3347 = vmul.f32 %v3338, 1.442695
    %v3348 = vpow.pop %v3347
    %v3349 = vmul.f32 %v3339, 1.442695
    %v3350 = vpow.pop %v3349
    %v3351 = vmul.f32 %v3340, 1.442695
    %v3352 = vpow.pop %v3351
    %v3353 = vmul.f32 %v3341, 1.442695
    %v3354 = vpow.pop %v3353
    %v3355 = vmul.f32 %v3342, 1.442695
    %v3356 = vpow.pop %v3355
    %v3357 = vmul.f32 %v3343, 1.442695
    %v3358 = vpow.pop %v3357
    %v3359 = vmul.f32 %v3344, 1.442695
    %v3360 = vpow.pop %v3359
    %v3361 = vsel %vm932, %v3346, 0.0
    %3362 = vadd.xlane.f32.xlu0 %v3361
    %v3363 = vpop.xlane.xlu0 %3362
    %v3364 = vsel %vm932, %v3348, 0.0
    %3365 = vadd.xlane.f32.xlu0 %v3364
    %v3366 = vpop.xlane.xlu0 %3365
    %v3367 = vsel %vm932, %v3350, 0.0
    %3368 = vadd.xlane.f32.xlu0 %v3367
    %v3369 = vpop.xlane.xlu0 %3368
    %v3370 = vsel %vm932, %v3352, 0.0
    %3371 = vadd.xlane.f32.xlu0 %v3370
    %v3372 = vpop.xlane.xlu0 %3371
    %v3373 = vsel %vm932, %v3354, 0.0
    %3374 = vadd.xlane.f32.xlu0 %v3373
    %v3375 = vpop.xlane.xlu0 %3374
    %v3376 = vsel %vm932, %v3356, 0.0
    %3377 = vadd.xlane.f32.xlu0 %v3376
    %v3378 = vpop.xlane.xlu0 %3377
    %v3379 = vsel %vm932, %v3358, 0.0
    %3380 = vadd.xlane.f32.xlu0 %v3379
    %v3381 = vpop.xlane.xlu0 %3380
    %v3382 = vsel %vm932, %v3360, 0.0
    %3383 = vadd.xlane.f32.xlu0 %v3382
    %v3384 = vpop.xlane.xlu0 %3383
    %v3385 = vrcp.pop %v3363
    %v3386 = vrcp.pop %v3366
    %v3387 = vrcp.pop %v3369
    %v3388 = vrcp.pop %v3372
    %v3389 = vrcp.pop %v3375
    %v3390 = vrcp.pop %v3378
    %v3391 = vrcp.pop %v3381
    %v3392 = vrcp.pop %v3384
    %v3393 = vmul.f32 %v3346, %v3385
    %v3394 = vmul.f32 %v3348, %v3386
    %v3395 = vmul.f32 %v3350, %v3387
    %v3396 = vmul.f32 %v3352, %v3388
    %v3397 = vmul.f32 %v3354, %v3389
    %v3398 = vmul.f32 %v3356, %v3390
    %v3399 = vmul.f32 %v3358, %v3391
    %v3400 = vmul.f32 %v3360, %v3392
    %v3402 = vsel %vm932, %v3393, 0
    %3404 = vmatprep.subr.mxu0 0.0
    %3405 = vmatpush1.msra.mxu0 0.0
    %3406 = vmatprep.subr.mxu0 0.0
    %3407 = vmatpush1.msra.mxu0 0.0
    %3408 = vmatprep.subr.mxu0 0.0
    %3409 = vmatpush1.msra.mxu0 0.0
    %3410 = vmatprep.subr.mxu0 0.0
    %3411 = vmatpush1.msra.mxu0 0.0
    %3412 = vmatprep.subr.mxu0 0.0
    %3413 = vmatpush1.msra.mxu0 0.0
    %3414 = vmatprep.subr.mxu0 0.0
    %3415 = vmatpush1.msra.mxu0 0.0
    %3416 = vmatprep.subr.mxu0 0.0
    %3417 = vmatpush1.msra.mxu0 0.0
    %3418 = vmatprep.subr.mxu0 0.0
    %3419 = vmatpush1.msra.mxu0 0.0
    %3420 = vmatprep.subr.mxu0 0.0
    %3421 = vmatpush1.msra.mxu0 0.0
    %3422 = vmatprep.subr.mxu0 0.0
    %3423 = vmatpush1.msra.mxu0 0.0
    %3424 = vmatprep.subr.mxu0 0.0
    %3425 = vmatpush1.msra.mxu0 0.0
    %3426 = vmatprep.subr.mxu0 0.0
    %3427 = vmatpush1.msra.mxu0 0.0
    %3428 = vmatprep.subr.mxu0 0.0
    %3429 = vmatpush1.msra.mxu0 0.0
    %3430 = vmatprep.subr.mxu0 0.0
    %3431 = vmatpush1.msra.mxu0 0.0
    %3432 = vmatprep.subr.mxu0 0.0
    %3433 = vmatpush1.msra.mxu0 0.0
    %3434 = vmatprep.subr.mxu0 0.0
    %3435 = vmatpush1.msra.mxu0 %v2667
    %3436 = vmatprep.subr.mxu0 0.0
    %3437 = vmatpush2.msra.mxu0 0.0
    %3438 = vmatprep.subr.mxu0 0.0
    %3439 = vmatpush2.msra.mxu0 0.0
    %3440 = vmatprep.subr.mxu0 0.0
    %3441 = vmatpush2.msra.mxu0 0.0
    %3442 = vmatprep.subr.mxu0 0.0
    %3443 = vmatpush2.msra.mxu0 0.0
    %3444 = vmatprep.subr.mxu0 0.0
    %3445 = vmatpush2.msra.mxu0 0.0
    %3446 = vmatprep.subr.mxu0 0.0
    %3447 = vmatpush2.msra.mxu0 0.0
    %3448 = vmatprep.subr.mxu0 0.0
    %3449 = vmatpush2.msra.mxu0 0.0
    %3450 = vmatprep.subr.mxu0 0.0
    %3451 = vmatpush2.msra.mxu0 0.0
    %3452 = vmatprep.subr.mxu0 0.0
    %3453 = vmatpush2.msra.mxu0 0.0
    %3454 = vmatprep.subr.mxu0 0.0
    %3455 = vmatpush2.msra.mxu0 0.0
    %3456 = vmatprep.subr.mxu0 0.0
    %3457 = vmatpush2.msra.mxu0 0.0
    %3458 = vmatprep.subr.mxu0 0.0
    %3459 = vmatpush2.msra.mxu0 0.0
    %3460 = vmatprep.subr.mxu0 0.0
    %3461 = vmatpush2.msra.mxu0 0.0
    %3462 = vmatprep.subr.mxu0 0.0
    %3463 = vmatpush2.msra.mxu0 0.0
    %3464 = vmatprep.subr.mxu0 0.0
    %3465 = vmatpush2.msra.mxu0 0.0
    %3466 = vmatprep.subr.mxu0 0.0
    %3467 = vmatpush2.msra.mxu0 0.0
    %3468 = vmatprep.mubr.f32.mxu0 0.0
    %3469 = vmatmul.mubr.f32.gmra.mxu0 %v3402
    %v3470 = vpop.f32.mrf.mxu0
    %v3471 = vadd.f32 0.0, %v3470
    %v3472 = vpop.f32.mrf.mxu0
    %3473 = vdwg.mxu0
    %v3475 = vsel %vm932, %v3394, 0
    %3477 = vmatprep.subr.mxu0 0.0
    %3478 = vmatpush1.msra.mxu0 0.0
    %3479 = vmatprep.subr.mxu0 0.0
    %3480 = vmatpush1.msra.mxu0 0.0
    %3481 = vmatprep.subr.mxu0 0.0
    %3482 = vmatpush1.msra.mxu0 0.0
    %3483 = vmatprep.subr.mxu0 0.0
    %3484 = vmatpush1.msra.mxu0 0.0
    %3485 = vmatprep.subr.mxu0 0.0
    %3486 = vmatpush1.msra.mxu0 0.0
    %3487 = vmatprep.subr.mxu0 0.0
    %3488 = vmatpush1.msra.mxu0 0.0
    %3489 = vmatprep.subr.mxu0 0.0
    %3490 = vmatpush1.msra.mxu0 0.0
    %3491 = vmatprep.subr.mxu0 0.0
    %3492 = vmatpush1.msra.mxu0 0.0
    %3493 = vmatprep.subr.mxu0 0.0
    %3494 = vmatpush1.msra.mxu0 0.0
    %3495 = vmatprep.subr.mxu0 0.0
    %3496 = vmatpush1.msra.mxu0 0.0
    %3497 = vmatprep.subr.mxu0 0.0
    %3498 = vmatpush1.msra.mxu0 0.0
    %3499 = vmatprep.subr.mxu0 0.0
    %3500 = vmatpush1.msra.mxu0 0.0
    %3501 = vmatprep.subr.mxu0 0.0
    %3502 = vmatpush1.msra.mxu0 0.0
    %3503 = vmatprep.subr.mxu0 0.0
    %3504 = vmatpush1.msra.mxu0 0.0
    %3505 = vmatprep.subr.mxu0 0.0
    %3506 = vmatpush1.msra.mxu0 0.0
    %3507 = vmatprep.subr.mxu0 0.0
    %3508 = vmatpush1.msra.mxu0 %v2672
    %3509 = vmatprep.subr.mxu0 0.0
    %3510 = vmatpush2.msra.mxu0 0.0
    %3511 = vmatprep.subr.mxu0 0.0
    %3512 = vmatpush2.msra.mxu0 0.0
    %3513 = vmatprep.subr.mxu0 0.0
    %3514 = vmatpush2.msra.mxu0 0.0
    %3515 = vmatprep.subr.mxu0 0.0
    %3516 = vmatpush2.msra.mxu0 0.0
    %3517 = vmatprep.subr.mxu0 0.0
    %3518 = vmatpush2.msra.mxu0 0.0
    %3519 = vmatprep.subr.mxu0 0.0
    %3520 = vmatpush2.msra.mxu0 0.0
    %3521 = vmatprep.subr.mxu0 0.0
    %3522 = vmatpush2.msra.mxu0 0.0
    %3523 = vmatprep.subr.mxu0 0.0
    %3524 = vmatpush2.msra.mxu0 0.0
    %3525 = vmatprep.subr.mxu0 0.0
    %3526 = vmatpush2.msra.mxu0 0.0
    %3527 = vmatprep.subr.mxu0 0.0
    %3528 = vmatpush2.msra.mxu0 0.0
    %3529 = vmatprep.subr.mxu0 0.0
    %3530 = vmatpush2.msra.mxu0 0.0
    %3531 = vmatprep.subr.mxu0 0.0
    %3532 = vmatpush2.msra.mxu0 0.0
    %3533 = vmatprep.subr.mxu0 0.0
    %3534 = vmatpush2.msra.mxu0 0.0
    %3535 = vmatprep.subr.mxu0 0.0
    %3536 = vmatpush2.msra.mxu0 0.0
    %3537 = vmatprep.subr.mxu0 0.0
    %3538 = vmatpush2.msra.mxu0 0.0
    %3539 = vmatprep.subr.mxu0 0.0
    %3540 = vmatpush2.msra.mxu0 0.0
    %3541 = vmatprep.mubr.f32.mxu0 0.0
    %3542 = vmatmul.mubr.f32.gmra.mxu0 %v3475
    %v3543 = vpop.f32.mrf.mxu0
    %v3544 = vadd.f32 0.0, %v3543
    %v3545 = vpop.f32.mrf.mxu0
    %3546 = vdwg.mxu0
    %v3548 = vsel %vm932, %v3395, 0
    %3550 = vmatprep.subr.mxu0 0.0
    %3551 = vmatpush1.msra.mxu0 0.0
    %3552 = vmatprep.subr.mxu0 0.0
    %3553 = vmatpush1.msra.mxu0 0.0
    %3554 = vmatprep.subr.mxu0 0.0
    %3555 = vmatpush1.msra.mxu0 0.0
    %3556 = vmatprep.subr.mxu0 0.0
    %3557 = vmatpush1.msra.mxu0 0.0
    %3558 = vmatprep.subr.mxu0 0.0
    %3559 = vmatpush1.msra.mxu0 0.0
    %3560 = vmatprep.subr.mxu0 0.0
    %3561 = vmatpush1.msra.mxu0 0.0
    %3562 = vmatprep.subr.mxu0 0.0
    %3563 = vmatpush1.msra.mxu0 0.0
    %3564 = vmatprep.subr.mxu0 0.0
    %3565 = vmatpush1.msra.mxu0 0.0
    %3566 = vmatprep.subr.mxu0 0.0
    %3567 = vmatpush1.msra.mxu0 0.0
    %3568 = vmatprep.subr.mxu0 0.0
    %3569 = vmatpush1.msra.mxu0 0.0
    %3570 = vmatprep.subr.mxu0 0.0
    %3571 = vmatpush1.msra.mxu0 0.0
    %3572 = vmatprep.subr.mxu0 0.0
    %3573 = vmatpush1.msra.mxu0 0.0
    %3574 = vmatprep.subr.mxu0 0.0
    %3575 = vmatpush1.msra.mxu0 0.0
    %3576 = vmatprep.subr.mxu0 0.0
    %3577 = vmatpush1.msra.mxu0 0.0
    %3578 = vmatprep.subr.mxu0 0.0
    %3579 = vmatpush1.msra.mxu0 0.0
    %3580 = vmatprep.subr.mxu0 0.0
    %3581 = vmatpush1.msra.mxu0 %v2677
    %3582 = vmatprep.subr.mxu0 0.0
    %3583 = vmatpush2.msra.mxu0 0.0
    %3584 = vmatprep.subr.mxu0 0.0
    %3585 = vmatpush2.msra.mxu0 0.0
    %3586 = vmatprep.subr.mxu0 0.0
    %3587 = vmatpush2.msra.mxu0 0.0
    %3588 = vmatprep.subr.mxu0 0.0
    %3589 = vmatpush2.msra.mxu0 0.0
    %3590 = vmatprep.subr.mxu0 0.0
    %3591 = vmatpush2.msra.mxu0 0.0
    %3592 = vmatprep.subr.mxu0 0.0
    %3593 = vmatpush2.msra.mxu0 0.0
    %3594 = vmatprep.subr.mxu0 0.0
    %3595 = vmatpush2.msra.mxu0 0.0
    %3596 = vmatprep.subr.mxu0 0.0
    %3597 = vmatpush2.msra.mxu0 0.0
    %3598 = vmatprep.subr.mxu0 0.0
    %3599 = vmatpush2.msra.mxu0 0.0
    %3600 = vmatprep.subr.mxu0 0.0
    %3601 = vmatpush2.msra.mxu0 0.0
    %3602 = vmatprep.subr.mxu0 0.0
    %3603 = vmatpush2.msra.mxu0 0.0
    %3604 = vmatprep.subr.mxu0 0.0
    %3605 = vmatpush2.msra.mxu0 0.0
    %3606 = vmatprep.subr.mxu0 0.0
    %3607 = vmatpush2.msra.mxu0 0.0
    %3608 = vmatprep.subr.mxu0 0.0
    %3609 = vmatpush2.msra.mxu0 0.0
    %3610 = vmatprep.subr.mxu0 0.0
    %3611 = vmatpush2.msra.mxu0 0.0
    %3612 = vmatprep.subr.mxu0 0.0
    %3613 = vmatpush2.msra.mxu0 0.0
    %3614 = vmatprep.mubr.f32.mxu0 0.0
    %3615 = vmatmul.mubr.f32.gmra.mxu0 %v3548
    %v3616 = vpop.f32.mrf.mxu0
    %v3617 = vadd.f32 0.0, %v3616
    %v3618 = vpop.f32.mrf.mxu0
    %3619 = vdwg.mxu0
    %v3621 = vsel %vm932, %v3396, 0
    %3623 = vmatprep.subr.mxu0 0.0
    %3624 = vmatpush1.msra.mxu0 0.0
    %3625 = vmatprep.subr.mxu0 0.0
    %3626 = vmatpush1.msra.mxu0 0.0
    %3627 = vmatprep.subr.mxu0 0.0
    %3628 = vmatpush1.msra.mxu0 0.0
    %3629 = vmatprep.subr.mxu0 0.0
    %3630 = vmatpush1.msra.mxu0 0.0
    %3631 = vmatprep.subr.mxu0 0.0
    %3632 = vmatpush1.msra.mxu0 0.0
    %3633 = vmatprep.subr.mxu0 0.0
    %3634 = vmatpush1.msra.mxu0 0.0
    %3635 = vmatprep.subr.mxu0 0.0
    %3636 = vmatpush1.msra.mxu0 0.0
    %3637 = vmatprep.subr.mxu0 0.0
    %3638 = vmatpush1.msra.mxu0 0.0
    %3639 = vmatprep.subr.mxu0 0.0
    %3640 = vmatpush1.msra.mxu0 0.0
    %3641 = vmatprep.subr.mxu0 0.0
    %3642 = vmatpush1.msra.mxu0 0.0
    %3643 = vmatprep.subr.mxu0 0.0
    %3644 = vmatpush1.msra.mxu0 0.0
    %3645 = vmatprep.subr.mxu0 0.0
    %3646 = vmatpush1.msra.mxu0 0.0
    %3647 = vmatprep.subr.mxu0 0.0
    %3648 = vmatpush1.msra.mxu0 0.0
    %3649 = vmatprep.subr.mxu0 0.0
    %3650 = vmatpush1.msra.mxu0 0.0
    %3651 = vmatprep.subr.mxu0 0.0
    %3652 = vmatpush1.msra.mxu0 0.0
    %3653 = vmatprep.subr.mxu0 0.0
    %3654 = vmatpush1.msra.mxu0 %v2682
    %3655 = vmatprep.subr.mxu0 0.0
    %3656 = vmatpush2.msra.mxu0 0.0
    %3657 = vmatprep.subr.mxu0 0.0
    %3658 = vmatpush2.msra.mxu0 0.0
    %3659 = vmatprep.subr.mxu0 0.0
    %3660 = vmatpush2.msra.mxu0 0.0
    %3661 = vmatprep.subr.mxu0 0.0
    %3662 = vmatpush2.msra.mxu0 0.0
    %3663 = vmatprep.subr.mxu0 0.0
    %3664 = vmatpush2.msra.mxu0 0.0
    %3665 = vmatprep.subr.mxu0 0.0
    %3666 = vmatpush2.msra.mxu0 0.0
    %3667 = vmatprep.subr.mxu0 0.0
    %3668 = vmatpush2.msra.mxu0 0.0
    %3669 = vmatprep.subr.mxu0 0.0
    %3670 = vmatpush2.msra.mxu0 0.0
    %3671 = vmatprep.subr.mxu0 0.0
    %3672 = vmatpush2.msra.mxu0 0.0
    %3673 = vmatprep.subr.mxu0 0.0
    %3674 = vmatpush2.msra.mxu0 0.0
    %3675 = vmatprep.subr.mxu0 0.0
    %3676 = vmatpush2.msra.mxu0 0.0
    %3677 = vmatprep.subr.mxu0 0.0
    %3678 = vmatpush2.msra.mxu0 0.0
    %3679 = vmatprep.subr.mxu0 0.0
    %3680 = vmatpush2.msra.mxu0 0.0
    %3681 = vmatprep.subr.mxu0 0.0
    %3682 = vmatpush2.msra.mxu0 0.0
    %3683 = vmatprep.subr.mxu0 0.0
    %3684 = vmatpush2.msra.mxu0 0.0
    %3685 = vmatprep.subr.mxu0 0.0
    %3686 = vmatpush2.msra.mxu0 0.0
    %3687 = vmatprep.mubr.f32.mxu0 0.0
    %3688 = vmatmul.mubr.f32.gmra.mxu0 %v3621
    %v3689 = vpop.f32.mrf.mxu0
    %v3690 = vadd.f32 0.0, %v3689
    %v3691 = vpop.f32.mrf.mxu0
    %3692 = vdwg.mxu0
    %v3694 = vsel %vm932, %v3397, 0
    %3696 = vmatprep.subr.mxu0 0.0
    %3697 = vmatpush1.msra.mxu0 0.0
    %3698 = vmatprep.subr.mxu0 0.0
    %3699 = vmatpush1.msra.mxu0 0.0
    %3700 = vmatprep.subr.mxu0 0.0
    %3701 = vmatpush1.msra.mxu0 0.0
    %3702 = vmatprep.subr.mxu0 0.0
    %3703 = vmatpush1.msra.mxu0 0.0
    %3704 = vmatprep.subr.mxu0 0.0
    %3705 = vmatpush1.msra.mxu0 0.0
    %3706 = vmatprep.subr.mxu0 0.0
    %3707 = vmatpush1.msra.mxu0 0.0
    %3708 = vmatprep.subr.mxu0 0.0
    %3709 = vmatpush1.msra.mxu0 0.0
    %3710 = vmatprep.subr.mxu0 0.0
    %3711 = vmatpush1.msra.mxu0 0.0
    %3712 = vmatprep.subr.mxu0 0.0
    %3713 = vmatpush1.msra.mxu0 0.0
    %3714 = vmatprep.subr.mxu0 0.0
    %3715 = vmatpush1.msra.mxu0 0.0
    %3716 = vmatprep.subr.mxu0 0.0
    %3717 = vmatpush1.msra.mxu0 0.0
    %3718 = vmatprep.subr.mxu0 0.0
    %3719 = vmatpush1.msra.mxu0 0.0
    %3720 = vmatprep.subr.mxu0 0.0
    %3721 = vmatpush1.msra.mxu0 0.0
    %3722 = vmatprep.subr.mxu0 0.0
    %3723 = vmatpush1.msra.mxu0 0.0
    %3724 = vmatprep.subr.mxu0 0.0
    %3725 = vmatpush1.msra.mxu0 0.0
    %3726 = vmatprep.subr.mxu0 0.0
    %3727 = vmatpush1.msra.mxu0 %v2687
    %3728 = vmatprep.subr.mxu0 0.0
    %3729 = vmatpush2.msra.mxu0 0.0
    %3730 = vmatprep.subr.mxu0 0.0
    %3731 = vmatpush2.msra.mxu0 0.0
    %3732 = vmatprep.subr.mxu0 0.0
    %3733 = vmatpush2.msra.mxu0 0.0
    %3734 = vmatprep.subr.mxu0 0.0
    %3735 = vmatpush2.msra.mxu0 0.0
    %3736 = vmatprep.subr.mxu0 0.0
    %3737 = vmatpush2.msra.mxu0 0.0
    %3738 = vmatprep.subr.mxu0 0.0
    %3739 = vmatpush2.msra.mxu0 0.0
    %3740 = vmatprep.subr.mxu0 0.0
    %3741 = vmatpush2.msra.mxu0 0.0
    %3742 = vmatprep.subr.mxu0 0.0
    %3743 = vmatpush2.msra.mxu0 0.0
    %3744 = vmatprep.subr.mxu0 0.0
    %3745 = vmatpush2.msra.mxu0 0.0
    %3746 = vmatprep.subr.mxu0 0.0
    %3747 = vmatpush2.msra.mxu0 0.0
    %3748 = vmatprep.subr.mxu0 0.0
    %3749 = vmatpush2.msra.mxu0 0.0
    %3750 = vmatprep.subr.mxu0 0.0
    %3751 = vmatpush2.msra.mxu0 0.0
    %3752 = vmatprep.subr.mxu0 0.0
    %3753 = vmatpush2.msra.mxu0 0.0
    %3754 = vmatprep.subr.mxu0 0.0
    %3755 = vmatpush2.msra.mxu0 0.0
    %3756 = vmatprep.subr.mxu0 0.0
    %3757 = vmatpush2.msra.mxu0 0.0
    %3758 = vmatprep.subr.mxu0 0.0
    %3759 = vmatpush2.msra.mxu0 0.0
    %3760 = vmatprep.mubr.f32.mxu0 0.0
    %3761 = vmatmul.mubr.f32.gmra.mxu0 %v3694
    %v3762 = vpop.f32.mrf.mxu0
    %v3763 = vadd.f32 0.0, %v3762
    %v3764 = vpop.f32.mrf.mxu0
    %3765 = vdwg.mxu0
    %v3767 = vsel %vm932, %v3398, 0
    %3769 = vmatprep.subr.mxu0 0.0
    %3770 = vmatpush1.msra.mxu0 0.0
    %3771 = vmatprep.subr.mxu0 0.0
    %3772 = vmatpush1.msra.mxu0 0.0
    %3773 = vmatprep.subr.mxu0 0.0
    %3774 = vmatpush1.msra.mxu0 0.0
    %3775 = vmatprep.subr.mxu0 0.0
    %3776 = vmatpush1.msra.mxu0 0.0
    %3777 = vmatprep.subr.mxu0 0.0
    %3778 = vmatpush1.msra.mxu0 0.0
    %3779 = vmatprep.subr.mxu0 0.0
    %3780 = vmatpush1.msra.mxu0 0.0
    %3781 = vmatprep.subr.mxu0 0.0
    %3782 = vmatpush1.msra.mxu0 0.0
    %3783 = vmatprep.subr.mxu0 0.0
    %3784 = vmatpush1.msra.mxu0 0.0
    %3785 = vmatprep.subr.mxu0 0.0
    %3786 = vmatpush1.msra.mxu0 0.0
    %3787 = vmatprep.subr.mxu0 0.0
    %3788 = vmatpush1.msra.mxu0 0.0
    %3789 = vmatprep.subr.mxu0 0.0
    %3790 = vmatpush1.msra.mxu0 0.0
    %3791 = vmatprep.subr.mxu0 0.0
    %3792 = vmatpush1.msra.mxu0 0.0
    %3793 = vmatprep.subr.mxu0 0.0
    %3794 = vmatpush1.msra.mxu0 0.0
    %3795 = vmatprep.subr.mxu0 0.0
    %3796 = vmatpush1.msra.mxu0 0.0
    %3797 = vmatprep.subr.mxu0 0.0
    %3798 = vmatpush1.msra.mxu0 0.0
    %3799 = vmatprep.subr.mxu0 0.0
    %3800 = vmatpush1.msra.mxu0 %v2692
    %3801 = vmatprep.subr.mxu0 0.0
    %3802 = vmatpush2.msra.mxu0 0.0
    %3803 = vmatprep.subr.mxu0 0.0
    %3804 = vmatpush2.msra.mxu0 0.0
    %3805 = vmatprep.subr.mxu0 0.0
    %3806 = vmatpush2.msra.mxu0 0.0
    %3807 = vmatprep.subr.mxu0 0.0
    %3808 = vmatpush2.msra.mxu0 0.0
    %3809 = vmatprep.subr.mxu0 0.0
    %3810 = vmatpush2.msra.mxu0 0.0
    %3811 = vmatprep.subr.mxu0 0.0
    %3812 = vmatpush2.msra.mxu0 0.0
    %3813 = vmatprep.subr.mxu0 0.0
    %3814 = vmatpush2.msra.mxu0 0.0
    %3815 = vmatprep.subr.mxu0 0.0
    %3816 = vmatpush2.msra.mxu0 0.0
    %3817 = vmatprep.subr.mxu0 0.0
    %3818 = vmatpush2.msra.mxu0 0.0
    %3819 = vmatprep.subr.mxu0 0.0
    %3820 = vmatpush2.msra.mxu0 0.0
    %3821 = vmatprep.subr.mxu0 0.0
    %3822 = vmatpush2.msra.mxu0 0.0
    %3823 = vmatprep.subr.mxu0 0.0
    %3824 = vmatpush2.msra.mxu0 0.0
    %3825 = vmatprep.subr.mxu0 0.0
    %3826 = vmatpush2.msra.mxu0 0.0
    %3827 = vmatprep.subr.mxu0 0.0
    %3828 = vmatpush2.msra.mxu0 0.0
    %3829 = vmatprep.subr.mxu0 0.0
    %3830 = vmatpush2.msra.mxu0 0.0
    %3831 = vmatprep.subr.mxu0 0.0
    %3832 = vmatpush2.msra.mxu0 0.0
    %3833 = vmatprep.mubr.f32.mxu0 0.0
    %3834 = vmatmul.mubr.f32.gmra.mxu0 %v3767
    %v3835 = vpop.f32.mrf.mxu0
    %v3836 = vadd.f32 0.0, %v3835
    %v3837 = vpop.f32.mrf.mxu0
    %3838 = vdwg.mxu0
    %v3840 = vsel %vm932, %v3399, 0
    %3842 = vmatprep.subr.mxu0 0.0
    %3843 = vmatpush1.msra.mxu0 0.0
    %3844 = vmatprep.subr.mxu0 0.0
    %3845 = vmatpush1.msra.mxu0 0.0
    %3846 = vmatprep.subr.mxu0 0.0
    %3847 = vmatpush1.msra.mxu0 0.0
    %3848 = vmatprep.subr.mxu0 0.0
    %3849 = vmatpush1.msra.mxu0 0.0
    %3850 = vmatprep.subr.mxu0 0.0
    %3851 = vmatpush1.msra.mxu0 0.0
    %3852 = vmatprep.subr.mxu0 0.0
    %3853 = vmatpush1.msra.mxu0 0.0
    %3854 = vmatprep.subr.mxu0 0.0
    %3855 = vmatpush1.msra.mxu0 0.0
    %3856 = vmatprep.subr.mxu0 0.0
    %3857 = vmatpush1.msra.mxu0 0.0
    %3858 = vmatprep.subr.mxu0 0.0
    %3859 = vmatpush1.msra.mxu0 0.0
    %3860 = vmatprep.subr.mxu0 0.0
    %3861 = vmatpush1.msra.mxu0 0.0
    %3862 = vmatprep.subr.mxu0 0.0
    %3863 = vmatpush1.msra.mxu0 0.0
    %3864 = vmatprep.subr.mxu0 0.0
    %3865 = vmatpush1.msra.mxu0 0.0
    %3866 = vmatprep.subr.mxu0 0.0
    %3867 = vmatpush1.msra.mxu0 0.0
    %3868 = vmatprep.subr.mxu0 0.0
    %3869 = vmatpush1.msra.mxu0 0.0
    %3870 = vmatprep.subr.mxu0 0.0
    %3871 = vmatpush1.msra.mxu0 0.0
    %3872 = vmatprep.subr.mxu0 0.0
    %3873 = vmatpush1.msra.mxu0 %v2697
    %3874 = vmatprep.subr.mxu0 0.0
    %3875 = vmatpush2.msra.mxu0 0.0
    %3876 = vmatprep.subr.mxu0 0.0
    %3877 = vmatpush2.msra.mxu0 0.0
    %3878 = vmatprep.subr.mxu0 0.0
    %3879 = vmatpush2.msra.mxu0 0.0
    %3880 = vmatprep.subr.mxu0 0.0
    %3881 = vmatpush2.msra.mxu0 0.0
    %3882 = vmatprep.subr.mxu0 0.0
    %3883 = vmatpush2.msra.mxu0 0.0
    %3884 = vmatprep.subr.mxu0 0.0
    %3885 = vmatpush2.msra.mxu0 0.0
    %3886 = vmatprep.subr.mxu0 0.0
    %3887 = vmatpush2.msra.mxu0 0.0
    %3888 = vmatprep.subr.mxu0 0.0
    %3889 = vmatpush2.msra.mxu0 0.0
    %3890 = vmatprep.subr.mxu0 0.0
    %3891 = vmatpush2.msra.mxu0 0.0
    %3892 = vmatprep.subr.mxu0 0.0
    %3893 = vmatpush2.msra.mxu0 0.0
    %3894 = vmatprep.subr.mxu0 0.0
    %3895 = vmatpush2.msra.mxu0 0.0
    %3896 = vmatprep.subr.mxu0 0.0
    %3897 = vmatpush2.msra.mxu0 0.0
    %3898 = vmatprep.subr.mxu0 0.0
    %3899 = vmatpush2.msra.mxu0 0.0
    %3900 = vmatprep.subr.mxu0 0.0
    %3901 = vmatpush2.msra.mxu0 0.0
    %3902 = vmatprep.subr.mxu0 0.0
    %3903 = vmatpush2.msra.mxu0 0.0
    %3904 = vmatprep.subr.mxu0 0.0
    %3905 = vmatpush2.msra.mxu0 0.0
    %3906 = vmatprep.mubr.f32.mxu0 0.0
    %3907 = vmatmul.mubr.f32.gmra.mxu0 %v3840
    %v3908 = vpop.f32.mrf.mxu0
    %v3909 = vadd.f32 0.0, %v3908
    %v3910 = vpop.f32.mrf.mxu0
    %3911 = vdwg.mxu0
    %v3913 = vsel %vm932, %v3400, 0
    %3915 = vmatprep.subr.mxu0 0.0
    %3916 = vmatpush1.msra.mxu0 0.0
    %3917 = vmatprep.subr.mxu0 0.0
    %3918 = vmatpush1.msra.mxu0 0.0
    %3919 = vmatprep.subr.mxu0 0.0
    %3920 = vmatpush1.msra.mxu0 0.0
    %3921 = vmatprep.subr.mxu0 0.0
    %3922 = vmatpush1.msra.mxu0 0.0
    %3923 = vmatprep.subr.mxu0 0.0
    %3924 = vmatpush1.msra.mxu0 0.0
    %3925 = vmatprep.subr.mxu0 0.0
    %3926 = vmatpush1.msra.mxu0 0.0
    %3927 = vmatprep.subr.mxu0 0.0
    %3928 = vmatpush1.msra.mxu0 0.0
    %3929 = vmatprep.subr.mxu0 0.0
    %3930 = vmatpush1.msra.mxu0 0.0
    %3931 = vmatprep.subr.mxu0 0.0
    %3932 = vmatpush1.msra.mxu0 0.0
    %3933 = vmatprep.subr.mxu0 0.0
    %3934 = vmatpush1.msra.mxu0 0.0
    %3935 = vmatprep.subr.mxu0 0.0
    %3936 = vmatpush1.msra.mxu0 0.0
    %3937 = vmatprep.subr.mxu0 0.0
    %3938 = vmatpush1.msra.mxu0 0.0
    %3939 = vmatprep.subr.mxu0 0.0
    %3940 = vmatpush1.msra.mxu0 0.0
    %3941 = vmatprep.subr.mxu0 0.0
    %3942 = vmatpush1.msra.mxu0 0.0
    %3943 = vmatprep.subr.mxu0 0.0
    %3944 = vmatpush1.msra.mxu0 0.0
    %3945 = vmatprep.subr.mxu0 0.0
    %3946 = vmatpush1.msra.mxu0 %v2702
    %3947 = vmatprep.subr.mxu0 0.0
    %3948 = vmatpush2.msra.mxu0 0.0
    %3949 = vmatprep.subr.mxu0 0.0
    %3950 = vmatpush2.msra.mxu0 0.0
    %3951 = vmatprep.subr.mxu0 0.0
    %3952 = vmatpush2.msra.mxu0 0.0
    %3953 = vmatprep.subr.mxu0 0.0
    %3954 = vmatpush2.msra.mxu0 0.0
    %3955 = vmatprep.subr.mxu0 0.0
    %3956 = vmatpush2.msra.mxu0 0.0
    %3957 = vmatprep.subr.mxu0 0.0
    %3958 = vmatpush2.msra.mxu0 0.0
    %3959 = vmatprep.subr.mxu0 0.0
    %3960 = vmatpush2.msra.mxu0 0.0
    %3961 = vmatprep.subr.mxu0 0.0
    %3962 = vmatpush2.msra.mxu0 0.0
    %3963 = vmatprep.subr.mxu0 0.0
    %3964 = vmatpush2.msra.mxu0 0.0
    %3965 = vmatprep.subr.mxu0 0.0
    %3966 = vmatpush2.msra.mxu0 0.0
    %3967 = vmatprep.subr.mxu0 0.0
    %3968 = vmatpush2.msra.mxu0 0.0
    %3969 = vmatprep.subr.mxu0 0.0
    %3970 = vmatpush2.msra.mxu0 0.0
    %3971 = vmatprep.subr.mxu0 0.0
    %3972 = vmatpush2.msra.mxu0 0.0
    %3973 = vmatprep.subr.mxu0 0.0
    %3974 = vmatpush2.msra.mxu0 0.0
    %3975 = vmatprep.subr.mxu0 0.0
    %3976 = vmatpush2.msra.mxu0 0.0
    %3977 = vmatprep.subr.mxu0 0.0
    %3978 = vmatpush2.msra.mxu0 0.0
    %3979 = vmatprep.mubr.f32.mxu0 0.0
    %3980 = vmatmul.mubr.f32.gmra.mxu0 %v3913
    %v3981 = vpop.f32.mrf.mxu0
    %v3982 = vadd.f32 0.0, %v3981
    %v3983 = vpop.f32.mrf.mxu0
    %3984 = vdwg.mxu0
    %s3985 = scalar_lea.vmem %s10, 8
    %v3986 = vld [vmem:[%s3985] sm:$0xff]
    %v3988 = vsel %vm932, %v3471, 0
    %v3991 = vsel %vm932, %v3544, 0
    %v3994 = vsel %vm932, %v3617, 0
    %v3997 = vsel %vm932, %v3690, 0
    %v4000 = vsel %vm932, %v3763, 0
    %v4003 = vsel %vm932, %v3836, 0
    %v4006 = vsel %vm932, %v3909, 0
    %v4009 = vsel %vm932, %v3982, 0
    %4011 = vmatprep.subr.mxu0 0.0
    %4012 = vmatpush1.msra.mxu0 0.0
    %4013 = vmatprep.subr.mxu0 0.0
    %4014 = vmatpush1.msra.mxu0 0.0
    %4015 = vmatprep.subr.mxu0 0.0
    %4016 = vmatpush1.msra.mxu0 0.0
    %4017 = vmatprep.subr.mxu0 0.0
    %4018 = vmatpush1.msra.mxu0 0.0
    %4019 = vmatprep.subr.mxu0 0.0
    %4020 = vmatpush1.msra.mxu0 0.0
    %4021 = vmatprep.subr.mxu0 0.0
    %4022 = vmatpush1.msra.mxu0 0.0
    %4023 = vmatprep.subr.mxu0 0.0
    %4024 = vmatpush1.msra.mxu0 0.0
    %4025 = vmatprep.subr.mxu0 0.0
    %4026 = vmatpush1.msra.mxu0 0.0
    %4027 = vmatprep.subr.mxu0 0.0
    %4028 = vmatpush1.msra.mxu0 0.0
    %4029 = vmatprep.subr.mxu0 0.0
    %4030 = vmatpush1.msra.mxu0 0.0
    %4031 = vmatprep.subr.mxu0 0.0
    %4032 = vmatpush1.msra.mxu0 0.0
    %4033 = vmatprep.subr.mxu0 0.0
    %4034 = vmatpush1.msra.mxu0 0.0
    %4035 = vmatprep.subr.mxu0 0.0
    %4036 = vmatpush1.msra.mxu0 0.0
    %4037 = vmatprep.subr.mxu0 0.0
    %4038 = vmatpush1.msra.mxu0 0.0
    %4039 = vmatprep.subr.mxu0 0.0
    %4040 = vmatpush1.msra.mxu0 0.0
    %4041 = vmatprep.subr.mxu0 0.0
    %4042 = vmatpush1.msra.mxu0 %v3986
    %4043 = vmatprep.subr.mxu0 0.0
    %4044 = vmatpush2.msra.mxu0 0.0
    %4045 = vmatprep.subr.mxu0 0.0
    %4046 = vmatpush2.msra.mxu0 0.0
    %4047 = vmatprep.subr.mxu0 0.0
    %4048 = vmatpush2.msra.mxu0 0.0
    %4049 = vmatprep.subr.mxu0 0.0
    %4050 = vmatpush2.msra.mxu0 0.0
    %4051 = vmatprep.subr.mxu0 0.0
    %4052 = vmatpush2.msra.mxu0 0.0
    %4053 = vmatprep.subr.mxu0 0.0
    %4054 = vmatpush2.msra.mxu0 0.0
    %4055 = vmatprep.subr.mxu0 0.0
    %4056 = vmatpush2.msra.mxu0 0.0
    %4057 = vmatprep.subr.mxu0 0.0
    %4058 = vmatpush2.msra.mxu0 0.0
    %4059 = vmatprep.subr.mxu0 0.0
    %4060 = vmatpush2.msra.mxu0 0.0
    %4061 = vmatprep.subr.mxu0 0.0
    %4062 = vmatpush2.msra.mxu0 0.0
    %4063 = vmatprep.subr.mxu0 0.0
    %4064 = vmatpush2.msra.mxu0 0.0
    %4065 = vmatprep.subr.mxu0 0.0
    %4066 = vmatpush2.msra.mxu0 0.0
    %4067 = vmatprep.subr.mxu0 0.0
    %4068 = vmatpush2.msra.mxu0 0.0
    %4069 = vmatprep.subr.mxu0 0.0
    %4070 = vmatpush2.msra.mxu0 0.0
    %4071 = vmatprep.subr.mxu0 0.0
    %4072 = vmatpush2.msra.mxu0 0.0
    %4073 = vmatprep.subr.mxu0 0.0
    %4074 = vmatpush2.msra.mxu0 0.0
    %4075 = vmatprep.mubr.f32.mxu0 0.0
    %4076 = vmatmul.mubr.f32.gmra.mxu0 %v3988
    %v4077 = vpop.f32.mrf.mxu0
    %v4078 = vadd.f32 0.0, %v4077
    %v4079 = vpop.f32.mrf.mxu0
    %4080 = vmatprep.mubr.f32.mxu0 0.0
    %4081 = vmatmul.mubr.f32.gmra.mxu0 %v3991
    %v4082 = vpop.f32.mrf.mxu0
    %v4083 = vadd.f32 0.0, %v4082
    %v4084 = vpop.f32.mrf.mxu0
    %4085 = vmatprep.mubr.f32.mxu0 0.0
    %4086 = vmatmul.mubr.f32.gmra.mxu0 %v3994
    %v4087 = vpop.f32.mrf.mxu0
    %v4088 = vadd.f32 0.0, %v4087
    %v4089 = vpop.f32.mrf.mxu0
    %4090 = vmatprep.mubr.f32.mxu0 0.0
    %4091 = vmatmul.mubr.f32.gmra.mxu0 %v3997
    %v4092 = vpop.f32.mrf.mxu0
    %v4093 = vadd.f32 0.0, %v4092
    %v4094 = vpop.f32.mrf.mxu0
    %4095 = vmatprep.mubr.f32.mxu0 0.0
    %4096 = vmatmul.mubr.f32.gmra.mxu0 %v4000
    %v4097 = vpop.f32.mrf.mxu0
    %v4098 = vadd.f32 0.0, %v4097
    %v4099 = vpop.f32.mrf.mxu0
    %4100 = vmatprep.mubr.f32.mxu0 0.0
    %4101 = vmatmul.mubr.f32.gmra.mxu0 %v4003
    %v4102 = vpop.f32.mrf.mxu0
    %v4103 = vadd.f32 0.0, %v4102
    %v4104 = vpop.f32.mrf.mxu0
    %4105 = vmatprep.mubr.f32.mxu0 0.0
    %4106 = vmatmul.mubr.f32.gmra.mxu0 %v4006
    %v4107 = vpop.f32.mrf.mxu0
    %v4108 = vadd.f32 0.0, %v4107
    %v4109 = vpop.f32.mrf.mxu0
    %4110 = vmatprep.mubr.f32.mxu0 0.0
    %4111 = vmatmul.mubr.f32.gmra.mxu0 %v4009
    %v4112 = vpop.f32.mrf.mxu0
    %v4113 = vadd.f32 0.0, %v4112
    %v4114 = vpop.f32.mrf.mxu0
    %4115 = vdwg.mxu0
    %v4116 = vadd.f32 %v2343, %v4078
    %v4117 = vadd.f32 %v2344, %v4083
    %v4118 = vadd.f32 %v2345, %v4088
    %v4119 = vadd.f32 %v2346, %v4093
    %v4120 = vadd.f32 %v2347, %v4098
    %v4121 = vadd.f32 %v2348, %v4103
    %v4122 = vadd.f32 %v2349, %v4108
    %v4123 = vadd.f32 %v2350, %v4113
    %s4124 = scalar_lea.vmem %s4, 64
    %v4125 = vld [vmem:[%s4124] sm:$0xff]
    %v4126 = vld [vmem:[%s4124 + $0x8] sm:$0xff]
    %v4127 = vld [vmem:[%s4124 + $0x10] sm:$0xff]
    %v4128 = vld [vmem:[%s4124 + $0x18] sm:$0xff]
    %s4129 = scalar_lea.vmem %s5, 2
    %v4130 = vld [vmem:[%s4129] sm:$0x1]
    %v4132 = vlaneseq
    %v4133 = vshrl.u32 %v4132, 7
    %v4134 = vsub.s32 0, %v4133
    %v4135 = vrot.slane %v4130, %v4134
    %4137 = vmatprep.subr.mxu0 0.0
    %4138 = vmatpush1.msra.mxu0 0.0
    %4139 = vmatprep.subr.mxu0 0.0
    %4140 = vmatpush1.msra.mxu0 0.0
    %4141 = vmatprep.subr.mxu0 0.0
    %4142 = vmatpush1.msra.mxu0 0.0
    %4143 = vmatprep.subr.mxu0 0.0
    %4144 = vmatpush1.msra.mxu0 0.0
    %4145 = vmatprep.subr.mxu0 0.0
    %4146 = vmatpush1.msra.mxu0 0.0
    %4147 = vmatprep.subr.mxu0 0.0
    %4148 = vmatpush1.msra.mxu0 0.0
    %4149 = vmatprep.subr.mxu0 0.0
    %4150 = vmatpush1.msra.mxu0 0.0
    %4151 = vmatprep.subr.mxu0 0.0
    %4152 = vmatpush1.msra.mxu0 0.0
    %4153 = vmatprep.subr.mxu0 0.0
    %4154 = vmatpush1.msra.mxu0 0.0
    %4155 = vmatprep.subr.mxu0 0.0
    %4156 = vmatpush1.msra.mxu0 0.0
    %4157 = vmatprep.subr.mxu0 0.0
    %4158 = vmatpush1.msra.mxu0 0.0
    %4159 = vmatprep.subr.mxu0 0.0
    %4160 = vmatpush1.msra.mxu0 0.0
    %4161 = vmatprep.subr.mxu0 0.0
    %4162 = vmatpush1.msra.mxu0 %v4128
    %4163 = vmatprep.subr.mxu0 0.0
    %4164 = vmatpush1.msra.mxu0 %v4127
    %4165 = vmatprep.subr.mxu0 0.0
    %4166 = vmatpush1.msra.mxu0 %v4126
    %4167 = vmatprep.subr.mxu0 0.0
    %4168 = vmatpush1.msra.mxu0 %v4125
    %4169 = vmatprep.subr.mxu0 0.0
    %4170 = vmatpush2.msra.mxu0 0.0
    %4171 = vmatprep.subr.mxu0 0.0
    %4172 = vmatpush2.msra.mxu0 0.0
    %4173 = vmatprep.subr.mxu0 0.0
    %4174 = vmatpush2.msra.mxu0 0.0
    %4175 = vmatprep.subr.mxu0 0.0
    %4176 = vmatpush2.msra.mxu0 0.0
    %4177 = vmatprep.subr.mxu0 0.0
    %4178 = vmatpush2.msra.mxu0 0.0
    %4179 = vmatprep.subr.mxu0 0.0
    %4180 = vmatpush2.msra.mxu0 0.0
    %4181 = vmatprep.subr.mxu0 0.0
    %4182 = vmatpush2.msra.mxu0 0.0
    %4183 = vmatprep.subr.mxu0 0.0
    %4184 = vmatpush2.msra.mxu0 0.0
    %4185 = vmatprep.subr.mxu0 0.0
    %4186 = vmatpush2.msra.mxu0 0.0
    %4187 = vmatprep.subr.mxu0 0.0
    %4188 = vmatpush2.msra.mxu0 0.0
    %4189 = vmatprep.subr.mxu0 0.0
    %4190 = vmatpush2.msra.mxu0 0.0
    %4191 = vmatprep.subr.mxu0 0.0
    %4192 = vmatpush2.msra.mxu0 0.0
    %4193 = vmatprep.subr.mxu0 0.0
    %4194 = vmatpush2.msra.mxu0 0.0
    %4195 = vmatprep.subr.mxu0 0.0
    %4196 = vmatpush2.msra.mxu0 0.0
    %4197 = vmatprep.subr.mxu0 0.0
    %4198 = vmatpush2.msra.mxu0 0.0
    %4199 = vmatprep.subr.mxu0 0.0
    %4200 = vmatpush2.msra.mxu0 0.0
    %4201 = vmatprep.mubr.f32.mxu0 0.0
    %4202 = vmatmul.mubr.f32.gmra.mxu0 %v524
    %v4203 = vpop.f32.mrf.mxu0
    %v4204 = vadd.f32 %v4135, %v4203
    %v4205 = vpop.f32.mrf.mxu0
    %4206 = vmatprep.mubr.f32.mxu0 0.0
    %4207 = vmatmul.mubr.f32.gmra.mxu0 %v527
    %v4208 = vpop.f32.mrf.mxu0
    %v4209 = vadd.f32 %v4135, %v4208
    %v4210 = vpop.f32.mrf.mxu0
    %4211 = vmatprep.mubr.f32.mxu0 0.0
    %4212 = vmatmul.mubr.f32.gmra.mxu0 %v530
    %v4213 = vpop.f32.mrf.mxu0
    %v4214 = vadd.f32 %v4135, %v4213
    %v4215 = vpop.f32.mrf.mxu0
    %4216 = vmatprep.mubr.f32.mxu0 0.0
    %4217 = vmatmul.mubr.f32.gmra.mxu0 %v533
    %v4218 = vpop.f32.mrf.mxu0
    %v4219 = vadd.f32 %v4135, %v4218
    %v4220 = vpop.f32.mrf.mxu0
    %4221 = vmatprep.mubr.f32.mxu0 0.0
    %4222 = vmatmul.mubr.f32.gmra.mxu0 %v536
    %v4223 = vpop.f32.mrf.mxu0
    %v4224 = vadd.f32 %v4135, %v4223
    %v4225 = vpop.f32.mrf.mxu0
    %4226 = vmatprep.mubr.f32.mxu0 0.0
    %4227 = vmatmul.mubr.f32.gmra.mxu0 %v539
    %v4228 = vpop.f32.mrf.mxu0
    %v4229 = vadd.f32 %v4135, %v4228
    %v4230 = vpop.f32.mrf.mxu0
    %4231 = vmatprep.mubr.f32.mxu0 0.0
    %4232 = vmatmul.mubr.f32.gmra.mxu0 %v542
    %v4233 = vpop.f32.mrf.mxu0
    %v4234 = vadd.f32 %v4135, %v4233
    %v4235 = vpop.f32.mrf.mxu0
    %4236 = vmatprep.mubr.f32.mxu0 0.0
    %4237 = vmatmul.mubr.f32.gmra.mxu0 %v545
    %v4238 = vpop.f32.mrf.mxu0
    %v4239 = vadd.f32 %v4135, %v4238
    %v4240 = vpop.f32.mrf.mxu0
    %4241 = vdwg.mxu0
    %s4242 = scalar_lea.vmem %s6, 64
    %v4243 = vld [vmem:[%s4242] sm:$0xff]
    %v4244 = vld [vmem:[%s4242 + $0x8] sm:$0xff]
    %v4245 = vld [vmem:[%s4242 + $0x10] sm:$0xff]
    %v4246 = vld [vmem:[%s4242 + $0x18] sm:$0xff]
    %s4247 = scalar_lea.vmem %s7, 2
    %v4248 = vld [vmem:[%s4247] sm:$0x1]
    %v4250 = vlaneseq
    %v4251 = vshrl.u32 %v4250, 7
    %v4252 = vsub.s32 0, %v4251
    %v4253 = vrot.slane %v4248, %v4252
    %4255 = vmatprep.subr.mxu0 0.0
    %4256 = vmatpush1.msra.mxu0 0.0
    %4257 = vmatprep.subr.mxu0 0.0
    %4258 = vmatpush1.msra.mxu0 0.0
    %4259 = vmatprep.subr.mxu0 0.0
    %4260 = vmatpush1.msra.mxu0 0.0
    %4261 = vmatprep.subr.mxu0 0.0
    %4262 = vmatpush1.msra.mxu0 0.0
    %4263 = vmatprep.subr.mxu0 0.0
    %4264 = vmatpush1.msra.mxu0 0.0
    %4265 = vmatprep.subr.mxu0 0.0
    %4266 = vmatpush1.msra.mxu0 0.0
    %4267 = vmatprep.subr.mxu0 0.0
    %4268 = vmatpush1.msra.mxu0 0.0
    %4269 = vmatprep.subr.mxu0 0.0
    %4270 = vmatpush1.msra.mxu0 0.0
    %4271 = vmatprep.subr.mxu0 0.0
    %4272 = vmatpush1.msra.mxu0 0.0
    %4273 = vmatprep.subr.mxu0 0.0
    %4274 = vmatpush1.msra.mxu0 0.0
    %4275 = vmatprep.subr.mxu0 0.0
    %4276 = vmatpush1.msra.mxu0 0.0
    %4277 = vmatprep.subr.mxu0 0.0
    %4278 = vmatpush1.msra.mxu0 0.0
    %4279 = vmatprep.subr.mxu0 0.0
    %4280 = vmatpush1.msra.mxu0 %v4246
    %4281 = vmatprep.subr.mxu0 0.0
    %4282 = vmatpush1.msra.mxu0 %v4245
    %4283 = vmatprep.subr.mxu0 0.0
    %4284 = vmatpush1.msra.mxu0 %v4244
    %4285 = vmatprep.subr.mxu0 0.0
    %4286 = vmatpush1.msra.mxu0 %v4243
    %4287 = vmatprep.subr.mxu0 0.0
    %4288 = vmatpush2.msra.mxu0 0.0
    %4289 = vmatprep.subr.mxu0 0.0
    %4290 = vmatpush2.msra.mxu0 0.0
    %4291 = vmatprep.subr.mxu0 0.0
    %4292 = vmatpush2.msra.mxu0 0.0
    %4293 = vmatprep.subr.mxu0 0.0
    %4294 = vmatpush2.msra.mxu0 0.0
    %4295 = vmatprep.subr.mxu0 0.0
    %4296 = vmatpush2.msra.mxu0 0.0
    %4297 = vmatprep.subr.mxu0 0.0
    %4298 = vmatpush2.msra.mxu0 0.0
    %4299 = vmatprep.subr.mxu0 0.0
    %4300 = vmatpush2.msra.mxu0 0.0
    %4301 = vmatprep.subr.mxu0 0.0
    %4302 = vmatpush2.msra.mxu0 0.0
    %4303 = vmatprep.subr.mxu0 0.0
    %4304 = vmatpush2.msra.mxu0 0.0
    %4305 = vmatprep.subr.mxu0 0.0
    %4306 = vmatpush2.msra.mxu0 0.0
    %4307 = vmatprep.subr.mxu0 0.0
    %4308 = vmatpush2.msra.mxu0 0.0
    %4309 = vmatprep.subr.mxu0 0.0
    %4310 = vmatpush2.msra.mxu0 0.0
    %4311 = vmatprep.subr.mxu0 0.0
    %4312 = vmatpush2.msra.mxu0 0.0
    %4313 = vmatprep.subr.mxu0 0.0
    %4314 = vmatpush2.msra.mxu0 0.0
    %4315 = vmatprep.subr.mxu0 0.0
    %4316 = vmatpush2.msra.mxu0 0.0
    %4317 = vmatprep.subr.mxu0 0.0
    %4318 = vmatpush2.msra.mxu0 0.0
    %4319 = vmatprep.mubr.f32.mxu0 0.0
    %4320 = vmatmul.mubr.f32.gmra.mxu0 %v524
    %v4321 = vpop.f32.mrf.mxu0
    %v4322 = vadd.f32 %v4253, %v4321
    %v4323 = vpop.f32.mrf.mxu0
    %4324 = vmatprep.mubr.f32.mxu0 0.0
    %4325 = vmatmul.mubr.f32.gmra.mxu0 %v527
    %v4326 = vpop.f32.mrf.mxu0
    %v4327 = vadd.f32 %v4253, %v4326
    %v4328 = vpop.f32.mrf.mxu0
    %4329 = vmatprep.mubr.f32.mxu0 0.0
    %4330 = vmatmul.mubr.f32.gmra.mxu0 %v530
    %v4331 = vpop.f32.mrf.mxu0
    %v4332 = vadd.f32 %v4253, %v4331
    %v4333 = vpop.f32.mrf.mxu0
    %4334 = vmatprep.mubr.f32.mxu0 0.0
    %4335 = vmatmul.mubr.f32.gmra.mxu0 %v533
    %v4336 = vpop.f32.mrf.mxu0
    %v4337 = vadd.f32 %v4253, %v4336
    %v4338 = vpop.f32.mrf.mxu0
    %4339 = vmatprep.mubr.f32.mxu0 0.0
    %4340 = vmatmul.mubr.f32.gmra.mxu0 %v536
    %v4341 = vpop.f32.mrf.mxu0
    %v4342 = vadd.f32 %v4253, %v4341
    %v4343 = vpop.f32.mrf.mxu0
    %4344 = vmatprep.mubr.f32.mxu0 0.0
    %4345 = vmatmul.mubr.f32.gmra.mxu0 %v539
    %v4346 = vpop.f32.mrf.mxu0
    %v4347 = vadd.f32 %v4253, %v4346
    %v4348 = vpop.f32.mrf.mxu0
    %4349 = vmatprep.mubr.f32.mxu0 0.0
    %4350 = vmatmul.mubr.f32.gmra.mxu0 %v542
    %v4351 = vpop.f32.mrf.mxu0
    %v4352 = vadd.f32 %v4253, %v4351
    %v4353 = vpop.f32.mrf.mxu0
    %4354 = vmatprep.mubr.f32.mxu0 0.0
    %4355 = vmatmul.mubr.f32.gmra.mxu0 %v545
    %v4356 = vpop.f32.mrf.mxu0
    %v4357 = vadd.f32 %v4253, %v4356
    %v4358 = vpop.f32.mrf.mxu0
    %4359 = vdwg.mxu0
    %s4360 = scalar_lea.vmem %s8, 64
    %v4361 = vld [vmem:[%s4360] sm:$0xff]
    %v4362 = vld [vmem:[%s4360 + $0x8] sm:$0xff]
    %v4363 = vld [vmem:[%s4360 + $0x10] sm:$0xff]
    %v4364 = vld [vmem:[%s4360 + $0x18] sm:$0xff]
    %s4365 = scalar_lea.vmem %s9, 2
    %v4366 = vld [vmem:[%s4365] sm:$0x1]
    %v4368 = vlaneseq
    %v4369 = vshrl.u32 %v4368, 7
    %v4370 = vsub.s32 0, %v4369
    %v4371 = vrot.slane %v4366, %v4370
    %4373 = vmatprep.subr.mxu0 0.0
    %4374 = vmatpush1.msra.mxu0 0.0
    %4375 = vmatprep.subr.mxu0 0.0
    %4376 = vmatpush1.msra.mxu0 0.0
    %4377 = vmatprep.subr.mxu0 0.0
    %4378 = vmatpush1.msra.mxu0 0.0
    %4379 = vmatprep.subr.mxu0 0.0
    %4380 = vmatpush1.msra.mxu0 0.0
    %4381 = vmatprep.subr.mxu0 0.0
    %4382 = vmatpush1.msra.mxu0 0.0
    %4383 = vmatprep.subr.mxu0 0.0
    %4384 = vmatpush1.msra.mxu0 0.0
    %4385 = vmatprep.subr.mxu0 0.0
    %4386 = vmatpush1.msra.mxu0 0.0
    %4387 = vmatprep.subr.mxu0 0.0
    %4388 = vmatpush1.msra.mxu0 0.0
    %4389 = vmatprep.subr.mxu0 0.0
    %4390 = vmatpush1.msra.mxu0 0.0
    %4391 = vmatprep.subr.mxu0 0.0
    %4392 = vmatpush1.msra.mxu0 0.0
    %4393 = vmatprep.subr.mxu0 0.0
    %4394 = vmatpush1.msra.mxu0 0.0
    %4395 = vmatprep.subr.mxu0 0.0
    %4396 = vmatpush1.msra.mxu0 0.0
    %4397 = vmatprep.subr.mxu0 0.0
    %4398 = vmatpush1.msra.mxu0 %v4364
    %4399 = vmatprep.subr.mxu0 0.0
    %4400 = vmatpush1.msra.mxu0 %v4363
    %4401 = vmatprep.subr.mxu0 0.0
    %4402 = vmatpush1.msra.mxu0 %v4362
    %4403 = vmatprep.subr.mxu0 0.0
    %4404 = vmatpush1.msra.mxu0 %v4361
    %4405 = vmatprep.subr.mxu0 0.0
    %4406 = vmatpush2.msra.mxu0 0.0
    %4407 = vmatprep.subr.mxu0 0.0
    %4408 = vmatpush2.msra.mxu0 0.0
    %4409 = vmatprep.subr.mxu0 0.0
    %4410 = vmatpush2.msra.mxu0 0.0
    %4411 = vmatprep.subr.mxu0 0.0
    %4412 = vmatpush2.msra.mxu0 0.0
    %4413 = vmatprep.subr.mxu0 0.0
    %4414 = vmatpush2.msra.mxu0 0.0
    %4415 = vmatprep.subr.mxu0 0.0
    %4416 = vmatpush2.msra.mxu0 0.0
    %4417 = vmatprep.subr.mxu0 0.0
    %4418 = vmatpush2.msra.mxu0 0.0
    %4419 = vmatprep.subr.mxu0 0.0
    %4420 = vmatpush2.msra.mxu0 0.0
    %4421 = vmatprep.subr.mxu0 0.0
    %4422 = vmatpush2.msra.mxu0 0.0
    %4423 = vmatprep.subr.mxu0 0.0
    %4424 = vmatpush2.msra.mxu0 0.0
    %4425 = vmatprep.subr.mxu0 0.0
    %4426 = vmatpush2.msra.mxu0 0.0
    %4427 = vmatprep.subr.mxu0 0.0
    %4428 = vmatpush2.msra.mxu0 0.0
    %4429 = vmatprep.subr.mxu0 0.0
    %4430 = vmatpush2.msra.mxu0 0.0
    %4431 = vmatprep.subr.mxu0 0.0
    %4432 = vmatpush2.msra.mxu0 0.0
    %4433 = vmatprep.subr.mxu0 0.0
    %4434 = vmatpush2.msra.mxu0 0.0
    %4435 = vmatprep.subr.mxu0 0.0
    %4436 = vmatpush2.msra.mxu0 0.0
    %4437 = vmatprep.mubr.f32.mxu0 0.0
    %4438 = vmatmul.mubr.f32.gmra.mxu0 %v524
    %v4439 = vpop.f32.mrf.mxu0
    %v4440 = vadd.f32 %v4371, %v4439
    %v4441 = vpop.f32.mrf.mxu0
    %4442 = vmatprep.mubr.f32.mxu0 0.0
    %4443 = vmatmul.mubr.f32.gmra.mxu0 %v527
    %v4444 = vpop.f32.mrf.mxu0
    %v4445 = vadd.f32 %v4371, %v4444
    %v4446 = vpop.f32.mrf.mxu0
    %4447 = vmatprep.mubr.f32.mxu0 0.0
    %4448 = vmatmul.mubr.f32.gmra.mxu0 %v530
    %v4449 = vpop.f32.mrf.mxu0
    %v4450 = vadd.f32 %v4371, %v4449
    %v4451 = vpop.f32.mrf.mxu0
    %4452 = vmatprep.mubr.f32.mxu0 0.0
    %4453 = vmatmul.mubr.f32.gmra.mxu0 %v533
    %v4454 = vpop.f32.mrf.mxu0
    %v4455 = vadd.f32 %v4371, %v4454
    %v4456 = vpop.f32.mrf.mxu0
    %4457 = vmatprep.mubr.f32.mxu0 0.0
    %4458 = vmatmul.mubr.f32.gmra.mxu0 %v536
    %v4459 = vpop.f32.mrf.mxu0
    %v4460 = vadd.f32 %v4371, %v4459
    %v4461 = vpop.f32.mrf.mxu0
    %4462 = vmatprep.mubr.f32.mxu0 0.0
    %4463 = vmatmul.mubr.f32.gmra.mxu0 %v539
    %v4464 = vpop.f32.mrf.mxu0
    %v4465 = vadd.f32 %v4371, %v4464
    %v4466 = vpop.f32.mrf.mxu0
    %4467 = vmatprep.mubr.f32.mxu0 0.0
    %4468 = vmatmul.mubr.f32.gmra.mxu0 %v542
    %v4469 = vpop.f32.mrf.mxu0
    %v4470 = vadd.f32 %v4371, %v4469
    %v4471 = vpop.f32.mrf.mxu0
    %4472 = vmatprep.mubr.f32.mxu0 0.0
    %4473 = vmatmul.mubr.f32.gmra.mxu0 %v545
    %v4474 = vpop.f32.mrf.mxu0
    %v4475 = vadd.f32 %v4371, %v4474
    %v4476 = vpop.f32.mrf.mxu0
    %4477 = vdwg.mxu0
    %v4479 = vsel %vm932, %v4204, 0
    %v4482 = vsel %vm932, %v4322, 0
    %4484 = vmatprep.subr.mxu0 0.0
    %4485 = vmatpush1.xpose.msra.mxu0 0.0
    %4486 = vmatprep.subr.mxu0 0.0
    %4487 = vmatpush1.xpose.msra.mxu0 0.0
    %4488 = vmatprep.subr.mxu0 0.0
    %4489 = vmatpush1.xpose.msra.mxu0 0.0
    %4490 = vmatprep.subr.mxu0 0.0
    %4491 = vmatpush1.xpose.msra.mxu0 0.0
    %4492 = vmatprep.subr.mxu0 0.0
    %4493 = vmatpush1.xpose.msra.mxu0 0.0
    %4494 = vmatprep.subr.mxu0 0.0
    %4495 = vmatpush1.xpose.msra.mxu0 0.0
    %4496 = vmatprep.subr.mxu0 0.0
    %4497 = vmatpush1.xpose.msra.mxu0 0.0
    %4498 = vmatprep.subr.mxu0 0.0
    %4499 = vmatpush1.xpose.msra.mxu0 0.0
    %4500 = vmatprep.subr.mxu0 0.0
    %4501 = vmatpush1.xpose.msra.mxu0 0.0
    %4502 = vmatprep.subr.mxu0 0.0
    %4503 = vmatpush1.xpose.msra.mxu0 0.0
    %4504 = vmatprep.subr.mxu0 0.0
    %4505 = vmatpush1.xpose.msra.mxu0 0.0
    %4506 = vmatprep.subr.mxu0 0.0
    %4507 = vmatpush1.xpose.msra.mxu0 0.0
    %4508 = vmatprep.subr.mxu0 0.0
    %4509 = vmatpush1.xpose.msra.mxu0 0.0
    %4510 = vmatprep.subr.mxu0 0.0
    %4511 = vmatpush1.xpose.msra.mxu0 0.0
    %4512 = vmatprep.subr.mxu0 0.0
    %4513 = vmatpush1.xpose.msra.mxu0 0.0
    %4514 = vmatprep.subr.mxu0 0.0
    %4515 = vmatpush1.xpose.msra.mxu0 %v4482
    %4516 = vmatprep.subr.mxu0 0.0
    %4517 = vmatpush2.xpose.msra.mxu0 0.0
    %4518 = vmatprep.subr.mxu0 0.0
    %4519 = vmatpush2.xpose.msra.mxu0 0.0
    %4520 = vmatprep.subr.mxu0 0.0
    %4521 = vmatpush2.xpose.msra.mxu0 0.0
    %4522 = vmatprep.subr.mxu0 0.0
    %4523 = vmatpush2.xpose.msra.mxu0 0.0
    %4524 = vmatprep.subr.mxu0 0.0
    %4525 = vmatpush2.xpose.msra.mxu0 0.0
    %4526 = vmatprep.subr.mxu0 0.0
    %4527 = vmatpush2.xpose.msra.mxu0 0.0
    %4528 = vmatprep.subr.mxu0 0.0
    %4529 = vmatpush2.xpose.msra.mxu0 0.0
    %4530 = vmatprep.subr.mxu0 0.0
    %4531 = vmatpush2.xpose.msra.mxu0 0.0
    %4532 = vmatprep.subr.mxu0 0.0
    %4533 = vmatpush2.xpose.msra.mxu0 0.0
    %4534 = vmatprep.subr.mxu0 0.0
    %4535 = vmatpush2.xpose.msra.mxu0 0.0
    %4536 = vmatprep.subr.mxu0 0.0
    %4537 = vmatpush2.xpose.msra.mxu0 0.0
    %4538 = vmatprep.subr.mxu0 0.0
    %4539 = vmatpush2.xpose.msra.mxu0 0.0
    %4540 = vmatprep.subr.mxu0 0.0
    %4541 = vmatpush2.xpose.msra.mxu0 0.0
    %4542 = vmatprep.subr.mxu0 0.0
    %4543 = vmatpush2.xpose.msra.mxu0 0.0
    %4544 = vmatprep.subr.mxu0 0.0
    %4545 = vmatpush2.xpose.msra.mxu0 0.0
    %4546 = vmatprep.subr.mxu0 0.0
    %4547 = vmatpush2.xpose.msra.mxu0 0.0
    %4548 = vmatprep.mubr.f32.mxu0 0.0
    %4549 = vmatmul.mubr.f32.gmra.mxu0 %v4479
    %v4550 = vpop.f32.mrf.mxu0
    %v4551 = vadd.f32 %v895, %v4550
    %v4552 = vpop.f32.mrf.mxu0
    %4553 = vdwg.mxu0
    %v4555 = vsel %vm932, %v4209, 0
    %v4558 = vsel %vm932, %v4327, 0
    %4560 = vmatprep.subr.mxu0 0.0
    %4561 = vmatpush1.xpose.msra.mxu0 0.0
    %4562 = vmatprep.subr.mxu0 0.0
    %4563 = vmatpush1.xpose.msra.mxu0 0.0
    %4564 = vmatprep.subr.mxu0 0.0
    %4565 = vmatpush1.xpose.msra.mxu0 0.0
    %4566 = vmatprep.subr.mxu0 0.0
    %4567 = vmatpush1.xpose.msra.mxu0 0.0
    %4568 = vmatprep.subr.mxu0 0.0
    %4569 = vmatpush1.xpose.msra.mxu0 0.0
    %4570 = vmatprep.subr.mxu0 0.0
    %4571 = vmatpush1.xpose.msra.mxu0 0.0
    %4572 = vmatprep.subr.mxu0 0.0
    %4573 = vmatpush1.xpose.msra.mxu0 0.0
    %4574 = vmatprep.subr.mxu0 0.0
    %4575 = vmatpush1.xpose.msra.mxu0 0.0
    %4576 = vmatprep.subr.mxu0 0.0
    %4577 = vmatpush1.xpose.msra.mxu0 0.0
    %4578 = vmatprep.subr.mxu0 0.0
    %4579 = vmatpush1.xpose.msra.mxu0 0.0
    %4580 = vmatprep.subr.mxu0 0.0
    %4581 = vmatpush1.xpose.msra.mxu0 0.0
    %4582 = vmatprep.subr.mxu0 0.0
    %4583 = vmatpush1.xpose.msra.mxu0 0.0
    %4584 = vmatprep.subr.mxu0 0.0
    %4585 = vmatpush1.xpose.msra.mxu0 0.0
    %4586 = vmatprep.subr.mxu0 0.0
    %4587 = vmatpush1.xpose.msra.mxu0 0.0
    %4588 = vmatprep.subr.mxu0 0.0
    %4589 = vmatpush1.xpose.msra.mxu0 0.0
    %4590 = vmatprep.subr.mxu0 0.0
    %4591 = vmatpush1.xpose.msra.mxu0 %v4558
    %4592 = vmatprep.subr.mxu0 0.0
    %4593 = vmatpush2.xpose.msra.mxu0 0.0
    %4594 = vmatprep.subr.mxu0 0.0
    %4595 = vmatpush2.xpose.msra.mxu0 0.0
    %4596 = vmatprep.subr.mxu0 0.0
    %4597 = vmatpush2.xpose.msra.mxu0 0.0
    %4598 = vmatprep.subr.mxu0 0.0
    %4599 = vmatpush2.xpose.msra.mxu0 0.0
    %4600 = vmatprep.subr.mxu0 0.0
    %4601 = vmatpush2.xpose.msra.mxu0 0.0
    %4602 = vmatprep.subr.mxu0 0.0
    %4603 = vmatpush2.xpose.msra.mxu0 0.0
    %4604 = vmatprep.subr.mxu0 0.0
    %4605 = vmatpush2.xpose.msra.mxu0 0.0
    %4606 = vmatprep.subr.mxu0 0.0
    %4607 = vmatpush2.xpose.msra.mxu0 0.0
    %4608 = vmatprep.subr.mxu0 0.0
    %4609 = vmatpush2.xpose.msra.mxu0 0.0
    %4610 = vmatprep.subr.mxu0 0.0
    %4611 = vmatpush2.xpose.msra.mxu0 0.0
    %4612 = vmatprep.subr.mxu0 0.0
    %4613 = vmatpush2.xpose.msra.mxu0 0.0
    %4614 = vmatprep.subr.mxu0 0.0
    %4615 = vmatpush2.xpose.msra.mxu0 0.0
    %4616 = vmatprep.subr.mxu0 0.0
    %4617 = vmatpush2.xpose.msra.mxu0 0.0
    %4618 = vmatprep.subr.mxu0 0.0
    %4619 = vmatpush2.xpose.msra.mxu0 0.0
    %4620 = vmatprep.subr.mxu0 0.0
    %4621 = vmatpush2.xpose.msra.mxu0 0.0
    %4622 = vmatprep.subr.mxu0 0.0
    %4623 = vmatpush2.xpose.msra.mxu0 0.0
    %4624 = vmatprep.mubr.f32.mxu0 0.0
    %4625 = vmatmul.mubr.f32.gmra.mxu0 %v4555
    %v4626 = vpop.f32.mrf.mxu0
    %v4627 = vadd.f32 %v899, %v4626
    %v4628 = vpop.f32.mrf.mxu0
    %4629 = vdwg.mxu0
    %v4631 = vsel %vm932, %v4214, 0
    %v4634 = vsel %vm932, %v4332, 0
    %4636 = vmatprep.subr.mxu0 0.0
    %4637 = vmatpush1.xpose.msra.mxu0 0.0
    %4638 = vmatprep.subr.mxu0 0.0
    %4639 = vmatpush1.xpose.msra.mxu0 0.0
    %4640 = vmatprep.subr.mxu0 0.0
    %4641 = vmatpush1.xpose.msra.mxu0 0.0
    %4642 = vmatprep.subr.mxu0 0.0
    %4643 = vmatpush1.xpose.msra.mxu0 0.0
    %4644 = vmatprep.subr.mxu0 0.0
    %4645 = vmatpush1.xpose.msra.mxu0 0.0
    %4646 = vmatprep.subr.mxu0 0.0
    %4647 = vmatpush1.xpose.msra.mxu0 0.0
    %4648 = vmatprep.subr.mxu0 0.0
    %4649 = vmatpush1.xpose.msra.mxu0 0.0
    %4650 = vmatprep.subr.mxu0 0.0
    %4651 = vmatpush1.xpose.msra.mxu0 0.0
    %4652 = vmatprep.subr.mxu0 0.0
    %4653 = vmatpush1.xpose.msra.mxu0 0.0
    %4654 = vmatprep.subr.mxu0 0.0
    %4655 = vmatpush1.xpose.msra.mxu0 0.0
    %4656 = vmatprep.subr.mxu0 0.0
    %4657 = vmatpush1.xpose.msra.mxu0 0.0
    %4658 = vmatprep.subr.mxu0 0.0
    %4659 = vmatpush1.xpose.msra.mxu0 0.0
    %4660 = vmatprep.subr.mxu0 0.0
    %4661 = vmatpush1.xpose.msra.mxu0 0.0
    %4662 = vmatprep.subr.mxu0 0.0
    %4663 = vmatpush1.xpose.msra.mxu0 0.0
    %4664 = vmatprep.subr.mxu0 0.0
    %4665 = vmatpush1.xpose.msra.mxu0 0.0
    %4666 = vmatprep.subr.mxu0 0.0
    %4667 = vmatpush1.xpose.msra.mxu0 %v4634
    %4668 = vmatprep.subr.mxu0 0.0
    %4669 = vmatpush2.xpose.msra.mxu0 0.0
    %4670 = vmatprep.subr.mxu0 0.0
    %4671 = vmatpush2.xpose.msra.mxu0 0.0
    %4672 = vmatprep.subr.mxu0 0.0
    %4673 = vmatpush2.xpose.msra.mxu0 0.0
    %4674 = vmatprep.subr.mxu0 0.0
    %4675 = vmatpush2.xpose.msra.mxu0 0.0
    %4676 = vmatprep.subr.mxu0 0.0
    %4677 = vmatpush2.xpose.msra.mxu0 0.0
    %4678 = vmatprep.subr.mxu0 0.0
    %4679 = vmatpush2.xpose.msra.mxu0 0.0
    %4680 = vmatprep.subr.mxu0 0.0
    %4681 = vmatpush2.xpose.msra.mxu0 0.0
    %4682 = vmatprep.subr.mxu0 0.0
    %4683 = vmatpush2.xpose.msra.mxu0 0.0
    %4684 = vmatprep.subr.mxu0 0.0
    %4685 = vmatpush2.xpose.msra.mxu0 0.0
    %4686 = vmatprep.subr.mxu0 0.0
    %4687 = vmatpush2.xpose.msra.mxu0 0.0
    %4688 = vmatprep.subr.mxu0 0.0
    %4689 = vmatpush2.xpose.msra.mxu0 0.0
    %4690 = vmatprep.subr.mxu0 0.0
    %4691 = vmatpush2.xpose.msra.mxu0 0.0
    %4692 = vmatprep.subr.mxu0 0.0
    %4693 = vmatpush2.xpose.msra.mxu0 0.0
    %4694 = vmatprep.subr.mxu0 0.0
    %4695 = vmatpush2.xpose.msra.mxu0 0.0
    %4696 = vmatprep.subr.mxu0 0.0
    %4697 = vmatpush2.xpose.msra.mxu0 0.0
    %4698 = vmatprep.subr.mxu0 0.0
    %4699 = vmatpush2.xpose.msra.mxu0 0.0
    %4700 = vmatprep.mubr.f32.mxu0 0.0
    %4701 = vmatmul.mubr.f32.gmra.mxu0 %v4631
    %v4702 = vpop.f32.mrf.mxu0
    %v4703 = vadd.f32 %v903, %v4702
    %v4704 = vpop.f32.mrf.mxu0
    %4705 = vdwg.mxu0
    %v4707 = vsel %vm932, %v4219, 0
    %v4710 = vsel %vm932, %v4337, 0
    %4712 = vmatprep.subr.mxu0 0.0
    %4713 = vmatpush1.xpose.msra.mxu0 0.0
    %4714 = vmatprep.subr.mxu0 0.0
    %4715 = vmatpush1.xpose.msra.mxu0 0.0
    %4716 = vmatprep.subr.mxu0 0.0
    %4717 = vmatpush1.xpose.msra.mxu0 0.0
    %4718 = vmatprep.subr.mxu0 0.0
    %4719 = vmatpush1.xpose.msra.mxu0 0.0
    %4720 = vmatprep.subr.mxu0 0.0
    %4721 = vmatpush1.xpose.msra.mxu0 0.0
    %4722 = vmatprep.subr.mxu0 0.0
    %4723 = vmatpush1.xpose.msra.mxu0 0.0
    %4724 = vmatprep.subr.mxu0 0.0
    %4725 = vmatpush1.xpose.msra.mxu0 0.0
    %4726 = vmatprep.subr.mxu0 0.0
    %4727 = vmatpush1.xpose.msra.mxu0 0.0
    %4728 = vmatprep.subr.mxu0 0.0
    %4729 = vmatpush1.xpose.msra.mxu0 0.0
    %4730 = vmatprep.subr.mxu0 0.0
    %4731 = vmatpush1.xpose.msra.mxu0 0.0
    %4732 = vmatprep.subr.mxu0 0.0
    %4733 = vmatpush1.xpose.msra.mxu0 0.0
    %4734 = vmatprep.subr.mxu0 0.0
    %4735 = vmatpush1.xpose.msra.mxu0 0.0
    %4736 = vmatprep.subr.mxu0 0.0
    %4737 = vmatpush1.xpose.msra.mxu0 0.0
    %4738 = vmatprep.subr.mxu0 0.0
    %4739 = vmatpush1.xpose.msra.mxu0 0.0
    %4740 = vmatprep.subr.mxu0 0.0
    %4741 = vmatpush1.xpose.msra.mxu0 0.0
    %4742 = vmatprep.subr.mxu0 0.0
    %4743 = vmatpush1.xpose.msra.mxu0 %v4710
    %4744 = vmatprep.subr.mxu0 0.0
    %4745 = vmatpush2.xpose.msra.mxu0 0.0
    %4746 = vmatprep.subr.mxu0 0.0
    %4747 = vmatpush2.xpose.msra.mxu0 0.0
    %4748 = vmatprep.subr.mxu0 0.0
    %4749 = vmatpush2.xpose.msra.mxu0 0.0
    %4750 = vmatprep.subr.mxu0 0.0
    %4751 = vmatpush2.xpose.msra.mxu0 0.0
    %4752 = vmatprep.subr.mxu0 0.0
    %4753 = vmatpush2.xpose.msra.mxu0 0.0
    %4754 = vmatprep.subr.mxu0 0.0
    %4755 = vmatpush2.xpose.msra.mxu0 0.0
    %4756 = vmatprep.subr.mxu0 0.0
    %4757 = vmatpush2.xpose.msra.mxu0 0.0
    %4758 = vmatprep.subr.mxu0 0.0
    %4759 = vmatpush2.xpose.msra.mxu0 0.0
    %4760 = vmatprep.subr.mxu0 0.0
    %4761 = vmatpush2.xpose.msra.mxu0 0.0
    %4762 = vmatprep.subr.mxu0 0.0
    %4763 = vmatpush2.xpose.msra.mxu0 0.0
    %4764 = vmatprep.subr.mxu0 0.0
    %4765 = vmatpush2.xpose.msra.mxu0 0.0
    %4766 = vmatprep.subr.mxu0 0.0
    %4767 = vmatpush2.xpose.msra.mxu0 0.0
    %4768 = vmatprep.subr.mxu0 0.0
    %4769 = vmatpush2.xpose.msra.mxu0 0.0
    %4770 = vmatprep.subr.mxu0 0.0
    %4771 = vmatpush2.xpose.msra.mxu0 0.0
    %4772 = vmatprep.subr.mxu0 0.0
    %4773 = vmatpush2.xpose.msra.mxu0 0.0
    %4774 = vmatprep.subr.mxu0 0.0
    %4775 = vmatpush2.xpose.msra.mxu0 0.0
    %4776 = vmatprep.mubr.f32.mxu0 0.0
    %4777 = vmatmul.mubr.f32.gmra.mxu0 %v4707
    %v4778 = vpop.f32.mrf.mxu0
    %v4779 = vadd.f32 %v907, %v4778
    %v4780 = vpop.f32.mrf.mxu0
    %4781 = vdwg.mxu0
    %v4783 = vsel %vm932, %v4224, 0
    %v4786 = vsel %vm932, %v4342, 0
    %4788 = vmatprep.subr.mxu0 0.0
    %4789 = vmatpush1.xpose.msra.mxu0 0.0
    %4790 = vmatprep.subr.mxu0 0.0
    %4791 = vmatpush1.xpose.msra.mxu0 0.0
    %4792 = vmatprep.subr.mxu0 0.0
    %4793 = vmatpush1.xpose.msra.mxu0 0.0
    %4794 = vmatprep.subr.mxu0 0.0
    %4795 = vmatpush1.xpose.msra.mxu0 0.0
    %4796 = vmatprep.subr.mxu0 0.0
    %4797 = vmatpush1.xpose.msra.mxu0 0.0
    %4798 = vmatprep.subr.mxu0 0.0
    %4799 = vmatpush1.xpose.msra.mxu0 0.0
    %4800 = vmatprep.subr.mxu0 0.0
    %4801 = vmatpush1.xpose.msra.mxu0 0.0
    %4802 = vmatprep.subr.mxu0 0.0
    %4803 = vmatpush1.xpose.msra.mxu0 0.0
    %4804 = vmatprep.subr.mxu0 0.0
    %4805 = vmatpush1.xpose.msra.mxu0 0.0
    %4806 = vmatprep.subr.mxu0 0.0
    %4807 = vmatpush1.xpose.msra.mxu0 0.0
    %4808 = vmatprep.subr.mxu0 0.0
    %4809 = vmatpush1.xpose.msra.mxu0 0.0
    %4810 = vmatprep.subr.mxu0 0.0
    %4811 = vmatpush1.xpose.msra.mxu0 0.0
    %4812 = vmatprep.subr.mxu0 0.0
    %4813 = vmatpush1.xpose.msra.mxu0 0.0
    %4814 = vmatprep.subr.mxu0 0.0
    %4815 = vmatpush1.xpose.msra.mxu0 0.0
    %4816 = vmatprep.subr.mxu0 0.0
    %4817 = vmatpush1.xpose.msra.mxu0 0.0
    %4818 = vmatprep.subr.mxu0 0.0
    %4819 = vmatpush1.xpose.msra.mxu0 %v4786
    %4820 = vmatprep.subr.mxu0 0.0
    %4821 = vmatpush2.xpose.msra.mxu0 0.0
    %4822 = vmatprep.subr.mxu0 0.0
    %4823 = vmatpush2.xpose.msra.mxu0 0.0
    %4824 = vmatprep.subr.mxu0 0.0
    %4825 = vmatpush2.xpose.msra.mxu0 0.0
    %4826 = vmatprep.subr.mxu0 0.0
    %4827 = vmatpush2.xpose.msra.mxu0 0.0
    %4828 = vmatprep.subr.mxu0 0.0
    %4829 = vmatpush2.xpose.msra.mxu0 0.0
    %4830 = vmatprep.subr.mxu0 0.0
    %4831 = vmatpush2.xpose.msra.mxu0 0.0
    %4832 = vmatprep.subr.mxu0 0.0
    %4833 = vmatpush2.xpose.msra.mxu0 0.0
    %4834 = vmatprep.subr.mxu0 0.0
    %4835 = vmatpush2.xpose.msra.mxu0 0.0
    %4836 = vmatprep.subr.mxu0 0.0
    %4837 = vmatpush2.xpose.msra.mxu0 0.0
    %4838 = vmatprep.subr.mxu0 0.0
    %4839 = vmatpush2.xpose.msra.mxu0 0.0
    %4840 = vmatprep.subr.mxu0 0.0
    %4841 = vmatpush2.xpose.msra.mxu0 0.0
    %4842 = vmatprep.subr.mxu0 0.0
    %4843 = vmatpush2.xpose.msra.mxu0 0.0
    %4844 = vmatprep.subr.mxu0 0.0
    %4845 = vmatpush2.xpose.msra.mxu0 0.0
    %4846 = vmatprep.subr.mxu0 0.0
    %4847 = vmatpush2.xpose.msra.mxu0 0.0
    %4848 = vmatprep.subr.mxu0 0.0
    %4849 = vmatpush2.xpose.msra.mxu0 0.0
    %4850 = vmatprep.subr.mxu0 0.0
    %4851 = vmatpush2.xpose.msra.mxu0 0.0
    %4852 = vmatprep.mubr.f32.mxu0 0.0
    %4853 = vmatmul.mubr.f32.gmra.mxu0 %v4783
    %v4854 = vpop.f32.mrf.mxu0
    %v4855 = vadd.f32 %v911, %v4854
    %v4856 = vpop.f32.mrf.mxu0
    %4857 = vdwg.mxu0
    %v4859 = vsel %vm932, %v4229, 0
    %v4862 = vsel %vm932, %v4347, 0
    %4864 = vmatprep.subr.mxu0 0.0
    %4865 = vmatpush1.xpose.msra.mxu0 0.0
    %4866 = vmatprep.subr.mxu0 0.0
    %4867 = vmatpush1.xpose.msra.mxu0 0.0
    %4868 = vmatprep.subr.mxu0 0.0
    %4869 = vmatpush1.xpose.msra.mxu0 0.0
    %4870 = vmatprep.subr.mxu0 0.0
    %4871 = vmatpush1.xpose.msra.mxu0 0.0
    %4872 = vmatprep.subr.mxu0 0.0
    %4873 = vmatpush1.xpose.msra.mxu0 0.0
    %4874 = vmatprep.subr.mxu0 0.0
    %4875 = vmatpush1.xpose.msra.mxu0 0.0
    %4876 = vmatprep.subr.mxu0 0.0
    %4877 = vmatpush1.xpose.msra.mxu0 0.0
    %4878 = vmatprep.subr.mxu0 0.0
    %4879 = vmatpush1.xpose.msra.mxu0 0.0
    %4880 = vmatprep.subr.mxu0 0.0
    %4881 = vmatpush1.xpose.msra.mxu0 0.0
    %4882 = vmatprep.subr.mxu0 0.0
    %4883 = vmatpush1.xpose.msra.mxu0 0.0
    %4884 = vmatprep.subr.mxu0 0.0
    %4885 = vmatpush1.xpose.msra.mxu0 0.0
    %4886 = vmatprep.subr.mxu0 0.0
    %4887 = vmatpush1.xpose.msra.mxu0 0.0
    %4888 = vmatprep.subr.mxu0 0.0
    %4889 = vmatpush1.xpose.msra.mxu0 0.0
    %4890 = vmatprep.subr.mxu0 0.0
    %4891 = vmatpush1.xpose.msra.mxu0 0.0
    %4892 = vmatprep.subr.mxu0 0.0
    %4893 = vmatpush1.xpose.msra.mxu0 0.0
    %4894 = vmatprep.subr.mxu0 0.0
    %4895 = vmatpush1.xpose.msra.mxu0 %v4862
    %4896 = vmatprep.subr.mxu0 0.0
    %4897 = vmatpush2.xpose.msra.mxu0 0.0
    %4898 = vmatprep.subr.mxu0 0.0
    %4899 = vmatpush2.xpose.msra.mxu0 0.0
    %4900 = vmatprep.subr.mxu0 0.0
    %4901 = vmatpush2.xpose.msra.mxu0 0.0
    %4902 = vmatprep.subr.mxu0 0.0
    %4903 = vmatpush2.xpose.msra.mxu0 0.0
    %4904 = vmatprep.subr.mxu0 0.0
    %4905 = vmatpush2.xpose.msra.mxu0 0.0
    %4906 = vmatprep.subr.mxu0 0.0
    %4907 = vmatpush2.xpose.msra.mxu0 0.0
    %4908 = vmatprep.subr.mxu0 0.0
    %4909 = vmatpush2.xpose.msra.mxu0 0.0
    %4910 = vmatprep.subr.mxu0 0.0
    %4911 = vmatpush2.xpose.msra.mxu0 0.0
    %4912 = vmatprep.subr.mxu0 0.0
    %4913 = vmatpush2.xpose.msra.mxu0 0.0
    %4914 = vmatprep.subr.mxu0 0.0
    %4915 = vmatpush2.xpose.msra.mxu0 0.0
    %4916 = vmatprep.subr.mxu0 0.0
    %4917 = vmatpush2.xpose.msra.mxu0 0.0
    %4918 = vmatprep.subr.mxu0 0.0
    %4919 = vmatpush2.xpose.msra.mxu0 0.0
    %4920 = vmatprep.subr.mxu0 0.0
    %4921 = vmatpush2.xpose.msra.mxu0 0.0
    %4922 = vmatprep.subr.mxu0 0.0
    %4923 = vmatpush2.xpose.msra.mxu0 0.0
    %4924 = vmatprep.subr.mxu0 0.0
    %4925 = vmatpush2.xpose.msra.mxu0 0.0
    %4926 = vmatprep.subr.mxu0 0.0
    %4927 = vmatpush2.xpose.msra.mxu0 0.0
    %4928 = vmatprep.mubr.f32.mxu0 0.0
    %4929 = vmatmul.mubr.f32.gmra.mxu0 %v4859
    %v4930 = vpop.f32.mrf.mxu0
    %v4931 = vadd.f32 %v915, %v4930
    %v4932 = vpop.f32.mrf.mxu0
    %4933 = vdwg.mxu0
    %v4935 = vsel %vm932, %v4234, 0
    %v4938 = vsel %vm932, %v4352, 0
    %4940 = vmatprep.subr.mxu0 0.0
    %4941 = vmatpush1.xpose.msra.mxu0 0.0
    %4942 = vmatprep.subr.mxu0 0.0
    %4943 = vmatpush1.xpose.msra.mxu0 0.0
    %4944 = vmatprep.subr.mxu0 0.0
    %4945 = vmatpush1.xpose.msra.mxu0 0.0
    %4946 = vmatprep.subr.mxu0 0.0
    %4947 = vmatpush1.xpose.msra.mxu0 0.0
    %4948 = vmatprep.subr.mxu0 0.0
    %4949 = vmatpush1.xpose.msra.mxu0 0.0
    %4950 = vmatprep.subr.mxu0 0.0
    %4951 = vmatpush1.xpose.msra.mxu0 0.0
    %4952 = vmatprep.subr.mxu0 0.0
    %4953 = vmatpush1.xpose.msra.mxu0 0.0
    %4954 = vmatprep.subr.mxu0 0.0
    %4955 = vmatpush1.xpose.msra.mxu0 0.0
    %4956 = vmatprep.subr.mxu0 0.0
    %4957 = vmatpush1.xpose.msra.mxu0 0.0
    %4958 = vmatprep.subr.mxu0 0.0
    %4959 = vmatpush1.xpose.msra.mxu0 0.0
    %4960 = vmatprep.subr.mxu0 0.0
    %4961 = vmatpush1.xpose.msra.mxu0 0.0
    %4962 = vmatprep.subr.mxu0 0.0
    %4963 = vmatpush1.xpose.msra.mxu0 0.0
    %4964 = vmatprep.subr.mxu0 0.0
    %4965 = vmatpush1.xpose.msra.mxu0 0.0
    %4966 = vmatprep.subr.mxu0 0.0
    %4967 = vmatpush1.xpose.msra.mxu0 0.0
    %4968 = vmatprep.subr.mxu0 0.0
    %4969 = vmatpush1.xpose.msra.mxu0 0.0
    %4970 = vmatprep.subr.mxu0 0.0
    %4971 = vmatpush1.xpose.msra.mxu0 %v4938
    %4972 = vmatprep.subr.mxu0 0.0
    %4973 = vmatpush2.xpose.msra.mxu0 0.0
    %4974 = vmatprep.subr.mxu0 0.0
    %4975 = vmatpush2.xpose.msra.mxu0 0.0
    %4976 = vmatprep.subr.mxu0 0.0
    %4977 = vmatpush2.xpose.msra.mxu0 0.0
    %4978 = vmatprep.subr.mxu0 0.0
    %4979 = vmatpush2.xpose.msra.mxu0 0.0
    %4980 = vmatprep.subr.mxu0 0.0
    %4981 = vmatpush2.xpose.msra.mxu0 0.0
    %4982 = vmatprep.subr.mxu0 0.0
    %4983 = vmatpush2.xpose.msra.mxu0 0.0
    %4984 = vmatprep.subr.mxu0 0.0
    %4985 = vmatpush2.xpose.msra.mxu0 0.0
    %4986 = vmatprep.subr.mxu0 0.0
    %4987 = vmatpush2.xpose.msra.mxu0 0.0
    %4988 = vmatprep.subr.mxu0 0.0
    %4989 = vmatpush2.xpose.msra.mxu0 0.0
    %4990 = vmatprep.subr.mxu0 0.0
    %4991 = vmatpush2.xpose.msra.mxu0 0.0
    %4992 = vmatprep.subr.mxu0 0.0
    %4993 = vmatpush2.xpose.msra.mxu0 0.0
    %4994 = vmatprep.subr.mxu0 0.0
    %4995 = vmatpush2.xpose.msra.mxu0 0.0
    %4996 = vmatprep.subr.mxu0 0.0
    %4997 = vmatpush2.xpose.msra.mxu0 0.0
    %4998 = vmatprep.subr.mxu0 0.0
    %4999 = vmatpush2.xpose.msra.mxu0 0.0
    %5000 = vmatprep.subr.mxu0 0.0
    %5001 = vmatpush2.xpose.msra.mxu0 0.0
    %5002 = vmatprep.subr.mxu0 0.0
    %5003 = vmatpush2.xpose.msra.mxu0 0.0
    %5004 = vmatprep.mubr.f32.mxu0 0.0
    %5005 = vmatmul.mubr.f32.gmra.mxu0 %v4935
    %v5006 = vpop.f32.mrf.mxu0
    %v5007 = vadd.f32 %v919, %v5006
    %v5008 = vpop.f32.mrf.mxu0
    %5009 = vdwg.mxu0
    %v5011 = vsel %vm932, %v4239, 0
    %v5014 = vsel %vm932, %v4357, 0
    %5016 = vmatprep.subr.mxu0 0.0
    %5017 = vmatpush1.xpose.msra.mxu0 0.0
    %5018 = vmatprep.subr.mxu0 0.0
    %5019 = vmatpush1.xpose.msra.mxu0 0.0
    %5020 = vmatprep.subr.mxu0 0.0
    %5021 = vmatpush1.xpose.msra.mxu0 0.0
    %5022 = vmatprep.subr.mxu0 0.0
    %5023 = vmatpush1.xpose.msra.mxu0 0.0
    %5024 = vmatprep.subr.mxu0 0.0
    %5025 = vmatpush1.xpose.msra.mxu0 0.0
    %5026 = vmatprep.subr.mxu0 0.0
    %5027 = vmatpush1.xpose.msra.mxu0 0.0
    %5028 = vmatprep.subr.mxu0 0.0
    %5029 = vmatpush1.xpose.msra.mxu0 0.0
    %5030 = vmatprep.subr.mxu0 0.0
    %5031 = vmatpush1.xpose.msra.mxu0 0.0
    %5032 = vmatprep.subr.mxu0 0.0
    %5033 = vmatpush1.xpose.msra.mxu0 0.0
    %5034 = vmatprep.subr.mxu0 0.0
    %5035 = vmatpush1.xpose.msra.mxu0 0.0
    %5036 = vmatprep.subr.mxu0 0.0
    %5037 = vmatpush1.xpose.msra.mxu0 0.0
    %5038 = vmatprep.subr.mxu0 0.0
    %5039 = vmatpush1.xpose.msra.mxu0 0.0
    %5040 = vmatprep.subr.mxu0 0.0
    %5041 = vmatpush1.xpose.msra.mxu0 0.0
    %5042 = vmatprep.subr.mxu0 0.0
    %5043 = vmatpush1.xpose.msra.mxu0 0.0
    %5044 = vmatprep.subr.mxu0 0.0
    %5045 = vmatpush1.xpose.msra.mxu0 0.0
    %5046 = vmatprep.subr.mxu0 0.0
    %5047 = vmatpush1.xpose.msra.mxu0 %v5014
    %5048 = vmatprep.subr.mxu0 0.0
    %5049 = vmatpush2.xpose.msra.mxu0 0.0
    %5050 = vmatprep.subr.mxu0 0.0
    %5051 = vmatpush2.xpose.msra.mxu0 0.0
    %5052 = vmatprep.subr.mxu0 0.0
    %5053 = vmatpush2.xpose.msra.mxu0 0.0
    %5054 = vmatprep.subr.mxu0 0.0
    %5055 = vmatpush2.xpose.msra.mxu0 0.0
    %5056 = vmatprep.subr.mxu0 0.0
    %5057 = vmatpush2.xpose.msra.mxu0 0.0
    %5058 = vmatprep.subr.mxu0 0.0
    %5059 = vmatpush2.xpose.msra.mxu0 0.0
    %5060 = vmatprep.subr.mxu0 0.0
    %5061 = vmatpush2.xpose.msra.mxu0 0.0
    %5062 = vmatprep.subr.mxu0 0.0
    %5063 = vmatpush2.xpose.msra.mxu0 0.0
    %5064 = vmatprep.subr.mxu0 0.0
    %5065 = vmatpush2.xpose.msra.mxu0 0.0
    %5066 = vmatprep.subr.mxu0 0.0
    %5067 = vmatpush2.xpose.msra.mxu0 0.0
    %5068 = vmatprep.subr.mxu0 0.0
    %5069 = vmatpush2.xpose.msra.mxu0 0.0
    %5070 = vmatprep.subr.mxu0 0.0
    %5071 = vmatpush2.xpose.msra.mxu0 0.0
    %5072 = vmatprep.subr.mxu0 0.0
    %5073 = vmatpush2.xpose.msra.mxu0 0.0
    %5074 = vmatprep.subr.mxu0 0.0
    %5075 = vmatpush2.xpose.msra.mxu0 0.0
    %5076 = vmatprep.subr.mxu0 0.0
    %5077 = vmatpush2.xpose.msra.mxu0 0.0
    %5078 = vmatprep.subr.mxu0 0.0
    %5079 = vmatpush2.xpose.msra.mxu0 0.0
    %5080 = vmatprep.mubr.f32.mxu0 0.0
    %5081 = vmatmul.mubr.f32.gmra.mxu0 %v5011
    %v5082 = vpop.f32.mrf.mxu0
    %v5083 = vadd.f32 %v923, %v5082
    %v5084 = vpop.f32.mrf.mxu0
    %5085 = vdwg.mxu0
    %v5086 = vsel %vm932, %v4551, -inf
    %5087 = vmax.xlane.f32.xlu0 %v5086
    %v5088 = vpop.xlane.xlu0 %5087
    %v5089 = vsel %vm932, %v4627, -inf
    %5090 = vmax.xlane.f32.xlu0 %v5089
    %v5091 = vpop.xlane.xlu0 %5090
    %v5092 = vsel %vm932, %v4703, -inf
    %5093 = vmax.xlane.f32.xlu0 %v5092
    %v5094 = vpop.xlane.xlu0 %5093
    %v5095 = vsel %vm932, %v4779, -inf
    %5096 = vmax.xlane.f32.xlu0 %v5095
    %v5097 = vpop.xlane.xlu0 %5096
    %v5098 = vsel %vm932, %v4855, -inf
    %5099 = vmax.xlane.f32.xlu0 %v5098
    %v5100 = vpop.xlane.xlu0 %5099
    %v5101 = vsel %vm932, %v4931, -inf
    %5102 = vmax.xlane.f32.xlu0 %v5101
    %v5103 = vpop.xlane.xlu0 %5102
    %v5104 = vsel %vm932, %v5007, -inf
    %5105 = vmax.xlane.f32.xlu0 %v5104
    %v5106 = vpop.xlane.xlu0 %5105
    %v5107 = vsel %vm932, %v5083, -inf
    %5108 = vmax.xlane.f32.xlu0 %v5107
    %v5109 = vpop.xlane.xlu0 %5108
    %v5110 = vsub.f32 %v4551, %v5088
    %v5111 = vsub.f32 %v4627, %v5091
    %v5112 = vsub.f32 %v4703, %v5094
    %v5113 = vsub.f32 %v4779, %v5097
    %v5114 = vsub.f32 %v4855, %v5100
    %v5115 = vsub.f32 %v4931, %v5103
    %v5116 = vsub.f32 %v5007, %v5106
    %v5117 = vsub.f32 %v5083, %v5109
    %v5118 = vmul.f32 %v5110, 1.442695
    %v5119 = vpow.pop %v5118
    %v5120 = vmul.f32 %v5111, 1.442695
    %v5121 = vpow.pop %v5120
    %v5122 = vmul.f32 %v5112, 1.442695
    %v5123 = vpow.pop %v5122
    %v5124 = vmul.f32 %v5113, 1.442695
    %v5125 = vpow.pop %v5124
    %v5126 = vmul.f32 %v5114, 1.442695
    %v5127 = vpow.pop %v5126
    %v5128 = vmul.f32 %v5115, 1.442695
    %v5129 = vpow.pop %v5128
    %v5130 = vmul.f32 %v5116, 1.442695
    %v5131 = vpow.pop %v5130
    %v5132 = vmul.f32 %v5117, 1.442695
    %v5133 = vpow.pop %v5132
    %v5134 = vsel %vm932, %v5119, 0.0
    %5135 = vadd.xlane.f32.xlu0 %v5134
    %v5136 = vpop.xlane.xlu0 %5135
    %v5137 = vsel %vm932, %v5121, 0.0
    %5138 = vadd.xlane.f32.xlu0 %v5137
    %v5139 = vpop.xlane.xlu0 %5138
    %v5140 = vsel %vm932, %v5123, 0.0
    %5141 = vadd.xlane.f32.xlu0 %v5140
    %v5142 = vpop.xlane.xlu0 %5141
    %v5143 = vsel %vm932, %v5125, 0.0
    %5144 = vadd.xlane.f32.xlu0 %v5143
    %v5145 = vpop.xlane.xlu0 %5144
    %v5146 = vsel %vm932, %v5127, 0.0
    %5147 = vadd.xlane.f32.xlu0 %v5146
    %v5148 = vpop.xlane.xlu0 %5147
    %v5149 = vsel %vm932, %v5129, 0.0
    %5150 = vadd.xlane.f32.xlu0 %v5149
    %v5151 = vpop.xlane.xlu0 %5150
    %v5152 = vsel %vm932, %v5131, 0.0
    %5153 = vadd.xlane.f32.xlu0 %v5152
    %v5154 = vpop.xlane.xlu0 %5153
    %v5155 = vsel %vm932, %v5133, 0.0
    %5156 = vadd.xlane.f32.xlu0 %v5155
    %v5157 = vpop.xlane.xlu0 %5156
    %v5158 = vrcp.pop %v5136
    %v5159 = vrcp.pop %v5139
    %v5160 = vrcp.pop %v5142
    %v5161 = vrcp.pop %v5145
    %v5162 = vrcp.pop %v5148
    %v5163 = vrcp.pop %v5151
    %v5164 = vrcp.pop %v5154
    %v5165 = vrcp.pop %v5157
    %v5166 = vmul.f32 %v5119, %v5158
    %v5167 = vmul.f32 %v5121, %v5159
    %v5168 = vmul.f32 %v5123, %v5160
    %v5169 = vmul.f32 %v5125, %v5161
    %v5170 = vmul.f32 %v5127, %v5162
    %v5171 = vmul.f32 %v5129, %v5163
    %v5172 = vmul.f32 %v5131, %v5164
    %v5173 = vmul.f32 %v5133, %v5165
    %v5175 = vsel %vm932, %v5166, 0
    %5177 = vmatprep.subr.mxu0 0.0
    %5178 = vmatpush1.msra.mxu0 0.0
    %5179 = vmatprep.subr.mxu0 0.0
    %5180 = vmatpush1.msra.mxu0 0.0
    %5181 = vmatprep.subr.mxu0 0.0
    %5182 = vmatpush1.msra.mxu0 0.0
    %5183 = vmatprep.subr.mxu0 0.0
    %5184 = vmatpush1.msra.mxu0 0.0
    %5185 = vmatprep.subr.mxu0 0.0
    %5186 = vmatpush1.msra.mxu0 0.0
    %5187 = vmatprep.subr.mxu0 0.0
    %5188 = vmatpush1.msra.mxu0 0.0
    %5189 = vmatprep.subr.mxu0 0.0
    %5190 = vmatpush1.msra.mxu0 0.0
    %5191 = vmatprep.subr.mxu0 0.0
    %5192 = vmatpush1.msra.mxu0 0.0
    %5193 = vmatprep.subr.mxu0 0.0
    %5194 = vmatpush1.msra.mxu0 0.0
    %5195 = vmatprep.subr.mxu0 0.0
    %5196 = vmatpush1.msra.mxu0 0.0
    %5197 = vmatprep.subr.mxu0 0.0
    %5198 = vmatpush1.msra.mxu0 0.0
    %5199 = vmatprep.subr.mxu0 0.0
    %5200 = vmatpush1.msra.mxu0 0.0
    %5201 = vmatprep.subr.mxu0 0.0
    %5202 = vmatpush1.msra.mxu0 0.0
    %5203 = vmatprep.subr.mxu0 0.0
    %5204 = vmatpush1.msra.mxu0 0.0
    %5205 = vmatprep.subr.mxu0 0.0
    %5206 = vmatpush1.msra.mxu0 0.0
    %5207 = vmatprep.subr.mxu0 0.0
    %5208 = vmatpush1.msra.mxu0 %v4440
    %5209 = vmatprep.subr.mxu0 0.0
    %5210 = vmatpush2.msra.mxu0 0.0
    %5211 = vmatprep.subr.mxu0 0.0
    %5212 = vmatpush2.msra.mxu0 0.0
    %5213 = vmatprep.subr.mxu0 0.0
    %5214 = vmatpush2.msra.mxu0 0.0
    %5215 = vmatprep.subr.mxu0 0.0
    %5216 = vmatpush2.msra.mxu0 0.0
    %5217 = vmatprep.subr.mxu0 0.0
    %5218 = vmatpush2.msra.mxu0 0.0
    %5219 = vmatprep.subr.mxu0 0.0
    %5220 = vmatpush2.msra.mxu0 0.0
    %5221 = vmatprep.subr.mxu0 0.0
    %5222 = vmatpush2.msra.mxu0 0.0
    %5223 = vmatprep.subr.mxu0 0.0
    %5224 = vmatpush2.msra.mxu0 0.0
    %5225 = vmatprep.subr.mxu0 0.0
    %5226 = vmatpush2.msra.mxu0 0.0
    %5227 = vmatprep.subr.mxu0 0.0
    %5228 = vmatpush2.msra.mxu0 0.0
    %5229 = vmatprep.subr.mxu0 0.0
    %5230 = vmatpush2.msra.mxu0 0.0
    %5231 = vmatprep.subr.mxu0 0.0
    %5232 = vmatpush2.msra.mxu0 0.0
    %5233 = vmatprep.subr.mxu0 0.0
    %5234 = vmatpush2.msra.mxu0 0.0
    %5235 = vmatprep.subr.mxu0 0.0
    %5236 = vmatpush2.msra.mxu0 0.0
    %5237 = vmatprep.subr.mxu0 0.0
    %5238 = vmatpush2.msra.mxu0 0.0
    %5239 = vmatprep.subr.mxu0 0.0
    %5240 = vmatpush2.msra.mxu0 0.0
    %5241 = vmatprep.mubr.f32.mxu0 0.0
    %5242 = vmatmul.mubr.f32.gmra.mxu0 %v5175
    %v5243 = vpop.f32.mrf.mxu0
    %v5244 = vadd.f32 0.0, %v5243
    %v5245 = vpop.f32.mrf.mxu0
    %5246 = vdwg.mxu0
    %v5248 = vsel %vm932, %v5167, 0
    %5250 = vmatprep.subr.mxu0 0.0
    %5251 = vmatpush1.msra.mxu0 0.0
    %5252 = vmatprep.subr.mxu0 0.0
    %5253 = vmatpush1.msra.mxu0 0.0
    %5254 = vmatprep.subr.mxu0 0.0
    %5255 = vmatpush1.msra.mxu0 0.0
    %5256 = vmatprep.subr.mxu0 0.0
    %5257 = vmatpush1.msra.mxu0 0.0
    %5258 = vmatprep.subr.mxu0 0.0
    %5259 = vmatpush1.msra.mxu0 0.0
    %5260 = vmatprep.subr.mxu0 0.0
    %5261 = vmatpush1.msra.mxu0 0.0
    %5262 = vmatprep.subr.mxu0 0.0
    %5263 = vmatpush1.msra.mxu0 0.0
    %5264 = vmatprep.subr.mxu0 0.0
    %5265 = vmatpush1.msra.mxu0 0.0
    %5266 = vmatprep.subr.mxu0 0.0
    %5267 = vmatpush1.msra.mxu0 0.0
    %5268 = vmatprep.subr.mxu0 0.0
    %5269 = vmatpush1.msra.mxu0 0.0
    %5270 = vmatprep.subr.mxu0 0.0
    %5271 = vmatpush1.msra.mxu0 0.0
    %5272 = vmatprep.subr.mxu0 0.0
    %5273 = vmatpush1.msra.mxu0 0.0
    %5274 = vmatprep.subr.mxu0 0.0
    %5275 = vmatpush1.msra.mxu0 0.0
    %5276 = vmatprep.subr.mxu0 0.0
    %5277 = vmatpush1.msra.mxu0 0.0
    %5278 = vmatprep.subr.mxu0 0.0
    %5279 = vmatpush1.msra.mxu0 0.0
    %5280 = vmatprep.subr.mxu0 0.0
    %5281 = vmatpush1.msra.mxu0 %v4445
    %5282 = vmatprep.subr.mxu0 0.0
    %5283 = vmatpush2.msra.mxu0 0.0
    %5284 = vmatprep.subr.mxu0 0.0
    %5285 = vmatpush2.msra.mxu0 0.0
    %5286 = vmatprep.subr.mxu0 0.0
    %5287 = vmatpush2.msra.mxu0 0.0
    %5288 = vmatprep.subr.mxu0 0.0
    %5289 = vmatpush2.msra.mxu0 0.0
    %5290 = vmatprep.subr.mxu0 0.0
    %5291 = vmatpush2.msra.mxu0 0.0
    %5292 = vmatprep.subr.mxu0 0.0
    %5293 = vmatpush2.msra.mxu0 0.0
    %5294 = vmatprep.subr.mxu0 0.0
    %5295 = vmatpush2.msra.mxu0 0.0
    %5296 = vmatprep.subr.mxu0 0.0
    %5297 = vmatpush2.msra.mxu0 0.0
    %5298 = vmatprep.subr.mxu0 0.0
    %5299 = vmatpush2.msra.mxu0 0.0
    %5300 = vmatprep.subr.mxu0 0.0
    %5301 = vmatpush2.msra.mxu0 0.0
    %5302 = vmatprep.subr.mxu0 0.0
    %5303 = vmatpush2.msra.mxu0 0.0
    %5304 = vmatprep.subr.mxu0 0.0
    %5305 = vmatpush2.msra.mxu0 0.0
    %5306 = vmatprep.subr.mxu0 0.0
    %5307 = vmatpush2.msra.mxu0 0.0
    %5308 = vmatprep.subr.mxu0 0.0
    %5309 = vmatpush2.msra.mxu0 0.0
    %5310 = vmatprep.subr.mxu0 0.0
    %5311 = vmatpush2.msra.mxu0 0.0
    %5312 = vmatprep.subr.mxu0 0.0
    %5313 = vmatpush2.msra.mxu0 0.0
    %5314 = vmatprep.mubr.f32.mxu0 0.0
    %5315 = vmatmul.mubr.f32.gmra.mxu0 %v5248
    %v5316 = vpop.f32.mrf.mxu0
    %v5317 = vadd.f32 0.0, %v5316
    %v5318 = vpop.f32.mrf.mxu0
    %5319 = vdwg.mxu0
    %v5321 = vsel %vm932, %v5168, 0
    %5323 = vmatprep.subr.mxu0 0.0
    %5324 = vmatpush1.msra.mxu0 0.0
    %5325 = vmatprep.subr.mxu0 0.0
    %5326 = vmatpush1.msra.mxu0 0.0
    %5327 = vmatprep.subr.mxu0 0.0
    %5328 = vmatpush1.msra.mxu0 0.0
    %5329 = vmatprep.subr.mxu0 0.0
    %5330 = vmatpush1.msra.mxu0 0.0
    %5331 = vmatprep.subr.mxu0 0.0
    %5332 = vmatpush1.msra.mxu0 0.0
    %5333 = vmatprep.subr.mxu0 0.0
    %5334 = vmatpush1.msra.mxu0 0.0
    %5335 = vmatprep.subr.mxu0 0.0
    %5336 = vmatpush1.msra.mxu0 0.0
    %5337 = vmatprep.subr.mxu0 0.0
    %5338 = vmatpush1.msra.mxu0 0.0
    %5339 = vmatprep.subr.mxu0 0.0
    %5340 = vmatpush1.msra.mxu0 0.0
    %5341 = vmatprep.subr.mxu0 0.0
    %5342 = vmatpush1.msra.mxu0 0.0
    %5343 = vmatprep.subr.mxu0 0.0
    %5344 = vmatpush1.msra.mxu0 0.0
    %5345 = vmatprep.subr.mxu0 0.0
    %5346 = vmatpush1.msra.mxu0 0.0
    %5347 = vmatprep.subr.mxu0 0.0
    %5348 = vmatpush1.msra.mxu0 0.0
    %5349 = vmatprep.subr.mxu0 0.0
    %5350 = vmatpush1.msra.mxu0 0.0
    %5351 = vmatprep.subr.mxu0 0.0
    %5352 = vmatpush1.msra.mxu0 0.0
    %5353 = vmatprep.subr.mxu0 0.0
    %5354 = vmatpush1.msra.mxu0 %v4450
    %5355 = vmatprep.subr.mxu0 0.0
    %5356 = vmatpush2.msra.mxu0 0.0
    %5357 = vmatprep.subr.mxu0 0.0
    %5358 = vmatpush2.msra.mxu0 0.0
    %5359 = vmatprep.subr.mxu0 0.0
    %5360 = vmatpush2.msra.mxu0 0.0
    %5361 = vmatprep.subr.mxu0 0.0
    %5362 = vmatpush2.msra.mxu0 0.0
    %5363 = vmatprep.subr.mxu0 0.0
    %5364 = vmatpush2.msra.mxu0 0.0
    %5365 = vmatprep.subr.mxu0 0.0
    %5366 = vmatpush2.msra.mxu0 0.0
    %5367 = vmatprep.subr.mxu0 0.0
    %5368 = vmatpush2.msra.mxu0 0.0
    %5369 = vmatprep.subr.mxu0 0.0
    %5370 = vmatpush2.msra.mxu0 0.0
    %5371 = vmatprep.subr.mxu0 0.0
    %5372 = vmatpush2.msra.mxu0 0.0
    %5373 = vmatprep.subr.mxu0 0.0
    %5374 = vmatpush2.msra.mxu0 0.0
    %5375 = vmatprep.subr.mxu0 0.0
    %5376 = vmatpush2.msra.mxu0 0.0
    %5377 = vmatprep.subr.mxu0 0.0
    %5378 = vmatpush2.msra.mxu0 0.0
    %5379 = vmatprep.subr.mxu0 0.0
    %5380 = vmatpush2.msra.mxu0 0.0
    %5381 = vmatprep.subr.mxu0 0.0
    %5382 = vmatpush2.msra.mxu0 0.0
    %5383 = vmatprep.subr.mxu0 0.0
    %5384 = vmatpush2.msra.mxu0 0.0
    %5385 = vmatprep.subr.mxu0 0.0
    %5386 = vmatpush2.msra.mxu0 0.0
    %5387 = vmatprep.mubr.f32.mxu0 0.0
    %5388 = vmatmul.mubr.f32.gmra.mxu0 %v5321
    %v5389 = vpop.f32.mrf.mxu0
    %v5390 = vadd.f32 0.0, %v5389
    %v5391 = vpop.f32.mrf.mxu0
    %5392 = vdwg.mxu0
    %v5394 = vsel %vm932, %v5169, 0
    %5396 = vmatprep.subr.mxu0 0.0
    %5397 = vmatpush1.msra.mxu0 0.0
    %5398 = vmatprep.subr.mxu0 0.0
    %5399 = vmatpush1.msra.mxu0 0.0
    %5400 = vmatprep.subr.mxu0 0.0
    %5401 = vmatpush1.msra.mxu0 0.0
    %5402 = vmatprep.subr.mxu0 0.0
    %5403 = vmatpush1.msra.mxu0 0.0
    %5404 = vmatprep.subr.mxu0 0.0
    %5405 = vmatpush1.msra.mxu0 0.0
    %5406 = vmatprep.subr.mxu0 0.0
    %5407 = vmatpush1.msra.mxu0 0.0
    %5408 = vmatprep.subr.mxu0 0.0
    %5409 = vmatpush1.msra.mxu0 0.0
    %5410 = vmatprep.subr.mxu0 0.0
    %5411 = vmatpush1.msra.mxu0 0.0
    %5412 = vmatprep.subr.mxu0 0.0
    %5413 = vmatpush1.msra.mxu0 0.0
    %5414 = vmatprep.subr.mxu0 0.0
    %5415 = vmatpush1.msra.mxu0 0.0
    %5416 = vmatprep.subr.mxu0 0.0
    %5417 = vmatpush1.msra.mxu0 0.0
    %5418 = vmatprep.subr.mxu0 0.0
    %5419 = vmatpush1.msra.mxu0 0.0
    %5420 = vmatprep.subr.mxu0 0.0
    %5421 = vmatpush1.msra.mxu0 0.0
    %5422 = vmatprep.subr.mxu0 0.0
    %5423 = vmatpush1.msra.mxu0 0.0
    %5424 = vmatprep.subr.mxu0 0.0
    %5425 = vmatpush1.msra.mxu0 0.0
    %5426 = vmatprep.subr.mxu0 0.0
    %5427 = vmatpush1.msra.mxu0 %v4455
    %5428 = vmatprep.subr.mxu0 0.0
    %5429 = vmatpush2.msra.mxu0 0.0
    %5430 = vmatprep.subr.mxu0 0.0
    %5431 = vmatpush2.msra.mxu0 0.0
    %5432 = vmatprep.subr.mxu0 0.0
    %5433 = vmatpush2.msra.mxu0 0.0
    %5434 = vmatprep.subr.mxu0 0.0
    %5435 = vmatpush2.msra.mxu0 0.0
    %5436 = vmatprep.subr.mxu0 0.0
    %5437 = vmatpush2.msra.mxu0 0.0
    %5438 = vmatprep.subr.mxu0 0.0
    %5439 = vmatpush2.msra.mxu0 0.0
    %5440 = vmatprep.subr.mxu0 0.0
    %5441 = vmatpush2.msra.mxu0 0.0
    %5442 = vmatprep.subr.mxu0 0.0
    %5443 = vmatpush2.msra.mxu0 0.0
    %5444 = vmatprep.subr.mxu0 0.0
    %5445 = vmatpush2.msra.mxu0 0.0
    %5446 = vmatprep.subr.mxu0 0.0
    %5447 = vmatpush2.msra.mxu0 0.0
    %5448 = vmatprep.subr.mxu0 0.0
    %5449 = vmatpush2.msra.mxu0 0.0
    %5450 = vmatprep.subr.mxu0 0.0
    %5451 = vmatpush2.msra.mxu0 0.0
    %5452 = vmatprep.subr.mxu0 0.0
    %5453 = vmatpush2.msra.mxu0 0.0
    %5454 = vmatprep.subr.mxu0 0.0
    %5455 = vmatpush2.msra.mxu0 0.0
    %5456 = vmatprep.subr.mxu0 0.0
    %5457 = vmatpush2.msra.mxu0 0.0
    %5458 = vmatprep.subr.mxu0 0.0
    %5459 = vmatpush2.msra.mxu0 0.0
    %5460 = vmatprep.mubr.f32.mxu0 0.0
    %5461 = vmatmul.mubr.f32.gmra.mxu0 %v5394
    %v5462 = vpop.f32.mrf.mxu0
    %v5463 = vadd.f32 0.0, %v5462
    %v5464 = vpop.f32.mrf.mxu0
    %5465 = vdwg.mxu0
    %v5467 = vsel %vm932, %v5170, 0
    %5469 = vmatprep.subr.mxu0 0.0
    %5470 = vmatpush1.msra.mxu0 0.0
    %5471 = vmatprep.subr.mxu0 0.0
    %5472 = vmatpush1.msra.mxu0 0.0
    %5473 = vmatprep.subr.mxu0 0.0
    %5474 = vmatpush1.msra.mxu0 0.0
    %5475 = vmatprep.subr.mxu0 0.0
    %5476 = vmatpush1.msra.mxu0 0.0
    %5477 = vmatprep.subr.mxu0 0.0
    %5478 = vmatpush1.msra.mxu0 0.0
    %5479 = vmatprep.subr.mxu0 0.0
    %5480 = vmatpush1.msra.mxu0 0.0
    %5481 = vmatprep.subr.mxu0 0.0
    %5482 = vmatpush1.msra.mxu0 0.0
    %5483 = vmatprep.subr.mxu0 0.0
    %5484 = vmatpush1.msra.mxu0 0.0
    %5485 = vmatprep.subr.mxu0 0.0
    %5486 = vmatpush1.msra.mxu0 0.0
    %5487 = vmatprep.subr.mxu0 0.0
    %5488 = vmatpush1.msra.mxu0 0.0
    %5489 = vmatprep.subr.mxu0 0.0
    %5490 = vmatpush1.msra.mxu0 0.0
    %5491 = vmatprep.subr.mxu0 0.0
    %5492 = vmatpush1.msra.mxu0 0.0
    %5493 = vmatprep.subr.mxu0 0.0
    %5494 = vmatpush1.msra.mxu0 0.0
    %5495 = vmatprep.subr.mxu0 0.0
    %5496 = vmatpush1.msra.mxu0 0.0
    %5497 = vmatprep.subr.mxu0 0.0
    %5498 = vmatpush1.msra.mxu0 0.0
    %5499 = vmatprep.subr.mxu0 0.0
    %5500 = vmatpush1.msra.mxu0 %v4460
    %5501 = vmatprep.subr.mxu0 0.0
    %5502 = vmatpush2.msra.mxu0 0.0
    %5503 = vmatprep.subr.mxu0 0.0
    %5504 = vmatpush2.msra.mxu0 0.0
    %5505 = vmatprep.subr.mxu0 0.0
    %5506 = vmatpush2.msra.mxu0 0.0
    %5507 = vmatprep.subr.mxu0 0.0
    %5508 = vmatpush2.msra.mxu0 0.0
    %5509 = vmatprep.subr.mxu0 0.0
    %5510 = vmatpush2.msra.mxu0 0.0
    %5511 = vmatprep.subr.mxu0 0.0
    %5512 = vmatpush2.msra.mxu0 0.0
    %5513 = vmatprep.subr.mxu0 0.0
    %5514 = vmatpush2.msra.mxu0 0.0
    %5515 = vmatprep.subr.mxu0 0.0
    %5516 = vmatpush2.msra.mxu0 0.0
    %5517 = vmatprep.subr.mxu0 0.0
    %5518 = vmatpush2.msra.mxu0 0.0
    %5519 = vmatprep.subr.mxu0 0.0
    %5520 = vmatpush2.msra.mxu0 0.0
    %5521 = vmatprep.subr.mxu0 0.0
    %5522 = vmatpush2.msra.mxu0 0.0
    %5523 = vmatprep.subr.mxu0 0.0
    %5524 = vmatpush2.msra.mxu0 0.0
    %5525 = vmatprep.subr.mxu0 0.0
    %5526 = vmatpush2.msra.mxu0 0.0
    %5527 = vmatprep.subr.mxu0 0.0
    %5528 = vmatpush2.msra.mxu0 0.0
    %5529 = vmatprep.subr.mxu0 0.0
    %5530 = vmatpush2.msra.mxu0 0.0
    %5531 = vmatprep.subr.mxu0 0.0
    %5532 = vmatpush2.msra.mxu0 0.0
    %5533 = vmatprep.mubr.f32.mxu0 0.0
    %5534 = vmatmul.mubr.f32.gmra.mxu0 %v5467
    %v5535 = vpop.f32.mrf.mxu0
    %v5536 = vadd.f32 0.0, %v5535
    %v5537 = vpop.f32.mrf.mxu0
    %5538 = vdwg.mxu0
    %v5540 = vsel %vm932, %v5171, 0
    %5542 = vmatprep.subr.mxu0 0.0
    %5543 = vmatpush1.msra.mxu0 0.0
    %5544 = vmatprep.subr.mxu0 0.0
    %5545 = vmatpush1.msra.mxu0 0.0
    %5546 = vmatprep.subr.mxu0 0.0
    %5547 = vmatpush1.msra.mxu0 0.0
    %5548 = vmatprep.subr.mxu0 0.0
    %5549 = vmatpush1.msra.mxu0 0.0
    %5550 = vmatprep.subr.mxu0 0.0
    %5551 = vmatpush1.msra.mxu0 0.0
    %5552 = vmatprep.subr.mxu0 0.0
    %5553 = vmatpush1.msra.mxu0 0.0
    %5554 = vmatprep.subr.mxu0 0.0
    %5555 = vmatpush1.msra.mxu0 0.0
    %5556 = vmatprep.subr.mxu0 0.0
    %5557 = vmatpush1.msra.mxu0 0.0
    %5558 = vmatprep.subr.mxu0 0.0
    %5559 = vmatpush1.msra.mxu0 0.0
    %5560 = vmatprep.subr.mxu0 0.0
    %5561 = vmatpush1.msra.mxu0 0.0
    %5562 = vmatprep.subr.mxu0 0.0
    %5563 = vmatpush1.msra.mxu0 0.0
    %5564 = vmatprep.subr.mxu0 0.0
    %5565 = vmatpush1.msra.mxu0 0.0
    %5566 = vmatprep.subr.mxu0 0.0
    %5567 = vmatpush1.msra.mxu0 0.0
    %5568 = vmatprep.subr.mxu0 0.0
    %5569 = vmatpush1.msra.mxu0 0.0
    %5570 = vmatprep.subr.mxu0 0.0
    %5571 = vmatpush1.msra.mxu0 0.0
    %5572 = vmatprep.subr.mxu0 0.0
    %5573 = vmatpush1.msra.mxu0 %v4465
    %5574 = vmatprep.subr.mxu0 0.0
    %5575 = vmatpush2.msra.mxu0 0.0
    %5576 = vmatprep.subr.mxu0 0.0
    %5577 = vmatpush2.msra.mxu0 0.0
    %5578 = vmatprep.subr.mxu0 0.0
    %5579 = vmatpush2.msra.mxu0 0.0
    %5580 = vmatprep.subr.mxu0 0.0
    %5581 = vmatpush2.msra.mxu0 0.0
    %5582 = vmatprep.subr.mxu0 0.0
    %5583 = vmatpush2.msra.mxu0 0.0
    %5584 = vmatprep.subr.mxu0 0.0
    %5585 = vmatpush2.msra.mxu0 0.0
    %5586 = vmatprep.subr.mxu0 0.0
    %5587 = vmatpush2.msra.mxu0 0.0
    %5588 = vmatprep.subr.mxu0 0.0
    %5589 = vmatpush2.msra.mxu0 0.0
    %5590 = vmatprep.subr.mxu0 0.0
    %5591 = vmatpush2.msra.mxu0 0.0
    %5592 = vmatprep.subr.mxu0 0.0
    %5593 = vmatpush2.msra.mxu0 0.0
    %5594 = vmatprep.subr.mxu0 0.0
    %5595 = vmatpush2.msra.mxu0 0.0
    %5596 = vmatprep.subr.mxu0 0.0
    %5597 = vmatpush2.msra.mxu0 0.0
    %5598 = vmatprep.subr.mxu0 0.0
    %5599 = vmatpush2.msra.mxu0 0.0
    %5600 = vmatprep.subr.mxu0 0.0
    %5601 = vmatpush2.msra.mxu0 0.0
    %5602 = vmatprep.subr.mxu0 0.0
    %5603 = vmatpush2.msra.mxu0 0.0
    %5604 = vmatprep.subr.mxu0 0.0
    %5605 = vmatpush2.msra.mxu0 0.0
    %5606 = vmatprep.mubr.f32.mxu0 0.0
    %5607 = vmatmul.mubr.f32.gmra.mxu0 %v5540
    %v5608 = vpop.f32.mrf.mxu0
    %v5609 = vadd.f32 0.0, %v5608
    %v5610 = vpop.f32.mrf.mxu0
    %5611 = vdwg.mxu0
    %v5613 = vsel %vm932, %v5172, 0
    %5615 = vmatprep.subr.mxu0 0.0
    %5616 = vmatpush1.msra.mxu0 0.0
    %5617 = vmatprep.subr.mxu0 0.0
    %5618 = vmatpush1.msra.mxu0 0.0
    %5619 = vmatprep.subr.mxu0 0.0
    %5620 = vmatpush1.msra.mxu0 0.0
    %5621 = vmatprep.subr.mxu0 0.0
    %5622 = vmatpush1.msra.mxu0 0.0
    %5623 = vmatprep.subr.mxu0 0.0
    %5624 = vmatpush1.msra.mxu0 0.0
    %5625 = vmatprep.subr.mxu0 0.0
    %5626 = vmatpush1.msra.mxu0 0.0
    %5627 = vmatprep.subr.mxu0 0.0
    %5628 = vmatpush1.msra.mxu0 0.0
    %5629 = vmatprep.subr.mxu0 0.0
    %5630 = vmatpush1.msra.mxu0 0.0
    %5631 = vmatprep.subr.mxu0 0.0
    %5632 = vmatpush1.msra.mxu0 0.0
    %5633 = vmatprep.subr.mxu0 0.0
    %5634 = vmatpush1.msra.mxu0 0.0
    %5635 = vmatprep.subr.mxu0 0.0
    %5636 = vmatpush1.msra.mxu0 0.0
    %5637 = vmatprep.subr.mxu0 0.0
    %5638 = vmatpush1.msra.mxu0 0.0
    %5639 = vmatprep.subr.mxu0 0.0
    %5640 = vmatpush1.msra.mxu0 0.0
    %5641 = vmatprep.subr.mxu0 0.0
    %5642 = vmatpush1.msra.mxu0 0.0
    %5643 = vmatprep.subr.mxu0 0.0
    %5644 = vmatpush1.msra.mxu0 0.0
    %5645 = vmatprep.subr.mxu0 0.0
    %5646 = vmatpush1.msra.mxu0 %v4470
    %5647 = vmatprep.subr.mxu0 0.0
    %5648 = vmatpush2.msra.mxu0 0.0
    %5649 = vmatprep.subr.mxu0 0.0
    %5650 = vmatpush2.msra.mxu0 0.0
    %5651 = vmatprep.subr.mxu0 0.0
    %5652 = vmatpush2.msra.mxu0 0.0
    %5653 = vmatprep.subr.mxu0 0.0
    %5654 = vmatpush2.msra.mxu0 0.0
    %5655 = vmatprep.subr.mxu0 0.0
    %5656 = vmatpush2.msra.mxu0 0.0
    %5657 = vmatprep.subr.mxu0 0.0
    %5658 = vmatpush2.msra.mxu0 0.0
    %5659 = vmatprep.subr.mxu0 0.0
    %5660 = vmatpush2.msra.mxu0 0.0
    %5661 = vmatprep.subr.mxu0 0.0
    %5662 = vmatpush2.msra.mxu0 0.0
    %5663 = vmatprep.subr.mxu0 0.0
    %5664 = vmatpush2.msra.mxu0 0.0
    %5665 = vmatprep.subr.mxu0 0.0
    %5666 = vmatpush2.msra.mxu0 0.0
    %5667 = vmatprep.subr.mxu0 0.0
    %5668 = vmatpush2.msra.mxu0 0.0
    %5669 = vmatprep.subr.mxu0 0.0
    %5670 = vmatpush2.msra.mxu0 0.0
    %5671 = vmatprep.subr.mxu0 0.0
    %5672 = vmatpush2.msra.mxu0 0.0
    %5673 = vmatprep.subr.mxu0 0.0
    %5674 = vmatpush2.msra.mxu0 0.0
    %5675 = vmatprep.subr.mxu0 0.0
    %5676 = vmatpush2.msra.mxu0 0.0
    %5677 = vmatprep.subr.mxu0 0.0
    %5678 = vmatpush2.msra.mxu0 0.0
    %5679 = vmatprep.mubr.f32.mxu0 0.0
    %5680 = vmatmul.mubr.f32.gmra.mxu0 %v5613
    %v5681 = vpop.f32.mrf.mxu0
    %v5682 = vadd.f32 0.0, %v5681
    %v5683 = vpop.f32.mrf.mxu0
    %5684 = vdwg.mxu0
    %v5686 = vsel %vm932, %v5173, 0
    %5688 = vmatprep.subr.mxu0 0.0
    %5689 = vmatpush1.msra.mxu0 0.0
    %5690 = vmatprep.subr.mxu0 0.0
    %5691 = vmatpush1.msra.mxu0 0.0
    %5692 = vmatprep.subr.mxu0 0.0
    %5693 = vmatpush1.msra.mxu0 0.0
    %5694 = vmatprep.subr.mxu0 0.0
    %5695 = vmatpush1.msra.mxu0 0.0
    %5696 = vmatprep.subr.mxu0 0.0
    %5697 = vmatpush1.msra.mxu0 0.0
    %5698 = vmatprep.subr.mxu0 0.0
    %5699 = vmatpush1.msra.mxu0 0.0
    %5700 = vmatprep.subr.mxu0 0.0
    %5701 = vmatpush1.msra.mxu0 0.0
    %5702 = vmatprep.subr.mxu0 0.0
    %5703 = vmatpush1.msra.mxu0 0.0
    %5704 = vmatprep.subr.mxu0 0.0
    %5705 = vmatpush1.msra.mxu0 0.0
    %5706 = vmatprep.subr.mxu0 0.0
    %5707 = vmatpush1.msra.mxu0 0.0
    %5708 = vmatprep.subr.mxu0 0.0
    %5709 = vmatpush1.msra.mxu0 0.0
    %5710 = vmatprep.subr.mxu0 0.0
    %5711 = vmatpush1.msra.mxu0 0.0
    %5712 = vmatprep.subr.mxu0 0.0
    %5713 = vmatpush1.msra.mxu0 0.0
    %5714 = vmatprep.subr.mxu0 0.0
    %5715 = vmatpush1.msra.mxu0 0.0
    %5716 = vmatprep.subr.mxu0 0.0
    %5717 = vmatpush1.msra.mxu0 0.0
    %5718 = vmatprep.subr.mxu0 0.0
    %5719 = vmatpush1.msra.mxu0 %v4475
    %5720 = vmatprep.subr.mxu0 0.0
    %5721 = vmatpush2.msra.mxu0 0.0
    %5722 = vmatprep.subr.mxu0 0.0
    %5723 = vmatpush2.msra.mxu0 0.0
    %5724 = vmatprep.subr.mxu0 0.0
    %5725 = vmatpush2.msra.mxu0 0.0
    %5726 = vmatprep.subr.mxu0 0.0
    %5727 = vmatpush2.msra.mxu0 0.0
    %5728 = vmatprep.subr.mxu0 0.0
    %5729 = vmatpush2.msra.mxu0 0.0
    %5730 = vmatprep.subr.mxu0 0.0
    %5731 = vmatpush2.msra.mxu0 0.0
    %5732 = vmatprep.subr.mxu0 0.0
    %5733 = vmatpush2.msra.mxu0 0.0
    %5734 = vmatprep.subr.mxu0 0.0
    %5735 = vmatpush2.msra.mxu0 0.0
    %5736 = vmatprep.subr.mxu0 0.0
    %5737 = vmatpush2.msra.mxu0 0.0
    %5738 = vmatprep.subr.mxu0 0.0
    %5739 = vmatpush2.msra.mxu0 0.0
    %5740 = vmatprep.subr.mxu0 0.0
    %5741 = vmatpush2.msra.mxu0 0.0
    %5742 = vmatprep.subr.mxu0 0.0
    %5743 = vmatpush2.msra.mxu0 0.0
    %5744 = vmatprep.subr.mxu0 0.0
    %5745 = vmatpush2.msra.mxu0 0.0
    %5746 = vmatprep.subr.mxu0 0.0
    %5747 = vmatpush2.msra.mxu0 0.0
    %5748 = vmatprep.subr.mxu0 0.0
    %5749 = vmatpush2.msra.mxu0 0.0
    %5750 = vmatprep.subr.mxu0 0.0
    %5751 = vmatpush2.msra.mxu0 0.0
    %5752 = vmatprep.mubr.f32.mxu0 0.0
    %5753 = vmatmul.mubr.f32.gmra.mxu0 %v5686
    %v5754 = vpop.f32.mrf.mxu0
    %v5755 = vadd.f32 0.0, %v5754
    %v5756 = vpop.f32.mrf.mxu0
    %5757 = vdwg.mxu0
    %s5758 = scalar_lea.vmem %s10, 16
    %v5759 = vld [vmem:[%s5758] sm:$0xff]
    %v5761 = vsel %vm932, %v5244, 0
    %v5764 = vsel %vm932, %v5317, 0
    %v5767 = vsel %vm932, %v5390, 0
    %v5770 = vsel %vm932, %v5463, 0
    %v5773 = vsel %vm932, %v5536, 0
    %v5776 = vsel %vm932, %v5609, 0
    %v5779 = vsel %vm932, %v5682, 0
    %v5782 = vsel %vm932, %v5755, 0
    %5784 = vmatprep.subr.mxu0 0.0
    %5785 = vmatpush1.msra.mxu0 0.0
    %5786 = vmatprep.subr.mxu0 0.0
    %5787 = vmatpush1.msra.mxu0 0.0
    %5788 = vmatprep.subr.mxu0 0.0
    %5789 = vmatpush1.msra.mxu0 0.0
    %5790 = vmatprep.subr.mxu0 0.0
    %5791 = vmatpush1.msra.mxu0 0.0
    %5792 = vmatprep.subr.mxu0 0.0
    %5793 = vmatpush1.msra.mxu0 0.0
    %5794 = vmatprep.subr.mxu0 0.0
    %5795 = vmatpush1.msra.mxu0 0.0
    %5796 = vmatprep.subr.mxu0 0.0
    %5797 = vmatpush1.msra.mxu0 0.0
    %5798 = vmatprep.subr.mxu0 0.0
    %5799 = vmatpush1.msra.mxu0 0.0
    %5800 = vmatprep.subr.mxu0 0.0
    %5801 = vmatpush1.msra.mxu0 0.0
    %5802 = vmatprep.subr.mxu0 0.0
    %5803 = vmatpush1.msra.mxu0 0.0
    %5804 = vmatprep.subr.mxu0 0.0
    %5805 = vmatpush1.msra.mxu0 0.0
    %5806 = vmatprep.subr.mxu0 0.0
    %5807 = vmatpush1.msra.mxu0 0.0
    %5808 = vmatprep.subr.mxu0 0.0
    %5809 = vmatpush1.msra.mxu0 0.0
    %5810 = vmatprep.subr.mxu0 0.0
    %5811 = vmatpush1.msra.mxu0 0.0
    %5812 = vmatprep.subr.mxu0 0.0
    %5813 = vmatpush1.msra.mxu0 0.0
    %5814 = vmatprep.subr.mxu0 0.0
    %5815 = vmatpush1.msra.mxu0 %v5759
    %5816 = vmatprep.subr.mxu0 0.0
    %5817 = vmatpush2.msra.mxu0 0.0
    %5818 = vmatprep.subr.mxu0 0.0
    %5819 = vmatpush2.msra.mxu0 0.0
    %5820 = vmatprep.subr.mxu0 0.0
    %5821 = vmatpush2.msra.mxu0 0.0
    %5822 = vmatprep.subr.mxu0 0.0
    %5823 = vmatpush2.msra.mxu0 0.0
    %5824 = vmatprep.subr.mxu0 0.0
    %5825 = vmatpush2.msra.mxu0 0.0
    %5826 = vmatprep.subr.mxu0 0.0
    %5827 = vmatpush2.msra.mxu0 0.0
    %5828 = vmatprep.subr.mxu0 0.0
    %5829 = vmatpush2.msra.mxu0 0.0
    %5830 = vmatprep.subr.mxu0 0.0
    %5831 = vmatpush2.msra.mxu0 0.0
    %5832 = vmatprep.subr.mxu0 0.0
    %5833 = vmatpush2.msra.mxu0 0.0
    %5834 = vmatprep.subr.mxu0 0.0
    %5835 = vmatpush2.msra.mxu0 0.0
    %5836 = vmatprep.subr.mxu0 0.0
    %5837 = vmatpush2.msra.mxu0 0.0
    %5838 = vmatprep.subr.mxu0 0.0
    %5839 = vmatpush2.msra.mxu0 0.0
    %5840 = vmatprep.subr.mxu0 0.0
    %5841 = vmatpush2.msra.mxu0 0.0
    %5842 = vmatprep.subr.mxu0 0.0
    %5843 = vmatpush2.msra.mxu0 0.0
    %5844 = vmatprep.subr.mxu0 0.0
    %5845 = vmatpush2.msra.mxu0 0.0
    %5846 = vmatprep.subr.mxu0 0.0
    %5847 = vmatpush2.msra.mxu0 0.0
    %5848 = vmatprep.mubr.f32.mxu0 0.0
    %5849 = vmatmul.mubr.f32.gmra.mxu0 %v5761
    %v5850 = vpop.f32.mrf.mxu0
    %v5851 = vadd.f32 0.0, %v5850
    %v5852 = vpop.f32.mrf.mxu0
    %5853 = vmatprep.mubr.f32.mxu0 0.0
    %5854 = vmatmul.mubr.f32.gmra.mxu0 %v5764
    %v5855 = vpop.f32.mrf.mxu0
    %v5856 = vadd.f32 0.0, %v5855
    %v5857 = vpop.f32.mrf.mxu0
    %5858 = vmatprep.mubr.f32.mxu0 0.0
    %5859 = vmatmul.mubr.f32.gmra.mxu0 %v5767
    %v5860 = vpop.f32.mrf.mxu0
    %v5861 = vadd.f32 0.0, %v5860
    %v5862 = vpop.f32.mrf.mxu0
    %5863 = vmatprep.mubr.f32.mxu0 0.0
    %5864 = vmatmul.mubr.f32.gmra.mxu0 %v5770
    %v5865 = vpop.f32.mrf.mxu0
    %v5866 = vadd.f32 0.0, %v5865
    %v5867 = vpop.f32.mrf.mxu0
    %5868 = vmatprep.mubr.f32.mxu0 0.0
    %5869 = vmatmul.mubr.f32.gmra.mxu0 %v5773
    %v5870 = vpop.f32.mrf.mxu0
    %v5871 = vadd.f32 0.0, %v5870
    %v5872 = vpop.f32.mrf.mxu0
    %5873 = vmatprep.mubr.f32.mxu0 0.0
    %5874 = vmatmul.mubr.f32.gmra.mxu0 %v5776
    %v5875 = vpop.f32.mrf.mxu0
    %v5876 = vadd.f32 0.0, %v5875
    %v5877 = vpop.f32.mrf.mxu0
    %5878 = vmatprep.mubr.f32.mxu0 0.0
    %5879 = vmatmul.mubr.f32.gmra.mxu0 %v5779
    %v5880 = vpop.f32.mrf.mxu0
    %v5881 = vadd.f32 0.0, %v5880
    %v5882 = vpop.f32.mrf.mxu0
    %5883 = vmatprep.mubr.f32.mxu0 0.0
    %5884 = vmatmul.mubr.f32.gmra.mxu0 %v5782
    %v5885 = vpop.f32.mrf.mxu0
    %v5886 = vadd.f32 0.0, %v5885
    %v5887 = vpop.f32.mrf.mxu0
    %5888 = vdwg.mxu0
    %v5889 = vadd.f32 %v4116, %v5851
    %v5890 = vadd.f32 %v4117, %v5856
    %v5891 = vadd.f32 %v4118, %v5861
    %v5892 = vadd.f32 %v4119, %v5866
    %v5893 = vadd.f32 %v4120, %v5871
    %v5894 = vadd.f32 %v4121, %v5876
    %v5895 = vadd.f32 %v4122, %v5881
    %v5896 = vadd.f32 %v4123, %v5886
    %s5897 = scalar_lea.vmem %s4, 96
    %v5898 = vld [vmem:[%s5897] sm:$0xff]
    %v5899 = vld [vmem:[%s5897 + $0x8] sm:$0xff]
    %v5900 = vld [vmem:[%s5897 + $0x10] sm:$0xff]
    %v5901 = vld [vmem:[%s5897 + $0x18] sm:$0xff]
    %s5902 = scalar_lea.vmem %s5, 3
    %v5903 = vld [vmem:[%s5902] sm:$0x1]
    %v5905 = vlaneseq
    %v5906 = vshrl.u32 %v5905, 7
    %v5907 = vsub.s32 0, %v5906
    %v5908 = vrot.slane %v5903, %v5907
    %5910 = vmatprep.subr.mxu0 0.0
    %5911 = vmatpush1.msra.mxu0 0.0
    %5912 = vmatprep.subr.mxu0 0.0
    %5913 = vmatpush1.msra.mxu0 0.0
    %5914 = vmatprep.subr.mxu0 0.0
    %5915 = vmatpush1.msra.mxu0 0.0
    %5916 = vmatprep.subr.mxu0 0.0
    %5917 = vmatpush1.msra.mxu0 0.0
    %5918 = vmatprep.subr.mxu0 0.0
    %5919 = vmatpush1.msra.mxu0 0.0
    %5920 = vmatprep.subr.mxu0 0.0
    %5921 = vmatpush1.msra.mxu0 0.0
    %5922 = vmatprep.subr.mxu0 0.0
    %5923 = vmatpush1.msra.mxu0 0.0
    %5924 = vmatprep.subr.mxu0 0.0
    %5925 = vmatpush1.msra.mxu0 0.0
    %5926 = vmatprep.subr.mxu0 0.0
    %5927 = vmatpush1.msra.mxu0 0.0
    %5928 = vmatprep.subr.mxu0 0.0
    %5929 = vmatpush1.msra.mxu0 0.0
    %5930 = vmatprep.subr.mxu0 0.0
    %5931 = vmatpush1.msra.mxu0 0.0
    %5932 = vmatprep.subr.mxu0 0.0
    %5933 = vmatpush1.msra.mxu0 0.0
    %5934 = vmatprep.subr.mxu0 0.0
    %5935 = vmatpush1.msra.mxu0 %v5901
    %5936 = vmatprep.subr.mxu0 0.0
    %5937 = vmatpush1.msra.mxu0 %v5900
    %5938 = vmatprep.subr.mxu0 0.0
    %5939 = vmatpush1.msra.mxu0 %v5899
    %5940 = vmatprep.subr.mxu0 0.0
    %5941 = vmatpush1.msra.mxu0 %v5898
    %5942 = vmatprep.subr.mxu0 0.0
    %5943 = vmatpush2.msra.mxu0 0.0
    %5944 = vmatprep.subr.mxu0 0.0
    %5945 = vmatpush2.msra.mxu0 0.0
    %5946 = vmatprep.subr.mxu0 0.0
    %5947 = vmatpush2.msra.mxu0 0.0
    %5948 = vmatprep.subr.mxu0 0.0
    %5949 = vmatpush2.msra.mxu0 0.0
    %5950 = vmatprep.subr.mxu0 0.0
    %5951 = vmatpush2.msra.mxu0 0.0
    %5952 = vmatprep.subr.mxu0 0.0
    %5953 = vmatpush2.msra.mxu0 0.0
    %5954 = vmatprep.subr.mxu0 0.0
    %5955 = vmatpush2.msra.mxu0 0.0
    %5956 = vmatprep.subr.mxu0 0.0
    %5957 = vmatpush2.msra.mxu0 0.0
    %5958 = vmatprep.subr.mxu0 0.0
    %5959 = vmatpush2.msra.mxu0 0.0
    %5960 = vmatprep.subr.mxu0 0.0
    %5961 = vmatpush2.msra.mxu0 0.0
    %5962 = vmatprep.subr.mxu0 0.0
    %5963 = vmatpush2.msra.mxu0 0.0
    %5964 = vmatprep.subr.mxu0 0.0
    %5965 = vmatpush2.msra.mxu0 0.0
    %5966 = vmatprep.subr.mxu0 0.0
    %5967 = vmatpush2.msra.mxu0 0.0
    %5968 = vmatprep.subr.mxu0 0.0
    %5969 = vmatpush2.msra.mxu0 0.0
    %5970 = vmatprep.subr.mxu0 0.0
    %5971 = vmatpush2.msra.mxu0 0.0
    %5972 = vmatprep.subr.mxu0 0.0
    %5973 = vmatpush2.msra.mxu0 0.0
    %5974 = vmatprep.mubr.f32.mxu0 0.0
    %5975 = vmatmul.mubr.f32.gmra.mxu0 %v524
    %v5976 = vpop.f32.mrf.mxu0
    %v5977 = vadd.f32 %v5908, %v5976
    %v5978 = vpop.f32.mrf.mxu0
    %5979 = vmatprep.mubr.f32.mxu0 0.0
    %5980 = vmatmul.mubr.f32.gmra.mxu0 %v527
    %v5981 = vpop.f32.mrf.mxu0
    %v5982 = vadd.f32 %v5908, %v5981
    %v5983 = vpop.f32.mrf.mxu0
    %5984 = vmatprep.mubr.f32.mxu0 0.0
    %5985 = vmatmul.mubr.f32.gmra.mxu0 %v530
    %v5986 = vpop.f32.mrf.mxu0
    %v5987 = vadd.f32 %v5908, %v5986
    %v5988 = vpop.f32.mrf.mxu0
    %5989 = vmatprep.mubr.f32.mxu0 0.0
    %5990 = vmatmul.mubr.f32.gmra.mxu0 %v533
    %v5991 = vpop.f32.mrf.mxu0
    %v5992 = vadd.f32 %v5908, %v5991
    %v5993 = vpop.f32.mrf.mxu0
    %5994 = vmatprep.mubr.f32.mxu0 0.0
    %5995 = vmatmul.mubr.f32.gmra.mxu0 %v536
    %v5996 = vpop.f32.mrf.mxu0
    %v5997 = vadd.f32 %v5908, %v5996
    %v5998 = vpop.f32.mrf.mxu0
    %5999 = vmatprep.mubr.f32.mxu0 0.0
    %6000 = vmatmul.mubr.f32.gmra.mxu0 %v539
    %v6001 = vpop.f32.mrf.mxu0
    %v6002 = vadd.f32 %v5908, %v6001
    %v6003 = vpop.f32.mrf.mxu0
    %6004 = vmatprep.mubr.f32.mxu0 0.0
    %6005 = vmatmul.mubr.f32.gmra.mxu0 %v542
    %v6006 = vpop.f32.mrf.mxu0
    %v6007 = vadd.f32 %v5908, %v6006
    %v6008 = vpop.f32.mrf.mxu0
    %6009 = vmatprep.mubr.f32.mxu0 0.0
    %6010 = vmatmul.mubr.f32.gmra.mxu0 %v545
    %v6011 = vpop.f32.mrf.mxu0
    %v6012 = vadd.f32 %v5908, %v6011
    %v6013 = vpop.f32.mrf.mxu0
    %6014 = vdwg.mxu0
    %s6015 = scalar_lea.vmem %s6, 96
    %v6016 = vld [vmem:[%s6015] sm:$0xff]
    %v6017 = vld [vmem:[%s6015 + $0x8] sm:$0xff]
    %v6018 = vld [vmem:[%s6015 + $0x10] sm:$0xff]
    %v6019 = vld [vmem:[%s6015 + $0x18] sm:$0xff]
    %s6020 = scalar_lea.vmem %s7, 3
    %v6021 = vld [vmem:[%s6020] sm:$0x1]
    %v6023 = vlaneseq
    %v6024 = vshrl.u32 %v6023, 7
    %v6025 = vsub.s32 0, %v6024
    %v6026 = vrot.slane %v6021, %v6025
    %6028 = vmatprep.subr.mxu0 0.0
    %6029 = vmatpush1.msra.mxu0 0.0
    %6030 = vmatprep.subr.mxu0 0.0
    %6031 = vmatpush1.msra.mxu0 0.0
    %6032 = vmatprep.subr.mxu0 0.0
    %6033 = vmatpush1.msra.mxu0 0.0
    %6034 = vmatprep.subr.mxu0 0.0
    %6035 = vmatpush1.msra.mxu0 0.0
    %6036 = vmatprep.subr.mxu0 0.0
    %6037 = vmatpush1.msra.mxu0 0.0
    %6038 = vmatprep.subr.mxu0 0.0
    %6039 = vmatpush1.msra.mxu0 0.0
    %6040 = vmatprep.subr.mxu0 0.0
    %6041 = vmatpush1.msra.mxu0 0.0
    %6042 = vmatprep.subr.mxu0 0.0
    %6043 = vmatpush1.msra.mxu0 0.0
    %6044 = vmatprep.subr.mxu0 0.0
    %6045 = vmatpush1.msra.mxu0 0.0
    %6046 = vmatprep.subr.mxu0 0.0
    %6047 = vmatpush1.msra.mxu0 0.0
    %6048 = vmatprep.subr.mxu0 0.0
    %6049 = vmatpush1.msra.mxu0 0.0
    %6050 = vmatprep.subr.mxu0 0.0
    %6051 = vmatpush1.msra.mxu0 0.0
    %6052 = vmatprep.subr.mxu0 0.0
    %6053 = vmatpush1.msra.mxu0 %v6019
    %6054 = vmatprep.subr.mxu0 0.0
    %6055 = vmatpush1.msra.mxu0 %v6018
    %6056 = vmatprep.subr.mxu0 0.0
    %6057 = vmatpush1.msra.mxu0 %v6017
    %6058 = vmatprep.subr.mxu0 0.0
    %6059 = vmatpush1.msra.mxu0 %v6016
    %6060 = vmatprep.subr.mxu0 0.0
    %6061 = vmatpush2.msra.mxu0 0.0
    %6062 = vmatprep.subr.mxu0 0.0
    %6063 = vmatpush2.msra.mxu0 0.0
    %6064 = vmatprep.subr.mxu0 0.0
    %6065 = vmatpush2.msra.mxu0 0.0
    %6066 = vmatprep.subr.mxu0 0.0
    %6067 = vmatpush2.msra.mxu0 0.0
    %6068 = vmatprep.subr.mxu0 0.0
    %6069 = vmatpush2.msra.mxu0 0.0
    %6070 = vmatprep.subr.mxu0 0.0
    %6071 = vmatpush2.msra.mxu0 0.0
    %6072 = vmatprep.subr.mxu0 0.0
    %6073 = vmatpush2.msra.mxu0 0.0
    %6074 = vmatprep.subr.mxu0 0.0
    %6075 = vmatpush2.msra.mxu0 0.0
    %6076 = vmatprep.subr.mxu0 0.0
    %6077 = vmatpush2.msra.mxu0 0.0
    %6078 = vmatprep.subr.mxu0 0.0
    %6079 = vmatpush2.msra.mxu0 0.0
    %6080 = vmatprep.subr.mxu0 0.0
    %6081 = vmatpush2.msra.mxu0 0.0
    %6082 = vmatprep.subr.mxu0 0.0
    %6083 = vmatpush2.msra.mxu0 0.0
    %6084 = vmatprep.subr.mxu0 0.0
    %6085 = vmatpush2.msra.mxu0 0.0
    %6086 = vmatprep.subr.mxu0 0.0
    %6087 = vmatpush2.msra.mxu0 0.0
    %6088 = vmatprep.subr.mxu0 0.0
    %6089 = vmatpush2.msra.mxu0 0.0
    %6090 = vmatprep.subr.mxu0 0.0
    %6091 = vmatpush2.msra.mxu0 0.0
    %6092 = vmatprep.mubr.f32.mxu0 0.0
    %6093 = vmatmul.mubr.f32.gmra.mxu0 %v524
    %v6094 = vpop.f32.mrf.mxu0
    %v6095 = vadd.f32 %v6026, %v6094
    %v6096 = vpop.f32.mrf.mxu0
    %6097 = vmatprep.mubr.f32.mxu0 0.0
    %6098 = vmatmul.mubr.f32.gmra.mxu0 %v527
    %v6099 = vpop.f32.mrf.mxu0
    %v6100 = vadd.f32 %v6026, %v6099
    %v6101 = vpop.f32.mrf.mxu0
    %6102 = vmatprep.mubr.f32.mxu0 0.0
    %6103 = vmatmul.mubr.f32.gmra.mxu0 %v530
    %v6104 = vpop.f32.mrf.mxu0
    %v6105 = vadd.f32 %v6026, %v6104
    %v6106 = vpop.f32.mrf.mxu0
    %6107 = vmatprep.mubr.f32.mxu0 0.0
    %6108 = vmatmul.mubr.f32.gmra.mxu0 %v533
    %v6109 = vpop.f32.mrf.mxu0
    %v6110 = vadd.f32 %v6026, %v6109
    %v6111 = vpop.f32.mrf.mxu0
    %6112 = vmatprep.mubr.f32.mxu0 0.0
    %6113 = vmatmul.mubr.f32.gmra.mxu0 %v536
    %v6114 = vpop.f32.mrf.mxu0
    %v6115 = vadd.f32 %v6026, %v6114
    %v6116 = vpop.f32.mrf.mxu0
    %6117 = vmatprep.mubr.f32.mxu0 0.0
    %6118 = vmatmul.mubr.f32.gmra.mxu0 %v539
    %v6119 = vpop.f32.mrf.mxu0
    %v6120 = vadd.f32 %v6026, %v6119
    %v6121 = vpop.f32.mrf.mxu0
    %6122 = vmatprep.mubr.f32.mxu0 0.0
    %6123 = vmatmul.mubr.f32.gmra.mxu0 %v542
    %v6124 = vpop.f32.mrf.mxu0
    %v6125 = vadd.f32 %v6026, %v6124
    %v6126 = vpop.f32.mrf.mxu0
    %6127 = vmatprep.mubr.f32.mxu0 0.0
    %6128 = vmatmul.mubr.f32.gmra.mxu0 %v545
    %v6129 = vpop.f32.mrf.mxu0
    %v6130 = vadd.f32 %v6026, %v6129
    %v6131 = vpop.f32.mrf.mxu0
    %6132 = vdwg.mxu0
    %s6133 = scalar_lea.vmem %s8, 96
    %v6134 = vld [vmem:[%s6133] sm:$0xff]
    %v6135 = vld [vmem:[%s6133 + $0x8] sm:$0xff]
    %v6136 = vld [vmem:[%s6133 + $0x10] sm:$0xff]
    %v6137 = vld [vmem:[%s6133 + $0x18] sm:$0xff]
    %s6138 = scalar_lea.vmem %s9, 3
    %v6139 = vld [vmem:[%s6138] sm:$0x1]
    %v6141 = vlaneseq
    %v6142 = vshrl.u32 %v6141, 7
    %v6143 = vsub.s32 0, %v6142
    %v6144 = vrot.slane %v6139, %v6143
    %6146 = vmatprep.subr.mxu0 0.0
    %6147 = vmatpush1.msra.mxu0 0.0
    %6148 = vmatprep.subr.mxu0 0.0
    %6149 = vmatpush1.msra.mxu0 0.0
    %6150 = vmatprep.subr.mxu0 0.0
    %6151 = vmatpush1.msra.mxu0 0.0
    %6152 = vmatprep.subr.mxu0 0.0
    %6153 = vmatpush1.msra.mxu0 0.0
    %6154 = vmatprep.subr.mxu0 0.0
    %6155 = vmatpush1.msra.mxu0 0.0
    %6156 = vmatprep.subr.mxu0 0.0
    %6157 = vmatpush1.msra.mxu0 0.0
    %6158 = vmatprep.subr.mxu0 0.0
    %6159 = vmatpush1.msra.mxu0 0.0
    %6160 = vmatprep.subr.mxu0 0.0
    %6161 = vmatpush1.msra.mxu0 0.0
    %6162 = vmatprep.subr.mxu0 0.0
    %6163 = vmatpush1.msra.mxu0 0.0
    %6164 = vmatprep.subr.mxu0 0.0
    %6165 = vmatpush1.msra.mxu0 0.0
    %6166 = vmatprep.subr.mxu0 0.0
    %6167 = vmatpush1.msra.mxu0 0.0
    %6168 = vmatprep.subr.mxu0 0.0
    %6169 = vmatpush1.msra.mxu0 0.0
    %6170 = vmatprep.subr.mxu0 0.0
    %6171 = vmatpush1.msra.mxu0 %v6137
    %6172 = vmatprep.subr.mxu0 0.0
    %6173 = vmatpush1.msra.mxu0 %v6136
    %6174 = vmatprep.subr.mxu0 0.0
    %6175 = vmatpush1.msra.mxu0 %v6135
    %6176 = vmatprep.subr.mxu0 0.0
    %6177 = vmatpush1.msra.mxu0 %v6134
    %6178 = vmatprep.subr.mxu0 0.0
    %6179 = vmatpush2.msra.mxu0 0.0
    %6180 = vmatprep.subr.mxu0 0.0
    %6181 = vmatpush2.msra.mxu0 0.0
    %6182 = vmatprep.subr.mxu0 0.0
    %6183 = vmatpush2.msra.mxu0 0.0
    %6184 = vmatprep.subr.mxu0 0.0
    %6185 = vmatpush2.msra.mxu0 0.0
    %6186 = vmatprep.subr.mxu0 0.0
    %6187 = vmatpush2.msra.mxu0 0.0
    %6188 = vmatprep.subr.mxu0 0.0
    %6189 = vmatpush2.msra.mxu0 0.0
    %6190 = vmatprep.subr.mxu0 0.0
    %6191 = vmatpush2.msra.mxu0 0.0
    %6192 = vmatprep.subr.mxu0 0.0
    %6193 = vmatpush2.msra.mxu0 0.0
    %6194 = vmatprep.subr.mxu0 0.0
    %6195 = vmatpush2.msra.mxu0 0.0
    %6196 = vmatprep.subr.mxu0 0.0
    %6197 = vmatpush2.msra.mxu0 0.0
    %6198 = vmatprep.subr.mxu0 0.0
    %6199 = vmatpush2.msra.mxu0 0.0
    %6200 = vmatprep.subr.mxu0 0.0
    %6201 = vmatpush2.msra.mxu0 0.0
    %6202 = vmatprep.subr.mxu0 0.0
    %6203 = vmatpush2.msra.mxu0 0.0
    %6204 = vmatprep.subr.mxu0 0.0
    %6205 = vmatpush2.msra.mxu0 0.0
    %6206 = vmatprep.subr.mxu0 0.0
    %6207 = vmatpush2.msra.mxu0 0.0
    %6208 = vmatprep.subr.mxu0 0.0
    %6209 = vmatpush2.msra.mxu0 0.0
    %6210 = vmatprep.mubr.f32.mxu0 0.0
    %6211 = vmatmul.mubr.f32.gmra.mxu0 %v524
    %v6212 = vpop.f32.mrf.mxu0
    %v6213 = vadd.f32 %v6144, %v6212
    %v6214 = vpop.f32.mrf.mxu0
    %6215 = vmatprep.mubr.f32.mxu0 0.0
    %6216 = vmatmul.mubr.f32.gmra.mxu0 %v527
    %v6217 = vpop.f32.mrf.mxu0
    %v6218 = vadd.f32 %v6144, %v6217
    %v6219 = vpop.f32.mrf.mxu0
    %6220 = vmatprep.mubr.f32.mxu0 0.0
    %6221 = vmatmul.mubr.f32.gmra.mxu0 %v530
    %v6222 = vpop.f32.mrf.mxu0
    %v6223 = vadd.f32 %v6144, %v6222
    %v6224 = vpop.f32.mrf.mxu0
    %6225 = vmatprep.mubr.f32.mxu0 0.0
    %6226 = vmatmul.mubr.f32.gmra.mxu0 %v533
    %v6227 = vpop.f32.mrf.mxu0
    %v6228 = vadd.f32 %v6144, %v6227
    %v6229 = vpop.f32.mrf.mxu0
    %6230 = vmatprep.mubr.f32.mxu0 0.0
    %6231 = vmatmul.mubr.f32.gmra.mxu0 %v536
    %v6232 = vpop.f32.mrf.mxu0
    %v6233 = vadd.f32 %v6144, %v6232
    %v6234 = vpop.f32.mrf.mxu0
    %6235 = vmatprep.mubr.f32.mxu0 0.0
    %6236 = vmatmul.mubr.f32.gmra.mxu0 %v539
    %v6237 = vpop.f32.mrf.mxu0
    %v6238 = vadd.f32 %v6144, %v6237
    %v6239 = vpop.f32.mrf.mxu0
    %6240 = vmatprep.mubr.f32.mxu0 0.0
    %6241 = vmatmul.mubr.f32.gmra.mxu0 %v542
    %v6242 = vpop.f32.mrf.mxu0
    %v6243 = vadd.f32 %v6144, %v6242
    %v6244 = vpop.f32.mrf.mxu0
    %6245 = vmatprep.mubr.f32.mxu0 0.0
    %6246 = vmatmul.mubr.f32.gmra.mxu0 %v545
    %v6247 = vpop.f32.mrf.mxu0
    %v6248 = vadd.f32 %v6144, %v6247
    %v6249 = vpop.f32.mrf.mxu0
    %6250 = vdwg.mxu0
    %v6252 = vsel %vm932, %v5977, 0
    %v6255 = vsel %vm932, %v6095, 0
    %6257 = vmatprep.subr.mxu0 0.0
    %6258 = vmatpush1.xpose.msra.mxu0 0.0
    %6259 = vmatprep.subr.mxu0 0.0
    %6260 = vmatpush1.xpose.msra.mxu0 0.0
    %6261 = vmatprep.subr.mxu0 0.0
    %6262 = vmatpush1.xpose.msra.mxu0 0.0
    %6263 = vmatprep.subr.mxu0 0.0
    %6264 = vmatpush1.xpose.msra.mxu0 0.0
    %6265 = vmatprep.subr.mxu0 0.0
    %6266 = vmatpush1.xpose.msra.mxu0 0.0
    %6267 = vmatprep.subr.mxu0 0.0
    %6268 = vmatpush1.xpose.msra.mxu0 0.0
    %6269 = vmatprep.subr.mxu0 0.0
    %6270 = vmatpush1.xpose.msra.mxu0 0.0
    %6271 = vmatprep.subr.mxu0 0.0
    %6272 = vmatpush1.xpose.msra.mxu0 0.0
    %6273 = vmatprep.subr.mxu0 0.0
    %6274 = vmatpush1.xpose.msra.mxu0 0.0
    %6275 = vmatprep.subr.mxu0 0.0
    %6276 = vmatpush1.xpose.msra.mxu0 0.0
    %6277 = vmatprep.subr.mxu0 0.0
    %6278 = vmatpush1.xpose.msra.mxu0 0.0
    %6279 = vmatprep.subr.mxu0 0.0
    %6280 = vmatpush1.xpose.msra.mxu0 0.0
    %6281 = vmatprep.subr.mxu0 0.0
    %6282 = vmatpush1.xpose.msra.mxu0 0.0
    %6283 = vmatprep.subr.mxu0 0.0
    %6284 = vmatpush1.xpose.msra.mxu0 0.0
    %6285 = vmatprep.subr.mxu0 0.0
    %6286 = vmatpush1.xpose.msra.mxu0 0.0
    %6287 = vmatprep.subr.mxu0 0.0
    %6288 = vmatpush1.xpose.msra.mxu0 %v6255
    %6289 = vmatprep.subr.mxu0 0.0
    %6290 = vmatpush2.xpose.msra.mxu0 0.0
    %6291 = vmatprep.subr.mxu0 0.0
    %6292 = vmatpush2.xpose.msra.mxu0 0.0
    %6293 = vmatprep.subr.mxu0 0.0
    %6294 = vmatpush2.xpose.msra.mxu0 0.0
    %6295 = vmatprep.subr.mxu0 0.0
    %6296 = vmatpush2.xpose.msra.mxu0 0.0
    %6297 = vmatprep.subr.mxu0 0.0
    %6298 = vmatpush2.xpose.msra.mxu0 0.0
    %6299 = vmatprep.subr.mxu0 0.0
    %6300 = vmatpush2.xpose.msra.mxu0 0.0
    %6301 = vmatprep.subr.mxu0 0.0
    %6302 = vmatpush2.xpose.msra.mxu0 0.0
    %6303 = vmatprep.subr.mxu0 0.0
    %6304 = vmatpush2.xpose.msra.mxu0 0.0
    %6305 = vmatprep.subr.mxu0 0.0
    %6306 = vmatpush2.xpose.msra.mxu0 0.0
    %6307 = vmatprep.subr.mxu0 0.0
    %6308 = vmatpush2.xpose.msra.mxu0 0.0
    %6309 = vmatprep.subr.mxu0 0.0
    %6310 = vmatpush2.xpose.msra.mxu0 0.0
    %6311 = vmatprep.subr.mxu0 0.0
    %6312 = vmatpush2.xpose.msra.mxu0 0.0
    %6313 = vmatprep.subr.mxu0 0.0
    %6314 = vmatpush2.xpose.msra.mxu0 0.0
    %6315 = vmatprep.subr.mxu0 0.0
    %6316 = vmatpush2.xpose.msra.mxu0 0.0
    %6317 = vmatprep.subr.mxu0 0.0
    %6318 = vmatpush2.xpose.msra.mxu0 0.0
    %6319 = vmatprep.subr.mxu0 0.0
    %6320 = vmatpush2.xpose.msra.mxu0 0.0
    %6321 = vmatprep.mubr.f32.mxu0 0.0
    %6322 = vmatmul.mubr.f32.gmra.mxu0 %v6252
    %v6323 = vpop.f32.mrf.mxu0
    %v6324 = vadd.f32 %v895, %v6323
    %v6325 = vpop.f32.mrf.mxu0
    %6326 = vdwg.mxu0
    %v6328 = vsel %vm932, %v5982, 0
    %v6331 = vsel %vm932, %v6100, 0
    %6333 = vmatprep.subr.mxu0 0.0
    %6334 = vmatpush1.xpose.msra.mxu0 0.0
    %6335 = vmatprep.subr.mxu0 0.0
    %6336 = vmatpush1.xpose.msra.mxu0 0.0
    %6337 = vmatprep.subr.mxu0 0.0
    %6338 = vmatpush1.xpose.msra.mxu0 0.0
    %6339 = vmatprep.subr.mxu0 0.0
    %6340 = vmatpush1.xpose.msra.mxu0 0.0
    %6341 = vmatprep.subr.mxu0 0.0
    %6342 = vmatpush1.xpose.msra.mxu0 0.0
    %6343 = vmatprep.subr.mxu0 0.0
    %6344 = vmatpush1.xpose.msra.mxu0 0.0
    %6345 = vmatprep.subr.mxu0 0.0
    %6346 = vmatpush1.xpose.msra.mxu0 0.0
    %6347 = vmatprep.subr.mxu0 0.0
    %6348 = vmatpush1.xpose.msra.mxu0 0.0
    %6349 = vmatprep.subr.mxu0 0.0
    %6350 = vmatpush1.xpose.msra.mxu0 0.0
    %6351 = vmatprep.subr.mxu0 0.0
    %6352 = vmatpush1.xpose.msra.mxu0 0.0
    %6353 = vmatprep.subr.mxu0 0.0
    %6354 = vmatpush1.xpose.msra.mxu0 0.0
    %6355 = vmatprep.subr.mxu0 0.0
    %6356 = vmatpush1.xpose.msra.mxu0 0.0
    %6357 = vmatprep.subr.mxu0 0.0
    %6358 = vmatpush1.xpose.msra.mxu0 0.0
    %6359 = vmatprep.subr.mxu0 0.0
    %6360 = vmatpush1.xpose.msra.mxu0 0.0
    %6361 = vmatprep.subr.mxu0 0.0
    %6362 = vmatpush1.xpose.msra.mxu0 0.0
    %6363 = vmatprep.subr.mxu0 0.0
    %6364 = vmatpush1.xpose.msra.mxu0 %v6331
    %6365 = vmatprep.subr.mxu0 0.0
    %6366 = vmatpush2.xpose.msra.mxu0 0.0
    %6367 = vmatprep.subr.mxu0 0.0
    %6368 = vmatpush2.xpose.msra.mxu0 0.0
    %6369 = vmatprep.subr.mxu0 0.0
    %6370 = vmatpush2.xpose.msra.mxu0 0.0
    %6371 = vmatprep.subr.mxu0 0.0
    %6372 = vmatpush2.xpose.msra.mxu0 0.0
    %6373 = vmatprep.subr.mxu0 0.0
    %6374 = vmatpush2.xpose.msra.mxu0 0.0
    %6375 = vmatprep.subr.mxu0 0.0
    %6376 = vmatpush2.xpose.msra.mxu0 0.0
    %6377 = vmatprep.subr.mxu0 0.0
    %6378 = vmatpush2.xpose.msra.mxu0 0.0
    %6379 = vmatprep.subr.mxu0 0.0
    %6380 = vmatpush2.xpose.msra.mxu0 0.0
    %6381 = vmatprep.subr.mxu0 0.0
    %6382 = vmatpush2.xpose.msra.mxu0 0.0
    %6383 = vmatprep.subr.mxu0 0.0
    %6384 = vmatpush2.xpose.msra.mxu0 0.0
    %6385 = vmatprep.subr.mxu0 0.0
    %6386 = vmatpush2.xpose.msra.mxu0 0.0
    %6387 = vmatprep.subr.mxu0 0.0
    %6388 = vmatpush2.xpose.msra.mxu0 0.0
    %6389 = vmatprep.subr.mxu0 0.0
    %6390 = vmatpush2.xpose.msra.mxu0 0.0
    %6391 = vmatprep.subr.mxu0 0.0
    %6392 = vmatpush2.xpose.msra.mxu0 0.0
    %6393 = vmatprep.subr.mxu0 0.0
    %6394 = vmatpush2.xpose.msra.mxu0 0.0
    %6395 = vmatprep.subr.mxu0 0.0
    %6396 = vmatpush2.xpose.msra.mxu0 0.0
    %6397 = vmatprep.mubr.f32.mxu0 0.0
    %6398 = vmatmul.mubr.f32.gmra.mxu0 %v6328
    %v6399 = vpop.f32.mrf.mxu0
    %v6400 = vadd.f32 %v899, %v6399
    %v6401 = vpop.f32.mrf.mxu0
    %6402 = vdwg.mxu0
    %v6404 = vsel %vm932, %v5987, 0
    %v6407 = vsel %vm932, %v6105, 0
    %6409 = vmatprep.subr.mxu0 0.0
    %6410 = vmatpush1.xpose.msra.mxu0 0.0
    %6411 = vmatprep.subr.mxu0 0.0
    %6412 = vmatpush1.xpose.msra.mxu0 0.0
    %6413 = vmatprep.subr.mxu0 0.0
    %6414 = vmatpush1.xpose.msra.mxu0 0.0
    %6415 = vmatprep.subr.mxu0 0.0
    %6416 = vmatpush1.xpose.msra.mxu0 0.0
    %6417 = vmatprep.subr.mxu0 0.0
    %6418 = vmatpush1.xpose.msra.mxu0 0.0
    %6419 = vmatprep.subr.mxu0 0.0
    %6420 = vmatpush1.xpose.msra.mxu0 0.0
    %6421 = vmatprep.subr.mxu0 0.0
    %6422 = vmatpush1.xpose.msra.mxu0 0.0
    %6423 = vmatprep.subr.mxu0 0.0
    %6424 = vmatpush1.xpose.msra.mxu0 0.0
    %6425 = vmatprep.subr.mxu0 0.0
    %6426 = vmatpush1.xpose.msra.mxu0 0.0
    %6427 = vmatprep.subr.mxu0 0.0
    %6428 = vmatpush1.xpose.msra.mxu0 0.0
    %6429 = vmatprep.subr.mxu0 0.0
    %6430 = vmatpush1.xpose.msra.mxu0 0.0
    %6431 = vmatprep.subr.mxu0 0.0
    %6432 = vmatpush1.xpose.msra.mxu0 0.0
    %6433 = vmatprep.subr.mxu0 0.0
    %6434 = vmatpush1.xpose.msra.mxu0 0.0
    %6435 = vmatprep.subr.mxu0 0.0
    %6436 = vmatpush1.xpose.msra.mxu0 0.0
    %6437 = vmatprep.subr.mxu0 0.0
    %6438 = vmatpush1.xpose.msra.mxu0 0.0
    %6439 = vmatprep.subr.mxu0 0.0
    %6440 = vmatpush1.xpose.msra.mxu0 %v6407
    %6441 = vmatprep.subr.mxu0 0.0
    %6442 = vmatpush2.xpose.msra.mxu0 0.0
    %6443 = vmatprep.subr.mxu0 0.0
    %6444 = vmatpush2.xpose.msra.mxu0 0.0
    %6445 = vmatprep.subr.mxu0 0.0
    %6446 = vmatpush2.xpose.msra.mxu0 0.0
    %6447 = vmatprep.subr.mxu0 0.0
    %6448 = vmatpush2.xpose.msra.mxu0 0.0
    %6449 = vmatprep.subr.mxu0 0.0
    %6450 = vmatpush2.xpose.msra.mxu0 0.0
    %6451 = vmatprep.subr.mxu0 0.0
    %6452 = vmatpush2.xpose.msra.mxu0 0.0
    %6453 = vmatprep.subr.mxu0 0.0
    %6454 = vmatpush2.xpose.msra.mxu0 0.0
    %6455 = vmatprep.subr.mxu0 0.0
    %6456 = vmatpush2.xpose.msra.mxu0 0.0
    %6457 = vmatprep.subr.mxu0 0.0
    %6458 = vmatpush2.xpose.msra.mxu0 0.0
    %6459 = vmatprep.subr.mxu0 0.0
    %6460 = vmatpush2.xpose.msra.mxu0 0.0
    %6461 = vmatprep.subr.mxu0 0.0
    %6462 = vmatpush2.xpose.msra.mxu0 0.0
    %6463 = vmatprep.subr.mxu0 0.0
    %6464 = vmatpush2.xpose.msra.mxu0 0.0
    %6465 = vmatprep.subr.mxu0 0.0
    %6466 = vmatpush2.xpose.msra.mxu0 0.0
    %6467 = vmatprep.subr.mxu0 0.0
    %6468 = vmatpush2.xpose.msra.mxu0 0.0
    %6469 = vmatprep.subr.mxu0 0.0
    %6470 = vmatpush2.xpose.msra.mxu0 0.0
    %6471 = vmatprep.subr.mxu0 0.0
    %6472 = vmatpush2.xpose.msra.mxu0 0.0
    %6473 = vmatprep.mubr.f32.mxu0 0.0
    %6474 = vmatmul.mubr.f32.gmra.mxu0 %v6404
    %v6475 = vpop.f32.mrf.mxu0
    %v6476 = vadd.f32 %v903, %v6475
    %v6477 = vpop.f32.mrf.mxu0
    %6478 = vdwg.mxu0
    %v6480 = vsel %vm932, %v5992, 0
    %v6483 = vsel %vm932, %v6110, 0
    %6485 = vmatprep.subr.mxu0 0.0
    %6486 = vmatpush1.xpose.msra.mxu0 0.0
    %6487 = vmatprep.subr.mxu0 0.0
    %6488 = vmatpush1.xpose.msra.mxu0 0.0
    %6489 = vmatprep.subr.mxu0 0.0
    %6490 = vmatpush1.xpose.msra.mxu0 0.0
    %6491 = vmatprep.subr.mxu0 0.0
    %6492 = vmatpush1.xpose.msra.mxu0 0.0
    %6493 = vmatprep.subr.mxu0 0.0
    %6494 = vmatpush1.xpose.msra.mxu0 0.0
    %6495 = vmatprep.subr.mxu0 0.0
    %6496 = vmatpush1.xpose.msra.mxu0 0.0
    %6497 = vmatprep.subr.mxu0 0.0
    %6498 = vmatpush1.xpose.msra.mxu0 0.0
    %6499 = vmatprep.subr.mxu0 0.0
    %6500 = vmatpush1.xpose.msra.mxu0 0.0
    %6501 = vmatprep.subr.mxu0 0.0
    %6502 = vmatpush1.xpose.msra.mxu0 0.0
    %6503 = vmatprep.subr.mxu0 0.0
    %6504 = vmatpush1.xpose.msra.mxu0 0.0
    %6505 = vmatprep.subr.mxu0 0.0
    %6506 = vmatpush1.xpose.msra.mxu0 0.0
    %6507 = vmatprep.subr.mxu0 0.0
    %6508 = vmatpush1.xpose.msra.mxu0 0.0
    %6509 = vmatprep.subr.mxu0 0.0
    %6510 = vmatpush1.xpose.msra.mxu0 0.0
    %6511 = vmatprep.subr.mxu0 0.0
    %6512 = vmatpush1.xpose.msra.mxu0 0.0
    %6513 = vmatprep.subr.mxu0 0.0
    %6514 = vmatpush1.xpose.msra.mxu0 0.0
    %6515 = vmatprep.subr.mxu0 0.0
    %6516 = vmatpush1.xpose.msra.mxu0 %v6483
    %6517 = vmatprep.subr.mxu0 0.0
    %6518 = vmatpush2.xpose.msra.mxu0 0.0
    %6519 = vmatprep.subr.mxu0 0.0
    %6520 = vmatpush2.xpose.msra.mxu0 0.0
    %6521 = vmatprep.subr.mxu0 0.0
    %6522 = vmatpush2.xpose.msra.mxu0 0.0
    %6523 = vmatprep.subr.mxu0 0.0
    %6524 = vmatpush2.xpose.msra.mxu0 0.0
    %6525 = vmatprep.subr.mxu0 0.0
    %6526 = vmatpush2.xpose.msra.mxu0 0.0
    %6527 = vmatprep.subr.mxu0 0.0
    %6528 = vmatpush2.xpose.msra.mxu0 0.0
    %6529 = vmatprep.subr.mxu0 0.0
    %6530 = vmatpush2.xpose.msra.mxu0 0.0
    %6531 = vmatprep.subr.mxu0 0.0
    %6532 = vmatpush2.xpose.msra.mxu0 0.0
    %6533 = vmatprep.subr.mxu0 0.0
    %6534 = vmatpush2.xpose.msra.mxu0 0.0
    %6535 = vmatprep.subr.mxu0 0.0
    %6536 = vmatpush2.xpose.msra.mxu0 0.0
    %6537 = vmatprep.subr.mxu0 0.0
    %6538 = vmatpush2.xpose.msra.mxu0 0.0
    %6539 = vmatprep.subr.mxu0 0.0
    %6540 = vmatpush2.xpose.msra.mxu0 0.0
    %6541 = vmatprep.subr.mxu0 0.0
    %6542 = vmatpush2.xpose.msra.mxu0 0.0
    %6543 = vmatprep.subr.mxu0 0.0
    %6544 = vmatpush2.xpose.msra.mxu0 0.0
    %6545 = vmatprep.subr.mxu0 0.0
    %6546 = vmatpush2.xpose.msra.mxu0 0.0
    %6547 = vmatprep.subr.mxu0 0.0
    %6548 = vmatpush2.xpose.msra.mxu0 0.0
    %6549 = vmatprep.mubr.f32.mxu0 0.0
    %6550 = vmatmul.mubr.f32.gmra.mxu0 %v6480
    %v6551 = vpop.f32.mrf.mxu0
    %v6552 = vadd.f32 %v907, %v6551
    %v6553 = vpop.f32.mrf.mxu0
    %6554 = vdwg.mxu0
    %v6556 = vsel %vm932, %v5997, 0
    %v6559 = vsel %vm932, %v6115, 0
    %6561 = vmatprep.subr.mxu0 0.0
    %6562 = vmatpush1.xpose.msra.mxu0 0.0
    %6563 = vmatprep.subr.mxu0 0.0
    %6564 = vmatpush1.xpose.msra.mxu0 0.0
    %6565 = vmatprep.subr.mxu0 0.0
    %6566 = vmatpush1.xpose.msra.mxu0 0.0
    %6567 = vmatprep.subr.mxu0 0.0
    %6568 = vmatpush1.xpose.msra.mxu0 0.0
    %6569 = vmatprep.subr.mxu0 0.0
    %6570 = vmatpush1.xpose.msra.mxu0 0.0
    %6571 = vmatprep.subr.mxu0 0.0
    %6572 = vmatpush1.xpose.msra.mxu0 0.0
    %6573 = vmatprep.subr.mxu0 0.0
    %6574 = vmatpush1.xpose.msra.mxu0 0.0
    %6575 = vmatprep.subr.mxu0 0.0
    %6576 = vmatpush1.xpose.msra.mxu0 0.0
    %6577 = vmatprep.subr.mxu0 0.0
    %6578 = vmatpush1.xpose.msra.mxu0 0.0
    %6579 = vmatprep.subr.mxu0 0.0
    %6580 = vmatpush1.xpose.msra.mxu0 0.0
    %6581 = vmatprep.subr.mxu0 0.0
    %6582 = vmatpush1.xpose.msra.mxu0 0.0
    %6583 = vmatprep.subr.mxu0 0.0
    %6584 = vmatpush1.xpose.msra.mxu0 0.0
    %6585 = vmatprep.subr.mxu0 0.0
    %6586 = vmatpush1.xpose.msra.mxu0 0.0
    %6587 = vmatprep.subr.mxu0 0.0
    %6588 = vmatpush1.xpose.msra.mxu0 0.0
    %6589 = vmatprep.subr.mxu0 0.0
    %6590 = vmatpush1.xpose.msra.mxu0 0.0
    %6591 = vmatprep.subr.mxu0 0.0
    %6592 = vmatpush1.xpose.msra.mxu0 %v6559
    %6593 = vmatprep.subr.mxu0 0.0
    %6594 = vmatpush2.xpose.msra.mxu0 0.0
    %6595 = vmatprep.subr.mxu0 0.0
    %6596 = vmatpush2.xpose.msra.mxu0 0.0
    %6597 = vmatprep.subr.mxu0 0.0
    %6598 = vmatpush2.xpose.msra.mxu0 0.0
    %6599 = vmatprep.subr.mxu0 0.0
    %6600 = vmatpush2.xpose.msra.mxu0 0.0
    %6601 = vmatprep.subr.mxu0 0.0
    %6602 = vmatpush2.xpose.msra.mxu0 0.0
    %6603 = vmatprep.subr.mxu0 0.0
    %6604 = vmatpush2.xpose.msra.mxu0 0.0
    %6605 = vmatprep.subr.mxu0 0.0
    %6606 = vmatpush2.xpose.msra.mxu0 0.0
    %6607 = vmatprep.subr.mxu0 0.0
    %6608 = vmatpush2.xpose.msra.mxu0 0.0
    %6609 = vmatprep.subr.mxu0 0.0
    %6610 = vmatpush2.xpose.msra.mxu0 0.0
    %6611 = vmatprep.subr.mxu0 0.0
    %6612 = vmatpush2.xpose.msra.mxu0 0.0
    %6613 = vmatprep.subr.mxu0 0.0
    %6614 = vmatpush2.xpose.msra.mxu0 0.0
    %6615 = vmatprep.subr.mxu0 0.0
    %6616 = vmatpush2.xpose.msra.mxu0 0.0
    %6617 = vmatprep.subr.mxu0 0.0
    %6618 = vmatpush2.xpose.msra.mxu0 0.0
    %6619 = vmatprep.subr.mxu0 0.0
    %6620 = vmatpush2.xpose.msra.mxu0 0.0
    %6621 = vmatprep.subr.mxu0 0.0
    %6622 = vmatpush2.xpose.msra.mxu0 0.0
    %6623 = vmatprep.subr.mxu0 0.0
    %6624 = vmatpush2.xpose.msra.mxu0 0.0
    %6625 = vmatprep.mubr.f32.mxu0 0.0
    %6626 = vmatmul.mubr.f32.gmra.mxu0 %v6556
    %v6627 = vpop.f32.mrf.mxu0
    %v6628 = vadd.f32 %v911, %v6627
    %v6629 = vpop.f32.mrf.mxu0
    %6630 = vdwg.mxu0
    %v6632 = vsel %vm932, %v6002, 0
    %v6635 = vsel %vm932, %v6120, 0
    %6637 = vmatprep.subr.mxu0 0.0
    %6638 = vmatpush1.xpose.msra.mxu0 0.0
    %6639 = vmatprep.subr.mxu0 0.0
    %6640 = vmatpush1.xpose.msra.mxu0 0.0
    %6641 = vmatprep.subr.mxu0 0.0
    %6642 = vmatpush1.xpose.msra.mxu0 0.0
    %6643 = vmatprep.subr.mxu0 0.0
    %6644 = vmatpush1.xpose.msra.mxu0 0.0
    %6645 = vmatprep.subr.mxu0 0.0
    %6646 = vmatpush1.xpose.msra.mxu0 0.0
    %6647 = vmatprep.subr.mxu0 0.0
    %6648 = vmatpush1.xpose.msra.mxu0 0.0
    %6649 = vmatprep.subr.mxu0 0.0
    %6650 = vmatpush1.xpose.msra.mxu0 0.0
    %6651 = vmatprep.subr.mxu0 0.0
    %6652 = vmatpush1.xpose.msra.mxu0 0.0
    %6653 = vmatprep.subr.mxu0 0.0
    %6654 = vmatpush1.xpose.msra.mxu0 0.0
    %6655 = vmatprep.subr.mxu0 0.0
    %6656 = vmatpush1.xpose.msra.mxu0 0.0
    %6657 = vmatprep.subr.mxu0 0.0
    %6658 = vmatpush1.xpose.msra.mxu0 0.0
    %6659 = vmatprep.subr.mxu0 0.0
    %6660 = vmatpush1.xpose.msra.mxu0 0.0
    %6661 = vmatprep.subr.mxu0 0.0
    %6662 = vmatpush1.xpose.msra.mxu0 0.0
    %6663 = vmatprep.subr.mxu0 0.0
    %6664 = vmatpush1.xpose.msra.mxu0 0.0
    %6665 = vmatprep.subr.mxu0 0.0
    %6666 = vmatpush1.xpose.msra.mxu0 0.0
    %6667 = vmatprep.subr.mxu0 0.0
    %6668 = vmatpush1.xpose.msra.mxu0 %v6635
    %6669 = vmatprep.subr.mxu0 0.0
    %6670 = vmatpush2.xpose.msra.mxu0 0.0
    %6671 = vmatprep.subr.mxu0 0.0
    %6672 = vmatpush2.xpose.msra.mxu0 0.0
    %6673 = vmatprep.subr.mxu0 0.0
    %6674 = vmatpush2.xpose.msra.mxu0 0.0
    %6675 = vmatprep.subr.mxu0 0.0
    %6676 = vmatpush2.xpose.msra.mxu0 0.0
    %6677 = vmatprep.subr.mxu0 0.0
    %6678 = vmatpush2.xpose.msra.mxu0 0.0
    %6679 = vmatprep.subr.mxu0 0.0
    %6680 = vmatpush2.xpose.msra.mxu0 0.0
    %6681 = vmatprep.subr.mxu0 0.0
    %6682 = vmatpush2.xpose.msra.mxu0 0.0
    %6683 = vmatprep.subr.mxu0 0.0
    %6684 = vmatpush2.xpose.msra.mxu0 0.0
    %6685 = vmatprep.subr.mxu0 0.0
    %6686 = vmatpush2.xpose.msra.mxu0 0.0
    %6687 = vmatprep.subr.mxu0 0.0
    %6688 = vmatpush2.xpose.msra.mxu0 0.0
    %6689 = vmatprep.subr.mxu0 0.0
    %6690 = vmatpush2.xpose.msra.mxu0 0.0
    %6691 = vmatprep.subr.mxu0 0.0
    %6692 = vmatpush2.xpose.msra.mxu0 0.0
    %6693 = vmatprep.subr.mxu0 0.0
    %6694 = vmatpush2.xpose.msra.mxu0 0.0
    %6695 = vmatprep.subr.mxu0 0.0
    %6696 = vmatpush2.xpose.msra.mxu0 0.0
    %6697 = vmatprep.subr.mxu0 0.0
    %6698 = vmatpush2.xpose.msra.mxu0 0.0
    %6699 = vmatprep.subr.mxu0 0.0
    %6700 = vmatpush2.xpose.msra.mxu0 0.0
    %6701 = vmatprep.mubr.f32.mxu0 0.0
    %6702 = vmatmul.mubr.f32.gmra.mxu0 %v6632
    %v6703 = vpop.f32.mrf.mxu0
    %v6704 = vadd.f32 %v915, %v6703
    %v6705 = vpop.f32.mrf.mxu0
    %6706 = vdwg.mxu0
    %v6708 = vsel %vm932, %v6007, 0
    %v6711 = vsel %vm932, %v6125, 0
    %6713 = vmatprep.subr.mxu0 0.0
    %6714 = vmatpush1.xpose.msra.mxu0 0.0
    %6715 = vmatprep.subr.mxu0 0.0
    %6716 = vmatpush1.xpose.msra.mxu0 0.0
    %6717 = vmatprep.subr.mxu0 0.0
    %6718 = vmatpush1.xpose.msra.mxu0 0.0
    %6719 = vmatprep.subr.mxu0 0.0
    %6720 = vmatpush1.xpose.msra.mxu0 0.0
    %6721 = vmatprep.subr.mxu0 0.0
    %6722 = vmatpush1.xpose.msra.mxu0 0.0
    %6723 = vmatprep.subr.mxu0 0.0
    %6724 = vmatpush1.xpose.msra.mxu0 0.0
    %6725 = vmatprep.subr.mxu0 0.0
    %6726 = vmatpush1.xpose.msra.mxu0 0.0
    %6727 = vmatprep.subr.mxu0 0.0
    %6728 = vmatpush1.xpose.msra.mxu0 0.0
    %6729 = vmatprep.subr.mxu0 0.0
    %6730 = vmatpush1.xpose.msra.mxu0 0.0
    %6731 = vmatprep.subr.mxu0 0.0
    %6732 = vmatpush1.xpose.msra.mxu0 0.0
    %6733 = vmatprep.subr.mxu0 0.0
    %6734 = vmatpush1.xpose.msra.mxu0 0.0
    %6735 = vmatprep.subr.mxu0 0.0
    %6736 = vmatpush1.xpose.msra.mxu0 0.0
    %6737 = vmatprep.subr.mxu0 0.0
    %6738 = vmatpush1.xpose.msra.mxu0 0.0
    %6739 = vmatprep.subr.mxu0 0.0
    %6740 = vmatpush1.xpose.msra.mxu0 0.0
    %6741 = vmatprep.subr.mxu0 0.0
    %6742 = vmatpush1.xpose.msra.mxu0 0.0
    %6743 = vmatprep.subr.mxu0 0.0
    %6744 = vmatpush1.xpose.msra.mxu0 %v6711
    %6745 = vmatprep.subr.mxu0 0.0
    %6746 = vmatpush2.xpose.msra.mxu0 0.0
    %6747 = vmatprep.subr.mxu0 0.0
    %6748 = vmatpush2.xpose.msra.mxu0 0.0
    %6749 = vmatprep.subr.mxu0 0.0
    %6750 = vmatpush2.xpose.msra.mxu0 0.0
    %6751 = vmatprep.subr.mxu0 0.0
    %6752 = vmatpush2.xpose.msra.mxu0 0.0
    %6753 = vmatprep.subr.mxu0 0.0
    %6754 = vmatpush2.xpose.msra.mxu0 0.0
    %6755 = vmatprep.subr.mxu0 0.0
    %6756 = vmatpush2.xpose.msra.mxu0 0.0
    %6757 = vmatprep.subr.mxu0 0.0
    %6758 = vmatpush2.xpose.msra.mxu0 0.0
    %6759 = vmatprep.subr.mxu0 0.0
    %6760 = vmatpush2.xpose.msra.mxu0 0.0
    %6761 = vmatprep.subr.mxu0 0.0
    %6762 = vmatpush2.xpose.msra.mxu0 0.0
    %6763 = vmatprep.subr.mxu0 0.0
    %6764 = vmatpush2.xpose.msra.mxu0 0.0
    %6765 = vmatprep.subr.mxu0 0.0
    %6766 = vmatpush2.xpose.msra.mxu0 0.0
    %6767 = vmatprep.subr.mxu0 0.0
    %6768 = vmatpush2.xpose.msra.mxu0 0.0
    %6769 = vmatprep.subr.mxu0 0.0
    %6770 = vmatpush2.xpose.msra.mxu0 0.0
    %6771 = vmatprep.subr.mxu0 0.0
    %6772 = vmatpush2.xpose.msra.mxu0 0.0
    %6773 = vmatprep.subr.mxu0 0.0
    %6774 = vmatpush2.xpose.msra.mxu0 0.0
    %6775 = vmatprep.subr.mxu0 0.0
    %6776 = vmatpush2.xpose.msra.mxu0 0.0
    %6777 = vmatprep.mubr.f32.mxu0 0.0
    %6778 = vmatmul.mubr.f32.gmra.mxu0 %v6708
    %v6779 = vpop.f32.mrf.mxu0
    %v6780 = vadd.f32 %v919, %v6779
    %v6781 = vpop.f32.mrf.mxu0
    %6782 = vdwg.mxu0
    %v6784 = vsel %vm932, %v6012, 0
    %v6787 = vsel %vm932, %v6130, 0
    %6789 = vmatprep.subr.mxu0 0.0
    %6790 = vmatpush1.xpose.msra.mxu0 0.0
    %6791 = vmatprep.subr.mxu0 0.0
    %6792 = vmatpush1.xpose.msra.mxu0 0.0
    %6793 = vmatprep.subr.mxu0 0.0
    %6794 = vmatpush1.xpose.msra.mxu0 0.0
    %6795 = vmatprep.subr.mxu0 0.0
    %6796 = vmatpush1.xpose.msra.mxu0 0.0
    %6797 = vmatprep.subr.mxu0 0.0
    %6798 = vmatpush1.xpose.msra.mxu0 0.0
    %6799 = vmatprep.subr.mxu0 0.0
    %6800 = vmatpush1.xpose.msra.mxu0 0.0
    %6801 = vmatprep.subr.mxu0 0.0
    %6802 = vmatpush1.xpose.msra.mxu0 0.0
    %6803 = vmatprep.subr.mxu0 0.0
    %6804 = vmatpush1.xpose.msra.mxu0 0.0
    %6805 = vmatprep.subr.mxu0 0.0
    %6806 = vmatpush1.xpose.msra.mxu0 0.0
    %6807 = vmatprep.subr.mxu0 0.0
    %6808 = vmatpush1.xpose.msra.mxu0 0.0
    %6809 = vmatprep.subr.mxu0 0.0
    %6810 = vmatpush1.xpose.msra.mxu0 0.0
    %6811 = vmatprep.subr.mxu0 0.0
    %6812 = vmatpush1.xpose.msra.mxu0 0.0
    %6813 = vmatprep.subr.mxu0 0.0
    %6814 = vmatpush1.xpose.msra.mxu0 0.0
    %6815 = vmatprep.subr.mxu0 0.0
    %6816 = vmatpush1.xpose.msra.mxu0 0.0
    %6817 = vmatprep.subr.mxu0 0.0
    %6818 = vmatpush1.xpose.msra.mxu0 0.0
    %6819 = vmatprep.subr.mxu0 0.0
    %6820 = vmatpush1.xpose.msra.mxu0 %v6787
    %6821 = vmatprep.subr.mxu0 0.0
    %6822 = vmatpush2.xpose.msra.mxu0 0.0
    %6823 = vmatprep.subr.mxu0 0.0
    %6824 = vmatpush2.xpose.msra.mxu0 0.0
    %6825 = vmatprep.subr.mxu0 0.0
    %6826 = vmatpush2.xpose.msra.mxu0 0.0
    %6827 = vmatprep.subr.mxu0 0.0
    %6828 = vmatpush2.xpose.msra.mxu0 0.0
    %6829 = vmatprep.subr.mxu0 0.0
    %6830 = vmatpush2.xpose.msra.mxu0 0.0
    %6831 = vmatprep.subr.mxu0 0.0
    %6832 = vmatpush2.xpose.msra.mxu0 0.0
    %6833 = vmatprep.subr.mxu0 0.0
    %6834 = vmatpush2.xpose.msra.mxu0 0.0
    %6835 = vmatprep.subr.mxu0 0.0
    %6836 = vmatpush2.xpose.msra.mxu0 0.0
    %6837 = vmatprep.subr.mxu0 0.0
    %6838 = vmatpush2.xpose.msra.mxu0 0.0
    %6839 = vmatprep.subr.mxu0 0.0
    %6840 = vmatpush2.xpose.msra.mxu0 0.0
    %6841 = vmatprep.subr.mxu0 0.0
    %6842 = vmatpush2.xpose.msra.mxu0 0.0
    %6843 = vmatprep.subr.mxu0 0.0
    %6844 = vmatpush2.xpose.msra.mxu0 0.0
    %6845 = vmatprep.subr.mxu0 0.0
    %6846 = vmatpush2.xpose.msra.mxu0 0.0
    %6847 = vmatprep.subr.mxu0 0.0
    %6848 = vmatpush2.xpose.msra.mxu0 0.0
    %6849 = vmatprep.subr.mxu0 0.0
    %6850 = vmatpush2.xpose.msra.mxu0 0.0
    %6851 = vmatprep.subr.mxu0 0.0
    %6852 = vmatpush2.xpose.msra.mxu0 0.0
    %6853 = vmatprep.mubr.f32.mxu0 0.0
    %6854 = vmatmul.mubr.f32.gmra.mxu0 %v6784
    %v6855 = vpop.f32.mrf.mxu0
    %v6856 = vadd.f32 %v923, %v6855
    %v6857 = vpop.f32.mrf.mxu0
    %6858 = vdwg.mxu0
    %v6859 = vsel %vm932, %v6324, -inf
    %6860 = vmax.xlane.f32.xlu0 %v6859
    %v6861 = vpop.xlane.xlu0 %6860
    %v6862 = vsel %vm932, %v6400, -inf
    %6863 = vmax.xlane.f32.xlu0 %v6862
    %v6864 = vpop.xlane.xlu0 %6863
    %v6865 = vsel %vm932, %v6476, -inf
    %6866 = vmax.xlane.f32.xlu0 %v6865
    %v6867 = vpop.xlane.xlu0 %6866
    %v6868 = vsel %vm932, %v6552, -inf
    %6869 = vmax.xlane.f32.xlu0 %v6868
    %v6870 = vpop.xlane.xlu0 %6869
    %v6871 = vsel %vm932, %v6628, -inf
    %6872 = vmax.xlane.f32.xlu0 %v6871
    %v6873 = vpop.xlane.xlu0 %6872
    %v6874 = vsel %vm932, %v6704, -inf
    %6875 = vmax.xlane.f32.xlu0 %v6874
    %v6876 = vpop.xlane.xlu0 %6875
    %v6877 = vsel %vm932, %v6780, -inf
    %6878 = vmax.xlane.f32.xlu0 %v6877
    %v6879 = vpop.xlane.xlu0 %6878
    %v6880 = vsel %vm932, %v6856, -inf
    %6881 = vmax.xlane.f32.xlu0 %v6880
    %v6882 = vpop.xlane.xlu0 %6881
    %v6883 = vsub.f32 %v6324, %v6861
    %v6884 = vsub.f32 %v6400, %v6864
    %v6885 = vsub.f32 %v6476, %v6867
    %v6886 = vsub.f32 %v6552, %v6870
    %v6887 = vsub.f32 %v6628, %v6873
    %v6888 = vsub.f32 %v6704, %v6876
    %v6889 = vsub.f32 %v6780, %v6879
    %v6890 = vsub.f32 %v6856, %v6882
    %v6891 = vmul.f32 %v6883, 1.442695
    %v6892 = vpow.pop %v6891
    %v6893 = vmul.f32 %v6884, 1.442695
    %v6894 = vpow.pop %v6893
    %v6895 = vmul.f32 %v6885, 1.442695
    %v6896 = vpow.pop %v6895
    %v6897 = vmul.f32 %v6886, 1.442695
    %v6898 = vpow.pop %v6897
    %v6899 = vmul.f32 %v6887, 1.442695
    %v6900 = vpow.pop %v6899
    %v6901 = vmul.f32 %v6888, 1.442695
    %v6902 = vpow.pop %v6901
    %v6903 = vmul.f32 %v6889, 1.442695
    %v6904 = vpow.pop %v6903
    %v6905 = vmul.f32 %v6890, 1.442695
    %v6906 = vpow.pop %v6905
    %v6907 = vsel %vm932, %v6892, 0.0
    %6908 = vadd.xlane.f32.xlu0 %v6907
    %v6909 = vpop.xlane.xlu0 %6908
    %v6910 = vsel %vm932, %v6894, 0.0
    %6911 = vadd.xlane.f32.xlu0 %v6910
    %v6912 = vpop.xlane.xlu0 %6911
    %v6913 = vsel %vm932, %v6896, 0.0
    %6914 = vadd.xlane.f32.xlu0 %v6913
    %v6915 = vpop.xlane.xlu0 %6914
    %v6916 = vsel %vm932, %v6898, 0.0
    %6917 = vadd.xlane.f32.xlu0 %v6916
    %v6918 = vpop.xlane.xlu0 %6917
    %v6919 = vsel %vm932, %v6900, 0.0
    %6920 = vadd.xlane.f32.xlu0 %v6919
    %v6921 = vpop.xlane.xlu0 %6920
    %v6922 = vsel %vm932, %v6902, 0.0
    %6923 = vadd.xlane.f32.xlu0 %v6922
    %v6924 = vpop.xlane.xlu0 %6923
    %v6925 = vsel %vm932, %v6904, 0.0
    %6926 = vadd.xlane.f32.xlu0 %v6925
    %v6927 = vpop.xlane.xlu0 %6926
    %v6928 = vsel %vm932, %v6906, 0.0
    %6929 = vadd.xlane.f32.xlu0 %v6928
    %v6930 = vpop.xlane.xlu0 %6929
    %v6931 = vrcp.pop %v6909
    %v6932 = vrcp.pop %v6912
    %v6933 = vrcp.pop %v6915
    %v6934 = vrcp.pop %v6918
    %v6935 = vrcp.pop %v6921
    %v6936 = vrcp.pop %v6924
    %v6937 = vrcp.pop %v6927
    %v6938 = vrcp.pop %v6930
    %v6939 = vmul.f32 %v6892, %v6931
    %v6940 = vmul.f32 %v6894, %v6932
    %v6941 = vmul.f32 %v6896, %v6933
    %v6942 = vmul.f32 %v6898, %v6934
    %v6943 = vmul.f32 %v6900, %v6935
    %v6944 = vmul.f32 %v6902, %v6936
    %v6945 = vmul.f32 %v6904, %v6937
    %v6946 = vmul.f32 %v6906, %v6938
    %v6948 = vsel %vm932, %v6939, 0
    %6950 = vmatprep.subr.mxu0 0.0
    %6951 = vmatpush1.msra.mxu0 0.0
    %6952 = vmatprep.subr.mxu0 0.0
    %6953 = vmatpush1.msra.mxu0 0.0
    %6954 = vmatprep.subr.mxu0 0.0
    %6955 = vmatpush1.msra.mxu0 0.0
    %6956 = vmatprep.subr.mxu0 0.0
    %6957 = vmatpush1.msra.mxu0 0.0
    %6958 = vmatprep.subr.mxu0 0.0
    %6959 = vmatpush1.msra.mxu0 0.0
    %6960 = vmatprep.subr.mxu0 0.0
    %6961 = vmatpush1.msra.mxu0 0.0
    %6962 = vmatprep.subr.mxu0 0.0
    %6963 = vmatpush1.msra.mxu0 0.0
    %6964 = vmatprep.subr.mxu0 0.0
    %6965 = vmatpush1.msra.mxu0 0.0
    %6966 = vmatprep.subr.mxu0 0.0
    %6967 = vmatpush1.msra.mxu0 0.0
    %6968 = vmatprep.subr.mxu0 0.0
    %6969 = vmatpush1.msra.mxu0 0.0
    %6970 = vmatprep.subr.mxu0 0.0
    %6971 = vmatpush1.msra.mxu0 0.0
    %6972 = vmatprep.subr.mxu0 0.0
    %6973 = vmatpush1.msra.mxu0 0.0
    %6974 = vmatprep.subr.mxu0 0.0
    %6975 = vmatpush1.msra.mxu0 0.0
    %6976 = vmatprep.subr.mxu0 0.0
    %6977 = vmatpush1.msra.mxu0 0.0
    %6978 = vmatprep.subr.mxu0 0.0
    %6979 = vmatpush1.msra.mxu0 0.0
    %6980 = vmatprep.subr.mxu0 0.0
    %6981 = vmatpush1.msra.mxu0 %v6213
    %6982 = vmatprep.subr.mxu0 0.0
    %6983 = vmatpush2.msra.mxu0 0.0
    %6984 = vmatprep.subr.mxu0 0.0
    %6985 = vmatpush2.msra.mxu0 0.0
    %6986 = vmatprep.subr.mxu0 0.0
    %6987 = vmatpush2.msra.mxu0 0.0
    %6988 = vmatprep.subr.mxu0 0.0
    %6989 = vmatpush2.msra.mxu0 0.0
    %6990 = vmatprep.subr.mxu0 0.0
    %6991 = vmatpush2.msra.mxu0 0.0
    %6992 = vmatprep.subr.mxu0 0.0
    %6993 = vmatpush2.msra.mxu0 0.0
    %6994 = vmatprep.subr.mxu0 0.0
    %6995 = vmatpush2.msra.mxu0 0.0
    %6996 = vmatprep.subr.mxu0 0.0
    %6997 = vmatpush2.msra.mxu0 0.0
    %6998 = vmatprep.subr.mxu0 0.0
    %6999 = vmatpush2.msra.mxu0 0.0
    %7000 = vmatprep.subr.mxu0 0.0
    %7001 = vmatpush2.msra.mxu0 0.0
    %7002 = vmatprep.subr.mxu0 0.0
    %7003 = vmatpush2.msra.mxu0 0.0
    %7004 = vmatprep.subr.mxu0 0.0
    %7005 = vmatpush2.msra.mxu0 0.0
    %7006 = vmatprep.subr.mxu0 0.0
    %7007 = vmatpush2.msra.mxu0 0.0
    %7008 = vmatprep.subr.mxu0 0.0
    %7009 = vmatpush2.msra.mxu0 0.0
    %7010 = vmatprep.subr.mxu0 0.0
    %7011 = vmatpush2.msra.mxu0 0.0
    %7012 = vmatprep.subr.mxu0 0.0
    %7013 = vmatpush2.msra.mxu0 0.0
    %7014 = vmatprep.mubr.f32.mxu0 0.0
    %7015 = vmatmul.mubr.f32.gmra.mxu0 %v6948
    %v7016 = vpop.f32.mrf.mxu0
    %v7017 = vadd.f32 0.0, %v7016
    %v7018 = vpop.f32.mrf.mxu0
    %7019 = vdwg.mxu0
    %v7021 = vsel %vm932, %v6940, 0
    %7023 = vmatprep.subr.mxu0 0.0
    %7024 = vmatpush1.msra.mxu0 0.0
    %7025 = vmatprep.subr.mxu0 0.0
    %7026 = vmatpush1.msra.mxu0 0.0
    %7027 = vmatprep.subr.mxu0 0.0
    %7028 = vmatpush1.msra.mxu0 0.0
    %7029 = vmatprep.subr.mxu0 0.0
    %7030 = vmatpush1.msra.mxu0 0.0
    %7031 = vmatprep.subr.mxu0 0.0
    %7032 = vmatpush1.msra.mxu0 0.0
    %7033 = vmatprep.subr.mxu0 0.0
    %7034 = vmatpush1.msra.mxu0 0.0
    %7035 = vmatprep.subr.mxu0 0.0
    %7036 = vmatpush1.msra.mxu0 0.0
    %7037 = vmatprep.subr.mxu0 0.0
    %7038 = vmatpush1.msra.mxu0 0.0
    %7039 = vmatprep.subr.mxu0 0.0
    %7040 = vmatpush1.msra.mxu0 0.0
    %7041 = vmatprep.subr.mxu0 0.0
    %7042 = vmatpush1.msra.mxu0 0.0
    %7043 = vmatprep.subr.mxu0 0.0
    %7044 = vmatpush1.msra.mxu0 0.0
    %7045 = vmatprep.subr.mxu0 0.0
    %7046 = vmatpush1.msra.mxu0 0.0
    %7047 = vmatprep.subr.mxu0 0.0
    %7048 = vmatpush1.msra.mxu0 0.0
    %7049 = vmatprep.subr.mxu0 0.0
    %7050 = vmatpush1.msra.mxu0 0.0
    %7051 = vmatprep.subr.mxu0 0.0
    %7052 = vmatpush1.msra.mxu0 0.0
    %7053 = vmatprep.subr.mxu0 0.0
    %7054 = vmatpush1.msra.mxu0 %v6218
    %7055 = vmatprep.subr.mxu0 0.0
    %7056 = vmatpush2.msra.mxu0 0.0
    %7057 = vmatprep.subr.mxu0 0.0
    %7058 = vmatpush2.msra.mxu0 0.0
    %7059 = vmatprep.subr.mxu0 0.0
    %7060 = vmatpush2.msra.mxu0 0.0
    %7061 = vmatprep.subr.mxu0 0.0
    %7062 = vmatpush2.msra.mxu0 0.0
    %7063 = vmatprep.subr.mxu0 0.0
    %7064 = vmatpush2.msra.mxu0 0.0
    %7065 = vmatprep.subr.mxu0 0.0
    %7066 = vmatpush2.msra.mxu0 0.0
    %7067 = vmatprep.subr.mxu0 0.0
    %7068 = vmatpush2.msra.mxu0 0.0
    %7069 = vmatprep.subr.mxu0 0.0
    %7070 = vmatpush2.msra.mxu0 0.0
    %7071 = vmatprep.subr.mxu0 0.0
    %7072 = vmatpush2.msra.mxu0 0.0
    %7073 = vmatprep.subr.mxu0 0.0
    %7074 = vmatpush2.msra.mxu0 0.0
    %7075 = vmatprep.subr.mxu0 0.0
    %7076 = vmatpush2.msra.mxu0 0.0
    %7077 = vmatprep.subr.mxu0 0.0
    %7078 = vmatpush2.msra.mxu0 0.0
    %7079 = vmatprep.subr.mxu0 0.0
    %7080 = vmatpush2.msra.mxu0 0.0
    %7081 = vmatprep.subr.mxu0 0.0
    %7082 = vmatpush2.msra.mxu0 0.0
    %7083 = vmatprep.subr.mxu0 0.0
    %7084 = vmatpush2.msra.mxu0 0.0
    %7085 = vmatprep.subr.mxu0 0.0
    %7086 = vmatpush2.msra.mxu0 0.0
    %7087 = vmatprep.mubr.f32.mxu0 0.0
    %7088 = vmatmul.mubr.f32.gmra.mxu0 %v7021
    %v7089 = vpop.f32.mrf.mxu0
    %v7090 = vadd.f32 0.0, %v7089
    %v7091 = vpop.f32.mrf.mxu0
    %7092 = vdwg.mxu0
    %v7094 = vsel %vm932, %v6941, 0
    %7096 = vmatprep.subr.mxu0 0.0
    %7097 = vmatpush1.msra.mxu0 0.0
    %7098 = vmatprep.subr.mxu0 0.0
    %7099 = vmatpush1.msra.mxu0 0.0
    %7100 = vmatprep.subr.mxu0 0.0
    %7101 = vmatpush1.msra.mxu0 0.0
    %7102 = vmatprep.subr.mxu0 0.0
    %7103 = vmatpush1.msra.mxu0 0.0
    %7104 = vmatprep.subr.mxu0 0.0
    %7105 = vmatpush1.msra.mxu0 0.0
    %7106 = vmatprep.subr.mxu0 0.0
    %7107 = vmatpush1.msra.mxu0 0.0
    %7108 = vmatprep.subr.mxu0 0.0
    %7109 = vmatpush1.msra.mxu0 0.0
    %7110 = vmatprep.subr.mxu0 0.0
    %7111 = vmatpush1.msra.mxu0 0.0
    %7112 = vmatprep.subr.mxu0 0.0
    %7113 = vmatpush1.msra.mxu0 0.0
    %7114 = vmatprep.subr.mxu0 0.0
    %7115 = vmatpush1.msra.mxu0 0.0
    %7116 = vmatprep.subr.mxu0 0.0
    %7117 = vmatpush1.msra.mxu0 0.0
    %7118 = vmatprep.subr.mxu0 0.0
    %7119 = vmatpush1.msra.mxu0 0.0
    %7120 = vmatprep.subr.mxu0 0.0
    %7121 = vmatpush1.msra.mxu0 0.0
    %7122 = vmatprep.subr.mxu0 0.0
    %7123 = vmatpush1.msra.mxu0 0.0
    %7124 = vmatprep.subr.mxu0 0.0
    %7125 = vmatpush1.msra.mxu0 0.0
    %7126 = vmatprep.subr.mxu0 0.0
    %7127 = vmatpush1.msra.mxu0 %v6223
    %7128 = vmatprep.subr.mxu0 0.0
    %7129 = vmatpush2.msra.mxu0 0.0
    %7130 = vmatprep.subr.mxu0 0.0
    %7131 = vmatpush2.msra.mxu0 0.0
    %7132 = vmatprep.subr.mxu0 0.0
    %7133 = vmatpush2.msra.mxu0 0.0
    %7134 = vmatprep.subr.mxu0 0.0
    %7135 = vmatpush2.msra.mxu0 0.0
    %7136 = vmatprep.subr.mxu0 0.0
    %7137 = vmatpush2.msra.mxu0 0.0
    %7138 = vmatprep.subr.mxu0 0.0
    %7139 = vmatpush2.msra.mxu0 0.0
    %7140 = vmatprep.subr.mxu0 0.0
    %7141 = vmatpush2.msra.mxu0 0.0
    %7142 = vmatprep.subr.mxu0 0.0
    %7143 = vmatpush2.msra.mxu0 0.0
    %7144 = vmatprep.subr.mxu0 0.0
    %7145 = vmatpush2.msra.mxu0 0.0
    %7146 = vmatprep.subr.mxu0 0.0
    %7147 = vmatpush2.msra.mxu0 0.0
    %7148 = vmatprep.subr.mxu0 0.0
    %7149 = vmatpush2.msra.mxu0 0.0
    %7150 = vmatprep.subr.mxu0 0.0
    %7151 = vmatpush2.msra.mxu0 0.0
    %7152 = vmatprep.subr.mxu0 0.0
    %7153 = vmatpush2.msra.mxu0 0.0
    %7154 = vmatprep.subr.mxu0 0.0
    %7155 = vmatpush2.msra.mxu0 0.0
    %7156 = vmatprep.subr.mxu0 0.0
    %7157 = vmatpush2.msra.mxu0 0.0
    %7158 = vmatprep.subr.mxu0 0.0
    %7159 = vmatpush2.msra.mxu0 0.0
    %7160 = vmatprep.mubr.f32.mxu0 0.0
    %7161 = vmatmul.mubr.f32.gmra.mxu0 %v7094
    %v7162 = vpop.f32.mrf.mxu0
    %v7163 = vadd.f32 0.0, %v7162
    %v7164 = vpop.f32.mrf.mxu0
    %7165 = vdwg.mxu0
    %v7167 = vsel %vm932, %v6942, 0
    %7169 = vmatprep.subr.mxu0 0.0
    %7170 = vmatpush1.msra.mxu0 0.0
    %7171 = vmatprep.subr.mxu0 0.0
    %7172 = vmatpush1.msra.mxu0 0.0
    %7173 = vmatprep.subr.mxu0 0.0
    %7174 = vmatpush1.msra.mxu0 0.0
    %7175 = vmatprep.subr.mxu0 0.0
    %7176 = vmatpush1.msra.mxu0 0.0
    %7177 = vmatprep.subr.mxu0 0.0
    %7178 = vmatpush1.msra.mxu0 0.0
    %7179 = vmatprep.subr.mxu0 0.0
    %7180 = vmatpush1.msra.mxu0 0.0
    %7181 = vmatprep.subr.mxu0 0.0
    %7182 = vmatpush1.msra.mxu0 0.0
    %7183 = vmatprep.subr.mxu0 0.0
    %7184 = vmatpush1.msra.mxu0 0.0
    %7185 = vmatprep.subr.mxu0 0.0
    %7186 = vmatpush1.msra.mxu0 0.0
    %7187 = vmatprep.subr.mxu0 0.0
    %7188 = vmatpush1.msra.mxu0 0.0
    %7189 = vmatprep.subr.mxu0 0.0
    %7190 = vmatpush1.msra.mxu0 0.0
    %7191 = vmatprep.subr.mxu0 0.0
    %7192 = vmatpush1.msra.mxu0 0.0
    %7193 = vmatprep.subr.mxu0 0.0
    %7194 = vmatpush1.msra.mxu0 0.0
    %7195 = vmatprep.subr.mxu0 0.0
    %7196 = vmatpush1.msra.mxu0 0.0
    %7197 = vmatprep.subr.mxu0 0.0
    %7198 = vmatpush1.msra.mxu0 0.0
    %7199 = vmatprep.subr.mxu0 0.0
    %7200 = vmatpush1.msra.mxu0 %v6228
    %7201 = vmatprep.subr.mxu0 0.0
    %7202 = vmatpush2.msra.mxu0 0.0
    %7203 = vmatprep.subr.mxu0 0.0
    %7204 = vmatpush2.msra.mxu0 0.0
    %7205 = vmatprep.subr.mxu0 0.0
    %7206 = vmatpush2.msra.mxu0 0.0
    %7207 = vmatprep.subr.mxu0 0.0
    %7208 = vmatpush2.msra.mxu0 0.0
    %7209 = vmatprep.subr.mxu0 0.0
    %7210 = vmatpush2.msra.mxu0 0.0
    %7211 = vmatprep.subr.mxu0 0.0
    %7212 = vmatpush2.msra.mxu0 0.0
    %7213 = vmatprep.subr.mxu0 0.0
    %7214 = vmatpush2.msra.mxu0 0.0
    %7215 = vmatprep.subr.mxu0 0.0
    %7216 = vmatpush2.msra.mxu0 0.0
    %7217 = vmatprep.subr.mxu0 0.0
    %7218 = vmatpush2.msra.mxu0 0.0
    %7219 = vmatprep.subr.mxu0 0.0
    %7220 = vmatpush2.msra.mxu0 0.0
    %7221 = vmatprep.subr.mxu0 0.0
    %7222 = vmatpush2.msra.mxu0 0.0
    %7223 = vmatprep.subr.mxu0 0.0
    %7224 = vmatpush2.msra.mxu0 0.0
    %7225 = vmatprep.subr.mxu0 0.0
    %7226 = vmatpush2.msra.mxu0 0.0
    %7227 = vmatprep.subr.mxu0 0.0
    %7228 = vmatpush2.msra.mxu0 0.0
    %7229 = vmatprep.subr.mxu0 0.0
    %7230 = vmatpush2.msra.mxu0 0.0
    %7231 = vmatprep.subr.mxu0 0.0
    %7232 = vmatpush2.msra.mxu0 0.0
    %7233 = vmatprep.mubr.f32.mxu0 0.0
    %7234 = vmatmul.mubr.f32.gmra.mxu0 %v7167
    %v7235 = vpop.f32.mrf.mxu0
    %v7236 = vadd.f32 0.0, %v7235
    %v7237 = vpop.f32.mrf.mxu0
    %7238 = vdwg.mxu0
    %v7240 = vsel %vm932, %v6943, 0
    %7242 = vmatprep.subr.mxu0 0.0
    %7243 = vmatpush1.msra.mxu0 0.0
    %7244 = vmatprep.subr.mxu0 0.0
    %7245 = vmatpush1.msra.mxu0 0.0
    %7246 = vmatprep.subr.mxu0 0.0
    %7247 = vmatpush1.msra.mxu0 0.0
    %7248 = vmatprep.subr.mxu0 0.0
    %7249 = vmatpush1.msra.mxu0 0.0
    %7250 = vmatprep.subr.mxu0 0.0
    %7251 = vmatpush1.msra.mxu0 0.0
    %7252 = vmatprep.subr.mxu0 0.0
    %7253 = vmatpush1.msra.mxu0 0.0
    %7254 = vmatprep.subr.mxu0 0.0
    %7255 = vmatpush1.msra.mxu0 0.0
    %7256 = vmatprep.subr.mxu0 0.0
    %7257 = vmatpush1.msra.mxu0 0.0
    %7258 = vmatprep.subr.mxu0 0.0
    %7259 = vmatpush1.msra.mxu0 0.0
    %7260 = vmatprep.subr.mxu0 0.0
    %7261 = vmatpush1.msra.mxu0 0.0
    %7262 = vmatprep.subr.mxu0 0.0
    %7263 = vmatpush1.msra.mxu0 0.0
    %7264 = vmatprep.subr.mxu0 0.0
    %7265 = vmatpush1.msra.mxu0 0.0
    %7266 = vmatprep.subr.mxu0 0.0
    %7267 = vmatpush1.msra.mxu0 0.0
    %7268 = vmatprep.subr.mxu0 0.0
    %7269 = vmatpush1.msra.mxu0 0.0
    %7270 = vmatprep.subr.mxu0 0.0
    %7271 = vmatpush1.msra.mxu0 0.0
    %7272 = vmatprep.subr.mxu0 0.0
    %7273 = vmatpush1.msra.mxu0 %v6233
    %7274 = vmatprep.subr.mxu0 0.0
    %7275 = vmatpush2.msra.mxu0 0.0
    %7276 = vmatprep.subr.mxu0 0.0
    %7277 = vmatpush2.msra.mxu0 0.0
    %7278 = vmatprep.subr.mxu0 0.0
    %7279 = vmatpush2.msra.mxu0 0.0
    %7280 = vmatprep.subr.mxu0 0.0
    %7281 = vmatpush2.msra.mxu0 0.0
    %7282 = vmatprep.subr.mxu0 0.0
    %7283 = vmatpush2.msra.mxu0 0.0
    %7284 = vmatprep.subr.mxu0 0.0
    %7285 = vmatpush2.msra.mxu0 0.0
    %7286 = vmatprep.subr.mxu0 0.0
    %7287 = vmatpush2.msra.mxu0 0.0
    %7288 = vmatprep.subr.mxu0 0.0
    %7289 = vmatpush2.msra.mxu0 0.0
    %7290 = vmatprep.subr.mxu0 0.0
    %7291 = vmatpush2.msra.mxu0 0.0
    %7292 = vmatprep.subr.mxu0 0.0
    %7293 = vmatpush2.msra.mxu0 0.0
    %7294 = vmatprep.subr.mxu0 0.0
    %7295 = vmatpush2.msra.mxu0 0.0
    %7296 = vmatprep.subr.mxu0 0.0
    %7297 = vmatpush2.msra.mxu0 0.0
    %7298 = vmatprep.subr.mxu0 0.0
    %7299 = vmatpush2.msra.mxu0 0.0
    %7300 = vmatprep.subr.mxu0 0.0
    %7301 = vmatpush2.msra.mxu0 0.0
    %7302 = vmatprep.subr.mxu0 0.0
    %7303 = vmatpush2.msra.mxu0 0.0
    %7304 = vmatprep.subr.mxu0 0.0
    %7305 = vmatpush2.msra.mxu0 0.0
    %7306 = vmatprep.mubr.f32.mxu0 0.0
    %7307 = vmatmul.mubr.f32.gmra.mxu0 %v7240
    %v7308 = vpop.f32.mrf.mxu0
    %v7309 = vadd.f32 0.0, %v7308
    %v7310 = vpop.f32.mrf.mxu0
    %7311 = vdwg.mxu0
    %v7313 = vsel %vm932, %v6944, 0
    %7315 = vmatprep.subr.mxu0 0.0
    %7316 = vmatpush1.msra.mxu0 0.0
    %7317 = vmatprep.subr.mxu0 0.0
    %7318 = vmatpush1.msra.mxu0 0.0
    %7319 = vmatprep.subr.mxu0 0.0
    %7320 = vmatpush1.msra.mxu0 0.0
    %7321 = vmatprep.subr.mxu0 0.0
    %7322 = vmatpush1.msra.mxu0 0.0
    %7323 = vmatprep.subr.mxu0 0.0
    %7324 = vmatpush1.msra.mxu0 0.0
    %7325 = vmatprep.subr.mxu0 0.0
    %7326 = vmatpush1.msra.mxu0 0.0
    %7327 = vmatprep.subr.mxu0 0.0
    %7328 = vmatpush1.msra.mxu0 0.0
    %7329 = vmatprep.subr.mxu0 0.0
    %7330 = vmatpush1.msra.mxu0 0.0
    %7331 = vmatprep.subr.mxu0 0.0
    %7332 = vmatpush1.msra.mxu0 0.0
    %7333 = vmatprep.subr.mxu0 0.0
    %7334 = vmatpush1.msra.mxu0 0.0
    %7335 = vmatprep.subr.mxu0 0.0
    %7336 = vmatpush1.msra.mxu0 0.0
    %7337 = vmatprep.subr.mxu0 0.0
    %7338 = vmatpush1.msra.mxu0 0.0
    %7339 = vmatprep.subr.mxu0 0.0
    %7340 = vmatpush1.msra.mxu0 0.0
    %7341 = vmatprep.subr.mxu0 0.0
    %7342 = vmatpush1.msra.mxu0 0.0
    %7343 = vmatprep.subr.mxu0 0.0
    %7344 = vmatpush1.msra.mxu0 0.0
    %7345 = vmatprep.subr.mxu0 0.0
    %7346 = vmatpush1.msra.mxu0 %v6238
    %7347 = vmatprep.subr.mxu0 0.0
    %7348 = vmatpush2.msra.mxu0 0.0
    %7349 = vmatprep.subr.mxu0 0.0
    %7350 = vmatpush2.msra.mxu0 0.0
    %7351 = vmatprep.subr.mxu0 0.0
    %7352 = vmatpush2.msra.mxu0 0.0
    %7353 = vmatprep.subr.mxu0 0.0
    %7354 = vmatpush2.msra.mxu0 0.0
    %7355 = vmatprep.subr.mxu0 0.0
    %7356 = vmatpush2.msra.mxu0 0.0
    %7357 = vmatprep.subr.mxu0 0.0
    %7358 = vmatpush2.msra.mxu0 0.0
    %7359 = vmatprep.subr.mxu0 0.0
    %7360 = vmatpush2.msra.mxu0 0.0
    %7361 = vmatprep.subr.mxu0 0.0
    %7362 = vmatpush2.msra.mxu0 0.0
    %7363 = vmatprep.subr.mxu0 0.0
    %7364 = vmatpush2.msra.mxu0 0.0
    %7365 = vmatprep.subr.mxu0 0.0
    %7366 = vmatpush2.msra.mxu0 0.0
    %7367 = vmatprep.subr.mxu0 0.0
    %7368 = vmatpush2.msra.mxu0 0.0
    %7369 = vmatprep.subr.mxu0 0.0
    %7370 = vmatpush2.msra.mxu0 0.0
    %7371 = vmatprep.subr.mxu0 0.0
    %7372 = vmatpush2.msra.mxu0 0.0
    %7373 = vmatprep.subr.mxu0 0.0
    %7374 = vmatpush2.msra.mxu0 0.0
    %7375 = vmatprep.subr.mxu0 0.0
    %7376 = vmatpush2.msra.mxu0 0.0
    %7377 = vmatprep.subr.mxu0 0.0
    %7378 = vmatpush2.msra.mxu0 0.0
    %7379 = vmatprep.mubr.f32.mxu0 0.0
    %7380 = vmatmul.mubr.f32.gmra.mxu0 %v7313
    %v7381 = vpop.f32.mrf.mxu0
    %v7382 = vadd.f32 0.0, %v7381
    %v7383 = vpop.f32.mrf.mxu0
    %7384 = vdwg.mxu0
    %v7386 = vsel %vm932, %v6945, 0
    %7388 = vmatprep.subr.mxu0 0.0
    %7389 = vmatpush1.msra.mxu0 0.0
    %7390 = vmatprep.subr.mxu0 0.0
    %7391 = vmatpush1.msra.mxu0 0.0
    %7392 = vmatprep.subr.mxu0 0.0
    %7393 = vmatpush1.msra.mxu0 0.0
    %7394 = vmatprep.subr.mxu0 0.0
    %7395 = vmatpush1.msra.mxu0 0.0
    %7396 = vmatprep.subr.mxu0 0.0
    %7397 = vmatpush1.msra.mxu0 0.0
    %7398 = vmatprep.subr.mxu0 0.0
    %7399 = vmatpush1.msra.mxu0 0.0
    %7400 = vmatprep.subr.mxu0 0.0
    %7401 = vmatpush1.msra.mxu0 0.0
    %7402 = vmatprep.subr.mxu0 0.0
    %7403 = vmatpush1.msra.mxu0 0.0
    %7404 = vmatprep.subr.mxu0 0.0
    %7405 = vmatpush1.msra.mxu0 0.0
    %7406 = vmatprep.subr.mxu0 0.0
    %7407 = vmatpush1.msra.mxu0 0.0
    %7408 = vmatprep.subr.mxu0 0.0
    %7409 = vmatpush1.msra.mxu0 0.0
    %7410 = vmatprep.subr.mxu0 0.0
    %7411 = vmatpush1.msra.mxu0 0.0
    %7412 = vmatprep.subr.mxu0 0.0
    %7413 = vmatpush1.msra.mxu0 0.0
    %7414 = vmatprep.subr.mxu0 0.0
    %7415 = vmatpush1.msra.mxu0 0.0
    %7416 = vmatprep.subr.mxu0 0.0
    %7417 = vmatpush1.msra.mxu0 0.0
    %7418 = vmatprep.subr.mxu0 0.0
    %7419 = vmatpush1.msra.mxu0 %v6243
    %7420 = vmatprep.subr.mxu0 0.0
    %7421 = vmatpush2.msra.mxu0 0.0
    %7422 = vmatprep.subr.mxu0 0.0
    %7423 = vmatpush2.msra.mxu0 0.0
    %7424 = vmatprep.subr.mxu0 0.0
    %7425 = vmatpush2.msra.mxu0 0.0
    %7426 = vmatprep.subr.mxu0 0.0
    %7427 = vmatpush2.msra.mxu0 0.0
    %7428 = vmatprep.subr.mxu0 0.0
    %7429 = vmatpush2.msra.mxu0 0.0
    %7430 = vmatprep.subr.mxu0 0.0
    %7431 = vmatpush2.msra.mxu0 0.0
    %7432 = vmatprep.subr.mxu0 0.0
    %7433 = vmatpush2.msra.mxu0 0.0
    %7434 = vmatprep.subr.mxu0 0.0
    %7435 = vmatpush2.msra.mxu0 0.0
    %7436 = vmatprep.subr.mxu0 0.0
    %7437 = vmatpush2.msra.mxu0 0.0
    %7438 = vmatprep.subr.mxu0 0.0
    %7439 = vmatpush2.msra.mxu0 0.0
    %7440 = vmatprep.subr.mxu0 0.0
    %7441 = vmatpush2.msra.mxu0 0.0
    %7442 = vmatprep.subr.mxu0 0.0
    %7443 = vmatpush2.msra.mxu0 0.0
    %7444 = vmatprep.subr.mxu0 0.0
    %7445 = vmatpush2.msra.mxu0 0.0
    %7446 = vmatprep.subr.mxu0 0.0
    %7447 = vmatpush2.msra.mxu0 0.0
    %7448 = vmatprep.subr.mxu0 0.0
    %7449 = vmatpush2.msra.mxu0 0.0
    %7450 = vmatprep.subr.mxu0 0.0
    %7451 = vmatpush2.msra.mxu0 0.0
    %7452 = vmatprep.mubr.f32.mxu0 0.0
    %7453 = vmatmul.mubr.f32.gmra.mxu0 %v7386
    %v7454 = vpop.f32.mrf.mxu0
    %v7455 = vadd.f32 0.0, %v7454
    %v7456 = vpop.f32.mrf.mxu0
    %7457 = vdwg.mxu0
    %v7459 = vsel %vm932, %v6946, 0
    %7461 = vmatprep.subr.mxu0 0.0
    %7462 = vmatpush1.msra.mxu0 0.0
    %7463 = vmatprep.subr.mxu0 0.0
    %7464 = vmatpush1.msra.mxu0 0.0
    %7465 = vmatprep.subr.mxu0 0.0
    %7466 = vmatpush1.msra.mxu0 0.0
    %7467 = vmatprep.subr.mxu0 0.0
    %7468 = vmatpush1.msra.mxu0 0.0
    %7469 = vmatprep.subr.mxu0 0.0
    %7470 = vmatpush1.msra.mxu0 0.0
    %7471 = vmatprep.subr.mxu0 0.0
    %7472 = vmatpush1.msra.mxu0 0.0
    %7473 = vmatprep.subr.mxu0 0.0
    %7474 = vmatpush1.msra.mxu0 0.0
    %7475 = vmatprep.subr.mxu0 0.0
    %7476 = vmatpush1.msra.mxu0 0.0
    %7477 = vmatprep.subr.mxu0 0.0
    %7478 = vmatpush1.msra.mxu0 0.0
    %7479 = vmatprep.subr.mxu0 0.0
    %7480 = vmatpush1.msra.mxu0 0.0
    %7481 = vmatprep.subr.mxu0 0.0
    %7482 = vmatpush1.msra.mxu0 0.0
    %7483 = vmatprep.subr.mxu0 0.0
    %7484 = vmatpush1.msra.mxu0 0.0
    %7485 = vmatprep.subr.mxu0 0.0
    %7486 = vmatpush1.msra.mxu0 0.0
    %7487 = vmatprep.subr.mxu0 0.0
    %7488 = vmatpush1.msra.mxu0 0.0
    %7489 = vmatprep.subr.mxu0 0.0
    %7490 = vmatpush1.msra.mxu0 0.0
    %7491 = vmatprep.subr.mxu0 0.0
    %7492 = vmatpush1.msra.mxu0 %v6248
    %7493 = vmatprep.subr.mxu0 0.0
    %7494 = vmatpush2.msra.mxu0 0.0
    %7495 = vmatprep.subr.mxu0 0.0
    %7496 = vmatpush2.msra.mxu0 0.0
    %7497 = vmatprep.subr.mxu0 0.0
    %7498 = vmatpush2.msra.mxu0 0.0
    %7499 = vmatprep.subr.mxu0 0.0
    %7500 = vmatpush2.msra.mxu0 0.0
    %7501 = vmatprep.subr.mxu0 0.0
    %7502 = vmatpush2.msra.mxu0 0.0
    %7503 = vmatprep.subr.mxu0 0.0
    %7504 = vmatpush2.msra.mxu0 0.0
    %7505 = vmatprep.subr.mxu0 0.0
    %7506 = vmatpush2.msra.mxu0 0.0
    %7507 = vmatprep.subr.mxu0 0.0
    %7508 = vmatpush2.msra.mxu0 0.0
    %7509 = vmatprep.subr.mxu0 0.0
    %7510 = vmatpush2.msra.mxu0 0.0
    %7511 = vmatprep.subr.mxu0 0.0
    %7512 = vmatpush2.msra.mxu0 0.0
    %7513 = vmatprep.subr.mxu0 0.0
    %7514 = vmatpush2.msra.mxu0 0.0
    %7515 = vmatprep.subr.mxu0 0.0
    %7516 = vmatpush2.msra.mxu0 0.0
    %7517 = vmatprep.subr.mxu0 0.0
    %7518 = vmatpush2.msra.mxu0 0.0
    %7519 = vmatprep.subr.mxu0 0.0
    %7520 = vmatpush2.msra.mxu0 0.0
    %7521 = vmatprep.subr.mxu0 0.0
    %7522 = vmatpush2.msra.mxu0 0.0
    %7523 = vmatprep.subr.mxu0 0.0
    %7524 = vmatpush2.msra.mxu0 0.0
    %7525 = vmatprep.mubr.f32.mxu0 0.0
    %7526 = vmatmul.mubr.f32.gmra.mxu0 %v7459
    %v7527 = vpop.f32.mrf.mxu0
    %v7528 = vadd.f32 0.0, %v7527
    %v7529 = vpop.f32.mrf.mxu0
    %7530 = vdwg.mxu0
    %s7531 = scalar_lea.vmem %s10, 24
    %v7532 = vld [vmem:[%s7531] sm:$0xff]
    %v7534 = vsel %vm932, %v7017, 0
    %v7537 = vsel %vm932, %v7090, 0
    %v7540 = vsel %vm932, %v7163, 0
    %v7543 = vsel %vm932, %v7236, 0
    %v7546 = vsel %vm932, %v7309, 0
    %v7549 = vsel %vm932, %v7382, 0
    %v7552 = vsel %vm932, %v7455, 0
    %v7555 = vsel %vm932, %v7528, 0
    %7557 = vmatprep.subr.mxu0 0.0
    %7558 = vmatpush1.msra.mxu0 0.0
    %7559 = vmatprep.subr.mxu0 0.0
    %7560 = vmatpush1.msra.mxu0 0.0
    %7561 = vmatprep.subr.mxu0 0.0
    %7562 = vmatpush1.msra.mxu0 0.0
    %7563 = vmatprep.subr.mxu0 0.0
    %7564 = vmatpush1.msra.mxu0 0.0
    %7565 = vmatprep.subr.mxu0 0.0
    %7566 = vmatpush1.msra.mxu0 0.0
    %7567 = vmatprep.subr.mxu0 0.0
    %7568 = vmatpush1.msra.mxu0 0.0
    %7569 = vmatprep.subr.mxu0 0.0
    %7570 = vmatpush1.msra.mxu0 0.0
    %7571 = vmatprep.subr.mxu0 0.0
    %7572 = vmatpush1.msra.mxu0 0.0
    %7573 = vmatprep.subr.mxu0 0.0
    %7574 = vmatpush1.msra.mxu0 0.0
    %7575 = vmatprep.subr.mxu0 0.0
    %7576 = vmatpush1.msra.mxu0 0.0
    %7577 = vmatprep.subr.mxu0 0.0
    %7578 = vmatpush1.msra.mxu0 0.0
    %7579 = vmatprep.subr.mxu0 0.0
    %7580 = vmatpush1.msra.mxu0 0.0
    %7581 = vmatprep.subr.mxu0 0.0
    %7582 = vmatpush1.msra.mxu0 0.0
    %7583 = vmatprep.subr.mxu0 0.0
    %7584 = vmatpush1.msra.mxu0 0.0
    %7585 = vmatprep.subr.mxu0 0.0
    %7586 = vmatpush1.msra.mxu0 0.0
    %7587 = vmatprep.subr.mxu0 0.0
    %7588 = vmatpush1.msra.mxu0 %v7532
    %7589 = vmatprep.subr.mxu0 0.0
    %7590 = vmatpush2.msra.mxu0 0.0
    %7591 = vmatprep.subr.mxu0 0.0
    %7592 = vmatpush2.msra.mxu0 0.0
    %7593 = vmatprep.subr.mxu0 0.0
    %7594 = vmatpush2.msra.mxu0 0.0
    %7595 = vmatprep.subr.mxu0 0.0
    %7596 = vmatpush2.msra.mxu0 0.0
    %7597 = vmatprep.subr.mxu0 0.0
    %7598 = vmatpush2.msra.mxu0 0.0
    %7599 = vmatprep.subr.mxu0 0.0
    %7600 = vmatpush2.msra.mxu0 0.0
    %7601 = vmatprep.subr.mxu0 0.0
    %7602 = vmatpush2.msra.mxu0 0.0
    %7603 = vmatprep.subr.mxu0 0.0
    %7604 = vmatpush2.msra.mxu0 0.0
    %7605 = vmatprep.subr.mxu0 0.0
    %7606 = vmatpush2.msra.mxu0 0.0
    %7607 = vmatprep.subr.mxu0 0.0
    %7608 = vmatpush2.msra.mxu0 0.0
    %7609 = vmatprep.subr.mxu0 0.0
    %7610 = vmatpush2.msra.mxu0 0.0
    %7611 = vmatprep.subr.mxu0 0.0
    %7612 = vmatpush2.msra.mxu0 0.0
    %7613 = vmatprep.subr.mxu0 0.0
    %7614 = vmatpush2.msra.mxu0 0.0
    %7615 = vmatprep.subr.mxu0 0.0
    %7616 = vmatpush2.msra.mxu0 0.0
    %7617 = vmatprep.subr.mxu0 0.0
    %7618 = vmatpush2.msra.mxu0 0.0
    %7619 = vmatprep.subr.mxu0 0.0
    %7620 = vmatpush2.msra.mxu0 0.0
    %7621 = vmatprep.mubr.f32.mxu0 0.0
    %7622 = vmatmul.mubr.f32.gmra.mxu0 %v7534
    %v7623 = vpop.f32.mrf.mxu0
    %v7624 = vadd.f32 0.0, %v7623
    %v7625 = vpop.f32.mrf.mxu0
    %7626 = vmatprep.mubr.f32.mxu0 0.0
    %7627 = vmatmul.mubr.f32.gmra.mxu0 %v7537
    %v7628 = vpop.f32.mrf.mxu0
    %v7629 = vadd.f32 0.0, %v7628
    %v7630 = vpop.f32.mrf.mxu0
    %7631 = vmatprep.mubr.f32.mxu0 0.0
    %7632 = vmatmul.mubr.f32.gmra.mxu0 %v7540
    %v7633 = vpop.f32.mrf.mxu0
    %v7634 = vadd.f32 0.0, %v7633
    %v7635 = vpop.f32.mrf.mxu0
    %7636 = vmatprep.mubr.f32.mxu0 0.0
    %7637 = vmatmul.mubr.f32.gmra.mxu0 %v7543
    %v7638 = vpop.f32.mrf.mxu0
    %v7639 = vadd.f32 0.0, %v7638
    %v7640 = vpop.f32.mrf.mxu0
    %7641 = vmatprep.mubr.f32.mxu0 0.0
    %7642 = vmatmul.mubr.f32.gmra.mxu0 %v7546
    %v7643 = vpop.f32.mrf.mxu0
    %v7644 = vadd.f32 0.0, %v7643
    %v7645 = vpop.f32.mrf.mxu0
    %7646 = vmatprep.mubr.f32.mxu0 0.0
    %7647 = vmatmul.mubr.f32.gmra.mxu0 %v7549
    %v7648 = vpop.f32.mrf.mxu0
    %v7649 = vadd.f32 0.0, %v7648
    %v7650 = vpop.f32.mrf.mxu0
    %7651 = vmatprep.mubr.f32.mxu0 0.0
    %7652 = vmatmul.mubr.f32.gmra.mxu0 %v7552
    %v7653 = vpop.f32.mrf.mxu0
    %v7654 = vadd.f32 0.0, %v7653
    %v7655 = vpop.f32.mrf.mxu0
    %7656 = vmatprep.mubr.f32.mxu0 0.0
    %7657 = vmatmul.mubr.f32.gmra.mxu0 %v7555
    %v7658 = vpop.f32.mrf.mxu0
    %v7659 = vadd.f32 0.0, %v7658
    %v7660 = vpop.f32.mrf.mxu0
    %7661 = vdwg.mxu0
    %v7662 = vadd.f32 %v5889, %v7624
    %v7663 = vadd.f32 %v5890, %v7629
    %v7664 = vadd.f32 %v5891, %v7634
    %v7665 = vadd.f32 %v5892, %v7639
    %v7666 = vadd.f32 %v5893, %v7644
    %v7667 = vadd.f32 %v5894, %v7649
    %v7668 = vadd.f32 %v5895, %v7654
    %v7669 = vadd.f32 %v5896, %v7659
    %v7670 = vsel %vm522, %v7662, 0.0
    %7671 = vadd.xlane.f32.xlu0 %v7670
    %v7672 = vpop.xlane.xlu0 %7671
    %v7673 = vsel %vm522, %v7663, 0.0
    %7674 = vadd.xlane.f32.xlu0 %v7673
    %v7675 = vpop.xlane.xlu0 %7674
    %v7676 = vsel %vm522, %v7664, 0.0
    %7677 = vadd.xlane.f32.xlu0 %v7676
    %v7678 = vpop.xlane.xlu0 %7677
    %v7679 = vsel %vm522, %v7665, 0.0
    %7680 = vadd.xlane.f32.xlu0 %v7679
    %v7681 = vpop.xlane.xlu0 %7680
    %v7682 = vsel %vm522, %v7666, 0.0
    %7683 = vadd.xlane.f32.xlu0 %v7682
    %v7684 = vpop.xlane.xlu0 %7683
    %v7685 = vsel %vm522, %v7667, 0.0
    %7686 = vadd.xlane.f32.xlu0 %v7685
    %v7687 = vpop.xlane.xlu0 %7686
    %v7688 = vsel %vm522, %v7668, 0.0
    %7689 = vadd.xlane.f32.xlu0 %v7688
    %v7690 = vpop.xlane.xlu0 %7689
    %v7691 = vsel %vm522, %v7669, 0.0
    %7692 = vadd.xlane.f32.xlu0 %v7691
    %v7693 = vpop.xlane.xlu0 %7692
    %v7694 = vrcp.pop 32.0
    %v7695 = vmul.f32 %v7672, %v7694
    %v7696 = vmul.f32 %v7675, %v7694
    %v7697 = vmul.f32 %v7678, %v7694
    %v7698 = vmul.f32 %v7681, %v7694
    %v7699 = vmul.f32 %v7684, %v7694
    %v7700 = vmul.f32 %v7687, %v7694
    %v7701 = vmul.f32 %v7690, %v7694
    %v7702 = vmul.f32 %v7693, %v7694
    %v7703 = vsub.f32 %v7662, %v7695
    %v7704 = vsub.f32 %v7663, %v7696
    %v7705 = vsub.f32 %v7664, %v7697
    %v7706 = vsub.f32 %v7665, %v7698
    %v7707 = vsub.f32 %v7666, %v7699
    %v7708 = vsub.f32 %v7667, %v7700
    %v7709 = vsub.f32 %v7668, %v7701
    %v7710 = vsub.f32 %v7669, %v7702
    %v7711 = vmul.f32 %v7703, %v7703
    %v7712 = vmul.f32 %v7704, %v7704
    %v7713 = vmul.f32 %v7705, %v7705
    %v7714 = vmul.f32 %v7706, %v7706
    %v7715 = vmul.f32 %v7707, %v7707
    %v7716 = vmul.f32 %v7708, %v7708
    %v7717 = vmul.f32 %v7709, %v7709
    %v7718 = vmul.f32 %v7710, %v7710
    %v7719 = vsel %vm522, %v7711, 0.0
    %7720 = vadd.xlane.f32.xlu0 %v7719
    %v7721 = vpop.xlane.xlu0 %7720
    %v7722 = vsel %vm522, %v7712, 0.0
    %7723 = vadd.xlane.f32.xlu0 %v7722
    %v7724 = vpop.xlane.xlu0 %7723
    %v7725 = vsel %vm522, %v7713, 0.0
    %7726 = vadd.xlane.f32.xlu0 %v7725
    %v7727 = vpop.xlane.xlu0 %7726
    %v7728 = vsel %vm522, %v7714, 0.0
    %7729 = vadd.xlane.f32.xlu0 %v7728
    %v7730 = vpop.xlane.xlu0 %7729
    %v7731 = vsel %vm522, %v7715, 0.0
    %7732 = vadd.xlane.f32.xlu0 %v7731
    %v7733 = vpop.xlane.xlu0 %7732
    %v7734 = vsel %vm522, %v7716, 0.0
    %7735 = vadd.xlane.f32.xlu0 %v7734
    %v7736 = vpop.xlane.xlu0 %7735
    %v7737 = vsel %vm522, %v7717, 0.0
    %7738 = vadd.xlane.f32.xlu0 %v7737
    %v7739 = vpop.xlane.xlu0 %7738
    %v7740 = vsel %vm522, %v7718, 0.0
    %7741 = vadd.xlane.f32.xlu0 %v7740
    %v7742 = vpop.xlane.xlu0 %7741
    %v7743 = vmul.f32 %v7721, %v7694
    %v7744 = vmul.f32 %v7724, %v7694
    %v7745 = vmul.f32 %v7727, %v7694
    %v7746 = vmul.f32 %v7730, %v7694
    %v7747 = vmul.f32 %v7733, %v7694
    %v7748 = vmul.f32 %v7736, %v7694
    %v7749 = vmul.f32 %v7739, %v7694
    %v7750 = vmul.f32 %v7742, %v7694
    %v7751 = vadd.f32 %v7743, 1e-12
    %v7752 = vadd.f32 %v7744, 1e-12
    %v7753 = vadd.f32 %v7745, 1e-12
    %v7754 = vadd.f32 %v7746, 1e-12
    %v7755 = vadd.f32 %v7747, 1e-12
    %v7756 = vadd.f32 %v7748, 1e-12
    %v7757 = vadd.f32 %v7749, 1e-12
    %v7758 = vadd.f32 %v7750, 1e-12
    %v7759 = vrsqrt.pop %v7751
    %v7760 = vrsqrt.pop %v7752
    %v7761 = vrsqrt.pop %v7753
    %v7762 = vrsqrt.pop %v7754
    %v7763 = vrsqrt.pop %v7755
    %v7764 = vrsqrt.pop %v7756
    %v7765 = vrsqrt.pop %v7757
    %v7766 = vrsqrt.pop %v7758
    %v7767 = vmul.f32 %v7703, %v7759
    %v7768 = vmul.f32 %v7704, %v7760
    %v7769 = vmul.f32 %v7705, %v7761
    %v7770 = vmul.f32 %v7706, %v7762
    %v7771 = vmul.f32 %v7707, %v7763
    %v7772 = vmul.f32 %v7708, %v7764
    %v7773 = vmul.f32 %v7709, %v7765
    %v7774 = vmul.f32 %v7710, %v7766
    %v7775 = vld [vmem:[%s12] sm:$0x1]
    %v7777 = vlaneseq
    %v7778 = vshrl.u32 %v7777, 7
    %v7779 = vsub.s32 0, %v7778
    %v7780 = vrot.slane %v7775, %v7779
    %v7782 = vmul.f32 %v7767, %v7780
    %v7783 = vmul.f32 %v7768, %v7780
    %v7784 = vmul.f32 %v7769, %v7780
    %v7785 = vmul.f32 %v7770, %v7780
    %v7786 = vmul.f32 %v7771, %v7780
    %v7787 = vmul.f32 %v7772, %v7780
    %v7788 = vmul.f32 %v7773, %v7780
    %v7789 = vmul.f32 %v7774, %v7780
    %v7790 = vld [vmem:[%s13] sm:$0x1]
    %v7792 = vlaneseq
    %v7793 = vshrl.u32 %v7792, 7
    %v7794 = vsub.s32 0, %v7793
    %v7795 = vrot.slane %v7790, %v7794
    %v7797 = vadd.f32 %v7782, %v7795
    %v7798 = vadd.f32 %v7783, %v7795
    %v7799 = vadd.f32 %v7784, %v7795
    %v7800 = vadd.f32 %v7785, %v7795
    %v7801 = vadd.f32 %v7786, %v7795
    %v7802 = vadd.f32 %v7787, %v7795
    %v7803 = vadd.f32 %v7788, %v7795
    %v7804 = vadd.f32 %v7789, %v7795
    %v7805 = vld [vmem:[%s3] sm:$0xff]
    %v7806 = vld [vmem:[%s3 + $0x8] sm:$0xff]
    %v7807 = vld [vmem:[%s3 + $0x10] sm:$0xff]
    %v7808 = vld [vmem:[%s3 + $0x18] sm:$0xff]
    %v7809 = vld [vmem:[%s3 + $0x20] sm:$0xff]
    %v7810 = vld [vmem:[%s3 + $0x28] sm:$0xff]
    %v7811 = vld [vmem:[%s3 + $0x30] sm:$0xff]
    %v7812 = vld [vmem:[%s3 + $0x38] sm:$0xff]
    %7814 = vset.pattern.permute.xlu0 0
    %7815 = vperm.xlu0 %7814, %v7805
    %v7816 = vpop.permute.xlu0 %7815
    %7819 = vset.pattern.permute.xlu0 0
    %7820 = vperm.xlu0 %7819, %v7806
    %v7821 = vpop.permute.xlu0 %7820
    %7824 = vset.pattern.permute.xlu0 0
    %7825 = vperm.xlu0 %7824, %v7807
    %v7826 = vpop.permute.xlu0 %7825
    %7829 = vset.pattern.permute.xlu0 0
    %7830 = vperm.xlu0 %7829, %v7808
    %v7831 = vpop.permute.xlu0 %7830
    %7834 = vset.pattern.permute.xlu0 0
    %7835 = vperm.xlu0 %7834, %v7809
    %v7836 = vpop.permute.xlu0 %7835
    %7839 = vset.pattern.permute.xlu0 0
    %7840 = vperm.xlu0 %7839, %v7810
    %v7841 = vpop.permute.xlu0 %7840
    %7844 = vset.pattern.permute.xlu0 0
    %7845 = vperm.xlu0 %7844, %v7811
    %v7846 = vpop.permute.xlu0 %7845
    %7849 = vset.pattern.permute.xlu0 0
    %7850 = vperm.xlu0 %7849, %v7812
    %v7851 = vpop.permute.xlu0 %7850
    %v7853 = vmul.f32 %v7797, %v7816
    %v7854 = vmul.f32 %v7798, %v7821
    %v7855 = vmul.f32 %v7799, %v7826
    %v7856 = vmul.f32 %v7800, %v7831
    %v7857 = vmul.f32 %v7801, %v7836
    %v7858 = vmul.f32 %v7802, %v7841
    %v7859 = vmul.f32 %v7803, %v7846
    %v7860 = vmul.f32 %v7804, %v7851
    %v7861 = vsel %vm522, %v7853, 0.0
    %v7862 = vrot.slane %v7861, 4
    %v7863 = vadd.f32 %v7861, %v7862
    %v7864 = vrot.slane %v7863, 2
    %v7865 = vadd.f32 %v7863, %v7864
    %v7866 = vrot.slane %v7865, 1
    %v7867 = vadd.f32 %v7865, %v7866
    %v7868 = vsel %vm522, %v7854, 0.0
    %v7869 = vrot.slane %v7868, 4
    %v7870 = vadd.f32 %v7868, %v7869
    %v7871 = vrot.slane %v7870, 2
    %v7872 = vadd.f32 %v7870, %v7871
    %v7873 = vrot.slane %v7872, 1
    %v7874 = vadd.f32 %v7872, %v7873
    %v7875 = vsel %vm522, %v7855, 0.0
    %v7876 = vrot.slane %v7875, 4
    %v7877 = vadd.f32 %v7875, %v7876
    %v7878 = vrot.slane %v7877, 2
    %v7879 = vadd.f32 %v7877, %v7878
    %v7880 = vrot.slane %v7879, 1
    %v7881 = vadd.f32 %v7879, %v7880
    %v7882 = vsel %vm522, %v7856, 0.0
    %v7883 = vrot.slane %v7882, 4
    %v7884 = vadd.f32 %v7882, %v7883
    %v7885 = vrot.slane %v7884, 2
    %v7886 = vadd.f32 %v7884, %v7885
    %v7887 = vrot.slane %v7886, 1
    %v7888 = vadd.f32 %v7886, %v7887
    %v7889 = vsel %vm522, %v7857, 0.0
    %v7890 = vrot.slane %v7889, 4
    %v7891 = vadd.f32 %v7889, %v7890
    %v7892 = vrot.slane %v7891, 2
    %v7893 = vadd.f32 %v7891, %v7892
    %v7894 = vrot.slane %v7893, 1
    %v7895 = vadd.f32 %v7893, %v7894
    %v7896 = vsel %vm522, %v7858, 0.0
    %v7897 = vrot.slane %v7896, 4
    %v7898 = vadd.f32 %v7896, %v7897
    %v7899 = vrot.slane %v7898, 2
    %v7900 = vadd.f32 %v7898, %v7899
    %v7901 = vrot.slane %v7900, 1
    %v7902 = vadd.f32 %v7900, %v7901
    %v7903 = vsel %vm522, %v7859, 0.0
    %v7904 = vrot.slane %v7903, 4
    %v7905 = vadd.f32 %v7903, %v7904
    %v7906 = vrot.slane %v7905, 2
    %v7907 = vadd.f32 %v7905, %v7906
    %v7908 = vrot.slane %v7907, 1
    %v7909 = vadd.f32 %v7907, %v7908
    %v7910 = vsel %vm522, %v7860, 0.0
    %v7911 = vrot.slane %v7910, 4
    %v7912 = vadd.f32 %v7910, %v7911
    %v7913 = vrot.slane %v7912, 2
    %v7914 = vadd.f32 %v7912, %v7913
    %v7915 = vrot.slane %v7914, 1
    %v7916 = vadd.f32 %v7914, %v7915
    %vm7917 = vcmask 7168
    %v7918 = vsel %vm7917, %v7805, 0.0
    %v7919 = vrot.slane %v7918, 4
    %v7920 = vadd.f32 %v7918, %v7919
    %v7921 = vrot.slane %v7920, 2
    %v7922 = vadd.f32 %v7920, %v7921
    %v7923 = vrot.slane %v7922, 1
    %v7924 = vadd.f32 %v7922, %v7923
    %v7925 = vsel %vm7917, %v7806, 0.0
    %v7926 = vrot.slane %v7925, 4
    %v7927 = vadd.f32 %v7925, %v7926
    %v7928 = vrot.slane %v7927, 2
    %v7929 = vadd.f32 %v7927, %v7928
    %v7930 = vrot.slane %v7929, 1
    %v7931 = vadd.f32 %v7929, %v7930
    %v7932 = vsel %vm7917, %v7807, 0.0
    %v7933 = vrot.slane %v7932, 4
    %v7934 = vadd.f32 %v7932, %v7933
    %v7935 = vrot.slane %v7934, 2
    %v7936 = vadd.f32 %v7934, %v7935
    %v7937 = vrot.slane %v7936, 1
    %v7938 = vadd.f32 %v7936, %v7937
    %v7939 = vsel %vm7917, %v7808, 0.0
    %v7940 = vrot.slane %v7939, 4
    %v7941 = vadd.f32 %v7939, %v7940
    %v7942 = vrot.slane %v7941, 2
    %v7943 = vadd.f32 %v7941, %v7942
    %v7944 = vrot.slane %v7943, 1
    %v7945 = vadd.f32 %v7943, %v7944
    %v7946 = vsel %vm7917, %v7809, 0.0
    %v7947 = vrot.slane %v7946, 4
    %v7948 = vadd.f32 %v7946, %v7947
    %v7949 = vrot.slane %v7948, 2
    %v7950 = vadd.f32 %v7948, %v7949
    %v7951 = vrot.slane %v7950, 1
    %v7952 = vadd.f32 %v7950, %v7951
    %v7953 = vsel %vm7917, %v7810, 0.0
    %v7954 = vrot.slane %v7953, 4
    %v7955 = vadd.f32 %v7953, %v7954
    %v7956 = vrot.slane %v7955, 2
    %v7957 = vadd.f32 %v7955, %v7956
    %v7958 = vrot.slane %v7957, 1
    %v7959 = vadd.f32 %v7957, %v7958
    %v7960 = vsel %vm7917, %v7811, 0.0
    %v7961 = vrot.slane %v7960, 4
    %v7962 = vadd.f32 %v7960, %v7961
    %v7963 = vrot.slane %v7962, 2
    %v7964 = vadd.f32 %v7962, %v7963
    %v7965 = vrot.slane %v7964, 1
    %v7966 = vadd.f32 %v7964, %v7965
    %v7967 = vsel %vm7917, %v7812, 0.0
    %v7968 = vrot.slane %v7967, 4
    %v7969 = vadd.f32 %v7967, %v7968
    %v7970 = vrot.slane %v7969, 2
    %v7971 = vadd.f32 %v7969, %v7970
    %v7972 = vrot.slane %v7971, 1
    %v7973 = vadd.f32 %v7971, %v7972
    %v7974 = vmax.f32 %v7924, 1e-09
    %v7975 = vmax.f32 %v7931, 1e-09
    %v7976 = vmax.f32 %v7938, 1e-09
    %v7977 = vmax.f32 %v7945, 1e-09
    %v7978 = vmax.f32 %v7952, 1e-09
    %v7979 = vmax.f32 %v7959, 1e-09
    %v7980 = vmax.f32 %v7966, 1e-09
    %v7981 = vmax.f32 %v7973, 1e-09
    %v7982 = vrcp.pop %v7974
    %v7983 = vrcp.pop %v7975
    %v7984 = vrcp.pop %v7976
    %v7985 = vrcp.pop %v7977
    %v7986 = vrcp.pop %v7978
    %v7987 = vrcp.pop %v7979
    %v7988 = vrcp.pop %v7980
    %v7989 = vrcp.pop %v7981
    %7991 = vset.pattern.permute.xlu0 0
    %7992 = vperm.xlu0 %7991, %v7982
    %v7993 = vpop.permute.xlu0 %7992
    %7996 = vset.pattern.permute.xlu0 0
    %7997 = vperm.xlu0 %7996, %v7983
    %v7998 = vpop.permute.xlu0 %7997
    %8001 = vset.pattern.permute.xlu0 0
    %8002 = vperm.xlu0 %8001, %v7984
    %v8003 = vpop.permute.xlu0 %8002
    %8006 = vset.pattern.permute.xlu0 0
    %8007 = vperm.xlu0 %8006, %v7985
    %v8008 = vpop.permute.xlu0 %8007
    %8011 = vset.pattern.permute.xlu0 0
    %8012 = vperm.xlu0 %8011, %v7986
    %v8013 = vpop.permute.xlu0 %8012
    %8016 = vset.pattern.permute.xlu0 0
    %8017 = vperm.xlu0 %8016, %v7987
    %v8018 = vpop.permute.xlu0 %8017
    %8021 = vset.pattern.permute.xlu0 0
    %8022 = vperm.xlu0 %8021, %v7988
    %v8023 = vpop.permute.xlu0 %8022
    %8026 = vset.pattern.permute.xlu0 0
    %8027 = vperm.xlu0 %8026, %v7989
    %v8028 = vpop.permute.xlu0 %8027
    %v8030 = vmul.f32 %v7867, %v7993
    %v8031 = vmul.f32 %v7874, %v7998
    %v8032 = vmul.f32 %v7881, %v8003
    %v8033 = vmul.f32 %v7888, %v8008
    %v8034 = vmul.f32 %v7895, %v8013
    %v8035 = vmul.f32 %v7902, %v8018
    %v8036 = vmul.f32 %v7909, %v8023
    %v8037 = vmul.f32 %v7916, %v8028
    %vm8046 = vcmask 1041409
    %v8047 = vsel %vm8046, %v8031, %v8030
    %vm8048 = vcmask 1042434
    %v8049 = vsel %vm8048, %v8032, %v8047
    %vm8050 = vcmask 1043459
    %v8051 = vsel %vm8050, %v8033, %v8049
    %vm8052 = vcmask 1044484
    %v8053 = vsel %vm8052, %v8034, %v8051
    %vm8054 = vcmask 1045509
    %v8055 = vsel %vm8054, %v8035, %v8053
    %vm8056 = vcmask 1046534
    %v8057 = vsel %vm8056, %v8036, %v8055
    %vm8058 = vcmask 1047559
    %v8059 = vsel %vm8058, %v8037, %v8057
    %8061 = vst.msk [vmem:[#allocation5] sm:$0xff] %vm522, %v8059
    // Predicated region
    $region62: #{tpu_custom_call.1} parent=1 // pred_check
      _
    $region63: #{tpu_custom_call.1} parent=1 // pred_check_branch
      %8063 = sbr.rel (0) target = $region65
    $region64: #{tpu_custom_call.1} parent=1 // pred_region
      %s8065 = ssub.s32 128, 128
      %8066 = vsyncadd [#allocation3], %s8065
      %s8068 = sshll.u32 [#allocation5], 4
      %s8069 = int_to_ptr.vmem [resolvable:$true] %s8068
      %8071 = dma.vmem_to_hbm [thread:$0]  %s8069, 128, %s14, [#allocation3]
    $region65: #{tpu_custom_call.1} parent=1 // pred_fallthru
      _
    // Predicated region
    $region66: #{tpu_custom_call.1} parent=1 // pred_check
      _
    $region67: #{tpu_custom_call.1} parent=1 // pred_check_branch
      %8073 = sbr.rel (0) target = $region69
    $region68: #{tpu_custom_call.1} parent=1 // pred_region
      %8074 = dma.done [#allocation3], 128
    $region69: #{tpu_custom_call.1} parent=1 // pred_fallthru
      _
    %8075 = vsyncpa [#allocation3], 1
    %8076 = vsyncpa [#allocation4], 1

</llo_original>
